<compile_context>
chip_gen: v7x
topology: tpu7x:2x2x1
jax: 0.10.0
libtpu: 0.0.40
codegen_flags: <defaults>
</compile_context>

<pallas_src>
import functools

import jax
import jax.numpy as jnp
from jax import lax
from jax.experimental import pallas as pl
from jax.experimental.pallas import tpu as pltpu

SHIFT_SIZE = 5
PAD = SHIFT_SIZE // 2            # 2
INV_SQRT2 = 0.7071067811865476


def _gelu_exact(v):
    # torch nn.GELU default: exact erf formulation
    return 0.5 * v * (1.0 + lax.erf(v * INV_SQRT2))


# ----------------------------------------------------------------------------
# Fused kernel builder: dwconv3x3x3 + GELU + [shift(H), fc1, shift(W), fc2,
# shift(D), fc3].  One grid step == one batch element, full volume in VMEM.
# ----------------------------------------------------------------------------
def _make_kernel(H, W, D, C, use_roll, roll_sign):
    N = H * W * D

    def kernel(x_ref, m_ref, wdw_ref, bdw_ref,
               w1_ref, b1_ref, w2_ref, b2_ref, w3_ref, b3_ref,
               o_ref, xpad_ref):
        # x_ref  : (1, H, W, D, C)   unpadded input block
        # m_ref  : (SHIFT_SIZE, C)   channel-group masks (group g <-> shift g-2)
        # wdw_ref: (3, 3, 3, C)      depthwise taps (torch (C,1,3,3,3) chan-last)
        # w*_ref : (C, C) bf16       fc weights (in,out); b*_ref: (1, C) f32
        # o_ref  : (1, N, C)
        # xpad_ref: VMEM (H+2, W+2, D, C) f32 scratch (H/W halo only)

        def shift_d(v, s, chan_mask=None):
            # out[..., d, c] = v[..., d - s, c]  (zero outside [0, D)),
            # optionally multiplied by a per-channel mask.
            if use_roll:
                if s == 0 and chan_mask is None:
                    return v
                amt = (roll_sign * s) % D
                r = pltpu.roll(v, amt, axis=2) if amt != 0 else v
                d_iota = lax.broadcasted_iota(jnp.int32, (D, C), 0)
                valid = jnp.logical_and(d_iota >= s, d_iota < D + s)
                if chan_mask is None:
                    m = valid.astype(v.dtype)
                else:
                    m = jnp.where(valid, chan_mask, 0.0).astype(v.dtype)
                return r * m
            # fallback: zero-filled shift via slice + concat (no XLU rotate)
            if s == 0:
                r = v
            elif s > 0:
                z = jnp.zeros(v.shape[:2] + (s, C), v.dtype)
                r = jnp.concatenate(
                    [z, lax.slice_in_dim(v, 0, D - s, axis=2)], axis=2)
            else:
                z = jnp.zeros(v.shape[:2] + (-s, C), v.dtype)
                r = jnp.concatenate(
                    [lax.slice_in_dim(v, -s, D, axis=2), z], axis=2)
            return r if chan_mask is None else r * chan_mask

        # ---- halo-padded input copy (VMEM only; no HBM pad pass) ------------
        xpad_ref[...] = jnp.zeros(xpad_ref.shape, xpad_ref.dtype)
        xpad_ref[1:H + 1, 1:W + 1, :, :] = x_ref[0]

        # ---- depthwise 3x3x3 conv + bias + exact GELU -----------------------
        wdw = wdw_ref[...]                      # (3, 3, 3, C), loaded once
        pk = [None, None, None]                 # partial sums per D-tap k
        for i in range(3):
            for j in range(3):
                t = xpad_ref[i:i + H, j:j + W, :, :]   # leading-dim slice
                for k in range(3):
                    tap = t * wdw[i, j, k, :]
                    pk[k] = tap if pk[k] is None else pk[k] + tap
        # D-axis taps: out[d] uses pk0[d-1], pk1[d], pk2[d+1] (zero at borders)
        acc = pk[1] + shift_d(pk[0], 1) + shift_d(pk[2], -1)
        acc = acc + bdw_ref[0, :]
        x = _gelu_exact(acc)                    # (H, W, D, C) f32

        masks = m_ref[...]                      # (SHIFT_SIZE, C), loaded once

        def group_shift_leading(v, axis):
            # shift along a leading (non-layout) axis: pad-by-2 + 5 offset
            # slices (leading-dim slices => no relayout), masked per group.
            zshape = list(v.shape)
            zshape[axis] = PAD
            z = jnp.zeros(zshape, v.dtype)
            vp = jnp.concatenate([z, v, z], axis=axis)
            n = v.shape[axis]
            out = None
            for g in range(SHIFT_SIZE):
                s = g - PAD
                sl = lax.slice_in_dim(vp, PAD - s, PAD - s + n, axis=axis)
                term = sl * masks[g]
                out = term if out is None else out + term
            return out

        def group_shift_d(v):
            # D (sublane) axis: XLU roll + fused positional x channel mask.
            out = None
            for g in range(SHIFT_SIZE):
                term = shift_d(v, g - PAD, chan_mask=masks[g])
                out = term if out is None else out + term
            return out

        def fc(v, w_ref, b_ref):
            # bf16 operands, f32 accumulation on the MXU; bias add in f32.
            vb = v.reshape(N, C).astype(jnp.bfloat16)
            y = jnp.dot(vb, w_ref[...], preferred_element_type=jnp.float32)
            return y + b_ref[0, :]

        # shift(H) -> fc1  (dropout p=0.0 -> identity)
        x = fc(group_shift_leading(x, 0), w1_ref, b1_ref).reshape(H, W, D, C)
        # shift(W) -> fc2
        x = fc(group_shift_leading(x, 1), w2_ref, b2_ref).reshape(H, W, D, C)
        # shift(D) -> fc3
        x = fc(group_shift_d(x), w3_ref, b3_ref)           # (N, C)

        o_ref[0] = x.astype(o_ref.dtype)

    return kernel


def shiftmlp_pallas(x, params, H, W, D, use_roll=True, roll_sign=1):
    # x: (B, N, C) tokens, N = H*W*D; returns (B, N, C)
    (w_dw, b_dw, w1, b1, w2, b2, w3, b3) = params
    B, N, C = x.shape
    assert N == H * W * D

    # channels-last 5D view: metadata-only reshape, no HBM copy / no padding.
    x5 = x.reshape(B, H, W, D, C)

    # fc weights in bf16 (f32 accumulation happens inside the kernel).
    w1b = w1.astype(jnp.bfloat16)
    w2b = w2.astype(jnp.bfloat16)
    w3b = w3.astype(jnp.bfloat16)

    # channel-group masks: channel c is in group c // chunk (torch.chunk),
    # shifted by group - PAD.
    chunk = -(-C // SHIFT_SIZE)
    grp = jnp.arange(C) // chunk
    masks = jnp.stack([(grp == g).astype(x.dtype) for g in range(SHIFT_SIZE)],
                      axis=0)                               # (SHIFT_SIZE, C)

    kernel = _make_kernel(H, W, D, C, use_roll, roll_sign)

    out = pl.pallas_call(
        kernel,
        out_shape=jax.ShapeDtypeStruct((B, N, C), x.dtype),
        grid=(B,),
        in_specs=[
            pl.BlockSpec((1, H, W, D, C), lambda b: (b, 0, 0, 0, 0)),
            pl.BlockSpec((SHIFT_SIZE, C), lambda b: (0, 0)),
            pl.BlockSpec((3, 3, 3, C), lambda b: (0, 0, 0, 0)),
            pl.BlockSpec((1, C), lambda b: (0, 0)),
            pl.BlockSpec((C, C), lambda b: (0, 0)),
            pl.BlockSpec((1, C), lambda b: (0, 0)),
            pl.BlockSpec((C, C), lambda b: (0, 0)),
            pl.BlockSpec((1, C), lambda b: (0, 0)),
            pl.BlockSpec((C, C), lambda b: (0, 0)),
            pl.BlockSpec((1, C), lambda b: (0, 0)),
        ],
        out_specs=pl.BlockSpec((1, N, C), lambda b: (b, 0, 0)),
        scratch_shapes=[pltpu.VMEM((H + 2, W + 2, D, C), jnp.float32)],
        compiler_params=pltpu.CompilerParams(
            dimension_semantics=("parallel",)),   # 2-TC sharding on v7x
    )(x5, masks, w_dw, b_dw, w1b, b1, w2b, b2, w3b, b3)

    return out


@functools.partial(jax.jit, static_argnums=(2, 3, 4, 5, 6))
def shiftmlp_forward(x, params, H, W, D, use_roll=True, roll_sign=1):
    return shiftmlp_pallas(x, params, H, W, D, use_roll, roll_sign)


# ----------------------------------------------------------------------------
# Probe: does pltpu.roll lower for our (..., D, C) sublane rotation, and does
# it follow jnp.roll's sign convention?  Falls back to the concat path if not.
# ----------------------------------------------------------------------------
def _roll_probe_kernel(x_ref, o_ref):
    o_ref[...] = pltpu.roll(x_ref[...], 1, axis=2)


def detect_roll(D, C):
    try:
        x = jnp.arange(2 * 2 * D * C, dtype=jnp.float32).reshape(2, 2, D, C)
        out = pl.pallas_call(
            _roll_probe_kernel,
            out_shape=jax.ShapeDtypeStruct(x.shape, x.dtype),
        )(x)
        out = jax.block_until_ready(out)
        if bool(jnp.array_equal(out, jnp.roll(x, 1, axis=2))):
            return True, 1
        if bool(jnp.array_equal(out, jnp.roll(x, -1, axis=2))):
            return True, -1
        return False, 1
    except Exception:
        return False, 1


# ----------------------------------------------------------------------------
# Pure-JAX reference mirroring the PyTorch module (f32, HIGHEST precision)
# ----------------------------------------------------------------------------
def shiftmlp_reference(x, params, H, W, D):
    (w_dw, b_dw, w1, b1, w2, b2, w3, b3) = params
    B, N, C = x.shape

    x5 = x.reshape(B, H, W, D, C)
    xp = jnp.pad(x5, ((0, 0), (1, 1), (1, 1), (1, 1), (0, 0)))
    acc = jnp.zeros((B, H, W, D, C), jnp.float32)
    for i in range(3):
        for j in range(3):
            for k in range(3):
                acc = acc + xp[:, i:i + H, j:j + W, k:k + D, :] * w_dw[i, j, k, :]
    acc = acc + b_dw[0]
    y = _gelu_exact(acc)
    x = y.reshape(B, N, C)

    def shift(x, axis):
        x5 = jnp.transpose(x, (0, 2, 1)).reshape(B, C, H, W, D)
        x5p = jnp.pad(x5, ((0, 0), (0, 0), (PAD, PAD), (PAD, PAD), (PAD, PAD)))
        chunk = -(-C // SHIFT_SIZE)
        chunks = [x5p[:, i:i + chunk] for i in range(0, C, chunk)]
        rolled = [jnp.roll(c, s, axis=axis)
                  for c, s in zip(chunks, range(-PAD, PAD + 1))]
        xc = jnp.concatenate(rolled, axis=1)
        xc = xc[:, :, PAD:PAD + H, PAD:PAD + W, PAD:PAD + D]
        return jnp.transpose(xc.reshape(B, C, N), (0, 2, 1))

    hp = jax.lax.Precision.HIGHEST
    x = shift(x, 2)
    x = jnp.dot(x, w1, precision=hp) + b1[0]
    x = shift(x, 3)
    x = jnp.dot(x, w2, precision=hp) + b2[0]
    x = shift(x, 4)
    x = jnp.dot(x, w3, precision=hp) + b3[0]
    return x


if __name__ == "__main__":
    # in_features == hidden_features == out_features is required by the module's
    # own forward (dwconv(hidden) runs before fc1).
    B, H, W, D = 2, 8, 8, 8
    C = 20                       # divisible by shift_size=5 -> 5 channel groups
    N = H * W * D

    key = jax.random.PRNGKey(0)
    ks = jax.random.split(key, 6)

    x = jax.random.normal(ks[0], (B, N, C), jnp.float32)

    # Deterministic synthetic parameters (shapes per module __init__);
    # dwconv weight stored channel-last: torch (C,1,3,3,3)[c,0,i,j,k] -> (i,j,k,c).
    w_dw = jax.random.normal(ks[1], (3, 3, 3, C), jnp.float32) * 0.1
    b_dw = jax.random.normal(ks[2], (1, C), jnp.float32) * 0.01

    def trunc_normal(k, shape, std=0.02):
        return jax.random.truncated_normal(k, -2.0, 2.0, shape, jnp.float32) * std

    # nn.Linear weights (out,in) stored transposed as (in,out); biases init 0
    w1 = trunc_normal(ks[3], (C, C)); b1 = jnp.zeros((1, C), jnp.float32)
    w2 = trunc_normal(ks[4], (C, C)); b2 = jnp.zeros((1, C), jnp.float32)
    w3 = trunc_normal(ks[5], (C, C)); b3 = jnp.zeros((1, C), jnp.float32)

    params = (w_dw, b_dw, w1, b1, w2, b2, w3, b3)

    use_roll, roll_sign = detect_roll(D, C)

    out = shiftmlp_forward(x, params, H, W, D, use_roll, roll_sign)
    jax.block_until_ready(out)
    assert out.shape == (B, N, C) and out.dtype == jnp.float32

    ref = shiftmlp_reference(x, params, H, W, D)
    err = float(jnp.max(jnp.abs(out - ref)))
    scale = float(jnp.max(jnp.abs(ref)))
    tol = 1e-4 + 5e-2 * scale    # bf16 matmul path vs f32 HIGHEST reference
    assert err <= tol, f"max abs err {err} vs tol {tol} (ref scale {scale})"

    print("KERNEL_OK")
</pallas_src>

<mosaic_0001>
module attributes {stable_mosaic.version = 11 : i64} {
  func.func @_roll_probe_kernel(%arg0: memref<2x2x8x20xf32, #tpu.memory_space<vmem>>, %arg1: memref<2x2x8x20xf32, #tpu.memory_space<vmem>>) attributes {dimension_semantics = [], scalar_prefetch = 0 : i64, scratch_operands = 0 : i64, tpu.core_type = #tpu.core_type<tc>} {
    %c0 = arith.constant 0 : index
    %c0_0 = arith.constant 0 : index
    %c0_1 = arith.constant 0 : index
    %c0_2 = arith.constant 0 : index
    %0 = vector.load %arg0[%c0, %c0_0, %c0_1, %c0_2] : memref<2x2x8x20xf32, #tpu.memory_space<vmem>>, vector<2x2x8x20xf32>
    %c1_i32 = arith.constant 1 : i32
    %1 = tpu.dynamic_rotate %0 by %c1_i32 dim 2 : vector<2x2x8x20xf32>, i32 -> vector<2x2x8x20xf32>
    %c0_3 = arith.constant 0 : index
    %c0_4 = arith.constant 0 : index
    %c0_5 = arith.constant 0 : index
    %c0_6 = arith.constant 0 : index
    %2 = vector.load %arg1[%c0_3, %c0_4, %c0_5, %c0_6] : memref<2x2x8x20xf32, #tpu.memory_space<vmem>>, vector<2x2x8x20xf32>
    tpu.vector_store %arg1[%c0_3, %c0_4, %c0_5, %c0_6], %1 {strides = array<i32>} : memref<2x2x8x20xf32, #tpu.memory_space<vmem>>, vector<2x2x8x20xf32>,
    return
  }
}

module attributes {stable_mosaic.version = 11 : i64} {
  func.func @kernel(%arg0: i32, %arg1: memref<1x8x8x8x20xf32, #tpu.memory_space<vmem>>, %arg2: memref<5x20xf32, #tpu.memory_space<vmem>>, %arg3: memref<3x3x3x20xf32, #tpu.memory_space<vmem>>, %arg4: memref<1x20xf32, #tpu.memory_space<vmem>>, %arg5: memref<20x20xbf16, #tpu.memory_space<vmem>>, %arg6: memref<1x20xf32, #tpu.memory_space<vmem>>, %arg7: memref<20x20xbf16, #tpu.memory_space<vmem>>, %arg8: memref<1x20xf32, #tpu.memory_space<vmem>>, %arg9: memref<20x20xbf16, #tpu.memory_space<vmem>>, %arg10: memref<1x20xf32, #tpu.memory_space<vmem>>, %arg11: memref<1x512x20xf32, #tpu.memory_space<vmem>>, %arg12: memref<10x10x8x20xf32, #tpu.memory_space<vmem>>) attributes {dimension_semantics = [#tpu.dimension_semantics<parallel>], iteration_bounds = array<i64: 2>, scalar_prefetch = 0 : i64, scratch_operands = 1 : i64, tpu.core_type = #tpu.core_type<tc>, window_params = [{transform_indices = @transform_0, window_bounds = array<i64: 1, 8, 8, 8, 20>}, {pipeline_mode = #tpu.pipeline_mode<synchronous>, transform_indices = @transform_1, window_bounds = array<i64: 5, 20>}, {pipeline_mode = #tpu.pipeline_mode<synchronous>, transform_indices = @transform_2, window_bounds = array<i64: 3, 3, 3, 20>}, {pipeline_mode = #tpu.pipeline_mode<synchronous>, transform_indices = @transform_3, window_bounds = array<i64: 1, 20>}, {pipeline_mode = #tpu.pipeline_mode<synchronous>, transform_indices = @transform_4, window_bounds = array<i64: 20, 20>}, {pipeline_mode = #tpu.pipeline_mode<synchronous>, transform_indices = @transform_5, window_bounds = array<i64: 1, 20>}, {pipeline_mode = #tpu.pipeline_mode<synchronous>, transform_indices = @transform_6, window_bounds = array<i64: 20, 20>}, {pipeline_mode = #tpu.pipeline_mode<synchronous>, transform_indices = @transform_7, window_bounds = array<i64: 1, 20>}, {pipeline_mode = #tpu.pipeline_mode<synchronous>, transform_indices = @transform_8, window_bounds = array<i64: 20, 20>}, {pipeline_mode = #tpu.pipeline_mode<synchronous>, transform_indices = @transform_9, window_bounds = array<i64: 1, 20>}, {transform_indices = @transform_10, window_bounds = array<i64: 1, 512, 20>}]} {
    %cst = arith.constant 0.000000e+00 : f32
    %0 = vector.broadcast %cst : f32 to vector<10x10x8x20xf32>
    %c0 = arith.constant 0 : index
    %c0_0 = arith.constant 0 : index
    %c0_1 = arith.constant 0 : index
    %c0_2 = arith.constant 0 : index
    %1 = vector.load %arg12[%c0, %c0_0, %c0_1, %c0_2] : memref<10x10x8x20xf32, #tpu.memory_space<vmem>>, vector<10x10x8x20xf32>
    tpu.vector_store %arg12[%c0, %c0_0, %c0_1, %c0_2], %0 {strides = array<i32>} : memref<10x10x8x20xf32, #tpu.memory_space<vmem>>, vector<10x10x8x20xf32>,
    %c0_3 = arith.constant 0 : index
    %c0_4 = arith.constant 0 : index
    %c0_5 = arith.constant 0 : index
    %c0_6 = arith.constant 0 : index
    %c0_7 = arith.constant 0 : index
    %2 = vector.load %arg1[%c0_3, %c0_4, %c0_5, %c0_6, %c0_7] : memref<1x8x8x8x20xf32, #tpu.memory_space<vmem>>, vector<1x8x8x8x20xf32>
    %3 = vector.shape_cast %2 : vector<1x8x8x8x20xf32> to vector<8x8x8x20xf32>
    %c1 = arith.constant 1 : index
    %c1_8 = arith.constant 1 : index
    %c0_9 = arith.constant 0 : index
    %c0_10 = arith.constant 0 : index
    %4 = vector.load %arg12[%c1, %c1_8, %c0_9, %c0_10] : memref<10x10x8x20xf32, #tpu.memory_space<vmem>>, vector<8x8x8x20xf32>
    tpu.vector_store %arg12[%c1, %c1_8, %c0_9, %c0_10], %3 {strides = array<i32>} : memref<10x10x8x20xf32, #tpu.memory_space<vmem>>, vector<8x8x8x20xf32>,
    %c0_11 = arith.constant 0 : index
    %c0_12 = arith.constant 0 : index
    %c0_13 = arith.constant 0 : index
    %c0_14 = arith.constant 0 : index
    %5 = vector.load %arg3[%c0_11, %c0_12, %c0_13, %c0_14] : memref<3x3x3x20xf32, #tpu.memory_space<vmem>>, vector<3x3x3x20xf32>
    %c0_15 = arith.constant 0 : index
    %c0_16 = arith.constant 0 : index
    %c0_17 = arith.constant 0 : index
    %c0_18 = arith.constant 0 : index
    %6 = vector.load %arg12[%c0_15, %c0_16, %c0_17, %c0_18] : memref<10x10x8x20xf32, #tpu.memory_space<vmem>>, vector<8x8x8x20xf32>
    %7 = vector.extract_strided_slice %5 {offsets = [0, 0, 0, 0], sizes = [1, 1, 1, 20], strides = [1, 1, 1, 1]} : vector<3x3x3x20xf32> to vector<1x1x1x20xf32>
    %8 = vector.shape_cast %7 : vector<1x1x1x20xf32> to vector<20xf32>
    %9 = vector.shape_cast %8 : vector<20xf32> to vector<1x1x1x20xf32>
    %10 = vector.broadcast %9 : vector<1x1x1x20xf32> to vector<8x8x8x20xf32>
    %11 = arith.mulf %6, %10 : vector<8x8x8x20xf32>
    %12 = vector.extract_strided_slice %5 {offsets = [0, 0, 1, 0], sizes = [1, 1, 1, 20], strides = [1, 1, 1, 1]} : vector<3x3x3x20xf32> to vector<1x1x1x20xf32>
    %13 = vector.shape_cast %12 : vector<1x1x1x20xf32> to vector<20xf32>
    %14 = vector.shape_cast %13 : vector<20xf32> to vector<1x1x1x20xf32>
    %15 = vector.broadcast %14 : vector<1x1x1x20xf32> to vector<8x8x8x20xf32>
    %16 = arith.mulf %6, %15 : vector<8x8x8x20xf32>
    %17 = vector.extract_strided_slice %5 {offsets = [0, 0, 2, 0], sizes = [1, 1, 1, 20], strides = [1, 1, 1, 1]} : vector<3x3x3x20xf32> to vector<1x1x1x20xf32>
    %18 = vector.shape_cast %17 : vector<1x1x1x20xf32> to vector<20xf32>
    %19 = vector.shape_cast %18 : vector<20xf32> to vector<1x1x1x20xf32>
    %20 = vector.broadcast %19 : vector<1x1x1x20xf32> to vector<8x8x8x20xf32>
    %21 = arith.mulf %6, %20 : vector<8x8x8x20xf32>
    %c0_19 = arith.constant 0 : index
    %c1_20 = arith.constant 1 : index
    %c0_21 = arith.constant 0 : index
    %c0_22 = arith.constant 0 : index
    %22 = vector.load %arg12[%c0_19, %c1_20, %c0_21, %c0_22] : memref<10x10x8x20xf32, #tpu.memory_space<vmem>>, vector<8x8x8x20xf32>
    %23 = vector.extract_strided_slice %5 {offsets = [0, 1, 0, 0], sizes = [1, 1, 1, 20], strides = [1, 1, 1, 1]} : vector<3x3x3x20xf32> to vector<1x1x1x20xf32>
    %24 = vector.shape_cast %23 : vector<1x1x1x20xf32> to vector<20xf32>
    %25 = vector.shape_cast %24 : vector<20xf32> to vector<1x1x1x20xf32>
    %26 = vector.broadcast %25 : vector<1x1x1x20xf32> to vector<8x8x8x20xf32>
    %27 = arith.mulf %22, %26 : vector<8x8x8x20xf32>
    %28 = arith.addf %11, %27 : vector<8x8x8x20xf32>
    %29 = vector.extract_strided_slice %5 {offsets = [0, 1, 1, 0], sizes = [1, 1, 1, 20], strides = [1, 1, 1, 1]} : vector<3x3x3x20xf32> to vector<1x1x1x20xf32>
    %30 = vector.shape_cast %29 : vector<1x1x1x20xf32> to vector<20xf32>
    %31 = vector.shape_cast %30 : vector<20xf32> to vector<1x1x1x20xf32>
    %32 = vector.broadcast %31 : vector<1x1x1x20xf32> to vector<8x8x8x20xf32>
    %33 = arith.mulf %22, %32 : vector<8x8x8x20xf32>
    %34 = arith.addf %16, %33 : vector<8x8x8x20xf32>
    %35 = vector.extract_strided_slice %5 {offsets = [0, 1, 2, 0], sizes = [1, 1, 1, 20], strides = [1, 1, 1, 1]} : vector<3x3x3x20xf32> to vector<1x1x1x20xf32>
    %36 = vector.shape_cast %35 : vector<1x1x1x20xf32> to vector<20xf32>
    %37 = vector.shape_cast %36 : vector<20xf32> to vector<1x1x1x20xf32>
    %38 = vector.broadcast %37 : vector<1x1x1x20xf32> to vector<8x8x8x20xf32>
    %39 = arith.mulf %22, %38 : vector<8x8x8x20xf32>
    %40 = arith.addf %21, %39 : vector<8x8x8x20xf32>
    %c0_23 = arith.constant 0 : index
    %c2 = arith.constant 2 : index
    %c0_24 = arith.constant 0 : index
    %c0_25 = arith.constant 0 : index
    %41 = vector.load %arg12[%c0_23, %c2, %c0_24, %c0_25] : memref<10x10x8x20xf32, #tpu.memory_space<vmem>>, vector<8x8x8x20xf32>
    %42 = vector.extract_strided_slice %5 {offsets = [0, 2, 0, 0], sizes = [1, 1, 1, 20], strides = [1, 1, 1, 1]} : vector<3x3x3x20xf32> to vector<1x1x1x20xf32>
    %43 = vector.shape_cast %42 : vector<1x1x1x20xf32> to vector<20xf32>
    %44 = vector.shape_cast %43 : vector<20xf32> to vector<1x1x1x20xf32>
    %45 = vector.broadcast %44 : vector<1x1x1x20xf32> to vector<8x8x8x20xf32>
    %46 = arith.mulf %41, %45 : vector<8x8x8x20xf32>
    %47 = arith.addf %28, %46 : vector<8x8x8x20xf32>
    %48 = vector.extract_strided_slice %5 {offsets = [0, 2, 1, 0], sizes = [1, 1, 1, 20], strides = [1, 1, 1, 1]} : vector<3x3x3x20xf32> to vector<1x1x1x20xf32>
    %49 = vector.shape_cast %48 : vector<1x1x1x20xf32> to vector<20xf32>
    %50 = vector.shape_cast %49 : vector<20xf32> to vector<1x1x1x20xf32>
    %51 = vector.broadcast %50 : vector<1x1x1x20xf32> to vector<8x8x8x20xf32>
    %52 = arith.mulf %41, %51 : vector<8x8x8x20xf32>
    %53 = arith.addf %34, %52 : vector<8x8x8x20xf32>
    %54 = vector.extract_strided_slice %5 {offsets = [0, 2, 2, 0], sizes = [1, 1, 1, 20], strides = [1, 1, 1, 1]} : vector<3x3x3x20xf32> to vector<1x1x1x20xf32>
    %55 = vector.shape_cast %54 : vector<1x1x1x20xf32> to vector<20xf32>
    %56 = vector.shape_cast %55 : vector<20xf32> to vector<1x1x1x20xf32>
    %57 = vector.broadcast %56 : vector<1x1x1x20xf32> to vector<8x8x8x20xf32>
    %58 = arith.mulf %41, %57 : vector<8x8x8x20xf32>
    %59 = arith.addf %40, %58 : vector<8x8x8x20xf32>
    %c1_26 = arith.constant 1 : index
    %c0_27 = arith.constant 0 : index
    %c0_28 = arith.constant 0 : index
    %c0_29 = arith.constant 0 : index
    %60 = vector.load %arg12[%c1_26, %c0_27, %c0_28, %c0_29] : memref<10x10x8x20xf32, #tpu.memory_space<vmem>>, vector<8x8x8x20xf32>
    %61 = vector.extract_strided_slice %5 {offsets = [1, 0, 0, 0], sizes = [1, 1, 1, 20], strides = [1, 1, 1, 1]} : vector<3x3x3x20xf32> to vector<1x1x1x20xf32>
    %62 = vector.shape_cast %61 : vector<1x1x1x20xf32> to vector<20xf32>
    %63 = vector.shape_cast %62 : vector<20xf32> to vector<1x1x1x20xf32>
    %64 = vector.broadcast %63 : vector<1x1x1x20xf32> to vector<8x8x8x20xf32>
    %65 = arith.mulf %60, %64 : vector<8x8x8x20xf32>
    %66 = arith.addf %47, %65 : vector<8x8x8x20xf32>
    %67 = vector.extract_strided_slice %5 {offsets = [1, 0, 1, 0], sizes = [1, 1, 1, 20], strides = [1, 1, 1, 1]} : vector<3x3x3x20xf32> to vector<1x1x1x20xf32>
    %68 = vector.shape_cast %67 : vector<1x1x1x20xf32> to vector<20xf32>
    %69 = vector.shape_cast %68 : vector<20xf32> to vector<1x1x1x20xf32>
    %70 = vector.broadcast %69 : vector<1x1x1x20xf32> to vector<8x8x8x20xf32>
    %71 = arith.mulf %60, %70 : vector<8x8x8x20xf32>
    %72 = arith.addf %53, %71 : vector<8x8x8x20xf32>
    %73 = vector.extract_strided_slice %5 {offsets = [1, 0, 2, 0], sizes = [1, 1, 1, 20], strides = [1, 1, 1, 1]} : vector<3x3x3x20xf32> to vector<1x1x1x20xf32>
    %74 = vector.shape_cast %73 : vector<1x1x1x20xf32> to vector<20xf32>
    %75 = vector.shape_cast %74 : vector<20xf32> to vector<1x1x1x20xf32>
    %76 = vector.broadcast %75 : vector<1x1x1x20xf32> to vector<8x8x8x20xf32>
    %77 = arith.mulf %60, %76 : vector<8x8x8x20xf32>
    %78 = arith.addf %59, %77 : vector<8x8x8x20xf32>
    %c1_30 = arith.constant 1 : index
    %c1_31 = arith.constant 1 : index
    %c0_32 = arith.constant 0 : index
    %c0_33 = arith.constant 0 : index
    %79 = vector.load %arg12[%c1_30, %c1_31, %c0_32, %c0_33] : memref<10x10x8x20xf32, #tpu.memory_space<vmem>>, vector<8x8x8x20xf32>
    %80 = vector.extract_strided_slice %5 {offsets = [1, 1, 0, 0], sizes = [1, 1, 1, 20], strides = [1, 1, 1, 1]} : vector<3x3x3x20xf32> to vector<1x1x1x20xf32>
    %81 = vector.shape_cast %80 : vector<1x1x1x20xf32> to vector<20xf32>
    %82 = vector.shape_cast %81 : vector<20xf32> to vector<1x1x1x20xf32>
    %83 = vector.broadcast %82 : vector<1x1x1x20xf32> to vector<8x8x8x20xf32>
    %84 = arith.mulf %79, %83 : vector<8x8x8x20xf32>
    %85 = arith.addf %66, %84 : vector<8x8x8x20xf32>
    %86 = vector.extract_strided_slice %5 {offsets = [1, 1, 1, 0], sizes = [1, 1, 1, 20], strides = [1, 1, 1, 1]} : vector<3x3x3x20xf32> to vector<1x1x1x20xf32>
    %87 = vector.shape_cast %86 : vector<1x1x1x20xf32> to vector<20xf32>
    %88 = vector.shape_cast %87 : vector<20xf32> to vector<1x1x1x20xf32>
    %89 = vector.broadcast %88 : vector<1x1x1x20xf32> to vector<8x8x8x20xf32>
    %90 = arith.mulf %79, %89 : vector<8x8x8x20xf32>
    %91 = arith.addf %72, %90 : vector<8x8x8x20xf32>
    %92 = vector.extract_strided_slice %5 {offsets = [1, 1, 2, 0], sizes = [1, 1, 1, 20], strides = [1, 1, 1, 1]} : vector<3x3x3x20xf32> to vector<1x1x1x20xf32>
    %93 = vector.shape_cast %92 : vector<1x1x1x20xf32> to vector<20xf32>
    %94 = vector.shape_cast %93 : vector<20xf32> to vector<1x1x1x20xf32>
    %95 = vector.broadcast %94 : vector<1x1x1x20xf32> to vector<8x8x8x20xf32>
    %96 = arith.mulf %79, %95 : vector<8x8x8x20xf32>
    %97 = arith.addf %78, %96 : vector<8x8x8x20xf32>
    %c1_34 = arith.constant 1 : index
    %c2_35 = arith.constant 2 : index
    %c0_36 = arith.constant 0 : index
    %c0_37 = arith.constant 0 : index
    %98 = vector.load %arg12[%c1_34, %c2_35, %c0_36, %c0_37] : memref<10x10x8x20xf32, #tpu.memory_space<vmem>>, vector<8x8x8x20xf32>
    %99 = vector.extract_strided_slice %5 {offsets = [1, 2, 0, 0], sizes = [1, 1, 1, 20], strides = [1, 1, 1, 1]} : vector<3x3x3x20xf32> to vector<1x1x1x20xf32>
    %100 = vector.shape_cast %99 : vector<1x1x1x20xf32> to vector<20xf32>
    %101 = vector.shape_cast %100 : vector<20xf32> to vector<1x1x1x20xf32>
    %102 = vector.broadcast %101 : vector<1x1x1x20xf32> to vector<8x8x8x20xf32>
    %103 = arith.mulf %98, %102 : vector<8x8x8x20xf32>
    %104 = arith.addf %85, %103 : vector<8x8x8x20xf32>
    %105 = vector.extract_strided_slice %5 {offsets = [1, 2, 1, 0], sizes = [1, 1, 1, 20], strides = [1, 1, 1, 1]} : vector<3x3x3x20xf32> to vector<1x1x1x20xf32>
    %106 = vector.shape_cast %105 : vector<1x1x1x20xf32> to vector<20xf32>
    %107 = vector.shape_cast %106 : vector<20xf32> to vector<1x1x1x20xf32>
    %108 = vector.broadcast %107 : vector<1x1x1x20xf32> to vector<8x8x8x20xf32>
    %109 = arith.mulf %98, %108 : vector<8x8x8x20xf32>
    %110 = arith.addf %91, %109 : vector<8x8x8x20xf32>
    %111 = vector.extract_strided_slice %5 {offsets = [1, 2, 2, 0], sizes = [1, 1, 1, 20], strides = [1, 1, 1, 1]} : vector<3x3x3x20xf32> to vector<1x1x1x20xf32>
    %112 = vector.shape_cast %111 : vector<1x1x1x20xf32> to vector<20xf32>
    %113 = vector.shape_cast %112 : vector<20xf32> to vector<1x1x1x20xf32>
    %114 = vector.broadcast %113 : vector<1x1x1x20xf32> to vector<8x8x8x20xf32>
    %115 = arith.mulf %98, %114 : vector<8x8x8x20xf32>
    %116 = arith.addf %97, %115 : vector<8x8x8x20xf32>
    %c2_38 = arith.constant 2 : index
    %c0_39 = arith.constant 0 : index
    %c0_40 = arith.constant 0 : index
    %c0_41 = arith.constant 0 : index
    %117 = vector.load %arg12[%c2_38, %c0_39, %c0_40, %c0_41] : memref<10x10x8x20xf32, #tpu.memory_space<vmem>>, vector<8x8x8x20xf32>
    %118 = vector.extract_strided_slice %5 {offsets = [2, 0, 0, 0], sizes = [1, 1, 1, 20], strides = [1, 1, 1, 1]} : vector<3x3x3x20xf32> to vector<1x1x1x20xf32>
    %119 = vector.shape_cast %118 : vector<1x1x1x20xf32> to vector<20xf32>
    %120 = vector.shape_cast %119 : vector<20xf32> to vector<1x1x1x20xf32>
    %121 = vector.broadcast %120 : vector<1x1x1x20xf32> to vector<8x8x8x20xf32>
    %122 = arith.mulf %117, %121 : vector<8x8x8x20xf32>
    %123 = arith.addf %104, %122 : vector<8x8x8x20xf32>
    %124 = vector.extract_strided_slice %5 {offsets = [2, 0, 1, 0], sizes = [1, 1, 1, 20], strides = [1, 1, 1, 1]} : vector<3x3x3x20xf32> to vector<1x1x1x20xf32>
    %125 = vector.shape_cast %124 : vector<1x1x1x20xf32> to vector<20xf32>
    %126 = vector.shape_cast %125 : vector<20xf32> to vector<1x1x1x20xf32>
    %127 = vector.broadcast %126 : vector<1x1x1x20xf32> to vector<8x8x8x20xf32>
    %128 = arith.mulf %117, %127 : vector<8x8x8x20xf32>
    %129 = arith.addf %110, %128 : vector<8x8x8x20xf32>
    %130 = vector.extract_strided_slice %5 {offsets = [2, 0, 2, 0], sizes = [1, 1, 1, 20], strides = [1, 1, 1, 1]} : vector<3x3x3x20xf32> to vector<1x1x1x20xf32>
    %131 = vector.shape_cast %130 : vector<1x1x1x20xf32> to vector<20xf32>
    %132 = vector.shape_cast %131 : vector<20xf32> to vector<1x1x1x20xf32>
    %133 = vector.broadcast %132 : vector<1x1x1x20xf32> to vector<8x8x8x20xf32>
    %134 = arith.mulf %117, %133 : vector<8x8x8x20xf32>
    %135 = arith.addf %116, %134 : vector<8x8x8x20xf32>
    %c2_42 = arith.constant 2 : index
    %c1_43 = arith.constant 1 : index
    %c0_44 = arith.constant 0 : index
    %c0_45 = arith.constant 0 : index
    %136 = vector.load %arg12[%c2_42, %c1_43, %c0_44, %c0_45] : memref<10x10x8x20xf32, #tpu.memory_space<vmem>>, vector<8x8x8x20xf32>
    %137 = vector.extract_strided_slice %5 {offsets = [2, 1, 0, 0], sizes = [1, 1, 1, 20], strides = [1, 1, 1, 1]} : vector<3x3x3x20xf32> to vector<1x1x1x20xf32>
    %138 = vector.shape_cast %137 : vector<1x1x1x20xf32> to vector<20xf32>
    %139 = vector.shape_cast %138 : vector<20xf32> to vector<1x1x1x20xf32>
    %140 = vector.broadcast %139 : vector<1x1x1x20xf32> to vector<8x8x8x20xf32>
    %141 = arith.mulf %136, %140 : vector<8x8x8x20xf32>
    %142 = arith.addf %123, %141 : vector<8x8x8x20xf32>
    %143 = vector.extract_strided_slice %5 {offsets = [2, 1, 1, 0], sizes = [1, 1, 1, 20], strides = [1, 1, 1, 1]} : vector<3x3x3x20xf32> to vector<1x1x1x20xf32>
    %144 = vector.shape_cast %143 : vector<1x1x1x20xf32> to vector<20xf32>
    %145 = vector.shape_cast %144 : vector<20xf32> to vector<1x1x1x20xf32>
    %146 = vector.broadcast %145 : vector<1x1x1x20xf32> to vector<8x8x8x20xf32>
    %147 = arith.mulf %136, %146 : vector<8x8x8x20xf32>
    %148 = arith.addf %129, %147 : vector<8x8x8x20xf32>
    %149 = vector.extract_strided_slice %5 {offsets = [2, 1, 2, 0], sizes = [1, 1, 1, 20], strides = [1, 1, 1, 1]} : vector<3x3x3x20xf32> to vector<1x1x1x20xf32>
    %150 = vector.shape_cast %149 : vector<1x1x1x20xf32> to vector<20xf32>
    %151 = vector.shape_cast %150 : vector<20xf32> to vector<1x1x1x20xf32>
    %152 = vector.broadcast %151 : vector<1x1x1x20xf32> to vector<8x8x8x20xf32>
    %153 = arith.mulf %136, %152 : vector<8x8x8x20xf32>
    %154 = arith.addf %135, %153 : vector<8x8x8x20xf32>
    %c2_46 = arith.constant 2 : index
    %c2_47 = arith.constant 2 : index
    %c0_48 = arith.constant 0 : index
    %c0_49 = arith.constant 0 : index
    %155 = vector.load %arg12[%c2_46, %c2_47, %c0_48, %c0_49] : memref<10x10x8x20xf32, #tpu.memory_space<vmem>>, vector<8x8x8x20xf32>
    %156 = vector.extract_strided_slice %5 {offsets = [2, 2, 0, 0], sizes = [1, 1, 1, 20], strides = [1, 1, 1, 1]} : vector<3x3x3x20xf32> to vector<1x1x1x20xf32>
    %157 = vector.shape_cast %156 : vector<1x1x1x20xf32> to vector<20xf32>
    %158 = vector.shape_cast %157 : vector<20xf32> to vector<1x1x1x20xf32>
    %159 = vector.broadcast %158 : vector<1x1x1x20xf32> to vector<8x8x8x20xf32>
    %160 = arith.mulf %155, %159 : vector<8x8x8x20xf32>
    %161 = arith.addf %142, %160 : vector<8x8x8x20xf32>
    %162 = vector.extract_strided_slice %5 {offsets = [2, 2, 1, 0], sizes = [1, 1, 1, 20], strides = [1, 1, 1, 1]} : vector<3x3x3x20xf32> to vector<1x1x1x20xf32>
    %163 = vector.shape_cast %162 : vector<1x1x1x20xf32> to vector<20xf32>
    %164 = vector.shape_cast %163 : vector<20xf32> to vector<1x1x1x20xf32>
    %165 = vector.broadcast %164 : vector<1x1x1x20xf32> to vector<8x8x8x20xf32>
    %166 = arith.mulf %155, %165 : vector<8x8x8x20xf32>
    %167 = arith.addf %148, %166 : vector<8x8x8x20xf32>
    %168 = vector.extract_strided_slice %5 {offsets = [2, 2, 2, 0], sizes = [1, 1, 1, 20], strides = [1, 1, 1, 1]} : vector<3x3x3x20xf32> to vector<1x1x1x20xf32>
    %169 = vector.shape_cast %168 : vector<1x1x1x20xf32> to vector<20xf32>
    %170 = vector.shape_cast %169 : vector<20xf32> to vector<1x1x1x20xf32>
    %171 = vector.broadcast %170 : vector<1x1x1x20xf32> to vector<8x8x8x20xf32>
    %172 = arith.mulf %155, %171 : vector<8x8x8x20xf32>
    %173 = arith.addf %154, %172 : vector<8x8x8x20xf32>
    %cst_50 = arith.constant 0.000000e+00 : f32
    %174 = vector.broadcast %cst_50 : f32 to vector<8x8x1x20xf32>
    %175 = vector.extract_strided_slice %161 {offsets = [0, 0, 0, 0], sizes = [8, 8, 7, 20], strides = [1, 1, 1, 1]} : vector<8x8x8x20xf32> to vector<8x8x7x20xf32>
    %176 = tpu.concatenate %174, %175 in 2 : vector<8x8x1x20xf32>, vector<8x8x7x20xf32> -> vector<8x8x8x20xf32>
    %177 = arith.addf %167, %176 : vector<8x8x8x20xf32>
    %cst_51 = arith.constant 0.000000e+00 : f32
    %178 = vector.broadcast %cst_51 : f32 to vector<8x8x1x20xf32>
    %179 = vector.extract_strided_slice %173 {offsets = [0, 0, 1, 0], sizes = [8, 8, 7, 20], strides = [1, 1, 1, 1]} : vector<8x8x8x20xf32> to vector<8x8x7x20xf32>
    %180 = tpu.concatenate %179, %178 in 2 : vector<8x8x7x20xf32>, vector<8x8x1x20xf32> -> vector<8x8x8x20xf32>
    %181 = arith.addf %177, %180 : vector<8x8x8x20xf32>
    %c0_52 = arith.constant 0 : index
    %c0_53 = arith.constant 0 : index
    %182 = vector.load %arg4[%c0_52, %c0_53] : memref<1x20xf32, #tpu.memory_space<vmem>>, vector<1x20xf32>
    %183 = vector.shape_cast %182 : vector<1x20xf32> to vector<20xf32>
    %184 = vector.shape_cast %183 : vector<20xf32> to vector<1x1x1x20xf32>
    %185 = vector.broadcast %184 : vector<1x1x1x20xf32> to vector<8x8x8x20xf32>
    %186 = arith.addf %181, %185 : vector<8x8x8x20xf32>
    %cst_54 = arith.constant 5.000000e-01 : f32
    %187 = vector.broadcast %cst_54 : f32 to vector<8x8x8x20xf32>
    %188 = arith.mulf %187, %186 : vector<8x8x8x20xf32>
    %cst_55 = arith.constant 0.707106769 : f32
    %189 = vector.broadcast %cst_55 : f32 to vector<8x8x8x20xf32>
    %190 = arith.mulf %186, %189 : vector<8x8x8x20xf32>
    %191 = math.erf %190 : vector<8x8x8x20xf32>
    %cst_56 = arith.constant 1.000000e+00 : f32
    %192 = vector.broadcast %cst_56 : f32 to vector<8x8x8x20xf32>
    %193 = arith.addf %192, %191 : vector<8x8x8x20xf32>
    %194 = arith.mulf %188, %193 : vector<8x8x8x20xf32>
    %c0_57 = arith.constant 0 : index
    %c0_58 = arith.constant 0 : index
    %195 = vector.load %arg2[%c0_57, %c0_58] : memref<5x20xf32, #tpu.memory_space<vmem>>, vector<5x20xf32>
    %cst_59 = arith.constant 0.000000e+00 : f32
    %196 = vector.broadcast %cst_59 : f32 to vector<2x8x8x20xf32>
    %197 = tpu.concatenate %196, %194, %196 in 0 : vector<2x8x8x20xf32>, vector<8x8x8x20xf32>, vector<2x8x8x20xf32> -> vector<12x8x8x20xf32>
    %198 = vector.extract_strided_slice %197 {offsets = [4, 0, 0, 0], sizes = [8, 8, 8, 20], strides = [1, 1, 1, 1]} : vector<12x8x8x20xf32> to vector<8x8x8x20xf32>
    %199 = vector.extract_strided_slice %195 {offsets = [0, 0], sizes = [1, 20], strides = [1, 1]} : vector<5x20xf32> to vector<1x20xf32>
    %200 = vector.shape_cast %199 : vector<1x20xf32> to vector<20xf32>
    %201 = vector.shape_cast %200 : vector<20xf32> to vector<1x1x1x20xf32>
    %202 = vector.broadcast %201 : vector<1x1x1x20xf32> to vector<8x8x8x20xf32>
    %203 = arith.mulf %198, %202 : vector<8x8x8x20xf32>
    %204 = vector.extract_strided_slice %197 {offsets = [3, 0, 0, 0], sizes = [8, 8, 8, 20], strides = [1, 1, 1, 1]} : vector<12x8x8x20xf32> to vector<8x8x8x20xf32>
    %205 = vector.extract_strided_slice %195 {offsets = [1, 0], sizes = [1, 20], strides = [1, 1]} : vector<5x20xf32> to vector<1x20xf32>
    %206 = vector.shape_cast %205 : vector<1x20xf32> to vector<20xf32>
    %207 = vector.shape_cast %206 : vector<20xf32> to vector<1x1x1x20xf32>
    %208 = vector.broadcast %207 : vector<1x1x1x20xf32> to vector<8x8x8x20xf32>
    %209 = arith.mulf %204, %208 : vector<8x8x8x20xf32>
    %210 = arith.addf %203, %209 : vector<8x8x8x20xf32>
    %211 = vector.extract_strided_slice %197 {offsets = [2, 0, 0, 0], sizes = [8, 8, 8, 20], strides = [1, 1, 1, 1]} : vector<12x8x8x20xf32> to vector<8x8x8x20xf32>
    %212 = vector.extract_strided_slice %195 {offsets = [2, 0], sizes = [1, 20], strides = [1, 1]} : vector<5x20xf32> to vector<1x20xf32>
    %213 = vector.shape_cast %212 : vector<1x20xf32> to vector<20xf32>
    %214 = vector.shape_cast %213 : vector<20xf32> to vector<1x1x1x20xf32>
    %215 = vector.broadcast %214 : vector<1x1x1x20xf32> to vector<8x8x8x20xf32>
    %216 = arith.mulf %211, %215 : vector<8x8x8x20xf32>
    %217 = arith.addf %210, %216 : vector<8x8x8x20xf32>
    %218 = vector.extract_strided_slice %197 {offsets = [1, 0, 0, 0], sizes = [8, 8, 8, 20], strides = [1, 1, 1, 1]} : vector<12x8x8x20xf32> to vector<8x8x8x20xf32>
    %219 = vector.extract_strided_slice %195 {offsets = [3, 0], sizes = [1, 20], strides = [1, 1]} : vector<5x20xf32> to vector<1x20xf32>
    %220 = vector.shape_cast %219 : vector<1x20xf32> to vector<20xf32>
    %221 = vector.shape_cast %220 : vector<20xf32> to vector<1x1x1x20xf32>
    %222 = vector.broadcast %221 : vector<1x1x1x20xf32> to vector<8x8x8x20xf32>
    %223 = arith.mulf %218, %222 : vector<8x8x8x20xf32>
    %224 = arith.addf %217, %223 : vector<8x8x8x20xf32>
    %225 = vector.extract_strided_slice %197 {offsets = [0, 0, 0, 0], sizes = [8, 8, 8, 20], strides = [1, 1, 1, 1]} : vector<12x8x8x20xf32> to vector<8x8x8x20xf32>
    %226 = vector.extract_strided_slice %195 {offsets = [4, 0], sizes = [1, 20], strides = [1, 1]} : vector<5x20xf32> to vector<1x20xf32>
    %227 = vector.shape_cast %226 : vector<1x20xf32> to vector<20xf32>
    %228 = vector.shape_cast %227 : vector<20xf32> to vector<1x1x1x20xf32>
    %229 = vector.broadcast %228 : vector<1x1x1x20xf32> to vector<8x8x8x20xf32>
    %230 = arith.mulf %225, %229 : vector<8x8x8x20xf32>
    %231 = arith.addf %224, %230 : vector<8x8x8x20xf32>
    %232 = vector.shape_cast %231 : vector<8x8x8x20xf32> to vector<512x20xf32>
    %233 = arith.truncf %232 : vector<512x20xf32> to vector<512x20xbf16>
    %c0_60 = arith.constant 0 : index
    %c0_61 = arith.constant 0 : index
    %234 = vector.load %arg5[%c0_60, %c0_61] : memref<20x20xbf16, #tpu.memory_space<vmem>>, vector<20x20xbf16>
    %cst_62 = arith.constant dense<0.000000e+00> : vector<512x20xf32>
    %235 = tpu.matmul %233, %234, %cst_62 {dimension_numbers = #tpu.dot_dimension_numbers<[1], [0], [0], [1], [0, 0, 1, 1], [], []>} : vector<512x20xbf16>, vector<20x20xbf16>, vector<512x20xf32> -> vector<512x20xf32>
    %c0_63 = arith.constant 0 : index
    %c0_64 = arith.constant 0 : index
    %236 = vector.load %arg6[%c0_63, %c0_64] : memref<1x20xf32, #tpu.memory_space<vmem>>, vector<1x20xf32>
    %237 = vector.shape_cast %236 : vector<1x20xf32> to vector<20xf32>
    %238 = vector.shape_cast %237 : vector<20xf32> to vector<1x20xf32>
    %239 = vector.broadcast %238 : vector<1x20xf32> to vector<512x20xf32>
    %240 = arith.addf %235, %239 : vector<512x20xf32>
    %241 = vector.shape_cast %240 : vector<512x20xf32> to vector<8x8x8x20xf32>
    %cst_65 = arith.constant 0.000000e+00 : f32
    %242 = vector.broadcast %cst_65 : f32 to vector<8x2x8x20xf32>
    %243 = tpu.concatenate %242, %241, %242 in 1 : vector<8x2x8x20xf32>, vector<8x8x8x20xf32>, vector<8x2x8x20xf32> -> vector<8x12x8x20xf32>
    %244 = vector.extract_strided_slice %243 {offsets = [0, 4, 0, 0], sizes = [8, 8, 8, 20], strides = [1, 1, 1, 1]} : vector<8x12x8x20xf32> to vector<8x8x8x20xf32>
    %245 = vector.extract_strided_slice %195 {offsets = [0, 0], sizes = [1, 20], strides = [1, 1]} : vector<5x20xf32> to vector<1x20xf32>
    %246 = vector.shape_cast %245 : vector<1x20xf32> to vector<20xf32>
    %247 = vector.shape_cast %246 : vector<20xf32> to vector<1x1x1x20xf32>
    %248 = vector.broadcast %247 : vector<1x1x1x20xf32> to vector<8x8x8x20xf32>
    %249 = arith.mulf %244, %248 : vector<8x8x8x20xf32>
    %250 = vector.extract_strided_slice %243 {offsets = [0, 3, 0, 0], sizes = [8, 8, 8, 20], strides = [1, 1, 1, 1]} : vector<8x12x8x20xf32> to vector<8x8x8x20xf32>
    %251 = vector.extract_strided_slice %195 {offsets = [1, 0], sizes = [1, 20], strides = [1, 1]} : vector<5x20xf32> to vector<1x20xf32>
    %252 = vector.shape_cast %251 : vector<1x20xf32> to vector<20xf32>
    %253 = vector.shape_cast %252 : vector<20xf32> to vector<1x1x1x20xf32>
    %254 = vector.broadcast %253 : vector<1x1x1x20xf32> to vector<8x8x8x20xf32>
    %255 = arith.mulf %250, %254 : vector<8x8x8x20xf32>
    %256 = arith.addf %249, %255 : vector<8x8x8x20xf32>
    %257 = vector.extract_strided_slice %243 {offsets = [0, 2, 0, 0], sizes = [8, 8, 8, 20], strides = [1, 1, 1, 1]} : vector<8x12x8x20xf32> to vector<8x8x8x20xf32>
    %258 = vector.extract_strided_slice %195 {offsets = [2, 0], sizes = [1, 20], strides = [1, 1]} : vector<5x20xf32> to vector<1x20xf32>
    %259 = vector.shape_cast %258 : vector<1x20xf32> to vector<20xf32>
    %260 = vector.shape_cast %259 : vector<20xf32> to vector<1x1x1x20xf32>
    %261 = vector.broadcast %260 : vector<1x1x1x20xf32> to vector<8x8x8x20xf32>
    %262 = arith.mulf %257, %261 : vector<8x8x8x20xf32>
    %263 = arith.addf %256, %262 : vector<8x8x8x20xf32>
    %264 = vector.extract_strided_slice %243 {offsets = [0, 1, 0, 0], sizes = [8, 8, 8, 20], strides = [1, 1, 1, 1]} : vector<8x12x8x20xf32> to vector<8x8x8x20xf32>
    %265 = vector.extract_strided_slice %195 {offsets = [3, 0], sizes = [1, 20], strides = [1, 1]} : vector<5x20xf32> to vector<1x20xf32>
    %266 = vector.shape_cast %265 : vector<1x20xf32> to vector<20xf32>
    %267 = vector.shape_cast %266 : vector<20xf32> to vector<1x1x1x20xf32>
    %268 = vector.broadcast %267 : vector<1x1x1x20xf32> to vector<8x8x8x20xf32>
    %269 = arith.mulf %264, %268 : vector<8x8x8x20xf32>
    %270 = arith.addf %263, %269 : vector<8x8x8x20xf32>
    %271 = vector.extract_strided_slice %243 {offsets = [0, 0, 0, 0], sizes = [8, 8, 8, 20], strides = [1, 1, 1, 1]} : vector<8x12x8x20xf32> to vector<8x8x8x20xf32>
    %272 = vector.extract_strided_slice %195 {offsets = [4, 0], sizes = [1, 20], strides = [1, 1]} : vector<5x20xf32> to vector<1x20xf32>
    %273 = vector.shape_cast %272 : vector<1x20xf32> to vector<20xf32>
    %274 = vector.shape_cast %273 : vector<20xf32> to vector<1x1x1x20xf32>
    %275 = vector.broadcast %274 : vector<1x1x1x20xf32> to vector<8x8x8x20xf32>
    %276 = arith.mulf %271, %275 : vector<8x8x8x20xf32>
    %277 = arith.addf %270, %276 : vector<8x8x8x20xf32>
    %278 = vector.shape_cast %277 : vector<8x8x8x20xf32> to vector<512x20xf32>
    %279 = arith.truncf %278 : vector<512x20xf32> to vector<512x20xbf16>
    %c0_66 = arith.constant 0 : index
    %c0_67 = arith.constant 0 : index
    %280 = vector.load %arg7[%c0_66, %c0_67] : memref<20x20xbf16, #tpu.memory_space<vmem>>, vector<20x20xbf16>
    %cst_68 = arith.constant dense<0.000000e+00> : vector<512x20xf32>
    %281 = tpu.matmul %279, %280, %cst_68 {dimension_numbers = #tpu.dot_dimension_numbers<[1], [0], [0], [1], [0, 0, 1, 1], [], []>} : vector<512x20xbf16>, vector<20x20xbf16>, vector<512x20xf32> -> vector<512x20xf32>
    %c0_69 = arith.constant 0 : index
    %c0_70 = arith.constant 0 : index
    %282 = vector.load %arg8[%c0_69, %c0_70] : memref<1x20xf32, #tpu.memory_space<vmem>>, vector<1x20xf32>
    %283 = vector.shape_cast %282 : vector<1x20xf32> to vector<20xf32>
    %284 = vector.shape_cast %283 : vector<20xf32> to vector<1x20xf32>
    %285 = vector.broadcast %284 : vector<1x20xf32> to vector<512x20xf32>
    %286 = arith.addf %281, %285 : vector<512x20xf32>
    %287 = vector.shape_cast %286 : vector<512x20xf32> to vector<8x8x8x20xf32>
    %288 = vector.extract_strided_slice %195 {offsets = [0, 0], sizes = [1, 20], strides = [1, 1]} : vector<5x20xf32> to vector<1x20xf32>
    %289 = vector.shape_cast %288 : vector<1x20xf32> to vector<20xf32>
    %cst_71 = arith.constant 0.000000e+00 : f32
    %290 = vector.broadcast %cst_71 : f32 to vector<8x8x2x20xf32>
    %291 = vector.extract_strided_slice %287 {offsets = [0, 0, 2, 0], sizes = [8, 8, 6, 20], strides = [1, 1, 1, 1]} : vector<8x8x8x20xf32> to vector<8x8x6x20xf32>
    %292 = tpu.concatenate %291, %290 in 2 : vector<8x8x6x20xf32>, vector<8x8x2x20xf32> -> vector<8x8x8x20xf32>
    %293 = vector.shape_cast %289 : vector<20xf32> to vector<1x1x1x20xf32>
    %294 = vector.broadcast %293 : vector<1x1x1x20xf32> to vector<8x8x8x20xf32>
    %295 = arith.mulf %292, %294 : vector<8x8x8x20xf32>
    %296 = vector.extract_strided_slice %195 {offsets = [1, 0], sizes = [1, 20], strides = [1, 1]} : vector<5x20xf32> to vector<1x20xf32>
    %297 = vector.shape_cast %296 : vector<1x20xf32> to vector<20xf32>
    %cst_72 = arith.constant 0.000000e+00 : f32
    %298 = vector.broadcast %cst_72 : f32 to vector<8x8x1x20xf32>
    %299 = vector.extract_strided_slice %287 {offsets = [0, 0, 1, 0], sizes = [8, 8, 7, 20], strides = [1, 1, 1, 1]} : vector<8x8x8x20xf32> to vector<8x8x7x20xf32>
    %300 = tpu.concatenate %299, %298 in 2 : vector<8x8x7x20xf32>, vector<8x8x1x20xf32> -> vector<8x8x8x20xf32>
    %301 = vector.shape_cast %297 : vector<20xf32> to vector<1x1x1x20xf32>
    %302 = vector.broadcast %301 : vector<1x1x1x20xf32> to vector<8x8x8x20xf32>
    %303 = arith.mulf %300, %302 : vector<8x8x8x20xf32>
    %304 = arith.addf %295, %303 : vector<8x8x8x20xf32>
    %305 = vector.extract_strided_slice %195 {offsets = [2, 0], sizes = [1, 20], strides = [1, 1]} : vector<5x20xf32> to vector<1x20xf32>
    %306 = vector.shape_cast %305 : vector<1x20xf32> to vector<20xf32>
    %307 = vector.shape_cast %306 : vector<20xf32> to vector<1x1x1x20xf32>
    %308 = vector.broadcast %307 : vector<1x1x1x20xf32> to vector<8x8x8x20xf32>
    %309 = arith.mulf %287, %308 : vector<8x8x8x20xf32>
    %310 = arith.addf %304, %309 : vector<8x8x8x20xf32>
    %311 = vector.extract_strided_slice %195 {offsets = [3, 0], sizes = [1, 20], strides = [1, 1]} : vector<5x20xf32> to vector<1x20xf32>
    %312 = vector.shape_cast %311 : vector<1x20xf32> to vector<20xf32>
    %cst_73 = arith.constant 0.000000e+00 : f32
    %313 = vector.broadcast %cst_73 : f32 to vector<8x8x1x20xf32>
    %314 = vector.extract_strided_slice %287 {offsets = [0, 0, 0, 0], sizes = [8, 8, 7, 20], strides = [1, 1, 1, 1]} : vector<8x8x8x20xf32> to vector<8x8x7x20xf32>
    %315 = tpu.concatenate %313, %314 in 2 : vector<8x8x1x20xf32>, vector<8x8x7x20xf32> -> vector<8x8x8x20xf32>
    %316 = vector.shape_cast %312 : vector<20xf32> to vector<1x1x1x20xf32>
    %317 = vector.broadcast %316 : vector<1x1x1x20xf32> to vector<8x8x8x20xf32>
    %318 = arith.mulf %315, %317 : vector<8x8x8x20xf32>
    %319 = arith.addf %310, %318 : vector<8x8x8x20xf32>
    %320 = vector.extract_strided_slice %195 {offsets = [4, 0], sizes = [1, 20], strides = [1, 1]} : vector<5x20xf32> to vector<1x20xf32>
    %321 = vector.shape_cast %320 : vector<1x20xf32> to vector<20xf32>
    %cst_74 = arith.constant 0.000000e+00 : f32
    %322 = vector.broadcast %cst_74 : f32 to vector<8x8x2x20xf32>
    %323 = vector.extract_strided_slice %287 {offsets = [0, 0, 0, 0], sizes = [8, 8, 6, 20], strides = [1, 1, 1, 1]} : vector<8x8x8x20xf32> to vector<8x8x6x20xf32>
    %324 = tpu.concatenate %322, %323 in 2 : vector<8x8x2x20xf32>, vector<8x8x6x20xf32> -> vector<8x8x8x20xf32>
    %325 = vector.shape_cast %321 : vector<20xf32> to vector<1x1x1x20xf32>
    %326 = vector.broadcast %325 : vector<1x1x1x20xf32> to vector<8x8x8x20xf32>
    %327 = arith.mulf %324, %326 : vector<8x8x8x20xf32>
    %328 = arith.addf %319, %327 : vector<8x8x8x20xf32>
    %329 = vector.shape_cast %328 : vector<8x8x8x20xf32> to vector<512x20xf32>
    %330 = arith.truncf %329 : vector<512x20xf32> to vector<512x20xbf16>
    %c0_75 = arith.constant 0 : index
    %c0_76 = arith.constant 0 : index
    %331 = vector.load %arg9[%c0_75, %c0_76] : memref<20x20xbf16, #tpu.memory_space<vmem>>, vector<20x20xbf16>
    %cst_77 = arith.constant dense<0.000000e+00> : vector<512x20xf32>
    %332 = tpu.matmul %330, %331, %cst_77 {dimension_numbers = #tpu.dot_dimension_numbers<[1], [0], [0], [1], [0, 0, 1, 1], [], []>} : vector<512x20xbf16>, vector<20x20xbf16>, vector<512x20xf32> -> vector<512x20xf32>
    %c0_78 = arith.constant 0 : index
    %c0_79 = arith.constant 0 : index
    %333 = vector.load %arg10[%c0_78, %c0_79] : memref<1x20xf32, #tpu.memory_space<vmem>>, vector<1x20xf32>
    %334 = vector.shape_cast %333 : vector<1x20xf32> to vector<20xf32>
    %335 = vector.shape_cast %334 : vector<20xf32> to vector<1x20xf32>
    %336 = vector.broadcast %335 : vector<1x20xf32> to vector<512x20xf32>
    %337 = arith.addf %332, %336 : vector<512x20xf32>
    %c0_80 = arith.constant 0 : index
    %c0_81 = arith.constant 0 : index
    %c0_82 = arith.constant 0 : index
    %338 = vector.load %arg11[%c0_80, %c0_81, %c0_82] : memref<1x512x20xf32, #tpu.memory_space<vmem>>, vector<1x512x20xf32>
    %339 = vector.shape_cast %338 : vector<1x512x20xf32> to vector<512x20xf32>
    %340 = vector.shape_cast %337 : vector<512x20xf32> to vector<1x512x20xf32>
    tpu.vector_store %arg11[%c0_80, %c0_81, %c0_82], %340 {strides = array<i32>} : memref<1x512x20xf32, #tpu.memory_space<vmem>>, vector<1x512x20xf32>,
    return
  }
  func.func @transform_0(%arg0: i32) -> (i32, i32, i32, i32, i32) {
    %c0_i32 = arith.constant 0 : i32
    %c0_i32_0 = arith.constant 0 : i32
    %c0_i32_1 = arith.constant 0 : i32
    %c0_i32_2 = arith.constant 0 : i32
    %c0_i32_3 = arith.constant 0 : i32
    return %arg0, %c0_i32, %c0_i32_0, %c0_i32_1, %c0_i32_2 : i32, i32, i32, i32, i32
  }
  func.func @transform_1(%arg0: i32) -> (i32, i32) {
    %c0_i32 = arith.constant 0 : i32
    %c0_i32_0 = arith.constant 0 : i32
    %c0_i32_1 = arith.constant 0 : i32
    return %c0_i32, %c0_i32_0 : i32, i32
  }
  func.func @transform_2(%arg0: i32) -> (i32, i32, i32, i32) {
    %c0_i32 = arith.constant 0 : i32
    %c0_i32_0 = arith.constant 0 : i32
    %c0_i32_1 = arith.constant 0 : i32
    %c0_i32_2 = arith.constant 0 : i32
    %c0_i32_3 = arith.constant 0 : i32
    return %c0_i32, %c0_i32_0, %c0_i32_1, %c0_i32_2 : i32, i32, i32, i32
  }
  func.func @transform_3(%arg0: i32) -> (i32, i32) {
    %c0_i32 = arith.constant 0 : i32
    %c0_i32_0 = arith.constant 0 : i32
    %c0_i32_1 = arith.constant 0 : i32
    return %c0_i32, %c0_i32_0 : i32, i32
  }
  func.func @transform_4(%arg0: i32) -> (i32, i32) {
    %c0_i32 = arith.constant 0 : i32
    %c0_i32_0 = arith.constant 0 : i32
    %c0_i32_1 = arith.constant 0 : i32
    return %c0_i32, %c0_i32_0 : i32, i32
  }
  func.func @transform_5(%arg0: i32) -> (i32, i32) {
    %c0_i32 = arith.constant 0 : i32
    %c0_i32_0 = arith.constant 0 : i32
    %c0_i32_1 = arith.constant 0 : i32
    return %c0_i32, %c0_i32_0 : i32, i32
  }
  func.func @transform_6(%arg0: i32) -> (i32, i32) {
    %c0_i32 = arith.constant 0 : i32
    %c0_i32_0 = arith.constant 0 : i32
    %c0_i32_1 = arith.constant 0 : i32
    return %c0_i32, %c0_i32_0 : i32, i32
  }
  func.func @transform_7(%arg0: i32) -> (i32, i32) {
    %c0_i32 = arith.constant 0 : i32
    %c0_i32_0 = arith.constant 0 : i32
    %c0_i32_1 = arith.constant 0 : i32
    return %c0_i32, %c0_i32_0 : i32, i32
  }
  func.func @transform_8(%arg0: i32) -> (i32, i32) {
    %c0_i32 = arith.constant 0 : i32
    %c0_i32_0 = arith.constant 0 : i32
    %c0_i32_1 = arith.constant 0 : i32
    return %c0_i32, %c0_i32_0 : i32, i32
  }
  func.func @transform_9(%arg0: i32) -> (i32, i32) {
    %c0_i32 = arith.constant 0 : i32
    %c0_i32_0 = arith.constant 0 : i32
    %c0_i32_1 = arith.constant 0 : i32
    return %c0_i32, %c0_i32_0 : i32, i32
  }
  func.func @transform_10(%arg0: i32) -> (i32, i32, i32) {
    %c0_i32 = arith.constant 0 : i32
    %c0_i32_0 = arith.constant 0 : i32
    %c0_i32_1 = arith.constant 0 : i32
    return %arg0, %c0_i32, %c0_i32_0 : i32, i32, i32
  }
}

</mosaic_0001>

<llo_original>
// kernel: tpu_custom_call.1
$region0: #{tpu_custom_call.1}
  #allocation0 [shape = 'u32[]', space=smem, size = 0x4, offset = 0x4, fixed_abs, tag = 'smem constant byte address 0x4 - core index']
  #allocation1 [shape = 'u32[144,128]{1,0:T(1,128)}', space=vmem, size = 0x12000, scoped, tag = 'internal scratch']
  %s0 = inlined_call_operand.hbm [shape: f32[2,2,8,20], index: 0, kind: input, shape index: {}]
  %s1 = inlined_call_operand.hbm [shape: f32[2,2,8,20], index: 1, kind: output, shape index: {}]
  %s2 = sld [smem:[#allocation0]]
  $region18: #{tpu_custom_call.1} parent=0
    _
  %s4 = ssub.s32 1, %s2
  %s5 = scalar_select 0, %s4, %s2
  $region1: #{tpu_custom_call.1} parent=0
    #allocation2 [shape = 'u8[16384]{0}', space=vmem, size = 0x4000, scoped, tag = 'input window, operand 0, single buffered']
    #allocation3 [shape = 's32[1]{0}', space=sflag, size = 0x4, scoped, tag = 'scoped memory for tpu_custom_call.1']
    #allocation4 [shape = 's32[1]{0}', space=sflag, size = 0x4, scoped, tag = 'scoped memory for tpu_custom_call.1']
    #allocation5 [shape = 'u8[16384]{0}', space=vmem, size = 0x4000, scoped, tag = 'output window, operand 0, single buffered']
    %6 = vsyncpa [#allocation3], 0
    %7 = vsyncpa [#allocation4], 0
    // Predicated region
    $region2: #{tpu_custom_call.1} parent=1 // pred_check
      _
    $region3: #{tpu_custom_call.1} parent=1 // pred_check_branch
      %9 = sbr.rel (0) target = $region5
    $region4: #{tpu_custom_call.1} parent=1 // pred_region
      %s11 = ssub.s32 512, 512
      %12 = vsyncadd [#allocation3], %s11
      %s13 = sshll.u32 [#allocation2], 4
      %s14 = int_to_ptr.vmem [resolvable:$true] %s13
      %19 = dma.hbm_to_vmem [thread:$0]  %s0, 512, %s14, [#allocation3], 128, 128, 8
    $region5: #{tpu_custom_call.1} parent=1 // pred_fallthru
      _
    // Predicated region
    $region6: #{tpu_custom_call.1} parent=1 // pred_check
      _
    $region7: #{tpu_custom_call.1} parent=1 // pred_check_branch
      %21 = sbr.rel (0) target = $region9
    $region8: #{tpu_custom_call.1} parent=1 // pred_region
      %22 = dma.done [#allocation3], 512
    $region9: #{tpu_custom_call.1} parent=1 // pred_fallthru
      _
    %v23 = vld [vmem:[#allocation2] sm:$0xff]
    %v24 = vld [vmem:[#allocation2 + $0x8] sm:$0xff]
    %v25 = vld [vmem:[#allocation2 + $0x10] sm:$0xff]
    %v26 = vld [vmem:[#allocation2 + $0x18] sm:$0xff]
    %v27 = vrot.slane %v23, 7
    %v28 = vrot.slane %v24, 7
    %v29 = vrot.slane %v25, 7
    %v30 = vrot.slane %v26, 7
    %vm31 = vcmask 162816
    %32 = vst.msk [vmem:[#allocation5] sm:$0xff] %vm31, %v27
    %33 = vst.msk [vmem:[#allocation5 + $0x8] sm:$0xff] %vm31, %v28
    %34 = vst.msk [vmem:[#allocation5 + $0x10] sm:$0xff] %vm31, %v29
    %35 = vst.msk [vmem:[#allocation5 + $0x18] sm:$0xff] %vm31, %v30
    // Predicated region
    $region10: #{tpu_custom_call.1} parent=1 // pred_check
      _
    $region11: #{tpu_custom_call.1} parent=1 // pred_check_branch
      %37 = sbr.rel (0) target = $region13
    $region12: #{tpu_custom_call.1} parent=1 // pred_region
      %s39 = ssub.s32 512, 512
      %40 = vsyncadd [#allocation4], %s39
      %s41 = sshll.u32 [#allocation5], 4
      %s42 = int_to_ptr.vmem [resolvable:$true] %s41
      %47 = dma.vmem_to_hbm [thread:$0]  %s42, 512, %s1, [#allocation4], 128, 128, 8
    $region13: #{tpu_custom_call.1} parent=1 // pred_fallthru
      _
    // Predicated region
    $region14: #{tpu_custom_call.1} parent=1 // pred_check
      _
    $region15: #{tpu_custom_call.1} parent=1 // pred_check_branch
      %49 = sbr.rel (0) target = $region17
    $region16: #{tpu_custom_call.1} parent=1 // pred_region
      %50 = dma.done [#allocation4], 512
    $region17: #{tpu_custom_call.1} parent=1 // pred_fallthru
      _
    %51 = vsyncpa [#allocation3], 1
    %52 = vsyncpa [#allocation4], 1

// kernel: shiftmlp_forward.1
$region0: #{shiftmlp_forward.1}
  #allocation0 [shape = 'u32[]', space=smem, size = 0x4, offset = 0x4, fixed_abs, tag = 'smem constant byte address 0x4 - core index']
  #allocation1 [shape = 'u32[144,128]{1,0:T(1,128)}', space=vmem, size = 0x12000, scoped, tag = 'internal scratch']
  #allocation2 [shape = 'f32[10,10,8,20]{3,2,1,0:T(8,128)}', space=vmem, size = 0x64000, scoped, tag = 'scratch operand']
  %s0 = inlined_call_operand.vmem [shape: f32[2,8,8,8,20], index: 0, kind: input, shape index: {}]
  %s1 = inlined_call_operand.vmem [shape: f32[5,20], index: 1, kind: input, shape index: {}]
  %s2 = inlined_call_operand.vmem [shape: f32[3,3,3,20], index: 2, kind: input, shape index: {}]
  %s3 = inlined_call_operand.vmem [shape: f32[1,20], index: 3, kind: input, shape index: {}]
  %s4 = inlined_call_operand.vmem [shape: bf16[20,20], index: 4, kind: input, shape index: {}]
  %s5 = inlined_call_operand.vmem [shape: f32[1,20], index: 5, kind: input, shape index: {}]
  %s6 = inlined_call_operand.vmem [shape: bf16[20,20], index: 6, kind: input, shape index: {}]
  %s7 = inlined_call_operand.vmem [shape: f32[1,20], index: 7, kind: input, shape index: {}]
  %s8 = inlined_call_operand.vmem [shape: bf16[20,20], index: 8, kind: input, shape index: {}]
  %s9 = inlined_call_operand.vmem [shape: f32[1,20], index: 9, kind: input, shape index: {}]
  %s10 = inlined_call_operand.vmem [shape: f32[2,512,20], index: 10, kind: output, shape index: {}]
  %s11 = sld [smem:[#allocation0]]
  $region73: #{shiftmlp_forward.1} parent=0
    _
  %s13 = ssub.s32 1, %s11
  %s14 = scalar_select 0, %s13, %s11
  loop: start=0, step=1, limit=4
  $region2: #{shiftmlp_forward.1} parent=0 // loop_pre_header
    _
  $region3: #{shiftmlp_forward.1} parent=0 // loop_header
    %s16 = sphi 0, %s20
    %p17 = scmp.ge.s32.totalorder %s16, 4
    %s26 = sphi 0, %s28
    %s29 = sphi 0, %s26
    %s30 = sphi 0, %s29
    %s46 = sphi 0, %s30
    %s50 = sphi 0, %s50
    %s52 = sphi 0, %s50
    %s53 = sphi 0, %s52
    %s67 = sphi 0, %s53
    %s71 = sphi 0, %s71
    %s73 = sphi 0, %s71
    %s74 = sphi 0, %s73
    %s88 = sphi 0, %s74
    %s92 = sphi 0, %s92
    %s94 = sphi 0, %s92
    %s95 = sphi 0, %s94
    %s109 = sphi 0, %s95
    %s113 = sphi 0, %s113
    %s115 = sphi 0, %s113
    %s116 = sphi 0, %s115
    %s130 = sphi 0, %s116
    %s134 = sphi 0, %s134
    %s136 = sphi 0, %s134
    %s137 = sphi 0, %s136
    %s151 = sphi 0, %s137
    %s155 = sphi 0, %s155
    %s157 = sphi 0, %s155
    %s158 = sphi 0, %s157
    %s172 = sphi 0, %s158
    %s176 = sphi 0, %s176
    %s178 = sphi 0, %s176
    %s179 = sphi 0, %s178
    %s193 = sphi 0, %s179
    %s197 = sphi 0, %s197
    %s199 = sphi 0, %s197
    %s200 = sphi 0, %s199
    %s214 = sphi 0, %s200
    %s218 = sphi 0, %s218
    %s220 = sphi 0, %s218
    %s221 = sphi 0, %s220
    %s235 = sphi 0, %s221
    %s241 = sphi 0, %s243
    %s244 = sphi 0, %s241
    %s245 = sphi 0, %s244
    %s261 = sphi 0, %s245
  $region4: #{shiftmlp_forward.1} parent=0 // loop_header_branch
    %19 = sbr.rel (%p17) target = $region8
  $region5: #{shiftmlp_forward.1} parent=0 // loop_body
    %s21 = ssub.s32 %s16, 1
    %s22 = ssub.s32 %s16, 2
    %s23 = sadd.s32 %s16, 1
    %s24 = ssub.s32 %s16, %s23
    %p25 = scmp.eq.s32.totalorder %s24, 0
    %s27 = sadd.s32 %s26, 1
    %s28 = scalar_select %p25, %s26, %s27
    %p31 = pneg %p25
    %p32 = scmp.eq.s32.totalorder %s16, 1
    %p33 = por %p31, %p32
    %p34 = scmp.ne.s32.totalorder %s26, %s29
    %p35 = scmp.eq.s32.totalorder %s16, 0
    %p36 = por %p34, %p35
    %p37 = scmp.ne.s32.totalorder %s26, %s29
    %p38 = scmp.eq.s32.totalorder %s21, 1
    %p39 = por %p37, %p38
    %p40 = scmp.ne.s32.totalorder %s29, %s30
    %p41 = scmp.eq.s32.totalorder %s21, 0
    %p42 = por %p40, %p41
    %p43 = scmp.ne.s32.totalorder %s29, %s30
    %p44 = scmp.eq.s32.totalorder %s22, 1
    %p45 = por %p43, %p44
    %p47 = scmp.ne.s32.totalorder %s30, %s46
    %p48 = scmp.eq.s32.totalorder %s22, 0
    %p49 = por %p47, %p48
    %s51 = sadd.s32 %s50, 1
    %p54 = scmp.eq.s32.totalorder %s16, 1
    %p55 = scmp.ne.s32.totalorder %s50, %s52
    %p56 = scmp.eq.s32.totalorder %s16, 0
    %p57 = por %p55, %p56
    %p58 = scmp.ne.s32.totalorder %s50, %s52
    %p59 = scmp.eq.s32.totalorder %s21, 1
    %p60 = por %p58, %p59
    %p61 = scmp.ne.s32.totalorder %s52, %s53
    %p62 = scmp.eq.s32.totalorder %s21, 0
    %p63 = por %p61, %p62
    %p64 = scmp.ne.s32.totalorder %s52, %s53
    %p65 = scmp.eq.s32.totalorder %s22, 1
    %p66 = por %p64, %p65
    %p68 = scmp.ne.s32.totalorder %s53, %s67
    %p69 = scmp.eq.s32.totalorder %s22, 0
    %p70 = por %p68, %p69
    %s72 = sadd.s32 %s71, 1
    %p75 = scmp.eq.s32.totalorder %s16, 1
    %p76 = scmp.ne.s32.totalorder %s71, %s73
    %p77 = scmp.eq.s32.totalorder %s16, 0
    %p78 = por %p76, %p77
    %p79 = scmp.ne.s32.totalorder %s71, %s73
    %p80 = scmp.eq.s32.totalorder %s21, 1
    %p81 = por %p79, %p80
    %p82 = scmp.ne.s32.totalorder %s73, %s74
    %p83 = scmp.eq.s32.totalorder %s21, 0
    %p84 = por %p82, %p83
    %p85 = scmp.ne.s32.totalorder %s73, %s74
    %p86 = scmp.eq.s32.totalorder %s22, 1
    %p87 = por %p85, %p86
    %p89 = scmp.ne.s32.totalorder %s74, %s88
    %p90 = scmp.eq.s32.totalorder %s22, 0
    %p91 = por %p89, %p90
    %s93 = sadd.s32 %s92, 1
    %p96 = scmp.eq.s32.totalorder %s16, 1
    %p97 = scmp.ne.s32.totalorder %s92, %s94
    %p98 = scmp.eq.s32.totalorder %s16, 0
    %p99 = por %p97, %p98
    %p100 = scmp.ne.s32.totalorder %s92, %s94
    %p101 = scmp.eq.s32.totalorder %s21, 1
    %p102 = por %p100, %p101
    %p103 = scmp.ne.s32.totalorder %s94, %s95
    %p104 = scmp.eq.s32.totalorder %s21, 0
    %p105 = por %p103, %p104
    %p106 = scmp.ne.s32.totalorder %s94, %s95
    %p107 = scmp.eq.s32.totalorder %s22, 1
    %p108 = por %p106, %p107
    %p110 = scmp.ne.s32.totalorder %s95, %s109
    %p111 = scmp.eq.s32.totalorder %s22, 0
    %p112 = por %p110, %p111
    %s114 = sadd.s32 %s113, 1
    %p117 = scmp.eq.s32.totalorder %s16, 1
    %p118 = scmp.ne.s32.totalorder %s113, %s115
    %p119 = scmp.eq.s32.totalorder %s16, 0
    %p120 = por %p118, %p119
    %p121 = scmp.ne.s32.totalorder %s113, %s115
    %p122 = scmp.eq.s32.totalorder %s21, 1
    %p123 = por %p121, %p122
    %p124 = scmp.ne.s32.totalorder %s115, %s116
    %p125 = scmp.eq.s32.totalorder %s21, 0
    %p126 = por %p124, %p125
    %p127 = scmp.ne.s32.totalorder %s115, %s116
    %p128 = scmp.eq.s32.totalorder %s22, 1
    %p129 = por %p127, %p128
    %p131 = scmp.ne.s32.totalorder %s116, %s130
    %p132 = scmp.eq.s32.totalorder %s22, 0
    %p133 = por %p131, %p132
    %s135 = sadd.s32 %s134, 1
    %p138 = scmp.eq.s32.totalorder %s16, 1
    %p139 = scmp.ne.s32.totalorder %s134, %s136
    %p140 = scmp.eq.s32.totalorder %s16, 0
    %p141 = por %p139, %p140
    %p142 = scmp.ne.s32.totalorder %s134, %s136
    %p143 = scmp.eq.s32.totalorder %s21, 1
    %p144 = por %p142, %p143
    %p145 = scmp.ne.s32.totalorder %s136, %s137
    %p146 = scmp.eq.s32.totalorder %s21, 0
    %p147 = por %p145, %p146
    %p148 = scmp.ne.s32.totalorder %s136, %s137
    %p149 = scmp.eq.s32.totalorder %s22, 1
    %p150 = por %p148, %p149
    %p152 = scmp.ne.s32.totalorder %s137, %s151
    %p153 = scmp.eq.s32.totalorder %s22, 0
    %p154 = por %p152, %p153
    %s156 = sadd.s32 %s155, 1
    %p159 = scmp.eq.s32.totalorder %s16, 1
    %p160 = scmp.ne.s32.totalorder %s155, %s157
    %p161 = scmp.eq.s32.totalorder %s16, 0
    %p162 = por %p160, %p161
    %p163 = scmp.ne.s32.totalorder %s155, %s157
    %p164 = scmp.eq.s32.totalorder %s21, 1
    %p165 = por %p163, %p164
    %p166 = scmp.ne.s32.totalorder %s157, %s158
    %p167 = scmp.eq.s32.totalorder %s21, 0
    %p168 = por %p166, %p167
    %p169 = scmp.ne.s32.totalorder %s157, %s158
    %p170 = scmp.eq.s32.totalorder %s22, 1
    %p171 = por %p169, %p170
    %p173 = scmp.ne.s32.totalorder %s158, %s172
    %p174 = scmp.eq.s32.totalorder %s22, 0
    %p175 = por %p173, %p174
    %s177 = sadd.s32 %s176, 1
    %p180 = scmp.eq.s32.totalorder %s16, 1
    %p181 = scmp.ne.s32.totalorder %s176, %s178
    %p182 = scmp.eq.s32.totalorder %s16, 0
    %p183 = por %p181, %p182
    %p184 = scmp.ne.s32.totalorder %s176, %s178
    %p185 = scmp.eq.s32.totalorder %s21, 1
    %p186 = por %p184, %p185
    %p187 = scmp.ne.s32.totalorder %s178, %s179
    %p188 = scmp.eq.s32.totalorder %s21, 0
    %p189 = por %p187, %p188
    %p190 = scmp.ne.s32.totalorder %s178, %s179
    %p191 = scmp.eq.s32.totalorder %s22, 1
    %p192 = por %p190, %p191
    %p194 = scmp.ne.s32.totalorder %s179, %s193
    %p195 = scmp.eq.s32.totalorder %s22, 0
    %p196 = por %p194, %p195
    %s198 = sadd.s32 %s197, 1
    %p201 = scmp.eq.s32.totalorder %s16, 1
    %p202 = scmp.ne.s32.totalorder %s197, %s199
    %p203 = scmp.eq.s32.totalorder %s16, 0
    %p204 = por %p202, %p203
    %p205 = scmp.ne.s32.totalorder %s197, %s199
    %p206 = scmp.eq.s32.totalorder %s21, 1
    %p207 = por %p205, %p206
    %p208 = scmp.ne.s32.totalorder %s199, %s200
    %p209 = scmp.eq.s32.totalorder %s21, 0
    %p210 = por %p208, %p209
    %p211 = scmp.ne.s32.totalorder %s199, %s200
    %p212 = scmp.eq.s32.totalorder %s22, 1
    %p213 = por %p211, %p212
    %p215 = scmp.ne.s32.totalorder %s200, %s214
    %p216 = scmp.eq.s32.totalorder %s22, 0
    %p217 = por %p215, %p216
    %s219 = sadd.s32 %s218, 1
    %p222 = scmp.eq.s32.totalorder %s16, 1
    %p223 = scmp.ne.s32.totalorder %s218, %s220
    %p224 = scmp.eq.s32.totalorder %s16, 0
    %p225 = por %p223, %p224
    %p226 = scmp.ne.s32.totalorder %s218, %s220
    %p227 = scmp.eq.s32.totalorder %s21, 1
    %p228 = por %p226, %p227
    %p229 = scmp.ne.s32.totalorder %s220, %s221
    %p230 = scmp.eq.s32.totalorder %s21, 0
    %p231 = por %p229, %p230
    %p232 = scmp.ne.s32.totalorder %s220, %s221
    %p233 = scmp.eq.s32.totalorder %s22, 1
    %p234 = por %p232, %p233
    %p236 = scmp.ne.s32.totalorder %s221, %s235
    %p237 = scmp.eq.s32.totalorder %s22, 0
    %p238 = por %p236, %p237
    %s239 = ssub.s32 %s16, %s23
    %p240 = scmp.eq.s32.totalorder %s239, 0
    %s242 = sadd.s32 %s241, 1
    %s243 = scalar_select %p240, %s241, %s242
    %p246 = pneg %p240
    %p247 = scmp.eq.s32.totalorder %s16, 1
    %p248 = por %p246, %p247
    %p249 = scmp.ne.s32.totalorder %s241, %s244
    %p250 = scmp.eq.s32.totalorder %s16, 0
    %p251 = por %p249, %p250
    %p252 = scmp.ne.s32.totalorder %s241, %s244
    %p253 = scmp.eq.s32.totalorder %s21, 1
    %p254 = por %p252, %p253
    %p255 = scmp.ne.s32.totalorder %s244, %s245
    %p256 = scmp.eq.s32.totalorder %s21, 0
    %p257 = por %p255, %p256
    %p258 = scmp.ne.s32.totalorder %s244, %s245
    %p259 = scmp.eq.s32.totalorder %s22, 1
    %p260 = por %p258, %p259
    %p262 = scmp.ne.s32.totalorder %s245, %s261
    %p263 = scmp.eq.s32.totalorder %s22, 0
    %p264 = por %p262, %p263
    %p265 = scmp.le.s32.totalorder 1, %s16
    %p266 = scmp.lt.s32.totalorder %s16, 3
    %p267 = pnand %p265, %p266
    %p268 = pneg %p267
    // Predicated region
    $region9: #{shiftmlp_forward.1} parent=5 // pred_check
      _
    $region10: #{shiftmlp_forward.1} parent=5 // pred_check_branch
      %270 = sbr.rel (%p267) target = $region12
    $region11: #{shiftmlp_forward.1} parent=5 // pred_region
      %s271 = ssub.s32 %s16, 1
      // Predicated region
      $region13: #{shiftmlp_forward.1} parent=11 // pred_check
        %p272 = pneg %p63
      $region14: #{shiftmlp_forward.1} parent=11 // pred_check_branch
        %274 = sbr.rel (%p272) target = $region16
      $region15: #{shiftmlp_forward.1} parent=11 // pred_region
        _
      $region16: #{shiftmlp_forward.1} parent=11 // pred_fallthru
        _
      // Predicated region
      $region17: #{shiftmlp_forward.1} parent=11 // pred_check
        %p275 = pneg %p84
      $region18: #{shiftmlp_forward.1} parent=11 // pred_check_branch
        %277 = sbr.rel (%p275) target = $region20
      $region19: #{shiftmlp_forward.1} parent=11 // pred_region
        _
      $region20: #{shiftmlp_forward.1} parent=11 // pred_fallthru
        _
      // Predicated region
      $region21: #{shiftmlp_forward.1} parent=11 // pred_check
        %p278 = pneg %p105
      $region22: #{shiftmlp_forward.1} parent=11 // pred_check_branch
        %280 = sbr.rel (%p278) target = $region24
      $region23: #{shiftmlp_forward.1} parent=11 // pred_region
        _
      $region24: #{shiftmlp_forward.1} parent=11 // pred_fallthru
        _
      // Predicated region
      $region25: #{shiftmlp_forward.1} parent=11 // pred_check
        %p281 = pneg %p126
      $region26: #{shiftmlp_forward.1} parent=11 // pred_check_branch
        %283 = sbr.rel (%p281) target = $region28
      $region27: #{shiftmlp_forward.1} parent=11 // pred_region
        _
      $region28: #{shiftmlp_forward.1} parent=11 // pred_fallthru
        _
      // Predicated region
      $region29: #{shiftmlp_forward.1} parent=11 // pred_check
        %p284 = pneg %p147
      $region30: #{shiftmlp_forward.1} parent=11 // pred_check_branch
        %286 = sbr.rel (%p284) target = $region32
      $region31: #{shiftmlp_forward.1} parent=11 // pred_region
        _
      $region32: #{shiftmlp_forward.1} parent=11 // pred_fallthru
        _
      // Predicated region
      $region33: #{shiftmlp_forward.1} parent=11 // pred_check
        %p287 = pneg %p168
      $region34: #{shiftmlp_forward.1} parent=11 // pred_check_branch
        %289 = sbr.rel (%p287) target = $region36
      $region35: #{shiftmlp_forward.1} parent=11 // pred_region
        _
      $region36: #{shiftmlp_forward.1} parent=11 // pred_fallthru
        _
      // Predicated region
      $region37: #{shiftmlp_forward.1} parent=11 // pred_check
        %p290 = pneg %p189
      $region38: #{shiftmlp_forward.1} parent=11 // pred_check_branch
        %292 = sbr.rel (%p290) target = $region40
      $region39: #{shiftmlp_forward.1} parent=11 // pred_region
        _
      $region40: #{shiftmlp_forward.1} parent=11 // pred_fallthru
        _
      // Predicated region
      $region41: #{shiftmlp_forward.1} parent=11 // pred_check
        %p293 = pneg %p210
      $region42: #{shiftmlp_forward.1} parent=11 // pred_check_branch
        %295 = sbr.rel (%p293) target = $region44
      $region43: #{shiftmlp_forward.1} parent=11 // pred_region
        _
      $region44: #{shiftmlp_forward.1} parent=11 // pred_fallthru
        _
      // Predicated region
      $region45: #{shiftmlp_forward.1} parent=11 // pred_check
        %p296 = pneg %p231
      $region46: #{shiftmlp_forward.1} parent=11 // pred_check_branch
        %298 = sbr.rel (%p296) target = $region48
      $region47: #{shiftmlp_forward.1} parent=11 // pred_region
        _
      $region48: #{shiftmlp_forward.1} parent=11 // pred_fallthru
        _
    $region12: #{shiftmlp_forward.1} parent=5 // pred_fallthru
      _
    %p299 = scmp.lt.s32.totalorder %s16, 2
    // Predicated region
    $region49: #{shiftmlp_forward.1} parent=5 // pred_check
      %p300 = pneg %p299
    $region50: #{shiftmlp_forward.1} parent=5 // pred_check_branch
      %302 = sbr.rel (%p300) target = $region52
    $region51: #{shiftmlp_forward.1} parent=5 // pred_region
      // Predicated region
      $region53: #{shiftmlp_forward.1} parent=51 // pred_check
        %p303 = pneg %p36
      $region54: #{shiftmlp_forward.1} parent=51 // pred_check_branch
        %305 = sbr.rel (%p303) target = $region56
      $region55: #{shiftmlp_forward.1} parent=51 // pred_region
        %p306 = scmp.lt.s32.totalorder %s16, 1
        %s307 = scalar_select %p306, %s16, 1
        %s308 = smul.addr %s307, 64
        %s309 = smul.addr %s308, 8
        %s310 = scalar_lea.vmem %s0, %s309
      $region56: #{shiftmlp_forward.1} parent=51 // pred_fallthru
        _
    $region52: #{shiftmlp_forward.1} parent=5 // pred_fallthru
      _
    %p311 = scmp.le.s32.totalorder 1, %s16
    %p312 = scmp.lt.s32.totalorder %s16, 3
    %p313 = pnand %p311, %p312
    %p314 = pneg %p313
    // Predicated region
    $region57: #{shiftmlp_forward.1} parent=5 // pred_check
      _
    $region58: #{shiftmlp_forward.1} parent=5 // pred_check_branch
      %316 = sbr.rel (%p313) target = $region60
    $region59: #{shiftmlp_forward.1} parent=5 // pred_region
      %s317 = ssub.s32 %s16, 1
      %p318 = scmp.lt.s32.totalorder %s21, 1
      %s319 = scalar_select %p318, %s21, 1
      %s320 = smul.addr %s319, 64
      %s321 = smul.addr %s320, 8
      %s322 = scalar_lea.vmem %s0, %s321
      %p323 = pneg %p42
      %p324 = pneg %p39
      %p325 = pneg %p63
      %p326 = pneg %p60
      %p327 = pneg %p84
      %p328 = pneg %p81
      %p329 = pneg %p105
      %p330 = pneg %p102
      %p331 = pneg %p126
      %p332 = pneg %p123
      %p333 = pneg %p147
      %p334 = pneg %p144
      %p335 = pneg %p168
      %p336 = pneg %p165
      %p337 = pneg %p189
      %p338 = pneg %p186
      %p339 = pneg %p210
      %p340 = pneg %p207
      %p341 = pneg %p231
      %p342 = pneg %p228
      %p343 = pneg %p257
      %p344 = pneg %p254
      %p345 = scmp.lt.s32.totalorder %s21, 1
      %s346 = scalar_select %p345, %s21, 1
      %s347 = smul.addr %s346, 64
      %s348 = smul.addr %s347, 8
      %s349 = scalar_lea.vmem %s10, %s348
      %p350 = scmp.lt.s32.totalorder %s21, 1
      %s351 = scalar_select %p350, %s21, 1
      %s352 = smul.addr %s351, 64
      %s353 = smul.addr %s352, 8
      %s354 = scalar_lea.vmem %s0, %s353
      %p355 = scmp.lt.s32.totalorder %s21, 1
      %s356 = scalar_select %p355, %s21, 1
      %s357 = smul.addr %s356, 64
      %s358 = smul.addr %s357, 8
      %s359 = scalar_lea.vmem %s10, %s358
      %vm361 = vcmask 162816
      %362 = vst.msk [vmem:[#allocation2] sm:$0xff] %vm361, 0.0
      %363 = vst.msk [vmem:[#allocation2 + $0x8] sm:$0xff] %vm361, 0.0
      %364 = vst.msk [vmem:[#allocation2 + $0x10] sm:$0xff] %vm361, 0.0
      %365 = vst.msk [vmem:[#allocation2 + $0x18] sm:$0xff] %vm361, 0.0
      %366 = vst.msk [vmem:[#allocation2 + $0x20] sm:$0xff] %vm361, 0.0
      %367 = vst.msk [vmem:[#allocation2 + $0x28] sm:$0xff] %vm361, 0.0
      %368 = vst.msk [vmem:[#allocation2 + $0x30] sm:$0xff] %vm361, 0.0
      %369 = vst.msk [vmem:[#allocation2 + $0x38] sm:$0xff] %vm361, 0.0
      %370 = vst.msk [vmem:[#allocation2 + $0x40] sm:$0xff] %vm361, 0.0
      %371 = vst.msk [vmem:[#allocation2 + $0x48] sm:$0xff] %vm361, 0.0
      %372 = vst.msk [vmem:[#allocation2 + $0x50] sm:$0xff] %vm361, 0.0
      %373 = vst.msk [vmem:[#allocation2 + $0x58] sm:$0xff] %vm361, 0.0
      %374 = vst.msk [vmem:[#allocation2 + $0x60] sm:$0xff] %vm361, 0.0
      %375 = vst.msk [vmem:[#allocation2 + $0x68] sm:$0xff] %vm361, 0.0
      %376 = vst.msk [vmem:[#allocation2 + $0x70] sm:$0xff] %vm361, 0.0
      %377 = vst.msk [vmem:[#allocation2 + $0x78] sm:$0xff] %vm361, 0.0
      %378 = vst.msk [vmem:[#allocation2 + $0x80] sm:$0xff] %vm361, 0.0
      %379 = vst.msk [vmem:[#allocation2 + $0x88] sm:$0xff] %vm361, 0.0
      %380 = vst.msk [vmem:[#allocation2 + $0x90] sm:$0xff] %vm361, 0.0
      %381 = vst.msk [vmem:[#allocation2 + $0x98] sm:$0xff] %vm361, 0.0
      %382 = vst.msk [vmem:[#allocation2 + $0xa0] sm:$0xff] %vm361, 0.0
      %383 = vst.msk [vmem:[#allocation2 + $0xa8] sm:$0xff] %vm361, 0.0
      %384 = vst.msk [vmem:[#allocation2 + $0xb0] sm:$0xff] %vm361, 0.0
      %385 = vst.msk [vmem:[#allocation2 + $0xb8] sm:$0xff] %vm361, 0.0
      %386 = vst.msk [vmem:[#allocation2 + $0xc0] sm:$0xff] %vm361, 0.0
      %387 = vst.msk [vmem:[#allocation2 + $0xc8] sm:$0xff] %vm361, 0.0
      %388 = vst.msk [vmem:[#allocation2 + $0xd0] sm:$0xff] %vm361, 0.0
      %389 = vst.msk [vmem:[#allocation2 + $0xd8] sm:$0xff] %vm361, 0.0
      %390 = vst.msk [vmem:[#allocation2 + $0xe0] sm:$0xff] %vm361, 0.0
      %391 = vst.msk [vmem:[#allocation2 + $0xe8] sm:$0xff] %vm361, 0.0
      %392 = vst.msk [vmem:[#allocation2 + $0xf0] sm:$0xff] %vm361, 0.0
      %393 = vst.msk [vmem:[#allocation2 + $0xf8] sm:$0xff] %vm361, 0.0
      %394 = vst.msk [vmem:[#allocation2 + $0x100] sm:$0xff] %vm361, 0.0
      %395 = vst.msk [vmem:[#allocation2 + $0x108] sm:$0xff] %vm361, 0.0
      %396 = vst.msk [vmem:[#allocation2 + $0x110] sm:$0xff] %vm361, 0.0
      %397 = vst.msk [vmem:[#allocation2 + $0x118] sm:$0xff] %vm361, 0.0
      %398 = vst.msk [vmem:[#allocation2 + $0x120] sm:$0xff] %vm361, 0.0
      %399 = vst.msk [vmem:[#allocation2 + $0x128] sm:$0xff] %vm361, 0.0
      %400 = vst.msk [vmem:[#allocation2 + $0x130] sm:$0xff] %vm361, 0.0
      %401 = vst.msk [vmem:[#allocation2 + $0x138] sm:$0xff] %vm361, 0.0
      %402 = vst.msk [vmem:[#allocation2 + $0x140] sm:$0xff] %vm361, 0.0
      %403 = vst.msk [vmem:[#allocation2 + $0x148] sm:$0xff] %vm361, 0.0
      %404 = vst.msk [vmem:[#allocation2 + $0x150] sm:$0xff] %vm361, 0.0
      %405 = vst.msk [vmem:[#allocation2 + $0x158] sm:$0xff] %vm361, 0.0
      %406 = vst.msk [vmem:[#allocation2 + $0x160] sm:$0xff] %vm361, 0.0
      %407 = vst.msk [vmem:[#allocation2 + $0x168] sm:$0xff] %vm361, 0.0
      %408 = vst.msk [vmem:[#allocation2 + $0x170] sm:$0xff] %vm361, 0.0
      %409 = vst.msk [vmem:[#allocation2 + $0x178] sm:$0xff] %vm361, 0.0
      %410 = vst.msk [vmem:[#allocation2 + $0x180] sm:$0xff] %vm361, 0.0
      %411 = vst.msk [vmem:[#allocation2 + $0x188] sm:$0xff] %vm361, 0.0
      %412 = vst.msk [vmem:[#allocation2 + $0x190] sm:$0xff] %vm361, 0.0
      %413 = vst.msk [vmem:[#allocation2 + $0x198] sm:$0xff] %vm361, 0.0
      %414 = vst.msk [vmem:[#allocation2 + $0x1a0] sm:$0xff] %vm361, 0.0
      %415 = vst.msk [vmem:[#allocation2 + $0x1a8] sm:$0xff] %vm361, 0.0
      %416 = vst.msk [vmem:[#allocation2 + $0x1b0] sm:$0xff] %vm361, 0.0
      %417 = vst.msk [vmem:[#allocation2 + $0x1b8] sm:$0xff] %vm361, 0.0
      %418 = vst.msk [vmem:[#allocation2 + $0x1c0] sm:$0xff] %vm361, 0.0
      %419 = vst.msk [vmem:[#allocation2 + $0x1c8] sm:$0xff] %vm361, 0.0
      %420 = vst.msk [vmem:[#allocation2 + $0x1d0] sm:$0xff] %vm361, 0.0
      %421 = vst.msk [vmem:[#allocation2 + $0x1d8] sm:$0xff] %vm361, 0.0
      %422 = vst.msk [vmem:[#allocation2 + $0x1e0] sm:$0xff] %vm361, 0.0
      %423 = vst.msk [vmem:[#allocation2 + $0x1e8] sm:$0xff] %vm361, 0.0
      %424 = vst.msk [vmem:[#allocation2 + $0x1f0] sm:$0xff] %vm361, 0.0
      %425 = vst.msk [vmem:[#allocation2 + $0x1f8] sm:$0xff] %vm361, 0.0
      %426 = vst.msk [vmem:[#allocation2 + $0x200] sm:$0xff] %vm361, 0.0
      %427 = vst.msk [vmem:[#allocation2 + $0x208] sm:$0xff] %vm361, 0.0
      %428 = vst.msk [vmem:[#allocation2 + $0x210] sm:$0xff] %vm361, 0.0
      %429 = vst.msk [vmem:[#allocation2 + $0x218] sm:$0xff] %vm361, 0.0
      %430 = vst.msk [vmem:[#allocation2 + $0x220] sm:$0xff] %vm361, 0.0
      %431 = vst.msk [vmem:[#allocation2 + $0x228] sm:$0xff] %vm361, 0.0
      %432 = vst.msk [vmem:[#allocation2 + $0x230] sm:$0xff] %vm361, 0.0
      %433 = vst.msk [vmem:[#allocation2 + $0x238] sm:$0xff] %vm361, 0.0
      %434 = vst.msk [vmem:[#allocation2 + $0x240] sm:$0xff] %vm361, 0.0
      %435 = vst.msk [vmem:[#allocation2 + $0x248] sm:$0xff] %vm361, 0.0
      %436 = vst.msk [vmem:[#allocation2 + $0x250] sm:$0xff] %vm361, 0.0
      %437 = vst.msk [vmem:[#allocation2 + $0x258] sm:$0xff] %vm361, 0.0
      %438 = vst.msk [vmem:[#allocation2 + $0x260] sm:$0xff] %vm361, 0.0
      %439 = vst.msk [vmem:[#allocation2 + $0x268] sm:$0xff] %vm361, 0.0
      %440 = vst.msk [vmem:[#allocation2 + $0x270] sm:$0xff] %vm361, 0.0
      %441 = vst.msk [vmem:[#allocation2 + $0x278] sm:$0xff] %vm361, 0.0
      %442 = vst.msk [vmem:[#allocation2 + $0x280] sm:$0xff] %vm361, 0.0
      %443 = vst.msk [vmem:[#allocation2 + $0x288] sm:$0xff] %vm361, 0.0
      %444 = vst.msk [vmem:[#allocation2 + $0x290] sm:$0xff] %vm361, 0.0
      %445 = vst.msk [vmem:[#allocation2 + $0x298] sm:$0xff] %vm361, 0.0
      %446 = vst.msk [vmem:[#allocation2 + $0x2a0] sm:$0xff] %vm361, 0.0
      %447 = vst.msk [vmem:[#allocation2 + $0x2a8] sm:$0xff] %vm361, 0.0
      %448 = vst.msk [vmem:[#allocation2 + $0x2b0] sm:$0xff] %vm361, 0.0
      %449 = vst.msk [vmem:[#allocation2 + $0x2b8] sm:$0xff] %vm361, 0.0
      %450 = vst.msk [vmem:[#allocation2 + $0x2c0] sm:$0xff] %vm361, 0.0
      %451 = vst.msk [vmem:[#allocation2 + $0x2c8] sm:$0xff] %vm361, 0.0
      %452 = vst.msk [vmem:[#allocation2 + $0x2d0] sm:$0xff] %vm361, 0.0
      %453 = vst.msk [vmem:[#allocation2 + $0x2d8] sm:$0xff] %vm361, 0.0
      %454 = vst.msk [vmem:[#allocation2 + $0x2e0] sm:$0xff] %vm361, 0.0
      %455 = vst.msk [vmem:[#allocation2 + $0x2e8] sm:$0xff] %vm361, 0.0
      %456 = vst.msk [vmem:[#allocation2 + $0x2f0] sm:$0xff] %vm361, 0.0
      %457 = vst.msk [vmem:[#allocation2 + $0x2f8] sm:$0xff] %vm361, 0.0
      %458 = vst.msk [vmem:[#allocation2 + $0x300] sm:$0xff] %vm361, 0.0
      %459 = vst.msk [vmem:[#allocation2 + $0x308] sm:$0xff] %vm361, 0.0
      %460 = vst.msk [vmem:[#allocation2 + $0x310] sm:$0xff] %vm361, 0.0
      %461 = vst.msk [vmem:[#allocation2 + $0x318] sm:$0xff] %vm361, 0.0
      %v462 = vld [vmem:[%s354] sm:$0xff]
      %v463 = vld [vmem:[%s354 + $0x8] sm:$0xff]
      %v464 = vld [vmem:[%s354 + $0x10] sm:$0xff]
      %v465 = vld [vmem:[%s354 + $0x18] sm:$0xff]
      %v466 = vld [vmem:[%s354 + $0x20] sm:$0xff]
      %v467 = vld [vmem:[%s354 + $0x28] sm:$0xff]
      %v468 = vld [vmem:[%s354 + $0x30] sm:$0xff]
      %v469 = vld [vmem:[%s354 + $0x38] sm:$0xff]
      %v470 = vld [vmem:[%s354 + $0x40] sm:$0xff]
      %v471 = vld [vmem:[%s354 + $0x48] sm:$0xff]
      %v472 = vld [vmem:[%s354 + $0x50] sm:$0xff]
      %v473 = vld [vmem:[%s354 + $0x58] sm:$0xff]
      %v474 = vld [vmem:[%s354 + $0x60] sm:$0xff]
      %v475 = vld [vmem:[%s354 + $0x68] sm:$0xff]
      %v476 = vld [vmem:[%s354 + $0x70] sm:$0xff]
      %v477 = vld [vmem:[%s354 + $0x78] sm:$0xff]
      %v478 = vld [vmem:[%s354 + $0x80] sm:$0xff]
      %v479 = vld [vmem:[%s354 + $0x88] sm:$0xff]
      %v480 = vld [vmem:[%s354 + $0x90] sm:$0xff]
      %v481 = vld [vmem:[%s354 + $0x98] sm:$0xff]
      %v482 = vld [vmem:[%s354 + $0xa0] sm:$0xff]
      %v483 = vld [vmem:[%s354 + $0xa8] sm:$0xff]
      %v484 = vld [vmem:[%s354 + $0xb0] sm:$0xff]
      %v485 = vld [vmem:[%s354 + $0xb8] sm:$0xff]
      %v486 = vld [vmem:[%s354 + $0xc0] sm:$0xff]
      %v487 = vld [vmem:[%s354 + $0xc8] sm:$0xff]
      %v488 = vld [vmem:[%s354 + $0xd0] sm:$0xff]
      %v489 = vld [vmem:[%s354 + $0xd8] sm:$0xff]
      %v490 = vld [vmem:[%s354 + $0xe0] sm:$0xff]
      %v491 = vld [vmem:[%s354 + $0xe8] sm:$0xff]
      %v492 = vld [vmem:[%s354 + $0xf0] sm:$0xff]
      %v493 = vld [vmem:[%s354 + $0xf8] sm:$0xff]
      %v494 = vld [vmem:[%s354 + $0x100] sm:$0xff]
      %v495 = vld [vmem:[%s354 + $0x108] sm:$0xff]
      %v496 = vld [vmem:[%s354 + $0x110] sm:$0xff]
      %v497 = vld [vmem:[%s354 + $0x118] sm:$0xff]
      %v498 = vld [vmem:[%s354 + $0x120] sm:$0xff]
      %v499 = vld [vmem:[%s354 + $0x128] sm:$0xff]
      %v500 = vld [vmem:[%s354 + $0x130] sm:$0xff]
      %v501 = vld [vmem:[%s354 + $0x138] sm:$0xff]
      %v502 = vld [vmem:[%s354 + $0x140] sm:$0xff]
      %v503 = vld [vmem:[%s354 + $0x148] sm:$0xff]
      %v504 = vld [vmem:[%s354 + $0x150] sm:$0xff]
      %v505 = vld [vmem:[%s354 + $0x158] sm:$0xff]
      %v506 = vld [vmem:[%s354 + $0x160] sm:$0xff]
      %v507 = vld [vmem:[%s354 + $0x168] sm:$0xff]
      %v508 = vld [vmem:[%s354 + $0x170] sm:$0xff]
      %v509 = vld [vmem:[%s354 + $0x178] sm:$0xff]
      %v510 = vld [vmem:[%s354 + $0x180] sm:$0xff]
      %v511 = vld [vmem:[%s354 + $0x188] sm:$0xff]
      %v512 = vld [vmem:[%s354 + $0x190] sm:$0xff]
      %v513 = vld [vmem:[%s354 + $0x198] sm:$0xff]
      %v514 = vld [vmem:[%s354 + $0x1a0] sm:$0xff]
      %v515 = vld [vmem:[%s354 + $0x1a8] sm:$0xff]
      %v516 = vld [vmem:[%s354 + $0x1b0] sm:$0xff]
      %v517 = vld [vmem:[%s354 + $0x1b8] sm:$0xff]
      %v518 = vld [vmem:[%s354 + $0x1c0] sm:$0xff]
      %v519 = vld [vmem:[%s354 + $0x1c8] sm:$0xff]
      %v520 = vld [vmem:[%s354 + $0x1d0] sm:$0xff]
      %v521 = vld [vmem:[%s354 + $0x1d8] sm:$0xff]
      %v522 = vld [vmem:[%s354 + $0x1e0] sm:$0xff]
      %v523 = vld [vmem:[%s354 + $0x1e8] sm:$0xff]
      %v524 = vld [vmem:[%s354 + $0x1f0] sm:$0xff]
      %v525 = vld [vmem:[%s354 + $0x1f8] sm:$0xff]
      %s526 = scalar_lea.vmem [#allocation2], 88
      %527 = vst.msk [vmem:[%s526] sm:$0xff] %vm361, %v462
      %528 = vst.msk [vmem:[%s526 + $0x8] sm:$0xff] %vm361, %v463
      %529 = vst.msk [vmem:[%s526 + $0x10] sm:$0xff] %vm361, %v464
      %530 = vst.msk [vmem:[%s526 + $0x18] sm:$0xff] %vm361, %v465
      %531 = vst.msk [vmem:[%s526 + $0x20] sm:$0xff] %vm361, %v466
      %532 = vst.msk [vmem:[%s526 + $0x28] sm:$0xff] %vm361, %v467
      %533 = vst.msk [vmem:[%s526 + $0x30] sm:$0xff] %vm361, %v468
      %534 = vst.msk [vmem:[%s526 + $0x38] sm:$0xff] %vm361, %v469
      %535 = vst.msk [vmem:[%s526 + $0x50] sm:$0xff] %vm361, %v470
      %536 = vst.msk [vmem:[%s526 + $0x58] sm:$0xff] %vm361, %v471
      %537 = vst.msk [vmem:[%s526 + $0x60] sm:$0xff] %vm361, %v472
      %538 = vst.msk [vmem:[%s526 + $0x68] sm:$0xff] %vm361, %v473
      %539 = vst.msk [vmem:[%s526 + $0x70] sm:$0xff] %vm361, %v474
      %540 = vst.msk [vmem:[%s526 + $0x78] sm:$0xff] %vm361, %v475
      %541 = vst.msk [vmem:[%s526 + $0x80] sm:$0xff] %vm361, %v476
      %542 = vst.msk [vmem:[%s526 + $0x88] sm:$0xff] %vm361, %v477
      %543 = vst.msk [vmem:[%s526 + $0xa0] sm:$0xff] %vm361, %v478
      %544 = vst.msk [vmem:[%s526 + $0xa8] sm:$0xff] %vm361, %v479
      %545 = vst.msk [vmem:[%s526 + $0xb0] sm:$0xff] %vm361, %v480
      %546 = vst.msk [vmem:[%s526 + $0xb8] sm:$0xff] %vm361, %v481
      %547 = vst.msk [vmem:[%s526 + $0xc0] sm:$0xff] %vm361, %v482
      %548 = vst.msk [vmem:[%s526 + $0xc8] sm:$0xff] %vm361, %v483
      %549 = vst.msk [vmem:[%s526 + $0xd0] sm:$0xff] %vm361, %v484
      %550 = vst.msk [vmem:[%s526 + $0xd8] sm:$0xff] %vm361, %v485
      %551 = vst.msk [vmem:[%s526 + $0xf0] sm:$0xff] %vm361, %v486
      %552 = vst.msk [vmem:[%s526 + $0xf8] sm:$0xff] %vm361, %v487
      %553 = vst.msk [vmem:[%s526 + $0x100] sm:$0xff] %vm361, %v488
      %554 = vst.msk [vmem:[%s526 + $0x108] sm:$0xff] %vm361, %v489
      %555 = vst.msk [vmem:[%s526 + $0x110] sm:$0xff] %vm361, %v490
      %556 = vst.msk [vmem:[%s526 + $0x118] sm:$0xff] %vm361, %v491
      %557 = vst.msk [vmem:[%s526 + $0x120] sm:$0xff] %vm361, %v492
      %558 = vst.msk [vmem:[%s526 + $0x128] sm:$0xff] %vm361, %v493
      %559 = vst.msk [vmem:[%s526 + $0x140] sm:$0xff] %vm361, %v494
      %560 = vst.msk [vmem:[%s526 + $0x148] sm:$0xff] %vm361, %v495
      %561 = vst.msk [vmem:[%s526 + $0x150] sm:$0xff] %vm361, %v496
      %562 = vst.msk [vmem:[%s526 + $0x158] sm:$0xff] %vm361, %v497
      %563 = vst.msk [vmem:[%s526 + $0x160] sm:$0xff] %vm361, %v498
      %564 = vst.msk [vmem:[%s526 + $0x168] sm:$0xff] %vm361, %v499
      %565 = vst.msk [vmem:[%s526 + $0x170] sm:$0xff] %vm361, %v500
      %566 = vst.msk [vmem:[%s526 + $0x178] sm:$0xff] %vm361, %v501
      %567 = vst.msk [vmem:[%s526 + $0x190] sm:$0xff] %vm361, %v502
      %568 = vst.msk [vmem:[%s526 + $0x198] sm:$0xff] %vm361, %v503
      %569 = vst.msk [vmem:[%s526 + $0x1a0] sm:$0xff] %vm361, %v504
      %570 = vst.msk [vmem:[%s526 + $0x1a8] sm:$0xff] %vm361, %v505
      %571 = vst.msk [vmem:[%s526 + $0x1b0] sm:$0xff] %vm361, %v506
      %572 = vst.msk [vmem:[%s526 + $0x1b8] sm:$0xff] %vm361, %v507
      %573 = vst.msk [vmem:[%s526 + $0x1c0] sm:$0xff] %vm361, %v508
      %574 = vst.msk [vmem:[%s526 + $0x1c8] sm:$0xff] %vm361, %v509
      %575 = vst.msk [vmem:[%s526 + $0x1e0] sm:$0xff] %vm361, %v510
      %576 = vst.msk [vmem:[%s526 + $0x1e8] sm:$0xff] %vm361, %v511
      %577 = vst.msk [vmem:[%s526 + $0x1f0] sm:$0xff] %vm361, %v512
      %578 = vst.msk [vmem:[%s526 + $0x1f8] sm:$0xff] %vm361, %v513
      %579 = vst.msk [vmem:[%s526 + $0x200] sm:$0xff] %vm361, %v514
      %580 = vst.msk [vmem:[%s526 + $0x208] sm:$0xff] %vm361, %v515
      %581 = vst.msk [vmem:[%s526 + $0x210] sm:$0xff] %vm361, %v516
      %582 = vst.msk [vmem:[%s526 + $0x218] sm:$0xff] %vm361, %v517
      %583 = vst.msk [vmem:[%s526 + $0x230] sm:$0xff] %vm361, %v518
      %584 = vst.msk [vmem:[%s526 + $0x238] sm:$0xff] %vm361, %v519
      %585 = vst.msk [vmem:[%s526 + $0x240] sm:$0xff] %vm361, %v520
      %586 = vst.msk [vmem:[%s526 + $0x248] sm:$0xff] %vm361, %v521
      %587 = vst.msk [vmem:[%s526 + $0x250] sm:$0xff] %vm361, %v522
      %588 = vst.msk [vmem:[%s526 + $0x258] sm:$0xff] %vm361, %v523
      %589 = vst.msk [vmem:[%s526 + $0x260] sm:$0xff] %vm361, %v524
      %590 = vst.msk [vmem:[%s526 + $0x268] sm:$0xff] %vm361, %v525
      %v591 = vld [vmem:[%s2] sm:$0x7]
      %v592 = vld [vmem:[%s2 + $0x4] sm:$0x7]
      %v593 = vld [vmem:[%s2 + $0x8] sm:$0x7]
      %v594 = vld [vmem:[%s2 + $0xc] sm:$0x7]
      %v595 = vld [vmem:[%s2 + $0x10] sm:$0x7]
      %v596 = vld [vmem:[%s2 + $0x14] sm:$0x7]
      %v597 = vld [vmem:[%s2 + $0x18] sm:$0x7]
      %v598 = vld [vmem:[%s2 + $0x1c] sm:$0x7]
      %v599 = vld [vmem:[%s2 + $0x20] sm:$0x7]
      %v600 = vld [vmem:[#allocation2] sm:$0xff]
      %v601 = vld [vmem:[#allocation2 + $0x8] sm:$0xff]
      %v602 = vld [vmem:[#allocation2 + $0x10] sm:$0xff]
      %v603 = vld [vmem:[#allocation2 + $0x18] sm:$0xff]
      %v604 = vld [vmem:[#allocation2 + $0x20] sm:$0xff]
      %v605 = vld [vmem:[#allocation2 + $0x28] sm:$0xff]
      %v606 = vld [vmem:[#allocation2 + $0x30] sm:$0xff]
      %v607 = vld [vmem:[#allocation2 + $0x38] sm:$0xff]
      %v608 = vld [vmem:[#allocation2 + $0x50] sm:$0xff]
      %v609 = vld [vmem:[#allocation2 + $0x58] sm:$0xff]
      %v610 = vld [vmem:[#allocation2 + $0x60] sm:$0xff]
      %v611 = vld [vmem:[#allocation2 + $0x68] sm:$0xff]
      %v612 = vld [vmem:[#allocation2 + $0x70] sm:$0xff]
      %v613 = vld [vmem:[#allocation2 + $0x78] sm:$0xff]
      %v614 = vld [vmem:[#allocation2 + $0x80] sm:$0xff]
      %v615 = vld [vmem:[#allocation2 + $0x88] sm:$0xff]
      %v616 = vld [vmem:[#allocation2 + $0xa0] sm:$0xff]
      %v617 = vld [vmem:[#allocation2 + $0xa8] sm:$0xff]
      %v618 = vld [vmem:[#allocation2 + $0xb0] sm:$0xff]
      %v619 = vld [vmem:[#allocation2 + $0xb8] sm:$0xff]
      %v620 = vld [vmem:[#allocation2 + $0xc0] sm:$0xff]
      %v621 = vld [vmem:[#allocation2 + $0xc8] sm:$0xff]
      %v622 = vld [vmem:[#allocation2 + $0xd0] sm:$0xff]
      %v623 = vld [vmem:[#allocation2 + $0xd8] sm:$0xff]
      %v624 = vld [vmem:[#allocation2 + $0xf0] sm:$0xff]
      %v625 = vld [vmem:[#allocation2 + $0xf8] sm:$0xff]
      %v626 = vld [vmem:[#allocation2 + $0x100] sm:$0xff]
      %v627 = vld [vmem:[#allocation2 + $0x108] sm:$0xff]
      %v628 = vld [vmem:[#allocation2 + $0x110] sm:$0xff]
      %v629 = vld [vmem:[#allocation2 + $0x118] sm:$0xff]
      %v630 = vld [vmem:[#allocation2 + $0x120] sm:$0xff]
      %v631 = vld [vmem:[#allocation2 + $0x128] sm:$0xff]
      %v632 = vld [vmem:[#allocation2 + $0x140] sm:$0xff]
      %v633 = vld [vmem:[#allocation2 + $0x148] sm:$0xff]
      %v634 = vld [vmem:[#allocation2 + $0x150] sm:$0xff]
      %v635 = vld [vmem:[#allocation2 + $0x158] sm:$0xff]
      %v636 = vld [vmem:[#allocation2 + $0x160] sm:$0xff]
      %v637 = vld [vmem:[#allocation2 + $0x168] sm:$0xff]
      %v638 = vld [vmem:[#allocation2 + $0x170] sm:$0xff]
      %v639 = vld [vmem:[#allocation2 + $0x178] sm:$0xff]
      %v640 = vld [vmem:[#allocation2 + $0x190] sm:$0xff]
      %v641 = vld [vmem:[#allocation2 + $0x198] sm:$0xff]
      %v642 = vld [vmem:[#allocation2 + $0x1a0] sm:$0xff]
      %v643 = vld [vmem:[#allocation2 + $0x1a8] sm:$0xff]
      %v644 = vld [vmem:[#allocation2 + $0x1b0] sm:$0xff]
      %v645 = vld [vmem:[#allocation2 + $0x1b8] sm:$0xff]
      %v646 = vld [vmem:[#allocation2 + $0x1c0] sm:$0xff]
      %v647 = vld [vmem:[#allocation2 + $0x1c8] sm:$0xff]
      %v648 = vld [vmem:[#allocation2 + $0x1e0] sm:$0xff]
      %v649 = vld [vmem:[#allocation2 + $0x1e8] sm:$0xff]
      %v650 = vld [vmem:[#allocation2 + $0x1f0] sm:$0xff]
      %v651 = vld [vmem:[#allocation2 + $0x1f8] sm:$0xff]
      %v652 = vld [vmem:[#allocation2 + $0x200] sm:$0xff]
      %v653 = vld [vmem:[#allocation2 + $0x208] sm:$0xff]
      %v654 = vld [vmem:[#allocation2 + $0x210] sm:$0xff]
      %v655 = vld [vmem:[#allocation2 + $0x218] sm:$0xff]
      %v656 = vld [vmem:[#allocation2 + $0x230] sm:$0xff]
      %v657 = vld [vmem:[#allocation2 + $0x238] sm:$0xff]
      %v658 = vld [vmem:[#allocation2 + $0x240] sm:$0xff]
      %v659 = vld [vmem:[#allocation2 + $0x248] sm:$0xff]
      %v660 = vld [vmem:[#allocation2 + $0x250] sm:$0xff]
      %v661 = vld [vmem:[#allocation2 + $0x258] sm:$0xff]
      %v662 = vld [vmem:[#allocation2 + $0x260] sm:$0xff]
      %v663 = vld [vmem:[#allocation2 + $0x268] sm:$0xff]
      %v664 = vlaneseq
      %v665 = vshrl.u32 %v664, 7
      %v666 = vsub.s32 0, %v665
      %v667 = vrot.slane %v591, %v666
      %v668 = vmul.f32 %v600, %v667
      %v669 = vmul.f32 %v601, %v667
      %v670 = vmul.f32 %v602, %v667
      %v671 = vmul.f32 %v603, %v667
      %v672 = vmul.f32 %v604, %v667
      %v673 = vmul.f32 %v605, %v667
      %v674 = vmul.f32 %v606, %v667
      %v675 = vmul.f32 %v607, %v667
      %v676 = vmul.f32 %v608, %v667
      %v677 = vmul.f32 %v609, %v667
      %v678 = vmul.f32 %v610, %v667
      %v679 = vmul.f32 %v611, %v667
      %v680 = vmul.f32 %v612, %v667
      %v681 = vmul.f32 %v613, %v667
      %v682 = vmul.f32 %v614, %v667
      %v683 = vmul.f32 %v615, %v667
      %v684 = vmul.f32 %v616, %v667
      %v685 = vmul.f32 %v617, %v667
      %v686 = vmul.f32 %v618, %v667
      %v687 = vmul.f32 %v619, %v667
      %v688 = vmul.f32 %v620, %v667
      %v689 = vmul.f32 %v621, %v667
      %v690 = vmul.f32 %v622, %v667
      %v691 = vmul.f32 %v623, %v667
      %v692 = vmul.f32 %v624, %v667
      %v693 = vmul.f32 %v625, %v667
      %v694 = vmul.f32 %v626, %v667
      %v695 = vmul.f32 %v627, %v667
      %v696 = vmul.f32 %v628, %v667
      %v697 = vmul.f32 %v629, %v667
      %v698 = vmul.f32 %v630, %v667
      %v699 = vmul.f32 %v631, %v667
      %v700 = vmul.f32 %v632, %v667
      %v701 = vmul.f32 %v633, %v667
      %v702 = vmul.f32 %v634, %v667
      %v703 = vmul.f32 %v635, %v667
      %v704 = vmul.f32 %v636, %v667
      %v705 = vmul.f32 %v637, %v667
      %v706 = vmul.f32 %v638, %v667
      %v707 = vmul.f32 %v639, %v667
      %v708 = vmul.f32 %v640, %v667
      %v709 = vmul.f32 %v641, %v667
      %v710 = vmul.f32 %v642, %v667
      %v711 = vmul.f32 %v643, %v667
      %v712 = vmul.f32 %v644, %v667
      %v713 = vmul.f32 %v645, %v667
      %v714 = vmul.f32 %v646, %v667
      %v715 = vmul.f32 %v647, %v667
      %v716 = vmul.f32 %v648, %v667
      %v717 = vmul.f32 %v649, %v667
      %v718 = vmul.f32 %v650, %v667
      %v719 = vmul.f32 %v651, %v667
      %v720 = vmul.f32 %v652, %v667
      %v721 = vmul.f32 %v653, %v667
      %v722 = vmul.f32 %v654, %v667
      %v723 = vmul.f32 %v655, %v667
      %v724 = vmul.f32 %v656, %v667
      %v725 = vmul.f32 %v657, %v667
      %v726 = vmul.f32 %v658, %v667
      %v727 = vmul.f32 %v659, %v667
      %v728 = vmul.f32 %v660, %v667
      %v729 = vmul.f32 %v661, %v667
      %v730 = vmul.f32 %v662, %v667
      %v731 = vmul.f32 %v663, %v667
      %v732 = vlaneseq
      %v733 = vshrl.u32 %v732, 7
      %v734 = vsub.s32 1, %v733
      %v735 = vrot.slane %v591, %v734
      %v736 = vmul.f32 %v600, %v735
      %v737 = vmul.f32 %v601, %v735
      %v738 = vmul.f32 %v602, %v735
      %v739 = vmul.f32 %v603, %v735
      %v740 = vmul.f32 %v604, %v735
      %v741 = vmul.f32 %v605, %v735
      %v742 = vmul.f32 %v606, %v735
      %v743 = vmul.f32 %v607, %v735
      %v744 = vmul.f32 %v608, %v735
      %v745 = vmul.f32 %v609, %v735
      %v746 = vmul.f32 %v610, %v735
      %v747 = vmul.f32 %v611, %v735
      %v748 = vmul.f32 %v612, %v735
      %v749 = vmul.f32 %v613, %v735
      %v750 = vmul.f32 %v614, %v735
      %v751 = vmul.f32 %v615, %v735
      %v752 = vmul.f32 %v616, %v735
      %v753 = vmul.f32 %v617, %v735
      %v754 = vmul.f32 %v618, %v735
      %v755 = vmul.f32 %v619, %v735
      %v756 = vmul.f32 %v620, %v735
      %v757 = vmul.f32 %v621, %v735
      %v758 = vmul.f32 %v622, %v735
      %v759 = vmul.f32 %v623, %v735
      %v760 = vmul.f32 %v624, %v735
      %v761 = vmul.f32 %v625, %v735
      %v762 = vmul.f32 %v626, %v735
      %v763 = vmul.f32 %v627, %v735
      %v764 = vmul.f32 %v628, %v735
      %v765 = vmul.f32 %v629, %v735
      %v766 = vmul.f32 %v630, %v735
      %v767 = vmul.f32 %v631, %v735
      %v768 = vmul.f32 %v632, %v735
      %v769 = vmul.f32 %v633, %v735
      %v770 = vmul.f32 %v634, %v735
      %v771 = vmul.f32 %v635, %v735
      %v772 = vmul.f32 %v636, %v735
      %v773 = vmul.f32 %v637, %v735
      %v774 = vmul.f32 %v638, %v735
      %v775 = vmul.f32 %v639, %v735
      %v776 = vmul.f32 %v640, %v735
      %v777 = vmul.f32 %v641, %v735
      %v778 = vmul.f32 %v642, %v735
      %v779 = vmul.f32 %v643, %v735
      %v780 = vmul.f32 %v644, %v735
      %v781 = vmul.f32 %v645, %v735
      %v782 = vmul.f32 %v646, %v735
      %v783 = vmul.f32 %v647, %v735
      %v784 = vmul.f32 %v648, %v735
      %v785 = vmul.f32 %v649, %v735
      %v786 = vmul.f32 %v650, %v735
      %v787 = vmul.f32 %v651, %v735
      %v788 = vmul.f32 %v652, %v735
      %v789 = vmul.f32 %v653, %v735
      %v790 = vmul.f32 %v654, %v735
      %v791 = vmul.f32 %v655, %v735
      %v792 = vmul.f32 %v656, %v735
      %v793 = vmul.f32 %v657, %v735
      %v794 = vmul.f32 %v658, %v735
      %v795 = vmul.f32 %v659, %v735
      %v796 = vmul.f32 %v660, %v735
      %v797 = vmul.f32 %v661, %v735
      %v798 = vmul.f32 %v662, %v735
      %v799 = vmul.f32 %v663, %v735
      %v800 = vlaneseq
      %v801 = vshrl.u32 %v800, 7
      %v802 = vsub.s32 2, %v801
      %v803 = vrot.slane %v591, %v802
      %v804 = vmul.f32 %v600, %v803
      %v805 = vmul.f32 %v601, %v803
      %v806 = vmul.f32 %v602, %v803
      %v807 = vmul.f32 %v603, %v803
      %v808 = vmul.f32 %v604, %v803
      %v809 = vmul.f32 %v605, %v803
      %v810 = vmul.f32 %v606, %v803
      %v811 = vmul.f32 %v607, %v803
      %v812 = vmul.f32 %v608, %v803
      %v813 = vmul.f32 %v609, %v803
      %v814 = vmul.f32 %v610, %v803
      %v815 = vmul.f32 %v611, %v803
      %v816 = vmul.f32 %v612, %v803
      %v817 = vmul.f32 %v613, %v803
      %v818 = vmul.f32 %v614, %v803
      %v819 = vmul.f32 %v615, %v803
      %v820 = vmul.f32 %v616, %v803
      %v821 = vmul.f32 %v617, %v803
      %v822 = vmul.f32 %v618, %v803
      %v823 = vmul.f32 %v619, %v803
      %v824 = vmul.f32 %v620, %v803
      %v825 = vmul.f32 %v621, %v803
      %v826 = vmul.f32 %v622, %v803
      %v827 = vmul.f32 %v623, %v803
      %v828 = vmul.f32 %v624, %v803
      %v829 = vmul.f32 %v625, %v803
      %v830 = vmul.f32 %v626, %v803
      %v831 = vmul.f32 %v627, %v803
      %v832 = vmul.f32 %v628, %v803
      %v833 = vmul.f32 %v629, %v803
      %v834 = vmul.f32 %v630, %v803
      %v835 = vmul.f32 %v631, %v803
      %v836 = vmul.f32 %v632, %v803
      %v837 = vmul.f32 %v633, %v803
      %v838 = vmul.f32 %v634, %v803
      %v839 = vmul.f32 %v635, %v803
      %v840 = vmul.f32 %v636, %v803
      %v841 = vmul.f32 %v637, %v803
      %v842 = vmul.f32 %v638, %v803
      %v843 = vmul.f32 %v639, %v803
      %v844 = vmul.f32 %v640, %v803
      %v845 = vmul.f32 %v641, %v803
      %v846 = vmul.f32 %v642, %v803
      %v847 = vmul.f32 %v643, %v803
      %v848 = vmul.f32 %v644, %v803
      %v849 = vmul.f32 %v645, %v803
      %v850 = vmul.f32 %v646, %v803
      %v851 = vmul.f32 %v647, %v803
      %v852 = vmul.f32 %v648, %v803
      %v853 = vmul.f32 %v649, %v803
      %v854 = vmul.f32 %v650, %v803
      %v855 = vmul.f32 %v651, %v803
      %v856 = vmul.f32 %v652, %v803
      %v857 = vmul.f32 %v653, %v803
      %v858 = vmul.f32 %v654, %v803
      %v859 = vmul.f32 %v655, %v803
      %v860 = vmul.f32 %v656, %v803
      %v861 = vmul.f32 %v657, %v803
      %v862 = vmul.f32 %v658, %v803
      %v863 = vmul.f32 %v659, %v803
      %v864 = vmul.f32 %v660, %v803
      %v865 = vmul.f32 %v661, %v803
      %v866 = vmul.f32 %v662, %v803
      %v867 = vmul.f32 %v663, %v803
      %s868 = scalar_lea.vmem [#allocation2], 8
      %v869 = vld [vmem:[%s868] sm:$0xff]
      %v870 = vld [vmem:[%s868 + $0x8] sm:$0xff]
      %v871 = vld [vmem:[%s868 + $0x10] sm:$0xff]
      %v872 = vld [vmem:[%s868 + $0x18] sm:$0xff]
      %v873 = vld [vmem:[%s868 + $0x20] sm:$0xff]
      %v874 = vld [vmem:[%s868 + $0x28] sm:$0xff]
      %v875 = vld [vmem:[%s868 + $0x30] sm:$0xff]
      %v876 = vld [vmem:[%s868 + $0x38] sm:$0xff]
      %v877 = vld [vmem:[%s868 + $0x50] sm:$0xff]
      %v878 = vld [vmem:[%s868 + $0x58] sm:$0xff]
      %v879 = vld [vmem:[%s868 + $0x60] sm:$0xff]
      %v880 = vld [vmem:[%s868 + $0x68] sm:$0xff]
      %v881 = vld [vmem:[%s868 + $0x70] sm:$0xff]
      %v882 = vld [vmem:[%s868 + $0x78] sm:$0xff]
      %v883 = vld [vmem:[%s868 + $0x80] sm:$0xff]
      %v884 = vld [vmem:[%s868 + $0x88] sm:$0xff]
      %v885 = vld [vmem:[%s868 + $0xa0] sm:$0xff]
      %v886 = vld [vmem:[%s868 + $0xa8] sm:$0xff]
      %v887 = vld [vmem:[%s868 + $0xb0] sm:$0xff]
      %v888 = vld [vmem:[%s868 + $0xb8] sm:$0xff]
      %v889 = vld [vmem:[%s868 + $0xc0] sm:$0xff]
      %v890 = vld [vmem:[%s868 + $0xc8] sm:$0xff]
      %v891 = vld [vmem:[%s868 + $0xd0] sm:$0xff]
      %v892 = vld [vmem:[%s868 + $0xd8] sm:$0xff]
      %v893 = vld [vmem:[%s868 + $0xf0] sm:$0xff]
      %v894 = vld [vmem:[%s868 + $0xf8] sm:$0xff]
      %v895 = vld [vmem:[%s868 + $0x100] sm:$0xff]
      %v896 = vld [vmem:[%s868 + $0x108] sm:$0xff]
      %v897 = vld [vmem:[%s868 + $0x110] sm:$0xff]
      %v898 = vld [vmem:[%s868 + $0x118] sm:$0xff]
      %v899 = vld [vmem:[%s868 + $0x120] sm:$0xff]
      %v900 = vld [vmem:[%s868 + $0x128] sm:$0xff]
      %v901 = vld [vmem:[%s868 + $0x140] sm:$0xff]
      %v902 = vld [vmem:[%s868 + $0x148] sm:$0xff]
      %v903 = vld [vmem:[%s868 + $0x150] sm:$0xff]
      %v904 = vld [vmem:[%s868 + $0x158] sm:$0xff]
      %v905 = vld [vmem:[%s868 + $0x160] sm:$0xff]
      %v906 = vld [vmem:[%s868 + $0x168] sm:$0xff]
      %v907 = vld [vmem:[%s868 + $0x170] sm:$0xff]
      %v908 = vld [vmem:[%s868 + $0x178] sm:$0xff]
      %v909 = vld [vmem:[%s868 + $0x190] sm:$0xff]
      %v910 = vld [vmem:[%s868 + $0x198] sm:$0xff]
      %v911 = vld [vmem:[%s868 + $0x1a0] sm:$0xff]
      %v912 = vld [vmem:[%s868 + $0x1a8] sm:$0xff]
      %v913 = vld [vmem:[%s868 + $0x1b0] sm:$0xff]
      %v914 = vld [vmem:[%s868 + $0x1b8] sm:$0xff]
      %v915 = vld [vmem:[%s868 + $0x1c0] sm:$0xff]
      %v916 = vld [vmem:[%s868 + $0x1c8] sm:$0xff]
      %v917 = vld [vmem:[%s868 + $0x1e0] sm:$0xff]
      %v918 = vld [vmem:[%s868 + $0x1e8] sm:$0xff]
      %v919 = vld [vmem:[%s868 + $0x1f0] sm:$0xff]
      %v920 = vld [vmem:[%s868 + $0x1f8] sm:$0xff]
      %v921 = vld [vmem:[%s868 + $0x200] sm:$0xff]
      %v922 = vld [vmem:[%s868 + $0x208] sm:$0xff]
      %v923 = vld [vmem:[%s868 + $0x210] sm:$0xff]
      %v924 = vld [vmem:[%s868 + $0x218] sm:$0xff]
      %v925 = vld [vmem:[%s868 + $0x230] sm:$0xff]
      %v926 = vld [vmem:[%s868 + $0x238] sm:$0xff]
      %v927 = vld [vmem:[%s868 + $0x240] sm:$0xff]
      %v928 = vld [vmem:[%s868 + $0x248] sm:$0xff]
      %v929 = vld [vmem:[%s868 + $0x250] sm:$0xff]
      %v930 = vld [vmem:[%s868 + $0x258] sm:$0xff]
      %v931 = vld [vmem:[%s868 + $0x260] sm:$0xff]
      %v932 = vld [vmem:[%s868 + $0x268] sm:$0xff]
      %v933 = vlaneseq
      %v934 = vshrl.u32 %v933, 7
      %v935 = vsub.s32 0, %v934
      %v936 = vrot.slane %v592, %v935
      %v937 = vmul.f32 %v869, %v936
      %v938 = vmul.f32 %v870, %v936
      %v939 = vmul.f32 %v871, %v936
      %v940 = vmul.f32 %v872, %v936
      %v941 = vmul.f32 %v873, %v936
      %v942 = vmul.f32 %v874, %v936
      %v943 = vmul.f32 %v875, %v936
      %v944 = vmul.f32 %v876, %v936
      %v945 = vmul.f32 %v877, %v936
      %v946 = vmul.f32 %v878, %v936
      %v947 = vmul.f32 %v879, %v936
      %v948 = vmul.f32 %v880, %v936
      %v949 = vmul.f32 %v881, %v936
      %v950 = vmul.f32 %v882, %v936
      %v951 = vmul.f32 %v883, %v936
      %v952 = vmul.f32 %v884, %v936
      %v953 = vmul.f32 %v885, %v936
      %v954 = vmul.f32 %v886, %v936
      %v955 = vmul.f32 %v887, %v936
      %v956 = vmul.f32 %v888, %v936
      %v957 = vmul.f32 %v889, %v936
      %v958 = vmul.f32 %v890, %v936
      %v959 = vmul.f32 %v891, %v936
      %v960 = vmul.f32 %v892, %v936
      %v961 = vmul.f32 %v893, %v936
      %v962 = vmul.f32 %v894, %v936
      %v963 = vmul.f32 %v895, %v936
      %v964 = vmul.f32 %v896, %v936
      %v965 = vmul.f32 %v897, %v936
      %v966 = vmul.f32 %v898, %v936
      %v967 = vmul.f32 %v899, %v936
      %v968 = vmul.f32 %v900, %v936
      %v969 = vmul.f32 %v901, %v936
      %v970 = vmul.f32 %v902, %v936
      %v971 = vmul.f32 %v903, %v936
      %v972 = vmul.f32 %v904, %v936
      %v973 = vmul.f32 %v905, %v936
      %v974 = vmul.f32 %v906, %v936
      %v975 = vmul.f32 %v907, %v936
      %v976 = vmul.f32 %v908, %v936
      %v977 = vmul.f32 %v909, %v936
      %v978 = vmul.f32 %v910, %v936
      %v979 = vmul.f32 %v911, %v936
      %v980 = vmul.f32 %v912, %v936
      %v981 = vmul.f32 %v913, %v936
      %v982 = vmul.f32 %v914, %v936
      %v983 = vmul.f32 %v915, %v936
      %v984 = vmul.f32 %v916, %v936
      %v985 = vmul.f32 %v917, %v936
      %v986 = vmul.f32 %v918, %v936
      %v987 = vmul.f32 %v919, %v936
      %v988 = vmul.f32 %v920, %v936
      %v989 = vmul.f32 %v921, %v936
      %v990 = vmul.f32 %v922, %v936
      %v991 = vmul.f32 %v923, %v936
      %v992 = vmul.f32 %v924, %v936
      %v993 = vmul.f32 %v925, %v936
      %v994 = vmul.f32 %v926, %v936
      %v995 = vmul.f32 %v927, %v936
      %v996 = vmul.f32 %v928, %v936
      %v997 = vmul.f32 %v929, %v936
      %v998 = vmul.f32 %v930, %v936
      %v999 = vmul.f32 %v931, %v936
      %v1000 = vmul.f32 %v932, %v936
      %v1001 = vadd.f32 %v668, %v937
      %v1002 = vadd.f32 %v669, %v938
      %v1003 = vadd.f32 %v670, %v939
      %v1004 = vadd.f32 %v671, %v940
      %v1005 = vadd.f32 %v672, %v941
      %v1006 = vadd.f32 %v673, %v942
      %v1007 = vadd.f32 %v674, %v943
      %v1008 = vadd.f32 %v675, %v944
      %v1009 = vadd.f32 %v676, %v945
      %v1010 = vadd.f32 %v677, %v946
      %v1011 = vadd.f32 %v678, %v947
      %v1012 = vadd.f32 %v679, %v948
      %v1013 = vadd.f32 %v680, %v949
      %v1014 = vadd.f32 %v681, %v950
      %v1015 = vadd.f32 %v682, %v951
      %v1016 = vadd.f32 %v683, %v952
      %v1017 = vadd.f32 %v684, %v953
      %v1018 = vadd.f32 %v685, %v954
      %v1019 = vadd.f32 %v686, %v955
      %v1020 = vadd.f32 %v687, %v956
      %v1021 = vadd.f32 %v688, %v957
      %v1022 = vadd.f32 %v689, %v958
      %v1023 = vadd.f32 %v690, %v959
      %v1024 = vadd.f32 %v691, %v960
      %v1025 = vadd.f32 %v692, %v961
      %v1026 = vadd.f32 %v693, %v962
      %v1027 = vadd.f32 %v694, %v963
      %v1028 = vadd.f32 %v695, %v964
      %v1029 = vadd.f32 %v696, %v965
      %v1030 = vadd.f32 %v697, %v966
      %v1031 = vadd.f32 %v698, %v967
      %v1032 = vadd.f32 %v699, %v968
      %v1033 = vadd.f32 %v700, %v969
      %v1034 = vadd.f32 %v701, %v970
      %v1035 = vadd.f32 %v702, %v971
      %v1036 = vadd.f32 %v703, %v972
      %v1037 = vadd.f32 %v704, %v973
      %v1038 = vadd.f32 %v705, %v974
      %v1039 = vadd.f32 %v706, %v975
      %v1040 = vadd.f32 %v707, %v976
      %v1041 = vadd.f32 %v708, %v977
      %v1042 = vadd.f32 %v709, %v978
      %v1043 = vadd.f32 %v710, %v979
      %v1044 = vadd.f32 %v711, %v980
      %v1045 = vadd.f32 %v712, %v981
      %v1046 = vadd.f32 %v713, %v982
      %v1047 = vadd.f32 %v714, %v983
      %v1048 = vadd.f32 %v715, %v984
      %v1049 = vadd.f32 %v716, %v985
      %v1050 = vadd.f32 %v717, %v986
      %v1051 = vadd.f32 %v718, %v987
      %v1052 = vadd.f32 %v719, %v988
      %v1053 = vadd.f32 %v720, %v989
      %v1054 = vadd.f32 %v721, %v990
      %v1055 = vadd.f32 %v722, %v991
      %v1056 = vadd.f32 %v723, %v992
      %v1057 = vadd.f32 %v724, %v993
      %v1058 = vadd.f32 %v725, %v994
      %v1059 = vadd.f32 %v726, %v995
      %v1060 = vadd.f32 %v727, %v996
      %v1061 = vadd.f32 %v728, %v997
      %v1062 = vadd.f32 %v729, %v998
      %v1063 = vadd.f32 %v730, %v999
      %v1064 = vadd.f32 %v731, %v1000
      %v1065 = vlaneseq
      %v1066 = vshrl.u32 %v1065, 7
      %v1067 = vsub.s32 1, %v1066
      %v1068 = vrot.slane %v592, %v1067
      %v1069 = vmul.f32 %v869, %v1068
      %v1070 = vmul.f32 %v870, %v1068
      %v1071 = vmul.f32 %v871, %v1068
      %v1072 = vmul.f32 %v872, %v1068
      %v1073 = vmul.f32 %v873, %v1068
      %v1074 = vmul.f32 %v874, %v1068
      %v1075 = vmul.f32 %v875, %v1068
      %v1076 = vmul.f32 %v876, %v1068
      %v1077 = vmul.f32 %v877, %v1068
      %v1078 = vmul.f32 %v878, %v1068
      %v1079 = vmul.f32 %v879, %v1068
      %v1080 = vmul.f32 %v880, %v1068
      %v1081 = vmul.f32 %v881, %v1068
      %v1082 = vmul.f32 %v882, %v1068
      %v1083 = vmul.f32 %v883, %v1068
      %v1084 = vmul.f32 %v884, %v1068
      %v1085 = vmul.f32 %v885, %v1068
      %v1086 = vmul.f32 %v886, %v1068
      %v1087 = vmul.f32 %v887, %v1068
      %v1088 = vmul.f32 %v888, %v1068
      %v1089 = vmul.f32 %v889, %v1068
      %v1090 = vmul.f32 %v890, %v1068
      %v1091 = vmul.f32 %v891, %v1068
      %v1092 = vmul.f32 %v892, %v1068
      %v1093 = vmul.f32 %v893, %v1068
      %v1094 = vmul.f32 %v894, %v1068
      %v1095 = vmul.f32 %v895, %v1068
      %v1096 = vmul.f32 %v896, %v1068
      %v1097 = vmul.f32 %v897, %v1068
      %v1098 = vmul.f32 %v898, %v1068
      %v1099 = vmul.f32 %v899, %v1068
      %v1100 = vmul.f32 %v900, %v1068
      %v1101 = vmul.f32 %v901, %v1068
      %v1102 = vmul.f32 %v902, %v1068
      %v1103 = vmul.f32 %v903, %v1068
      %v1104 = vmul.f32 %v904, %v1068
      %v1105 = vmul.f32 %v905, %v1068
      %v1106 = vmul.f32 %v906, %v1068
      %v1107 = vmul.f32 %v907, %v1068
      %v1108 = vmul.f32 %v908, %v1068
      %v1109 = vmul.f32 %v909, %v1068
      %v1110 = vmul.f32 %v910, %v1068
      %v1111 = vmul.f32 %v911, %v1068
      %v1112 = vmul.f32 %v912, %v1068
      %v1113 = vmul.f32 %v913, %v1068
      %v1114 = vmul.f32 %v914, %v1068
      %v1115 = vmul.f32 %v915, %v1068
      %v1116 = vmul.f32 %v916, %v1068
      %v1117 = vmul.f32 %v917, %v1068
      %v1118 = vmul.f32 %v918, %v1068
      %v1119 = vmul.f32 %v919, %v1068
      %v1120 = vmul.f32 %v920, %v1068
      %v1121 = vmul.f32 %v921, %v1068
      %v1122 = vmul.f32 %v922, %v1068
      %v1123 = vmul.f32 %v923, %v1068
      %v1124 = vmul.f32 %v924, %v1068
      %v1125 = vmul.f32 %v925, %v1068
      %v1126 = vmul.f32 %v926, %v1068
      %v1127 = vmul.f32 %v927, %v1068
      %v1128 = vmul.f32 %v928, %v1068
      %v1129 = vmul.f32 %v929, %v1068
      %v1130 = vmul.f32 %v930, %v1068
      %v1131 = vmul.f32 %v931, %v1068
      %v1132 = vmul.f32 %v932, %v1068
      %v1133 = vadd.f32 %v736, %v1069
      %v1134 = vadd.f32 %v737, %v1070
      %v1135 = vadd.f32 %v738, %v1071
      %v1136 = vadd.f32 %v739, %v1072
      %v1137 = vadd.f32 %v740, %v1073
      %v1138 = vadd.f32 %v741, %v1074
      %v1139 = vadd.f32 %v742, %v1075
      %v1140 = vadd.f32 %v743, %v1076
      %v1141 = vadd.f32 %v744, %v1077
      %v1142 = vadd.f32 %v745, %v1078
      %v1143 = vadd.f32 %v746, %v1079
      %v1144 = vadd.f32 %v747, %v1080
      %v1145 = vadd.f32 %v748, %v1081
      %v1146 = vadd.f32 %v749, %v1082
      %v1147 = vadd.f32 %v750, %v1083
      %v1148 = vadd.f32 %v751, %v1084
      %v1149 = vadd.f32 %v752, %v1085
      %v1150 = vadd.f32 %v753, %v1086
      %v1151 = vadd.f32 %v754, %v1087
      %v1152 = vadd.f32 %v755, %v1088
      %v1153 = vadd.f32 %v756, %v1089
      %v1154 = vadd.f32 %v757, %v1090
      %v1155 = vadd.f32 %v758, %v1091
      %v1156 = vadd.f32 %v759, %v1092
      %v1157 = vadd.f32 %v760, %v1093
      %v1158 = vadd.f32 %v761, %v1094
      %v1159 = vadd.f32 %v762, %v1095
      %v1160 = vadd.f32 %v763, %v1096
      %v1161 = vadd.f32 %v764, %v1097
      %v1162 = vadd.f32 %v765, %v1098
      %v1163 = vadd.f32 %v766, %v1099
      %v1164 = vadd.f32 %v767, %v1100
      %v1165 = vadd.f32 %v768, %v1101
      %v1166 = vadd.f32 %v769, %v1102
      %v1167 = vadd.f32 %v770, %v1103
      %v1168 = vadd.f32 %v771, %v1104
      %v1169 = vadd.f32 %v772, %v1105
      %v1170 = vadd.f32 %v773, %v1106
      %v1171 = vadd.f32 %v774, %v1107
      %v1172 = vadd.f32 %v775, %v1108
      %v1173 = vadd.f32 %v776, %v1109
      %v1174 = vadd.f32 %v777, %v1110
      %v1175 = vadd.f32 %v778, %v1111
      %v1176 = vadd.f32 %v779, %v1112
      %v1177 = vadd.f32 %v780, %v1113
      %v1178 = vadd.f32 %v781, %v1114
      %v1179 = vadd.f32 %v782, %v1115
      %v1180 = vadd.f32 %v783, %v1116
      %v1181 = vadd.f32 %v784, %v1117
      %v1182 = vadd.f32 %v785, %v1118
      %v1183 = vadd.f32 %v786, %v1119
      %v1184 = vadd.f32 %v787, %v1120
      %v1185 = vadd.f32 %v788, %v1121
      %v1186 = vadd.f32 %v789, %v1122
      %v1187 = vadd.f32 %v790, %v1123
      %v1188 = vadd.f32 %v791, %v1124
      %v1189 = vadd.f32 %v792, %v1125
      %v1190 = vadd.f32 %v793, %v1126
      %v1191 = vadd.f32 %v794, %v1127
      %v1192 = vadd.f32 %v795, %v1128
      %v1193 = vadd.f32 %v796, %v1129
      %v1194 = vadd.f32 %v797, %v1130
      %v1195 = vadd.f32 %v798, %v1131
      %v1196 = vadd.f32 %v799, %v1132
      %v1197 = vlaneseq
      %v1198 = vshrl.u32 %v1197, 7
      %v1199 = vsub.s32 2, %v1198
      %v1200 = vrot.slane %v592, %v1199
      %v1201 = vmul.f32 %v869, %v1200
      %v1202 = vmul.f32 %v870, %v1200
      %v1203 = vmul.f32 %v871, %v1200
      %v1204 = vmul.f32 %v872, %v1200
      %v1205 = vmul.f32 %v873, %v1200
      %v1206 = vmul.f32 %v874, %v1200
      %v1207 = vmul.f32 %v875, %v1200
      %v1208 = vmul.f32 %v876, %v1200
      %v1209 = vmul.f32 %v877, %v1200
      %v1210 = vmul.f32 %v878, %v1200
      %v1211 = vmul.f32 %v879, %v1200
      %v1212 = vmul.f32 %v880, %v1200
      %v1213 = vmul.f32 %v881, %v1200
      %v1214 = vmul.f32 %v882, %v1200
      %v1215 = vmul.f32 %v883, %v1200
      %v1216 = vmul.f32 %v884, %v1200
      %v1217 = vmul.f32 %v885, %v1200
      %v1218 = vmul.f32 %v886, %v1200
      %v1219 = vmul.f32 %v887, %v1200
      %v1220 = vmul.f32 %v888, %v1200
      %v1221 = vmul.f32 %v889, %v1200
      %v1222 = vmul.f32 %v890, %v1200
      %v1223 = vmul.f32 %v891, %v1200
      %v1224 = vmul.f32 %v892, %v1200
      %v1225 = vmul.f32 %v893, %v1200
      %v1226 = vmul.f32 %v894, %v1200
      %v1227 = vmul.f32 %v895, %v1200
      %v1228 = vmul.f32 %v896, %v1200
      %v1229 = vmul.f32 %v897, %v1200
      %v1230 = vmul.f32 %v898, %v1200
      %v1231 = vmul.f32 %v899, %v1200
      %v1232 = vmul.f32 %v900, %v1200
      %v1233 = vmul.f32 %v901, %v1200
      %v1234 = vmul.f32 %v902, %v1200
      %v1235 = vmul.f32 %v903, %v1200
      %v1236 = vmul.f32 %v904, %v1200
      %v1237 = vmul.f32 %v905, %v1200
      %v1238 = vmul.f32 %v906, %v1200
      %v1239 = vmul.f32 %v907, %v1200
      %v1240 = vmul.f32 %v908, %v1200
      %v1241 = vmul.f32 %v909, %v1200
      %v1242 = vmul.f32 %v910, %v1200
      %v1243 = vmul.f32 %v911, %v1200
      %v1244 = vmul.f32 %v912, %v1200
      %v1245 = vmul.f32 %v913, %v1200
      %v1246 = vmul.f32 %v914, %v1200
      %v1247 = vmul.f32 %v915, %v1200
      %v1248 = vmul.f32 %v916, %v1200
      %v1249 = vmul.f32 %v917, %v1200
      %v1250 = vmul.f32 %v918, %v1200
      %v1251 = vmul.f32 %v919, %v1200
      %v1252 = vmul.f32 %v920, %v1200
      %v1253 = vmul.f32 %v921, %v1200
      %v1254 = vmul.f32 %v922, %v1200
      %v1255 = vmul.f32 %v923, %v1200
      %v1256 = vmul.f32 %v924, %v1200
      %v1257 = vmul.f32 %v925, %v1200
      %v1258 = vmul.f32 %v926, %v1200
      %v1259 = vmul.f32 %v927, %v1200
      %v1260 = vmul.f32 %v928, %v1200
      %v1261 = vmul.f32 %v929, %v1200
      %v1262 = vmul.f32 %v930, %v1200
      %v1263 = vmul.f32 %v931, %v1200
      %v1264 = vmul.f32 %v932, %v1200
      %v1265 = vadd.f32 %v804, %v1201
      %v1266 = vadd.f32 %v805, %v1202
      %v1267 = vadd.f32 %v806, %v1203
      %v1268 = vadd.f32 %v807, %v1204
      %v1269 = vadd.f32 %v808, %v1205
      %v1270 = vadd.f32 %v809, %v1206
      %v1271 = vadd.f32 %v810, %v1207
      %v1272 = vadd.f32 %v811, %v1208
      %v1273 = vadd.f32 %v812, %v1209
      %v1274 = vadd.f32 %v813, %v1210
      %v1275 = vadd.f32 %v814, %v1211
      %v1276 = vadd.f32 %v815, %v1212
      %v1277 = vadd.f32 %v816, %v1213
      %v1278 = vadd.f32 %v817, %v1214
      %v1279 = vadd.f32 %v818, %v1215
      %v1280 = vadd.f32 %v819, %v1216
      %v1281 = vadd.f32 %v820, %v1217
      %v1282 = vadd.f32 %v821, %v1218
      %v1283 = vadd.f32 %v822, %v1219
      %v1284 = vadd.f32 %v823, %v1220
      %v1285 = vadd.f32 %v824, %v1221
      %v1286 = vadd.f32 %v825, %v1222
      %v1287 = vadd.f32 %v826, %v1223
      %v1288 = vadd.f32 %v827, %v1224
      %v1289 = vadd.f32 %v828, %v1225
      %v1290 = vadd.f32 %v829, %v1226
      %v1291 = vadd.f32 %v830, %v1227
      %v1292 = vadd.f32 %v831, %v1228
      %v1293 = vadd.f32 %v832, %v1229
      %v1294 = vadd.f32 %v833, %v1230
      %v1295 = vadd.f32 %v834, %v1231
      %v1296 = vadd.f32 %v835, %v1232
      %v1297 = vadd.f32 %v836, %v1233
      %v1298 = vadd.f32 %v837, %v1234
      %v1299 = vadd.f32 %v838, %v1235
      %v1300 = vadd.f32 %v839, %v1236
      %v1301 = vadd.f32 %v840, %v1237
      %v1302 = vadd.f32 %v841, %v1238
      %v1303 = vadd.f32 %v842, %v1239
      %v1304 = vadd.f32 %v843, %v1240
      %v1305 = vadd.f32 %v844, %v1241
      %v1306 = vadd.f32 %v845, %v1242
      %v1307 = vadd.f32 %v846, %v1243
      %v1308 = vadd.f32 %v847, %v1244
      %v1309 = vadd.f32 %v848, %v1245
      %v1310 = vadd.f32 %v849, %v1246
      %v1311 = vadd.f32 %v850, %v1247
      %v1312 = vadd.f32 %v851, %v1248
      %v1313 = vadd.f32 %v852, %v1249
      %v1314 = vadd.f32 %v853, %v1250
      %v1315 = vadd.f32 %v854, %v1251
      %v1316 = vadd.f32 %v855, %v1252
      %v1317 = vadd.f32 %v856, %v1253
      %v1318 = vadd.f32 %v857, %v1254
      %v1319 = vadd.f32 %v858, %v1255
      %v1320 = vadd.f32 %v859, %v1256
      %v1321 = vadd.f32 %v860, %v1257
      %v1322 = vadd.f32 %v861, %v1258
      %v1323 = vadd.f32 %v862, %v1259
      %v1324 = vadd.f32 %v863, %v1260
      %v1325 = vadd.f32 %v864, %v1261
      %v1326 = vadd.f32 %v865, %v1262
      %v1327 = vadd.f32 %v866, %v1263
      %v1328 = vadd.f32 %v867, %v1264
      %s1329 = scalar_lea.vmem [#allocation2], 16
      %v1330 = vld [vmem:[%s1329] sm:$0xff]
      %v1331 = vld [vmem:[%s1329 + $0x8] sm:$0xff]
      %v1332 = vld [vmem:[%s1329 + $0x10] sm:$0xff]
      %v1333 = vld [vmem:[%s1329 + $0x18] sm:$0xff]
      %v1334 = vld [vmem:[%s1329 + $0x20] sm:$0xff]
      %v1335 = vld [vmem:[%s1329 + $0x28] sm:$0xff]
      %v1336 = vld [vmem:[%s1329 + $0x30] sm:$0xff]
      %v1337 = vld [vmem:[%s1329 + $0x38] sm:$0xff]
      %v1338 = vld [vmem:[%s1329 + $0x50] sm:$0xff]
      %v1339 = vld [vmem:[%s1329 + $0x58] sm:$0xff]
      %v1340 = vld [vmem:[%s1329 + $0x60] sm:$0xff]
      %v1341 = vld [vmem:[%s1329 + $0x68] sm:$0xff]
      %v1342 = vld [vmem:[%s1329 + $0x70] sm:$0xff]
      %v1343 = vld [vmem:[%s1329 + $0x78] sm:$0xff]
      %v1344 = vld [vmem:[%s1329 + $0x80] sm:$0xff]
      %v1345 = vld [vmem:[%s1329 + $0x88] sm:$0xff]
      %v1346 = vld [vmem:[%s1329 + $0xa0] sm:$0xff]
      %v1347 = vld [vmem:[%s1329 + $0xa8] sm:$0xff]
      %v1348 = vld [vmem:[%s1329 + $0xb0] sm:$0xff]
      %v1349 = vld [vmem:[%s1329 + $0xb8] sm:$0xff]
      %v1350 = vld [vmem:[%s1329 + $0xc0] sm:$0xff]
      %v1351 = vld [vmem:[%s1329 + $0xc8] sm:$0xff]
      %v1352 = vld [vmem:[%s1329 + $0xd0] sm:$0xff]
      %v1353 = vld [vmem:[%s1329 + $0xd8] sm:$0xff]
      %v1354 = vld [vmem:[%s1329 + $0xf0] sm:$0xff]
      %v1355 = vld [vmem:[%s1329 + $0xf8] sm:$0xff]
      %v1356 = vld [vmem:[%s1329 + $0x100] sm:$0xff]
      %v1357 = vld [vmem:[%s1329 + $0x108] sm:$0xff]
      %v1358 = vld [vmem:[%s1329 + $0x110] sm:$0xff]
      %v1359 = vld [vmem:[%s1329 + $0x118] sm:$0xff]
      %v1360 = vld [vmem:[%s1329 + $0x120] sm:$0xff]
      %v1361 = vld [vmem:[%s1329 + $0x128] sm:$0xff]
      %v1362 = vld [vmem:[%s1329 + $0x140] sm:$0xff]
      %v1363 = vld [vmem:[%s1329 + $0x148] sm:$0xff]
      %v1364 = vld [vmem:[%s1329 + $0x150] sm:$0xff]
      %v1365 = vld [vmem:[%s1329 + $0x158] sm:$0xff]
      %v1366 = vld [vmem:[%s1329 + $0x160] sm:$0xff]
      %v1367 = vld [vmem:[%s1329 + $0x168] sm:$0xff]
      %v1368 = vld [vmem:[%s1329 + $0x170] sm:$0xff]
      %v1369 = vld [vmem:[%s1329 + $0x178] sm:$0xff]
      %v1370 = vld [vmem:[%s1329 + $0x190] sm:$0xff]
      %v1371 = vld [vmem:[%s1329 + $0x198] sm:$0xff]
      %v1372 = vld [vmem:[%s1329 + $0x1a0] sm:$0xff]
      %v1373 = vld [vmem:[%s1329 + $0x1a8] sm:$0xff]
      %v1374 = vld [vmem:[%s1329 + $0x1b0] sm:$0xff]
      %v1375 = vld [vmem:[%s1329 + $0x1b8] sm:$0xff]
      %v1376 = vld [vmem:[%s1329 + $0x1c0] sm:$0xff]
      %v1377 = vld [vmem:[%s1329 + $0x1c8] sm:$0xff]
      %v1378 = vld [vmem:[%s1329 + $0x1e0] sm:$0xff]
      %v1379 = vld [vmem:[%s1329 + $0x1e8] sm:$0xff]
      %v1380 = vld [vmem:[%s1329 + $0x1f0] sm:$0xff]
      %v1381 = vld [vmem:[%s1329 + $0x1f8] sm:$0xff]
      %v1382 = vld [vmem:[%s1329 + $0x200] sm:$0xff]
      %v1383 = vld [vmem:[%s1329 + $0x208] sm:$0xff]
      %v1384 = vld [vmem:[%s1329 + $0x210] sm:$0xff]
      %v1385 = vld [vmem:[%s1329 + $0x218] sm:$0xff]
      %v1386 = vld [vmem:[%s1329 + $0x230] sm:$0xff]
      %v1387 = vld [vmem:[%s1329 + $0x238] sm:$0xff]
      %v1388 = vld [vmem:[%s1329 + $0x240] sm:$0xff]
      %v1389 = vld [vmem:[%s1329 + $0x248] sm:$0xff]
      %v1390 = vld [vmem:[%s1329 + $0x250] sm:$0xff]
      %v1391 = vld [vmem:[%s1329 + $0x258] sm:$0xff]
      %v1392 = vld [vmem:[%s1329 + $0x260] sm:$0xff]
      %v1393 = vld [vmem:[%s1329 + $0x268] sm:$0xff]
      %v1394 = vlaneseq
      %v1395 = vshrl.u32 %v1394, 7
      %v1396 = vsub.s32 0, %v1395
      %v1397 = vrot.slane %v593, %v1396
      %v1398 = vmul.f32 %v1330, %v1397
      %v1399 = vmul.f32 %v1331, %v1397
      %v1400 = vmul.f32 %v1332, %v1397
      %v1401 = vmul.f32 %v1333, %v1397
      %v1402 = vmul.f32 %v1334, %v1397
      %v1403 = vmul.f32 %v1335, %v1397
      %v1404 = vmul.f32 %v1336, %v1397
      %v1405 = vmul.f32 %v1337, %v1397
      %v1406 = vmul.f32 %v1338, %v1397
      %v1407 = vmul.f32 %v1339, %v1397
      %v1408 = vmul.f32 %v1340, %v1397
      %v1409 = vmul.f32 %v1341, %v1397
      %v1410 = vmul.f32 %v1342, %v1397
      %v1411 = vmul.f32 %v1343, %v1397
      %v1412 = vmul.f32 %v1344, %v1397
      %v1413 = vmul.f32 %v1345, %v1397
      %v1414 = vmul.f32 %v1346, %v1397
      %v1415 = vmul.f32 %v1347, %v1397
      %v1416 = vmul.f32 %v1348, %v1397
      %v1417 = vmul.f32 %v1349, %v1397
      %v1418 = vmul.f32 %v1350, %v1397
      %v1419 = vmul.f32 %v1351, %v1397
      %v1420 = vmul.f32 %v1352, %v1397
      %v1421 = vmul.f32 %v1353, %v1397
      %v1422 = vmul.f32 %v1354, %v1397
      %v1423 = vmul.f32 %v1355, %v1397
      %v1424 = vmul.f32 %v1356, %v1397
      %v1425 = vmul.f32 %v1357, %v1397
      %v1426 = vmul.f32 %v1358, %v1397
      %v1427 = vmul.f32 %v1359, %v1397
      %v1428 = vmul.f32 %v1360, %v1397
      %v1429 = vmul.f32 %v1361, %v1397
      %v1430 = vmul.f32 %v1362, %v1397
      %v1431 = vmul.f32 %v1363, %v1397
      %v1432 = vmul.f32 %v1364, %v1397
      %v1433 = vmul.f32 %v1365, %v1397
      %v1434 = vmul.f32 %v1366, %v1397
      %v1435 = vmul.f32 %v1367, %v1397
      %v1436 = vmul.f32 %v1368, %v1397
      %v1437 = vmul.f32 %v1369, %v1397
      %v1438 = vmul.f32 %v1370, %v1397
      %v1439 = vmul.f32 %v1371, %v1397
      %v1440 = vmul.f32 %v1372, %v1397
      %v1441 = vmul.f32 %v1373, %v1397
      %v1442 = vmul.f32 %v1374, %v1397
      %v1443 = vmul.f32 %v1375, %v1397
      %v1444 = vmul.f32 %v1376, %v1397
      %v1445 = vmul.f32 %v1377, %v1397
      %v1446 = vmul.f32 %v1378, %v1397
      %v1447 = vmul.f32 %v1379, %v1397
      %v1448 = vmul.f32 %v1380, %v1397
      %v1449 = vmul.f32 %v1381, %v1397
      %v1450 = vmul.f32 %v1382, %v1397
      %v1451 = vmul.f32 %v1383, %v1397
      %v1452 = vmul.f32 %v1384, %v1397
      %v1453 = vmul.f32 %v1385, %v1397
      %v1454 = vmul.f32 %v1386, %v1397
      %v1455 = vmul.f32 %v1387, %v1397
      %v1456 = vmul.f32 %v1388, %v1397
      %v1457 = vmul.f32 %v1389, %v1397
      %v1458 = vmul.f32 %v1390, %v1397
      %v1459 = vmul.f32 %v1391, %v1397
      %v1460 = vmul.f32 %v1392, %v1397
      %v1461 = vmul.f32 %v1393, %v1397
      %v1462 = vadd.f32 %v1001, %v1398
      %v1463 = vadd.f32 %v1002, %v1399
      %v1464 = vadd.f32 %v1003, %v1400
      %v1465 = vadd.f32 %v1004, %v1401
      %v1466 = vadd.f32 %v1005, %v1402
      %v1467 = vadd.f32 %v1006, %v1403
      %v1468 = vadd.f32 %v1007, %v1404
      %v1469 = vadd.f32 %v1008, %v1405
      %v1470 = vadd.f32 %v1009, %v1406
      %v1471 = vadd.f32 %v1010, %v1407
      %v1472 = vadd.f32 %v1011, %v1408
      %v1473 = vadd.f32 %v1012, %v1409
      %v1474 = vadd.f32 %v1013, %v1410
      %v1475 = vadd.f32 %v1014, %v1411
      %v1476 = vadd.f32 %v1015, %v1412
      %v1477 = vadd.f32 %v1016, %v1413
      %v1478 = vadd.f32 %v1017, %v1414
      %v1479 = vadd.f32 %v1018, %v1415
      %v1480 = vadd.f32 %v1019, %v1416
      %v1481 = vadd.f32 %v1020, %v1417
      %v1482 = vadd.f32 %v1021, %v1418
      %v1483 = vadd.f32 %v1022, %v1419
      %v1484 = vadd.f32 %v1023, %v1420
      %v1485 = vadd.f32 %v1024, %v1421
      %v1486 = vadd.f32 %v1025, %v1422
      %v1487 = vadd.f32 %v1026, %v1423
      %v1488 = vadd.f32 %v1027, %v1424
      %v1489 = vadd.f32 %v1028, %v1425
      %v1490 = vadd.f32 %v1029, %v1426
      %v1491 = vadd.f32 %v1030, %v1427
      %v1492 = vadd.f32 %v1031, %v1428
      %v1493 = vadd.f32 %v1032, %v1429
      %v1494 = vadd.f32 %v1033, %v1430
      %v1495 = vadd.f32 %v1034, %v1431
      %v1496 = vadd.f32 %v1035, %v1432
      %v1497 = vadd.f32 %v1036, %v1433
      %v1498 = vadd.f32 %v1037, %v1434
      %v1499 = vadd.f32 %v1038, %v1435
      %v1500 = vadd.f32 %v1039, %v1436
      %v1501 = vadd.f32 %v1040, %v1437
      %v1502 = vadd.f32 %v1041, %v1438
      %v1503 = vadd.f32 %v1042, %v1439
      %v1504 = vadd.f32 %v1043, %v1440
      %v1505 = vadd.f32 %v1044, %v1441
      %v1506 = vadd.f32 %v1045, %v1442
      %v1507 = vadd.f32 %v1046, %v1443
      %v1508 = vadd.f32 %v1047, %v1444
      %v1509 = vadd.f32 %v1048, %v1445
      %v1510 = vadd.f32 %v1049, %v1446
      %v1511 = vadd.f32 %v1050, %v1447
      %v1512 = vadd.f32 %v1051, %v1448
      %v1513 = vadd.f32 %v1052, %v1449
      %v1514 = vadd.f32 %v1053, %v1450
      %v1515 = vadd.f32 %v1054, %v1451
      %v1516 = vadd.f32 %v1055, %v1452
      %v1517 = vadd.f32 %v1056, %v1453
      %v1518 = vadd.f32 %v1057, %v1454
      %v1519 = vadd.f32 %v1058, %v1455
      %v1520 = vadd.f32 %v1059, %v1456
      %v1521 = vadd.f32 %v1060, %v1457
      %v1522 = vadd.f32 %v1061, %v1458
      %v1523 = vadd.f32 %v1062, %v1459
      %v1524 = vadd.f32 %v1063, %v1460
      %v1525 = vadd.f32 %v1064, %v1461
      %v1526 = vlaneseq
      %v1527 = vshrl.u32 %v1526, 7
      %v1528 = vsub.s32 1, %v1527
      %v1529 = vrot.slane %v593, %v1528
      %v1530 = vmul.f32 %v1330, %v1529
      %v1531 = vmul.f32 %v1331, %v1529
      %v1532 = vmul.f32 %v1332, %v1529
      %v1533 = vmul.f32 %v1333, %v1529
      %v1534 = vmul.f32 %v1334, %v1529
      %v1535 = vmul.f32 %v1335, %v1529
      %v1536 = vmul.f32 %v1336, %v1529
      %v1537 = vmul.f32 %v1337, %v1529
      %v1538 = vmul.f32 %v1338, %v1529
      %v1539 = vmul.f32 %v1339, %v1529
      %v1540 = vmul.f32 %v1340, %v1529
      %v1541 = vmul.f32 %v1341, %v1529
      %v1542 = vmul.f32 %v1342, %v1529
      %v1543 = vmul.f32 %v1343, %v1529
      %v1544 = vmul.f32 %v1344, %v1529
      %v1545 = vmul.f32 %v1345, %v1529
      %v1546 = vmul.f32 %v1346, %v1529
      %v1547 = vmul.f32 %v1347, %v1529
      %v1548 = vmul.f32 %v1348, %v1529
      %v1549 = vmul.f32 %v1349, %v1529
      %v1550 = vmul.f32 %v1350, %v1529
      %v1551 = vmul.f32 %v1351, %v1529
      %v1552 = vmul.f32 %v1352, %v1529
      %v1553 = vmul.f32 %v1353, %v1529
      %v1554 = vmul.f32 %v1354, %v1529
      %v1555 = vmul.f32 %v1355, %v1529
      %v1556 = vmul.f32 %v1356, %v1529
      %v1557 = vmul.f32 %v1357, %v1529
      %v1558 = vmul.f32 %v1358, %v1529
      %v1559 = vmul.f32 %v1359, %v1529
      %v1560 = vmul.f32 %v1360, %v1529
      %v1561 = vmul.f32 %v1361, %v1529
      %v1562 = vmul.f32 %v1362, %v1529
      %v1563 = vmul.f32 %v1363, %v1529
      %v1564 = vmul.f32 %v1364, %v1529
      %v1565 = vmul.f32 %v1365, %v1529
      %v1566 = vmul.f32 %v1366, %v1529
      %v1567 = vmul.f32 %v1367, %v1529
      %v1568 = vmul.f32 %v1368, %v1529
      %v1569 = vmul.f32 %v1369, %v1529
      %v1570 = vmul.f32 %v1370, %v1529
      %v1571 = vmul.f32 %v1371, %v1529
      %v1572 = vmul.f32 %v1372, %v1529
      %v1573 = vmul.f32 %v1373, %v1529
      %v1574 = vmul.f32 %v1374, %v1529
      %v1575 = vmul.f32 %v1375, %v1529
      %v1576 = vmul.f32 %v1376, %v1529
      %v1577 = vmul.f32 %v1377, %v1529
      %v1578 = vmul.f32 %v1378, %v1529
      %v1579 = vmul.f32 %v1379, %v1529
      %v1580 = vmul.f32 %v1380, %v1529
      %v1581 = vmul.f32 %v1381, %v1529
      %v1582 = vmul.f32 %v1382, %v1529
      %v1583 = vmul.f32 %v1383, %v1529
      %v1584 = vmul.f32 %v1384, %v1529
      %v1585 = vmul.f32 %v1385, %v1529
      %v1586 = vmul.f32 %v1386, %v1529
      %v1587 = vmul.f32 %v1387, %v1529
      %v1588 = vmul.f32 %v1388, %v1529
      %v1589 = vmul.f32 %v1389, %v1529
      %v1590 = vmul.f32 %v1390, %v1529
      %v1591 = vmul.f32 %v1391, %v1529
      %v1592 = vmul.f32 %v1392, %v1529
      %v1593 = vmul.f32 %v1393, %v1529
      %v1594 = vadd.f32 %v1133, %v1530
      %v1595 = vadd.f32 %v1134, %v1531
      %v1596 = vadd.f32 %v1135, %v1532
      %v1597 = vadd.f32 %v1136, %v1533
      %v1598 = vadd.f32 %v1137, %v1534
      %v1599 = vadd.f32 %v1138, %v1535
      %v1600 = vadd.f32 %v1139, %v1536
      %v1601 = vadd.f32 %v1140, %v1537
      %v1602 = vadd.f32 %v1141, %v1538
      %v1603 = vadd.f32 %v1142, %v1539
      %v1604 = vadd.f32 %v1143, %v1540
      %v1605 = vadd.f32 %v1144, %v1541
      %v1606 = vadd.f32 %v1145, %v1542
      %v1607 = vadd.f32 %v1146, %v1543
      %v1608 = vadd.f32 %v1147, %v1544
      %v1609 = vadd.f32 %v1148, %v1545
      %v1610 = vadd.f32 %v1149, %v1546
      %v1611 = vadd.f32 %v1150, %v1547
      %v1612 = vadd.f32 %v1151, %v1548
      %v1613 = vadd.f32 %v1152, %v1549
      %v1614 = vadd.f32 %v1153, %v1550
      %v1615 = vadd.f32 %v1154, %v1551
      %v1616 = vadd.f32 %v1155, %v1552
      %v1617 = vadd.f32 %v1156, %v1553
      %v1618 = vadd.f32 %v1157, %v1554
      %v1619 = vadd.f32 %v1158, %v1555
      %v1620 = vadd.f32 %v1159, %v1556
      %v1621 = vadd.f32 %v1160, %v1557
      %v1622 = vadd.f32 %v1161, %v1558
      %v1623 = vadd.f32 %v1162, %v1559
      %v1624 = vadd.f32 %v1163, %v1560
      %v1625 = vadd.f32 %v1164, %v1561
      %v1626 = vadd.f32 %v1165, %v1562
      %v1627 = vadd.f32 %v1166, %v1563
      %v1628 = vadd.f32 %v1167, %v1564
      %v1629 = vadd.f32 %v1168, %v1565
      %v1630 = vadd.f32 %v1169, %v1566
      %v1631 = vadd.f32 %v1170, %v1567
      %v1632 = vadd.f32 %v1171, %v1568
      %v1633 = vadd.f32 %v1172, %v1569
      %v1634 = vadd.f32 %v1173, %v1570
      %v1635 = vadd.f32 %v1174, %v1571
      %v1636 = vadd.f32 %v1175, %v1572
      %v1637 = vadd.f32 %v1176, %v1573
      %v1638 = vadd.f32 %v1177, %v1574
      %v1639 = vadd.f32 %v1178, %v1575
      %v1640 = vadd.f32 %v1179, %v1576
      %v1641 = vadd.f32 %v1180, %v1577
      %v1642 = vadd.f32 %v1181, %v1578
      %v1643 = vadd.f32 %v1182, %v1579
      %v1644 = vadd.f32 %v1183, %v1580
      %v1645 = vadd.f32 %v1184, %v1581
      %v1646 = vadd.f32 %v1185, %v1582
      %v1647 = vadd.f32 %v1186, %v1583
      %v1648 = vadd.f32 %v1187, %v1584
      %v1649 = vadd.f32 %v1188, %v1585
      %v1650 = vadd.f32 %v1189, %v1586
      %v1651 = vadd.f32 %v1190, %v1587
      %v1652 = vadd.f32 %v1191, %v1588
      %v1653 = vadd.f32 %v1192, %v1589
      %v1654 = vadd.f32 %v1193, %v1590
      %v1655 = vadd.f32 %v1194, %v1591
      %v1656 = vadd.f32 %v1195, %v1592
      %v1657 = vadd.f32 %v1196, %v1593
      %v1658 = vlaneseq
      %v1659 = vshrl.u32 %v1658, 7
      %v1660 = vsub.s32 2, %v1659
      %v1661 = vrot.slane %v593, %v1660
      %v1662 = vmul.f32 %v1330, %v1661
      %v1663 = vmul.f32 %v1331, %v1661
      %v1664 = vmul.f32 %v1332, %v1661
      %v1665 = vmul.f32 %v1333, %v1661
      %v1666 = vmul.f32 %v1334, %v1661
      %v1667 = vmul.f32 %v1335, %v1661
      %v1668 = vmul.f32 %v1336, %v1661
      %v1669 = vmul.f32 %v1337, %v1661
      %v1670 = vmul.f32 %v1338, %v1661
      %v1671 = vmul.f32 %v1339, %v1661
      %v1672 = vmul.f32 %v1340, %v1661
      %v1673 = vmul.f32 %v1341, %v1661
      %v1674 = vmul.f32 %v1342, %v1661
      %v1675 = vmul.f32 %v1343, %v1661
      %v1676 = vmul.f32 %v1344, %v1661
      %v1677 = vmul.f32 %v1345, %v1661
      %v1678 = vmul.f32 %v1346, %v1661
      %v1679 = vmul.f32 %v1347, %v1661
      %v1680 = vmul.f32 %v1348, %v1661
      %v1681 = vmul.f32 %v1349, %v1661
      %v1682 = vmul.f32 %v1350, %v1661
      %v1683 = vmul.f32 %v1351, %v1661
      %v1684 = vmul.f32 %v1352, %v1661
      %v1685 = vmul.f32 %v1353, %v1661
      %v1686 = vmul.f32 %v1354, %v1661
      %v1687 = vmul.f32 %v1355, %v1661
      %v1688 = vmul.f32 %v1356, %v1661
      %v1689 = vmul.f32 %v1357, %v1661
      %v1690 = vmul.f32 %v1358, %v1661
      %v1691 = vmul.f32 %v1359, %v1661
      %v1692 = vmul.f32 %v1360, %v1661
      %v1693 = vmul.f32 %v1361, %v1661
      %v1694 = vmul.f32 %v1362, %v1661
      %v1695 = vmul.f32 %v1363, %v1661
      %v1696 = vmul.f32 %v1364, %v1661
      %v1697 = vmul.f32 %v1365, %v1661
      %v1698 = vmul.f32 %v1366, %v1661
      %v1699 = vmul.f32 %v1367, %v1661
      %v1700 = vmul.f32 %v1368, %v1661
      %v1701 = vmul.f32 %v1369, %v1661
      %v1702 = vmul.f32 %v1370, %v1661
      %v1703 = vmul.f32 %v1371, %v1661
      %v1704 = vmul.f32 %v1372, %v1661
      %v1705 = vmul.f32 %v1373, %v1661
      %v1706 = vmul.f32 %v1374, %v1661
      %v1707 = vmul.f32 %v1375, %v1661
      %v1708 = vmul.f32 %v1376, %v1661
      %v1709 = vmul.f32 %v1377, %v1661
      %v1710 = vmul.f32 %v1378, %v1661
      %v1711 = vmul.f32 %v1379, %v1661
      %v1712 = vmul.f32 %v1380, %v1661
      %v1713 = vmul.f32 %v1381, %v1661
      %v1714 = vmul.f32 %v1382, %v1661
      %v1715 = vmul.f32 %v1383, %v1661
      %v1716 = vmul.f32 %v1384, %v1661
      %v1717 = vmul.f32 %v1385, %v1661
      %v1718 = vmul.f32 %v1386, %v1661
      %v1719 = vmul.f32 %v1387, %v1661
      %v1720 = vmul.f32 %v1388, %v1661
      %v1721 = vmul.f32 %v1389, %v1661
      %v1722 = vmul.f32 %v1390, %v1661
      %v1723 = vmul.f32 %v1391, %v1661
      %v1724 = vmul.f32 %v1392, %v1661
      %v1725 = vmul.f32 %v1393, %v1661
      %v1726 = vadd.f32 %v1265, %v1662
      %v1727 = vadd.f32 %v1266, %v1663
      %v1728 = vadd.f32 %v1267, %v1664
      %v1729 = vadd.f32 %v1268, %v1665
      %v1730 = vadd.f32 %v1269, %v1666
      %v1731 = vadd.f32 %v1270, %v1667
      %v1732 = vadd.f32 %v1271, %v1668
      %v1733 = vadd.f32 %v1272, %v1669
      %v1734 = vadd.f32 %v1273, %v1670
      %v1735 = vadd.f32 %v1274, %v1671
      %v1736 = vadd.f32 %v1275, %v1672
      %v1737 = vadd.f32 %v1276, %v1673
      %v1738 = vadd.f32 %v1277, %v1674
      %v1739 = vadd.f32 %v1278, %v1675
      %v1740 = vadd.f32 %v1279, %v1676
      %v1741 = vadd.f32 %v1280, %v1677
      %v1742 = vadd.f32 %v1281, %v1678
      %v1743 = vadd.f32 %v1282, %v1679
      %v1744 = vadd.f32 %v1283, %v1680
      %v1745 = vadd.f32 %v1284, %v1681
      %v1746 = vadd.f32 %v1285, %v1682
      %v1747 = vadd.f32 %v1286, %v1683
      %v1748 = vadd.f32 %v1287, %v1684
      %v1749 = vadd.f32 %v1288, %v1685
      %v1750 = vadd.f32 %v1289, %v1686
      %v1751 = vadd.f32 %v1290, %v1687
      %v1752 = vadd.f32 %v1291, %v1688
      %v1753 = vadd.f32 %v1292, %v1689
      %v1754 = vadd.f32 %v1293, %v1690
      %v1755 = vadd.f32 %v1294, %v1691
      %v1756 = vadd.f32 %v1295, %v1692
      %v1757 = vadd.f32 %v1296, %v1693
      %v1758 = vadd.f32 %v1297, %v1694
      %v1759 = vadd.f32 %v1298, %v1695
      %v1760 = vadd.f32 %v1299, %v1696
      %v1761 = vadd.f32 %v1300, %v1697
      %v1762 = vadd.f32 %v1301, %v1698
      %v1763 = vadd.f32 %v1302, %v1699
      %v1764 = vadd.f32 %v1303, %v1700
      %v1765 = vadd.f32 %v1304, %v1701
      %v1766 = vadd.f32 %v1305, %v1702
      %v1767 = vadd.f32 %v1306, %v1703
      %v1768 = vadd.f32 %v1307, %v1704
      %v1769 = vadd.f32 %v1308, %v1705
      %v1770 = vadd.f32 %v1309, %v1706
      %v1771 = vadd.f32 %v1310, %v1707
      %v1772 = vadd.f32 %v1311, %v1708
      %v1773 = vadd.f32 %v1312, %v1709
      %v1774 = vadd.f32 %v1313, %v1710
      %v1775 = vadd.f32 %v1314, %v1711
      %v1776 = vadd.f32 %v1315, %v1712
      %v1777 = vadd.f32 %v1316, %v1713
      %v1778 = vadd.f32 %v1317, %v1714
      %v1779 = vadd.f32 %v1318, %v1715
      %v1780 = vadd.f32 %v1319, %v1716
      %v1781 = vadd.f32 %v1320, %v1717
      %v1782 = vadd.f32 %v1321, %v1718
      %v1783 = vadd.f32 %v1322, %v1719
      %v1784 = vadd.f32 %v1323, %v1720
      %v1785 = vadd.f32 %v1324, %v1721
      %v1786 = vadd.f32 %v1325, %v1722
      %v1787 = vadd.f32 %v1326, %v1723
      %v1788 = vadd.f32 %v1327, %v1724
      %v1789 = vadd.f32 %v1328, %v1725
      %s1790 = scalar_lea.vmem [#allocation2], 80
      %v1791 = vld [vmem:[%s1790] sm:$0xff]
      %v1792 = vld [vmem:[%s1790 + $0x8] sm:$0xff]
      %v1793 = vld [vmem:[%s1790 + $0x10] sm:$0xff]
      %v1794 = vld [vmem:[%s1790 + $0x18] sm:$0xff]
      %v1795 = vld [vmem:[%s1790 + $0x20] sm:$0xff]
      %v1796 = vld [vmem:[%s1790 + $0x28] sm:$0xff]
      %v1797 = vld [vmem:[%s1790 + $0x30] sm:$0xff]
      %v1798 = vld [vmem:[%s1790 + $0x38] sm:$0xff]
      %v1799 = vld [vmem:[%s1790 + $0x50] sm:$0xff]
      %v1800 = vld [vmem:[%s1790 + $0x58] sm:$0xff]
      %v1801 = vld [vmem:[%s1790 + $0x60] sm:$0xff]
      %v1802 = vld [vmem:[%s1790 + $0x68] sm:$0xff]
      %v1803 = vld [vmem:[%s1790 + $0x70] sm:$0xff]
      %v1804 = vld [vmem:[%s1790 + $0x78] sm:$0xff]
      %v1805 = vld [vmem:[%s1790 + $0x80] sm:$0xff]
      %v1806 = vld [vmem:[%s1790 + $0x88] sm:$0xff]
      %v1807 = vld [vmem:[%s1790 + $0xa0] sm:$0xff]
      %v1808 = vld [vmem:[%s1790 + $0xa8] sm:$0xff]
      %v1809 = vld [vmem:[%s1790 + $0xb0] sm:$0xff]
      %v1810 = vld [vmem:[%s1790 + $0xb8] sm:$0xff]
      %v1811 = vld [vmem:[%s1790 + $0xc0] sm:$0xff]
      %v1812 = vld [vmem:[%s1790 + $0xc8] sm:$0xff]
      %v1813 = vld [vmem:[%s1790 + $0xd0] sm:$0xff]
      %v1814 = vld [vmem:[%s1790 + $0xd8] sm:$0xff]
      %v1815 = vld [vmem:[%s1790 + $0xf0] sm:$0xff]
      %v1816 = vld [vmem:[%s1790 + $0xf8] sm:$0xff]
      %v1817 = vld [vmem:[%s1790 + $0x100] sm:$0xff]
      %v1818 = vld [vmem:[%s1790 + $0x108] sm:$0xff]
      %v1819 = vld [vmem:[%s1790 + $0x110] sm:$0xff]
      %v1820 = vld [vmem:[%s1790 + $0x118] sm:$0xff]
      %v1821 = vld [vmem:[%s1790 + $0x120] sm:$0xff]
      %v1822 = vld [vmem:[%s1790 + $0x128] sm:$0xff]
      %v1823 = vld [vmem:[%s1790 + $0x140] sm:$0xff]
      %v1824 = vld [vmem:[%s1790 + $0x148] sm:$0xff]
      %v1825 = vld [vmem:[%s1790 + $0x150] sm:$0xff]
      %v1826 = vld [vmem:[%s1790 + $0x158] sm:$0xff]
      %v1827 = vld [vmem:[%s1790 + $0x160] sm:$0xff]
      %v1828 = vld [vmem:[%s1790 + $0x168] sm:$0xff]
      %v1829 = vld [vmem:[%s1790 + $0x170] sm:$0xff]
      %v1830 = vld [vmem:[%s1790 + $0x178] sm:$0xff]
      %v1831 = vld [vmem:[%s1790 + $0x190] sm:$0xff]
      %v1832 = vld [vmem:[%s1790 + $0x198] sm:$0xff]
      %v1833 = vld [vmem:[%s1790 + $0x1a0] sm:$0xff]
      %v1834 = vld [vmem:[%s1790 + $0x1a8] sm:$0xff]
      %v1835 = vld [vmem:[%s1790 + $0x1b0] sm:$0xff]
      %v1836 = vld [vmem:[%s1790 + $0x1b8] sm:$0xff]
      %v1837 = vld [vmem:[%s1790 + $0x1c0] sm:$0xff]
      %v1838 = vld [vmem:[%s1790 + $0x1c8] sm:$0xff]
      %v1839 = vld [vmem:[%s1790 + $0x1e0] sm:$0xff]
      %v1840 = vld [vmem:[%s1790 + $0x1e8] sm:$0xff]
      %v1841 = vld [vmem:[%s1790 + $0x1f0] sm:$0xff]
      %v1842 = vld [vmem:[%s1790 + $0x1f8] sm:$0xff]
      %v1843 = vld [vmem:[%s1790 + $0x200] sm:$0xff]
      %v1844 = vld [vmem:[%s1790 + $0x208] sm:$0xff]
      %v1845 = vld [vmem:[%s1790 + $0x210] sm:$0xff]
      %v1846 = vld [vmem:[%s1790 + $0x218] sm:$0xff]
      %v1847 = vld [vmem:[%s1790 + $0x230] sm:$0xff]
      %v1848 = vld [vmem:[%s1790 + $0x238] sm:$0xff]
      %v1849 = vld [vmem:[%s1790 + $0x240] sm:$0xff]
      %v1850 = vld [vmem:[%s1790 + $0x248] sm:$0xff]
      %v1851 = vld [vmem:[%s1790 + $0x250] sm:$0xff]
      %v1852 = vld [vmem:[%s1790 + $0x258] sm:$0xff]
      %v1853 = vld [vmem:[%s1790 + $0x260] sm:$0xff]
      %v1854 = vld [vmem:[%s1790 + $0x268] sm:$0xff]
      %v1855 = vlaneseq
      %v1856 = vshrl.u32 %v1855, 7
      %v1857 = vsub.s32 0, %v1856
      %v1858 = vrot.slane %v594, %v1857
      %v1859 = vmul.f32 %v1791, %v1858
      %v1860 = vmul.f32 %v1792, %v1858
      %v1861 = vmul.f32 %v1793, %v1858
      %v1862 = vmul.f32 %v1794, %v1858
      %v1863 = vmul.f32 %v1795, %v1858
      %v1864 = vmul.f32 %v1796, %v1858
      %v1865 = vmul.f32 %v1797, %v1858
      %v1866 = vmul.f32 %v1798, %v1858
      %v1867 = vmul.f32 %v1799, %v1858
      %v1868 = vmul.f32 %v1800, %v1858
      %v1869 = vmul.f32 %v1801, %v1858
      %v1870 = vmul.f32 %v1802, %v1858
      %v1871 = vmul.f32 %v1803, %v1858
      %v1872 = vmul.f32 %v1804, %v1858
      %v1873 = vmul.f32 %v1805, %v1858
      %v1874 = vmul.f32 %v1806, %v1858
      %v1875 = vmul.f32 %v1807, %v1858
      %v1876 = vmul.f32 %v1808, %v1858
      %v1877 = vmul.f32 %v1809, %v1858
      %v1878 = vmul.f32 %v1810, %v1858
      %v1879 = vmul.f32 %v1811, %v1858
      %v1880 = vmul.f32 %v1812, %v1858
      %v1881 = vmul.f32 %v1813, %v1858
      %v1882 = vmul.f32 %v1814, %v1858
      %v1883 = vmul.f32 %v1815, %v1858
      %v1884 = vmul.f32 %v1816, %v1858
      %v1885 = vmul.f32 %v1817, %v1858
      %v1886 = vmul.f32 %v1818, %v1858
      %v1887 = vmul.f32 %v1819, %v1858
      %v1888 = vmul.f32 %v1820, %v1858
      %v1889 = vmul.f32 %v1821, %v1858
      %v1890 = vmul.f32 %v1822, %v1858
      %v1891 = vmul.f32 %v1823, %v1858
      %v1892 = vmul.f32 %v1824, %v1858
      %v1893 = vmul.f32 %v1825, %v1858
      %v1894 = vmul.f32 %v1826, %v1858
      %v1895 = vmul.f32 %v1827, %v1858
      %v1896 = vmul.f32 %v1828, %v1858
      %v1897 = vmul.f32 %v1829, %v1858
      %v1898 = vmul.f32 %v1830, %v1858
      %v1899 = vmul.f32 %v1831, %v1858
      %v1900 = vmul.f32 %v1832, %v1858
      %v1901 = vmul.f32 %v1833, %v1858
      %v1902 = vmul.f32 %v1834, %v1858
      %v1903 = vmul.f32 %v1835, %v1858
      %v1904 = vmul.f32 %v1836, %v1858
      %v1905 = vmul.f32 %v1837, %v1858
      %v1906 = vmul.f32 %v1838, %v1858
      %v1907 = vmul.f32 %v1839, %v1858
      %v1908 = vmul.f32 %v1840, %v1858
      %v1909 = vmul.f32 %v1841, %v1858
      %v1910 = vmul.f32 %v1842, %v1858
      %v1911 = vmul.f32 %v1843, %v1858
      %v1912 = vmul.f32 %v1844, %v1858
      %v1913 = vmul.f32 %v1845, %v1858
      %v1914 = vmul.f32 %v1846, %v1858
      %v1915 = vmul.f32 %v1847, %v1858
      %v1916 = vmul.f32 %v1848, %v1858
      %v1917 = vmul.f32 %v1849, %v1858
      %v1918 = vmul.f32 %v1850, %v1858
      %v1919 = vmul.f32 %v1851, %v1858
      %v1920 = vmul.f32 %v1852, %v1858
      %v1921 = vmul.f32 %v1853, %v1858
      %v1922 = vmul.f32 %v1854, %v1858
      %v1923 = vadd.f32 %v1462, %v1859
      %v1924 = vadd.f32 %v1463, %v1860
      %v1925 = vadd.f32 %v1464, %v1861
      %v1926 = vadd.f32 %v1465, %v1862
      %v1927 = vadd.f32 %v1466, %v1863
      %v1928 = vadd.f32 %v1467, %v1864
      %v1929 = vadd.f32 %v1468, %v1865
      %v1930 = vadd.f32 %v1469, %v1866
      %v1931 = vadd.f32 %v1470, %v1867
      %v1932 = vadd.f32 %v1471, %v1868
      %v1933 = vadd.f32 %v1472, %v1869
      %v1934 = vadd.f32 %v1473, %v1870
      %v1935 = vadd.f32 %v1474, %v1871
      %v1936 = vadd.f32 %v1475, %v1872
      %v1937 = vadd.f32 %v1476, %v1873
      %v1938 = vadd.f32 %v1477, %v1874
      %v1939 = vadd.f32 %v1478, %v1875
      %v1940 = vadd.f32 %v1479, %v1876
      %v1941 = vadd.f32 %v1480, %v1877
      %v1942 = vadd.f32 %v1481, %v1878
      %v1943 = vadd.f32 %v1482, %v1879
      %v1944 = vadd.f32 %v1483, %v1880
      %v1945 = vadd.f32 %v1484, %v1881
      %v1946 = vadd.f32 %v1485, %v1882
      %v1947 = vadd.f32 %v1486, %v1883
      %v1948 = vadd.f32 %v1487, %v1884
      %v1949 = vadd.f32 %v1488, %v1885
      %v1950 = vadd.f32 %v1489, %v1886
      %v1951 = vadd.f32 %v1490, %v1887
      %v1952 = vadd.f32 %v1491, %v1888
      %v1953 = vadd.f32 %v1492, %v1889
      %v1954 = vadd.f32 %v1493, %v1890
      %v1955 = vadd.f32 %v1494, %v1891
      %v1956 = vadd.f32 %v1495, %v1892
      %v1957 = vadd.f32 %v1496, %v1893
      %v1958 = vadd.f32 %v1497, %v1894
      %v1959 = vadd.f32 %v1498, %v1895
      %v1960 = vadd.f32 %v1499, %v1896
      %v1961 = vadd.f32 %v1500, %v1897
      %v1962 = vadd.f32 %v1501, %v1898
      %v1963 = vadd.f32 %v1502, %v1899
      %v1964 = vadd.f32 %v1503, %v1900
      %v1965 = vadd.f32 %v1504, %v1901
      %v1966 = vadd.f32 %v1505, %v1902
      %v1967 = vadd.f32 %v1506, %v1903
      %v1968 = vadd.f32 %v1507, %v1904
      %v1969 = vadd.f32 %v1508, %v1905
      %v1970 = vadd.f32 %v1509, %v1906
      %v1971 = vadd.f32 %v1510, %v1907
      %v1972 = vadd.f32 %v1511, %v1908
      %v1973 = vadd.f32 %v1512, %v1909
      %v1974 = vadd.f32 %v1513, %v1910
      %v1975 = vadd.f32 %v1514, %v1911
      %v1976 = vadd.f32 %v1515, %v1912
      %v1977 = vadd.f32 %v1516, %v1913
      %v1978 = vadd.f32 %v1517, %v1914
      %v1979 = vadd.f32 %v1518, %v1915
      %v1980 = vadd.f32 %v1519, %v1916
      %v1981 = vadd.f32 %v1520, %v1917
      %v1982 = vadd.f32 %v1521, %v1918
      %v1983 = vadd.f32 %v1522, %v1919
      %v1984 = vadd.f32 %v1523, %v1920
      %v1985 = vadd.f32 %v1524, %v1921
      %v1986 = vadd.f32 %v1525, %v1922
      %v1987 = vlaneseq
      %v1988 = vshrl.u32 %v1987, 7
      %v1989 = vsub.s32 1, %v1988
      %v1990 = vrot.slane %v594, %v1989
      %v1991 = vmul.f32 %v1791, %v1990
      %v1992 = vmul.f32 %v1792, %v1990
      %v1993 = vmul.f32 %v1793, %v1990
      %v1994 = vmul.f32 %v1794, %v1990
      %v1995 = vmul.f32 %v1795, %v1990
      %v1996 = vmul.f32 %v1796, %v1990
      %v1997 = vmul.f32 %v1797, %v1990
      %v1998 = vmul.f32 %v1798, %v1990
      %v1999 = vmul.f32 %v1799, %v1990
      %v2000 = vmul.f32 %v1800, %v1990
      %v2001 = vmul.f32 %v1801, %v1990
      %v2002 = vmul.f32 %v1802, %v1990
      %v2003 = vmul.f32 %v1803, %v1990
      %v2004 = vmul.f32 %v1804, %v1990
      %v2005 = vmul.f32 %v1805, %v1990
      %v2006 = vmul.f32 %v1806, %v1990
      %v2007 = vmul.f32 %v1807, %v1990
      %v2008 = vmul.f32 %v1808, %v1990
      %v2009 = vmul.f32 %v1809, %v1990
      %v2010 = vmul.f32 %v1810, %v1990
      %v2011 = vmul.f32 %v1811, %v1990
      %v2012 = vmul.f32 %v1812, %v1990
      %v2013 = vmul.f32 %v1813, %v1990
      %v2014 = vmul.f32 %v1814, %v1990
      %v2015 = vmul.f32 %v1815, %v1990
      %v2016 = vmul.f32 %v1816, %v1990
      %v2017 = vmul.f32 %v1817, %v1990
      %v2018 = vmul.f32 %v1818, %v1990
      %v2019 = vmul.f32 %v1819, %v1990
      %v2020 = vmul.f32 %v1820, %v1990
      %v2021 = vmul.f32 %v1821, %v1990
      %v2022 = vmul.f32 %v1822, %v1990
      %v2023 = vmul.f32 %v1823, %v1990
      %v2024 = vmul.f32 %v1824, %v1990
      %v2025 = vmul.f32 %v1825, %v1990
      %v2026 = vmul.f32 %v1826, %v1990
      %v2027 = vmul.f32 %v1827, %v1990
      %v2028 = vmul.f32 %v1828, %v1990
      %v2029 = vmul.f32 %v1829, %v1990
      %v2030 = vmul.f32 %v1830, %v1990
      %v2031 = vmul.f32 %v1831, %v1990
      %v2032 = vmul.f32 %v1832, %v1990
      %v2033 = vmul.f32 %v1833, %v1990
      %v2034 = vmul.f32 %v1834, %v1990
      %v2035 = vmul.f32 %v1835, %v1990
      %v2036 = vmul.f32 %v1836, %v1990
      %v2037 = vmul.f32 %v1837, %v1990
      %v2038 = vmul.f32 %v1838, %v1990
      %v2039 = vmul.f32 %v1839, %v1990
      %v2040 = vmul.f32 %v1840, %v1990
      %v2041 = vmul.f32 %v1841, %v1990
      %v2042 = vmul.f32 %v1842, %v1990
      %v2043 = vmul.f32 %v1843, %v1990
      %v2044 = vmul.f32 %v1844, %v1990
      %v2045 = vmul.f32 %v1845, %v1990
      %v2046 = vmul.f32 %v1846, %v1990
      %v2047 = vmul.f32 %v1847, %v1990
      %v2048 = vmul.f32 %v1848, %v1990
      %v2049 = vmul.f32 %v1849, %v1990
      %v2050 = vmul.f32 %v1850, %v1990
      %v2051 = vmul.f32 %v1851, %v1990
      %v2052 = vmul.f32 %v1852, %v1990
      %v2053 = vmul.f32 %v1853, %v1990
      %v2054 = vmul.f32 %v1854, %v1990
      %v2055 = vadd.f32 %v1594, %v1991
      %v2056 = vadd.f32 %v1595, %v1992
      %v2057 = vadd.f32 %v1596, %v1993
      %v2058 = vadd.f32 %v1597, %v1994
      %v2059 = vadd.f32 %v1598, %v1995
      %v2060 = vadd.f32 %v1599, %v1996
      %v2061 = vadd.f32 %v1600, %v1997
      %v2062 = vadd.f32 %v1601, %v1998
      %v2063 = vadd.f32 %v1602, %v1999
      %v2064 = vadd.f32 %v1603, %v2000
      %v2065 = vadd.f32 %v1604, %v2001
      %v2066 = vadd.f32 %v1605, %v2002
      %v2067 = vadd.f32 %v1606, %v2003
      %v2068 = vadd.f32 %v1607, %v2004
      %v2069 = vadd.f32 %v1608, %v2005
      %v2070 = vadd.f32 %v1609, %v2006
      %v2071 = vadd.f32 %v1610, %v2007
      %v2072 = vadd.f32 %v1611, %v2008
      %v2073 = vadd.f32 %v1612, %v2009
      %v2074 = vadd.f32 %v1613, %v2010
      %v2075 = vadd.f32 %v1614, %v2011
      %v2076 = vadd.f32 %v1615, %v2012
      %v2077 = vadd.f32 %v1616, %v2013
      %v2078 = vadd.f32 %v1617, %v2014
      %v2079 = vadd.f32 %v1618, %v2015
      %v2080 = vadd.f32 %v1619, %v2016
      %v2081 = vadd.f32 %v1620, %v2017
      %v2082 = vadd.f32 %v1621, %v2018
      %v2083 = vadd.f32 %v1622, %v2019
      %v2084 = vadd.f32 %v1623, %v2020
      %v2085 = vadd.f32 %v1624, %v2021
      %v2086 = vadd.f32 %v1625, %v2022
      %v2087 = vadd.f32 %v1626, %v2023
      %v2088 = vadd.f32 %v1627, %v2024
      %v2089 = vadd.f32 %v1628, %v2025
      %v2090 = vadd.f32 %v1629, %v2026
      %v2091 = vadd.f32 %v1630, %v2027
      %v2092 = vadd.f32 %v1631, %v2028
      %v2093 = vadd.f32 %v1632, %v2029
      %v2094 = vadd.f32 %v1633, %v2030
      %v2095 = vadd.f32 %v1634, %v2031
      %v2096 = vadd.f32 %v1635, %v2032
      %v2097 = vadd.f32 %v1636, %v2033
      %v2098 = vadd.f32 %v1637, %v2034
      %v2099 = vadd.f32 %v1638, %v2035
      %v2100 = vadd.f32 %v1639, %v2036
      %v2101 = vadd.f32 %v1640, %v2037
      %v2102 = vadd.f32 %v1641, %v2038
      %v2103 = vadd.f32 %v1642, %v2039
      %v2104 = vadd.f32 %v1643, %v2040
      %v2105 = vadd.f32 %v1644, %v2041
      %v2106 = vadd.f32 %v1645, %v2042
      %v2107 = vadd.f32 %v1646, %v2043
      %v2108 = vadd.f32 %v1647, %v2044
      %v2109 = vadd.f32 %v1648, %v2045
      %v2110 = vadd.f32 %v1649, %v2046
      %v2111 = vadd.f32 %v1650, %v2047
      %v2112 = vadd.f32 %v1651, %v2048
      %v2113 = vadd.f32 %v1652, %v2049
      %v2114 = vadd.f32 %v1653, %v2050
      %v2115 = vadd.f32 %v1654, %v2051
      %v2116 = vadd.f32 %v1655, %v2052
      %v2117 = vadd.f32 %v1656, %v2053
      %v2118 = vadd.f32 %v1657, %v2054
      %v2119 = vlaneseq
      %v2120 = vshrl.u32 %v2119, 7
      %v2121 = vsub.s32 2, %v2120
      %v2122 = vrot.slane %v594, %v2121
      %v2123 = vmul.f32 %v1791, %v2122
      %v2124 = vmul.f32 %v1792, %v2122
      %v2125 = vmul.f32 %v1793, %v2122
      %v2126 = vmul.f32 %v1794, %v2122
      %v2127 = vmul.f32 %v1795, %v2122
      %v2128 = vmul.f32 %v1796, %v2122
      %v2129 = vmul.f32 %v1797, %v2122
      %v2130 = vmul.f32 %v1798, %v2122
      %v2131 = vmul.f32 %v1799, %v2122
      %v2132 = vmul.f32 %v1800, %v2122
      %v2133 = vmul.f32 %v1801, %v2122
      %v2134 = vmul.f32 %v1802, %v2122
      %v2135 = vmul.f32 %v1803, %v2122
      %v2136 = vmul.f32 %v1804, %v2122
      %v2137 = vmul.f32 %v1805, %v2122
      %v2138 = vmul.f32 %v1806, %v2122
      %v2139 = vmul.f32 %v1807, %v2122
      %v2140 = vmul.f32 %v1808, %v2122
      %v2141 = vmul.f32 %v1809, %v2122
      %v2142 = vmul.f32 %v1810, %v2122
      %v2143 = vmul.f32 %v1811, %v2122
      %v2144 = vmul.f32 %v1812, %v2122
      %v2145 = vmul.f32 %v1813, %v2122
      %v2146 = vmul.f32 %v1814, %v2122
      %v2147 = vmul.f32 %v1815, %v2122
      %v2148 = vmul.f32 %v1816, %v2122
      %v2149 = vmul.f32 %v1817, %v2122
      %v2150 = vmul.f32 %v1818, %v2122
      %v2151 = vmul.f32 %v1819, %v2122
      %v2152 = vmul.f32 %v1820, %v2122
      %v2153 = vmul.f32 %v1821, %v2122
      %v2154 = vmul.f32 %v1822, %v2122
      %v2155 = vmul.f32 %v1823, %v2122
      %v2156 = vmul.f32 %v1824, %v2122
      %v2157 = vmul.f32 %v1825, %v2122
      %v2158 = vmul.f32 %v1826, %v2122
      %v2159 = vmul.f32 %v1827, %v2122
      %v2160 = vmul.f32 %v1828, %v2122
      %v2161 = vmul.f32 %v1829, %v2122
      %v2162 = vmul.f32 %v1830, %v2122
      %v2163 = vmul.f32 %v1831, %v2122
      %v2164 = vmul.f32 %v1832, %v2122
      %v2165 = vmul.f32 %v1833, %v2122
      %v2166 = vmul.f32 %v1834, %v2122
      %v2167 = vmul.f32 %v1835, %v2122
      %v2168 = vmul.f32 %v1836, %v2122
      %v2169 = vmul.f32 %v1837, %v2122
      %v2170 = vmul.f32 %v1838, %v2122
      %v2171 = vmul.f32 %v1839, %v2122
      %v2172 = vmul.f32 %v1840, %v2122
      %v2173 = vmul.f32 %v1841, %v2122
      %v2174 = vmul.f32 %v1842, %v2122
      %v2175 = vmul.f32 %v1843, %v2122
      %v2176 = vmul.f32 %v1844, %v2122
      %v2177 = vmul.f32 %v1845, %v2122
      %v2178 = vmul.f32 %v1846, %v2122
      %v2179 = vmul.f32 %v1847, %v2122
      %v2180 = vmul.f32 %v1848, %v2122
      %v2181 = vmul.f32 %v1849, %v2122
      %v2182 = vmul.f32 %v1850, %v2122
      %v2183 = vmul.f32 %v1851, %v2122
      %v2184 = vmul.f32 %v1852, %v2122
      %v2185 = vmul.f32 %v1853, %v2122
      %v2186 = vmul.f32 %v1854, %v2122
      %v2187 = vadd.f32 %v1726, %v2123
      %v2188 = vadd.f32 %v1727, %v2124
      %v2189 = vadd.f32 %v1728, %v2125
      %v2190 = vadd.f32 %v1729, %v2126
      %v2191 = vadd.f32 %v1730, %v2127
      %v2192 = vadd.f32 %v1731, %v2128
      %v2193 = vadd.f32 %v1732, %v2129
      %v2194 = vadd.f32 %v1733, %v2130
      %v2195 = vadd.f32 %v1734, %v2131
      %v2196 = vadd.f32 %v1735, %v2132
      %v2197 = vadd.f32 %v1736, %v2133
      %v2198 = vadd.f32 %v1737, %v2134
      %v2199 = vadd.f32 %v1738, %v2135
      %v2200 = vadd.f32 %v1739, %v2136
      %v2201 = vadd.f32 %v1740, %v2137
      %v2202 = vadd.f32 %v1741, %v2138
      %v2203 = vadd.f32 %v1742, %v2139
      %v2204 = vadd.f32 %v1743, %v2140
      %v2205 = vadd.f32 %v1744, %v2141
      %v2206 = vadd.f32 %v1745, %v2142
      %v2207 = vadd.f32 %v1746, %v2143
      %v2208 = vadd.f32 %v1747, %v2144
      %v2209 = vadd.f32 %v1748, %v2145
      %v2210 = vadd.f32 %v1749, %v2146
      %v2211 = vadd.f32 %v1750, %v2147
      %v2212 = vadd.f32 %v1751, %v2148
      %v2213 = vadd.f32 %v1752, %v2149
      %v2214 = vadd.f32 %v1753, %v2150
      %v2215 = vadd.f32 %v1754, %v2151
      %v2216 = vadd.f32 %v1755, %v2152
      %v2217 = vadd.f32 %v1756, %v2153
      %v2218 = vadd.f32 %v1757, %v2154
      %v2219 = vadd.f32 %v1758, %v2155
      %v2220 = vadd.f32 %v1759, %v2156
      %v2221 = vadd.f32 %v1760, %v2157
      %v2222 = vadd.f32 %v1761, %v2158
      %v2223 = vadd.f32 %v1762, %v2159
      %v2224 = vadd.f32 %v1763, %v2160
      %v2225 = vadd.f32 %v1764, %v2161
      %v2226 = vadd.f32 %v1765, %v2162
      %v2227 = vadd.f32 %v1766, %v2163
      %v2228 = vadd.f32 %v1767, %v2164
      %v2229 = vadd.f32 %v1768, %v2165
      %v2230 = vadd.f32 %v1769, %v2166
      %v2231 = vadd.f32 %v1770, %v2167
      %v2232 = vadd.f32 %v1771, %v2168
      %v2233 = vadd.f32 %v1772, %v2169
      %v2234 = vadd.f32 %v1773, %v2170
      %v2235 = vadd.f32 %v1774, %v2171
      %v2236 = vadd.f32 %v1775, %v2172
      %v2237 = vadd.f32 %v1776, %v2173
      %v2238 = vadd.f32 %v1777, %v2174
      %v2239 = vadd.f32 %v1778, %v2175
      %v2240 = vadd.f32 %v1779, %v2176
      %v2241 = vadd.f32 %v1780, %v2177
      %v2242 = vadd.f32 %v1781, %v2178
      %v2243 = vadd.f32 %v1782, %v2179
      %v2244 = vadd.f32 %v1783, %v2180
      %v2245 = vadd.f32 %v1784, %v2181
      %v2246 = vadd.f32 %v1785, %v2182
      %v2247 = vadd.f32 %v1786, %v2183
      %v2248 = vadd.f32 %v1787, %v2184
      %v2249 = vadd.f32 %v1788, %v2185
      %v2250 = vadd.f32 %v1789, %v2186
      %v2251 = vld [vmem:[%s526] sm:$0xff]
      %v2252 = vld [vmem:[%s526 + $0x8] sm:$0xff]
      %v2253 = vld [vmem:[%s526 + $0x10] sm:$0xff]
      %v2254 = vld [vmem:[%s526 + $0x18] sm:$0xff]
      %v2255 = vld [vmem:[%s526 + $0x20] sm:$0xff]
      %v2256 = vld [vmem:[%s526 + $0x28] sm:$0xff]
      %v2257 = vld [vmem:[%s526 + $0x30] sm:$0xff]
      %v2258 = vld [vmem:[%s526 + $0x38] sm:$0xff]
      %v2259 = vld [vmem:[%s526 + $0x50] sm:$0xff]
      %v2260 = vld [vmem:[%s526 + $0x58] sm:$0xff]
      %v2261 = vld [vmem:[%s526 + $0x60] sm:$0xff]
      %v2262 = vld [vmem:[%s526 + $0x68] sm:$0xff]
      %v2263 = vld [vmem:[%s526 + $0x70] sm:$0xff]
      %v2264 = vld [vmem:[%s526 + $0x78] sm:$0xff]
      %v2265 = vld [vmem:[%s526 + $0x80] sm:$0xff]
      %v2266 = vld [vmem:[%s526 + $0x88] sm:$0xff]
      %v2267 = vld [vmem:[%s526 + $0xa0] sm:$0xff]
      %v2268 = vld [vmem:[%s526 + $0xa8] sm:$0xff]
      %v2269 = vld [vmem:[%s526 + $0xb0] sm:$0xff]
      %v2270 = vld [vmem:[%s526 + $0xb8] sm:$0xff]
      %v2271 = vld [vmem:[%s526 + $0xc0] sm:$0xff]
      %v2272 = vld [vmem:[%s526 + $0xc8] sm:$0xff]
      %v2273 = vld [vmem:[%s526 + $0xd0] sm:$0xff]
      %v2274 = vld [vmem:[%s526 + $0xd8] sm:$0xff]
      %v2275 = vld [vmem:[%s526 + $0xf0] sm:$0xff]
      %v2276 = vld [vmem:[%s526 + $0xf8] sm:$0xff]
      %v2277 = vld [vmem:[%s526 + $0x100] sm:$0xff]
      %v2278 = vld [vmem:[%s526 + $0x108] sm:$0xff]
      %v2279 = vld [vmem:[%s526 + $0x110] sm:$0xff]
      %v2280 = vld [vmem:[%s526 + $0x118] sm:$0xff]
      %v2281 = vld [vmem:[%s526 + $0x120] sm:$0xff]
      %v2282 = vld [vmem:[%s526 + $0x128] sm:$0xff]
      %v2283 = vld [vmem:[%s526 + $0x140] sm:$0xff]
      %v2284 = vld [vmem:[%s526 + $0x148] sm:$0xff]
      %v2285 = vld [vmem:[%s526 + $0x150] sm:$0xff]
      %v2286 = vld [vmem:[%s526 + $0x158] sm:$0xff]
      %v2287 = vld [vmem:[%s526 + $0x160] sm:$0xff]
      %v2288 = vld [vmem:[%s526 + $0x168] sm:$0xff]
      %v2289 = vld [vmem:[%s526 + $0x170] sm:$0xff]
      %v2290 = vld [vmem:[%s526 + $0x178] sm:$0xff]
      %v2291 = vld [vmem:[%s526 + $0x190] sm:$0xff]
      %v2292 = vld [vmem:[%s526 + $0x198] sm:$0xff]
      %v2293 = vld [vmem:[%s526 + $0x1a0] sm:$0xff]
      %v2294 = vld [vmem:[%s526 + $0x1a8] sm:$0xff]
      %v2295 = vld [vmem:[%s526 + $0x1b0] sm:$0xff]
      %v2296 = vld [vmem:[%s526 + $0x1b8] sm:$0xff]
      %v2297 = vld [vmem:[%s526 + $0x1c0] sm:$0xff]
      %v2298 = vld [vmem:[%s526 + $0x1c8] sm:$0xff]
      %v2299 = vld [vmem:[%s526 + $0x1e0] sm:$0xff]
      %v2300 = vld [vmem:[%s526 + $0x1e8] sm:$0xff]
      %v2301 = vld [vmem:[%s526 + $0x1f0] sm:$0xff]
      %v2302 = vld [vmem:[%s526 + $0x1f8] sm:$0xff]
      %v2303 = vld [vmem:[%s526 + $0x200] sm:$0xff]
      %v2304 = vld [vmem:[%s526 + $0x208] sm:$0xff]
      %v2305 = vld [vmem:[%s526 + $0x210] sm:$0xff]
      %v2306 = vld [vmem:[%s526 + $0x218] sm:$0xff]
      %v2307 = vld [vmem:[%s526 + $0x230] sm:$0xff]
      %v2308 = vld [vmem:[%s526 + $0x238] sm:$0xff]
      %v2309 = vld [vmem:[%s526 + $0x240] sm:$0xff]
      %v2310 = vld [vmem:[%s526 + $0x248] sm:$0xff]
      %v2311 = vld [vmem:[%s526 + $0x250] sm:$0xff]
      %v2312 = vld [vmem:[%s526 + $0x258] sm:$0xff]
      %v2313 = vld [vmem:[%s526 + $0x260] sm:$0xff]
      %v2314 = vld [vmem:[%s526 + $0x268] sm:$0xff]
      %v2315 = vlaneseq
      %v2316 = vshrl.u32 %v2315, 7
      %v2317 = vsub.s32 0, %v2316
      %v2318 = vrot.slane %v595, %v2317
      %v2319 = vmul.f32 %v2251, %v2318
      %v2320 = vmul.f32 %v2252, %v2318
      %v2321 = vmul.f32 %v2253, %v2318
      %v2322 = vmul.f32 %v2254, %v2318
      %v2323 = vmul.f32 %v2255, %v2318
      %v2324 = vmul.f32 %v2256, %v2318
      %v2325 = vmul.f32 %v2257, %v2318
      %v2326 = vmul.f32 %v2258, %v2318
      %v2327 = vmul.f32 %v2259, %v2318
      %v2328 = vmul.f32 %v2260, %v2318
      %v2329 = vmul.f32 %v2261, %v2318
      %v2330 = vmul.f32 %v2262, %v2318
      %v2331 = vmul.f32 %v2263, %v2318
      %v2332 = vmul.f32 %v2264, %v2318
      %v2333 = vmul.f32 %v2265, %v2318
      %v2334 = vmul.f32 %v2266, %v2318
      %v2335 = vmul.f32 %v2267, %v2318
      %v2336 = vmul.f32 %v2268, %v2318
      %v2337 = vmul.f32 %v2269, %v2318
      %v2338 = vmul.f32 %v2270, %v2318
      %v2339 = vmul.f32 %v2271, %v2318
      %v2340 = vmul.f32 %v2272, %v2318
      %v2341 = vmul.f32 %v2273, %v2318
      %v2342 = vmul.f32 %v2274, %v2318
      %v2343 = vmul.f32 %v2275, %v2318
      %v2344 = vmul.f32 %v2276, %v2318
      %v2345 = vmul.f32 %v2277, %v2318
      %v2346 = vmul.f32 %v2278, %v2318
      %v2347 = vmul.f32 %v2279, %v2318
      %v2348 = vmul.f32 %v2280, %v2318
      %v2349 = vmul.f32 %v2281, %v2318
      %v2350 = vmul.f32 %v2282, %v2318
      %v2351 = vmul.f32 %v2283, %v2318
      %v2352 = vmul.f32 %v2284, %v2318
      %v2353 = vmul.f32 %v2285, %v2318
      %v2354 = vmul.f32 %v2286, %v2318
      %v2355 = vmul.f32 %v2287, %v2318
      %v2356 = vmul.f32 %v2288, %v2318
      %v2357 = vmul.f32 %v2289, %v2318
      %v2358 = vmul.f32 %v2290, %v2318
      %v2359 = vmul.f32 %v2291, %v2318
      %v2360 = vmul.f32 %v2292, %v2318
      %v2361 = vmul.f32 %v2293, %v2318
      %v2362 = vmul.f32 %v2294, %v2318
      %v2363 = vmul.f32 %v2295, %v2318
      %v2364 = vmul.f32 %v2296, %v2318
      %v2365 = vmul.f32 %v2297, %v2318
      %v2366 = vmul.f32 %v2298, %v2318
      %v2367 = vmul.f32 %v2299, %v2318
      %v2368 = vmul.f32 %v2300, %v2318
      %v2369 = vmul.f32 %v2301, %v2318
      %v2370 = vmul.f32 %v2302, %v2318
      %v2371 = vmul.f32 %v2303, %v2318
      %v2372 = vmul.f32 %v2304, %v2318
      %v2373 = vmul.f32 %v2305, %v2318
      %v2374 = vmul.f32 %v2306, %v2318
      %v2375 = vmul.f32 %v2307, %v2318
      %v2376 = vmul.f32 %v2308, %v2318
      %v2377 = vmul.f32 %v2309, %v2318
      %v2378 = vmul.f32 %v2310, %v2318
      %v2379 = vmul.f32 %v2311, %v2318
      %v2380 = vmul.f32 %v2312, %v2318
      %v2381 = vmul.f32 %v2313, %v2318
      %v2382 = vmul.f32 %v2314, %v2318
      %v2383 = vadd.f32 %v1923, %v2319
      %v2384 = vadd.f32 %v1924, %v2320
      %v2385 = vadd.f32 %v1925, %v2321
      %v2386 = vadd.f32 %v1926, %v2322
      %v2387 = vadd.f32 %v1927, %v2323
      %v2388 = vadd.f32 %v1928, %v2324
      %v2389 = vadd.f32 %v1929, %v2325
      %v2390 = vadd.f32 %v1930, %v2326
      %v2391 = vadd.f32 %v1931, %v2327
      %v2392 = vadd.f32 %v1932, %v2328
      %v2393 = vadd.f32 %v1933, %v2329
      %v2394 = vadd.f32 %v1934, %v2330
      %v2395 = vadd.f32 %v1935, %v2331
      %v2396 = vadd.f32 %v1936, %v2332
      %v2397 = vadd.f32 %v1937, %v2333
      %v2398 = vadd.f32 %v1938, %v2334
      %v2399 = vadd.f32 %v1939, %v2335
      %v2400 = vadd.f32 %v1940, %v2336
      %v2401 = vadd.f32 %v1941, %v2337
      %v2402 = vadd.f32 %v1942, %v2338
      %v2403 = vadd.f32 %v1943, %v2339
      %v2404 = vadd.f32 %v1944, %v2340
      %v2405 = vadd.f32 %v1945, %v2341
      %v2406 = vadd.f32 %v1946, %v2342
      %v2407 = vadd.f32 %v1947, %v2343
      %v2408 = vadd.f32 %v1948, %v2344
      %v2409 = vadd.f32 %v1949, %v2345
      %v2410 = vadd.f32 %v1950, %v2346
      %v2411 = vadd.f32 %v1951, %v2347
      %v2412 = vadd.f32 %v1952, %v2348
      %v2413 = vadd.f32 %v1953, %v2349
      %v2414 = vadd.f32 %v1954, %v2350
      %v2415 = vadd.f32 %v1955, %v2351
      %v2416 = vadd.f32 %v1956, %v2352
      %v2417 = vadd.f32 %v1957, %v2353
      %v2418 = vadd.f32 %v1958, %v2354
      %v2419 = vadd.f32 %v1959, %v2355
      %v2420 = vadd.f32 %v1960, %v2356
      %v2421 = vadd.f32 %v1961, %v2357
      %v2422 = vadd.f32 %v1962, %v2358
      %v2423 = vadd.f32 %v1963, %v2359
      %v2424 = vadd.f32 %v1964, %v2360
      %v2425 = vadd.f32 %v1965, %v2361
      %v2426 = vadd.f32 %v1966, %v2362
      %v2427 = vadd.f32 %v1967, %v2363
      %v2428 = vadd.f32 %v1968, %v2364
      %v2429 = vadd.f32 %v1969, %v2365
      %v2430 = vadd.f32 %v1970, %v2366
      %v2431 = vadd.f32 %v1971, %v2367
      %v2432 = vadd.f32 %v1972, %v2368
      %v2433 = vadd.f32 %v1973, %v2369
      %v2434 = vadd.f32 %v1974, %v2370
      %v2435 = vadd.f32 %v1975, %v2371
      %v2436 = vadd.f32 %v1976, %v2372
      %v2437 = vadd.f32 %v1977, %v2373
      %v2438 = vadd.f32 %v1978, %v2374
      %v2439 = vadd.f32 %v1979, %v2375
      %v2440 = vadd.f32 %v1980, %v2376
      %v2441 = vadd.f32 %v1981, %v2377
      %v2442 = vadd.f32 %v1982, %v2378
      %v2443 = vadd.f32 %v1983, %v2379
      %v2444 = vadd.f32 %v1984, %v2380
      %v2445 = vadd.f32 %v1985, %v2381
      %v2446 = vadd.f32 %v1986, %v2382
      %v2447 = vlaneseq
      %v2448 = vshrl.u32 %v2447, 7
      %v2449 = vsub.s32 1, %v2448
      %v2450 = vrot.slane %v595, %v2449
      %v2451 = vmul.f32 %v2251, %v2450
      %v2452 = vmul.f32 %v2252, %v2450
      %v2453 = vmul.f32 %v2253, %v2450
      %v2454 = vmul.f32 %v2254, %v2450
      %v2455 = vmul.f32 %v2255, %v2450
      %v2456 = vmul.f32 %v2256, %v2450
      %v2457 = vmul.f32 %v2257, %v2450
      %v2458 = vmul.f32 %v2258, %v2450
      %v2459 = vmul.f32 %v2259, %v2450
      %v2460 = vmul.f32 %v2260, %v2450
      %v2461 = vmul.f32 %v2261, %v2450
      %v2462 = vmul.f32 %v2262, %v2450
      %v2463 = vmul.f32 %v2263, %v2450
      %v2464 = vmul.f32 %v2264, %v2450
      %v2465 = vmul.f32 %v2265, %v2450
      %v2466 = vmul.f32 %v2266, %v2450
      %v2467 = vmul.f32 %v2267, %v2450
      %v2468 = vmul.f32 %v2268, %v2450
      %v2469 = vmul.f32 %v2269, %v2450
      %v2470 = vmul.f32 %v2270, %v2450
      %v2471 = vmul.f32 %v2271, %v2450
      %v2472 = vmul.f32 %v2272, %v2450
      %v2473 = vmul.f32 %v2273, %v2450
      %v2474 = vmul.f32 %v2274, %v2450
      %v2475 = vmul.f32 %v2275, %v2450
      %v2476 = vmul.f32 %v2276, %v2450
      %v2477 = vmul.f32 %v2277, %v2450
      %v2478 = vmul.f32 %v2278, %v2450
      %v2479 = vmul.f32 %v2279, %v2450
      %v2480 = vmul.f32 %v2280, %v2450
      %v2481 = vmul.f32 %v2281, %v2450
      %v2482 = vmul.f32 %v2282, %v2450
      %v2483 = vmul.f32 %v2283, %v2450
      %v2484 = vmul.f32 %v2284, %v2450
      %v2485 = vmul.f32 %v2285, %v2450
      %v2486 = vmul.f32 %v2286, %v2450
      %v2487 = vmul.f32 %v2287, %v2450
      %v2488 = vmul.f32 %v2288, %v2450
      %v2489 = vmul.f32 %v2289, %v2450
      %v2490 = vmul.f32 %v2290, %v2450
      %v2491 = vmul.f32 %v2291, %v2450
      %v2492 = vmul.f32 %v2292, %v2450
      %v2493 = vmul.f32 %v2293, %v2450
      %v2494 = vmul.f32 %v2294, %v2450
      %v2495 = vmul.f32 %v2295, %v2450
      %v2496 = vmul.f32 %v2296, %v2450
      %v2497 = vmul.f32 %v2297, %v2450
      %v2498 = vmul.f32 %v2298, %v2450
      %v2499 = vmul.f32 %v2299, %v2450
      %v2500 = vmul.f32 %v2300, %v2450
      %v2501 = vmul.f32 %v2301, %v2450
      %v2502 = vmul.f32 %v2302, %v2450
      %v2503 = vmul.f32 %v2303, %v2450
      %v2504 = vmul.f32 %v2304, %v2450
      %v2505 = vmul.f32 %v2305, %v2450
      %v2506 = vmul.f32 %v2306, %v2450
      %v2507 = vmul.f32 %v2307, %v2450
      %v2508 = vmul.f32 %v2308, %v2450
      %v2509 = vmul.f32 %v2309, %v2450
      %v2510 = vmul.f32 %v2310, %v2450
      %v2511 = vmul.f32 %v2311, %v2450
      %v2512 = vmul.f32 %v2312, %v2450
      %v2513 = vmul.f32 %v2313, %v2450
      %v2514 = vmul.f32 %v2314, %v2450
      %v2515 = vadd.f32 %v2055, %v2451
      %v2516 = vadd.f32 %v2056, %v2452
      %v2517 = vadd.f32 %v2057, %v2453
      %v2518 = vadd.f32 %v2058, %v2454
      %v2519 = vadd.f32 %v2059, %v2455
      %v2520 = vadd.f32 %v2060, %v2456
      %v2521 = vadd.f32 %v2061, %v2457
      %v2522 = vadd.f32 %v2062, %v2458
      %v2523 = vadd.f32 %v2063, %v2459
      %v2524 = vadd.f32 %v2064, %v2460
      %v2525 = vadd.f32 %v2065, %v2461
      %v2526 = vadd.f32 %v2066, %v2462
      %v2527 = vadd.f32 %v2067, %v2463
      %v2528 = vadd.f32 %v2068, %v2464
      %v2529 = vadd.f32 %v2069, %v2465
      %v2530 = vadd.f32 %v2070, %v2466
      %v2531 = vadd.f32 %v2071, %v2467
      %v2532 = vadd.f32 %v2072, %v2468
      %v2533 = vadd.f32 %v2073, %v2469
      %v2534 = vadd.f32 %v2074, %v2470
      %v2535 = vadd.f32 %v2075, %v2471
      %v2536 = vadd.f32 %v2076, %v2472
      %v2537 = vadd.f32 %v2077, %v2473
      %v2538 = vadd.f32 %v2078, %v2474
      %v2539 = vadd.f32 %v2079, %v2475
      %v2540 = vadd.f32 %v2080, %v2476
      %v2541 = vadd.f32 %v2081, %v2477
      %v2542 = vadd.f32 %v2082, %v2478
      %v2543 = vadd.f32 %v2083, %v2479
      %v2544 = vadd.f32 %v2084, %v2480
      %v2545 = vadd.f32 %v2085, %v2481
      %v2546 = vadd.f32 %v2086, %v2482
      %v2547 = vadd.f32 %v2087, %v2483
      %v2548 = vadd.f32 %v2088, %v2484
      %v2549 = vadd.f32 %v2089, %v2485
      %v2550 = vadd.f32 %v2090, %v2486
      %v2551 = vadd.f32 %v2091, %v2487
      %v2552 = vadd.f32 %v2092, %v2488
      %v2553 = vadd.f32 %v2093, %v2489
      %v2554 = vadd.f32 %v2094, %v2490
      %v2555 = vadd.f32 %v2095, %v2491
      %v2556 = vadd.f32 %v2096, %v2492
      %v2557 = vadd.f32 %v2097, %v2493
      %v2558 = vadd.f32 %v2098, %v2494
      %v2559 = vadd.f32 %v2099, %v2495
      %v2560 = vadd.f32 %v2100, %v2496
      %v2561 = vadd.f32 %v2101, %v2497
      %v2562 = vadd.f32 %v2102, %v2498
      %v2563 = vadd.f32 %v2103, %v2499
      %v2564 = vadd.f32 %v2104, %v2500
      %v2565 = vadd.f32 %v2105, %v2501
      %v2566 = vadd.f32 %v2106, %v2502
      %v2567 = vadd.f32 %v2107, %v2503
      %v2568 = vadd.f32 %v2108, %v2504
      %v2569 = vadd.f32 %v2109, %v2505
      %v2570 = vadd.f32 %v2110, %v2506
      %v2571 = vadd.f32 %v2111, %v2507
      %v2572 = vadd.f32 %v2112, %v2508
      %v2573 = vadd.f32 %v2113, %v2509
      %v2574 = vadd.f32 %v2114, %v2510
      %v2575 = vadd.f32 %v2115, %v2511
      %v2576 = vadd.f32 %v2116, %v2512
      %v2577 = vadd.f32 %v2117, %v2513
      %v2578 = vadd.f32 %v2118, %v2514
      %v2579 = vlaneseq
      %v2580 = vshrl.u32 %v2579, 7
      %v2581 = vsub.s32 2, %v2580
      %v2582 = vrot.slane %v595, %v2581
      %v2583 = vmul.f32 %v2251, %v2582
      %v2584 = vmul.f32 %v2252, %v2582
      %v2585 = vmul.f32 %v2253, %v2582
      %v2586 = vmul.f32 %v2254, %v2582
      %v2587 = vmul.f32 %v2255, %v2582
      %v2588 = vmul.f32 %v2256, %v2582
      %v2589 = vmul.f32 %v2257, %v2582
      %v2590 = vmul.f32 %v2258, %v2582
      %v2591 = vmul.f32 %v2259, %v2582
      %v2592 = vmul.f32 %v2260, %v2582
      %v2593 = vmul.f32 %v2261, %v2582
      %v2594 = vmul.f32 %v2262, %v2582
      %v2595 = vmul.f32 %v2263, %v2582
      %v2596 = vmul.f32 %v2264, %v2582
      %v2597 = vmul.f32 %v2265, %v2582
      %v2598 = vmul.f32 %v2266, %v2582
      %v2599 = vmul.f32 %v2267, %v2582
      %v2600 = vmul.f32 %v2268, %v2582
      %v2601 = vmul.f32 %v2269, %v2582
      %v2602 = vmul.f32 %v2270, %v2582
      %v2603 = vmul.f32 %v2271, %v2582
      %v2604 = vmul.f32 %v2272, %v2582
      %v2605 = vmul.f32 %v2273, %v2582
      %v2606 = vmul.f32 %v2274, %v2582
      %v2607 = vmul.f32 %v2275, %v2582
      %v2608 = vmul.f32 %v2276, %v2582
      %v2609 = vmul.f32 %v2277, %v2582
      %v2610 = vmul.f32 %v2278, %v2582
      %v2611 = vmul.f32 %v2279, %v2582
      %v2612 = vmul.f32 %v2280, %v2582
      %v2613 = vmul.f32 %v2281, %v2582
      %v2614 = vmul.f32 %v2282, %v2582
      %v2615 = vmul.f32 %v2283, %v2582
      %v2616 = vmul.f32 %v2284, %v2582
      %v2617 = vmul.f32 %v2285, %v2582
      %v2618 = vmul.f32 %v2286, %v2582
      %v2619 = vmul.f32 %v2287, %v2582
      %v2620 = vmul.f32 %v2288, %v2582
      %v2621 = vmul.f32 %v2289, %v2582
      %v2622 = vmul.f32 %v2290, %v2582
      %v2623 = vmul.f32 %v2291, %v2582
      %v2624 = vmul.f32 %v2292, %v2582
      %v2625 = vmul.f32 %v2293, %v2582
      %v2626 = vmul.f32 %v2294, %v2582
      %v2627 = vmul.f32 %v2295, %v2582
      %v2628 = vmul.f32 %v2296, %v2582
      %v2629 = vmul.f32 %v2297, %v2582
      %v2630 = vmul.f32 %v2298, %v2582
      %v2631 = vmul.f32 %v2299, %v2582
      %v2632 = vmul.f32 %v2300, %v2582
      %v2633 = vmul.f32 %v2301, %v2582
      %v2634 = vmul.f32 %v2302, %v2582
      %v2635 = vmul.f32 %v2303, %v2582
      %v2636 = vmul.f32 %v2304, %v2582
      %v2637 = vmul.f32 %v2305, %v2582
      %v2638 = vmul.f32 %v2306, %v2582
      %v2639 = vmul.f32 %v2307, %v2582
      %v2640 = vmul.f32 %v2308, %v2582
      %v2641 = vmul.f32 %v2309, %v2582
      %v2642 = vmul.f32 %v2310, %v2582
      %v2643 = vmul.f32 %v2311, %v2582
      %v2644 = vmul.f32 %v2312, %v2582
      %v2645 = vmul.f32 %v2313, %v2582
      %v2646 = vmul.f32 %v2314, %v2582
      %v2647 = vadd.f32 %v2187, %v2583
      %v2648 = vadd.f32 %v2188, %v2584
      %v2649 = vadd.f32 %v2189, %v2585
      %v2650 = vadd.f32 %v2190, %v2586
      %v2651 = vadd.f32 %v2191, %v2587
      %v2652 = vadd.f32 %v2192, %v2588
      %v2653 = vadd.f32 %v2193, %v2589
      %v2654 = vadd.f32 %v2194, %v2590
      %v2655 = vadd.f32 %v2195, %v2591
      %v2656 = vadd.f32 %v2196, %v2592
      %v2657 = vadd.f32 %v2197, %v2593
      %v2658 = vadd.f32 %v2198, %v2594
      %v2659 = vadd.f32 %v2199, %v2595
      %v2660 = vadd.f32 %v2200, %v2596
      %v2661 = vadd.f32 %v2201, %v2597
      %v2662 = vadd.f32 %v2202, %v2598
      %v2663 = vadd.f32 %v2203, %v2599
      %v2664 = vadd.f32 %v2204, %v2600
      %v2665 = vadd.f32 %v2205, %v2601
      %v2666 = vadd.f32 %v2206, %v2602
      %v2667 = vadd.f32 %v2207, %v2603
      %v2668 = vadd.f32 %v2208, %v2604
      %v2669 = vadd.f32 %v2209, %v2605
      %v2670 = vadd.f32 %v2210, %v2606
      %v2671 = vadd.f32 %v2211, %v2607
      %v2672 = vadd.f32 %v2212, %v2608
      %v2673 = vadd.f32 %v2213, %v2609
      %v2674 = vadd.f32 %v2214, %v2610
      %v2675 = vadd.f32 %v2215, %v2611
      %v2676 = vadd.f32 %v2216, %v2612
      %v2677 = vadd.f32 %v2217, %v2613
      %v2678 = vadd.f32 %v2218, %v2614
      %v2679 = vadd.f32 %v2219, %v2615
      %v2680 = vadd.f32 %v2220, %v2616
      %v2681 = vadd.f32 %v2221, %v2617
      %v2682 = vadd.f32 %v2222, %v2618
      %v2683 = vadd.f32 %v2223, %v2619
      %v2684 = vadd.f32 %v2224, %v2620
      %v2685 = vadd.f32 %v2225, %v2621
      %v2686 = vadd.f32 %v2226, %v2622
      %v2687 = vadd.f32 %v2227, %v2623
      %v2688 = vadd.f32 %v2228, %v2624
      %v2689 = vadd.f32 %v2229, %v2625
      %v2690 = vadd.f32 %v2230, %v2626
      %v2691 = vadd.f32 %v2231, %v2627
      %v2692 = vadd.f32 %v2232, %v2628
      %v2693 = vadd.f32 %v2233, %v2629
      %v2694 = vadd.f32 %v2234, %v2630
      %v2695 = vadd.f32 %v2235, %v2631
      %v2696 = vadd.f32 %v2236, %v2632
      %v2697 = vadd.f32 %v2237, %v2633
      %v2698 = vadd.f32 %v2238, %v2634
      %v2699 = vadd.f32 %v2239, %v2635
      %v2700 = vadd.f32 %v2240, %v2636
      %v2701 = vadd.f32 %v2241, %v2637
      %v2702 = vadd.f32 %v2242, %v2638
      %v2703 = vadd.f32 %v2243, %v2639
      %v2704 = vadd.f32 %v2244, %v2640
      %v2705 = vadd.f32 %v2245, %v2641
      %v2706 = vadd.f32 %v2246, %v2642
      %v2707 = vadd.f32 %v2247, %v2643
      %v2708 = vadd.f32 %v2248, %v2644
      %v2709 = vadd.f32 %v2249, %v2645
      %v2710 = vadd.f32 %v2250, %v2646
      %s2711 = scalar_lea.vmem [#allocation2], 96
      %v2712 = vld [vmem:[%s2711] sm:$0xff]
      %v2713 = vld [vmem:[%s2711 + $0x8] sm:$0xff]
      %v2714 = vld [vmem:[%s2711 + $0x10] sm:$0xff]
      %v2715 = vld [vmem:[%s2711 + $0x18] sm:$0xff]
      %v2716 = vld [vmem:[%s2711 + $0x20] sm:$0xff]
      %v2717 = vld [vmem:[%s2711 + $0x28] sm:$0xff]
      %v2718 = vld [vmem:[%s2711 + $0x30] sm:$0xff]
      %v2719 = vld [vmem:[%s2711 + $0x38] sm:$0xff]
      %v2720 = vld [vmem:[%s2711 + $0x50] sm:$0xff]
      %v2721 = vld [vmem:[%s2711 + $0x58] sm:$0xff]
      %v2722 = vld [vmem:[%s2711 + $0x60] sm:$0xff]
      %v2723 = vld [vmem:[%s2711 + $0x68] sm:$0xff]
      %v2724 = vld [vmem:[%s2711 + $0x70] sm:$0xff]
      %v2725 = vld [vmem:[%s2711 + $0x78] sm:$0xff]
      %v2726 = vld [vmem:[%s2711 + $0x80] sm:$0xff]
      %v2727 = vld [vmem:[%s2711 + $0x88] sm:$0xff]
      %v2728 = vld [vmem:[%s2711 + $0xa0] sm:$0xff]
      %v2729 = vld [vmem:[%s2711 + $0xa8] sm:$0xff]
      %v2730 = vld [vmem:[%s2711 + $0xb0] sm:$0xff]
      %v2731 = vld [vmem:[%s2711 + $0xb8] sm:$0xff]
      %v2732 = vld [vmem:[%s2711 + $0xc0] sm:$0xff]
      %v2733 = vld [vmem:[%s2711 + $0xc8] sm:$0xff]
      %v2734 = vld [vmem:[%s2711 + $0xd0] sm:$0xff]
      %v2735 = vld [vmem:[%s2711 + $0xd8] sm:$0xff]
      %v2736 = vld [vmem:[%s2711 + $0xf0] sm:$0xff]
      %v2737 = vld [vmem:[%s2711 + $0xf8] sm:$0xff]
      %v2738 = vld [vmem:[%s2711 + $0x100] sm:$0xff]
      %v2739 = vld [vmem:[%s2711 + $0x108] sm:$0xff]
      %v2740 = vld [vmem:[%s2711 + $0x110] sm:$0xff]
      %v2741 = vld [vmem:[%s2711 + $0x118] sm:$0xff]
      %v2742 = vld [vmem:[%s2711 + $0x120] sm:$0xff]
      %v2743 = vld [vmem:[%s2711 + $0x128] sm:$0xff]
      %v2744 = vld [vmem:[%s2711 + $0x140] sm:$0xff]
      %v2745 = vld [vmem:[%s2711 + $0x148] sm:$0xff]
      %v2746 = vld [vmem:[%s2711 + $0x150] sm:$0xff]
      %v2747 = vld [vmem:[%s2711 + $0x158] sm:$0xff]
      %v2748 = vld [vmem:[%s2711 + $0x160] sm:$0xff]
      %v2749 = vld [vmem:[%s2711 + $0x168] sm:$0xff]
      %v2750 = vld [vmem:[%s2711 + $0x170] sm:$0xff]
      %v2751 = vld [vmem:[%s2711 + $0x178] sm:$0xff]
      %v2752 = vld [vmem:[%s2711 + $0x190] sm:$0xff]
      %v2753 = vld [vmem:[%s2711 + $0x198] sm:$0xff]
      %v2754 = vld [vmem:[%s2711 + $0x1a0] sm:$0xff]
      %v2755 = vld [vmem:[%s2711 + $0x1a8] sm:$0xff]
      %v2756 = vld [vmem:[%s2711 + $0x1b0] sm:$0xff]
      %v2757 = vld [vmem:[%s2711 + $0x1b8] sm:$0xff]
      %v2758 = vld [vmem:[%s2711 + $0x1c0] sm:$0xff]
      %v2759 = vld [vmem:[%s2711 + $0x1c8] sm:$0xff]
      %v2760 = vld [vmem:[%s2711 + $0x1e0] sm:$0xff]
      %v2761 = vld [vmem:[%s2711 + $0x1e8] sm:$0xff]
      %v2762 = vld [vmem:[%s2711 + $0x1f0] sm:$0xff]
      %v2763 = vld [vmem:[%s2711 + $0x1f8] sm:$0xff]
      %v2764 = vld [vmem:[%s2711 + $0x200] sm:$0xff]
      %v2765 = vld [vmem:[%s2711 + $0x208] sm:$0xff]
      %v2766 = vld [vmem:[%s2711 + $0x210] sm:$0xff]
      %v2767 = vld [vmem:[%s2711 + $0x218] sm:$0xff]
      %v2768 = vld [vmem:[%s2711 + $0x230] sm:$0xff]
      %v2769 = vld [vmem:[%s2711 + $0x238] sm:$0xff]
      %v2770 = vld [vmem:[%s2711 + $0x240] sm:$0xff]
      %v2771 = vld [vmem:[%s2711 + $0x248] sm:$0xff]
      %v2772 = vld [vmem:[%s2711 + $0x250] sm:$0xff]
      %v2773 = vld [vmem:[%s2711 + $0x258] sm:$0xff]
      %v2774 = vld [vmem:[%s2711 + $0x260] sm:$0xff]
      %v2775 = vld [vmem:[%s2711 + $0x268] sm:$0xff]
      %v2776 = vlaneseq
      %v2777 = vshrl.u32 %v2776, 7
      %v2778 = vsub.s32 0, %v2777
      %v2779 = vrot.slane %v596, %v2778
      %v2780 = vmul.f32 %v2712, %v2779
      %v2781 = vmul.f32 %v2713, %v2779
      %v2782 = vmul.f32 %v2714, %v2779
      %v2783 = vmul.f32 %v2715, %v2779
      %v2784 = vmul.f32 %v2716, %v2779
      %v2785 = vmul.f32 %v2717, %v2779
      %v2786 = vmul.f32 %v2718, %v2779
      %v2787 = vmul.f32 %v2719, %v2779
      %v2788 = vmul.f32 %v2720, %v2779
      %v2789 = vmul.f32 %v2721, %v2779
      %v2790 = vmul.f32 %v2722, %v2779
      %v2791 = vmul.f32 %v2723, %v2779
      %v2792 = vmul.f32 %v2724, %v2779
      %v2793 = vmul.f32 %v2725, %v2779
      %v2794 = vmul.f32 %v2726, %v2779
      %v2795 = vmul.f32 %v2727, %v2779
      %v2796 = vmul.f32 %v2728, %v2779
      %v2797 = vmul.f32 %v2729, %v2779
      %v2798 = vmul.f32 %v2730, %v2779
      %v2799 = vmul.f32 %v2731, %v2779
      %v2800 = vmul.f32 %v2732, %v2779
      %v2801 = vmul.f32 %v2733, %v2779
      %v2802 = vmul.f32 %v2734, %v2779
      %v2803 = vmul.f32 %v2735, %v2779
      %v2804 = vmul.f32 %v2736, %v2779
      %v2805 = vmul.f32 %v2737, %v2779
      %v2806 = vmul.f32 %v2738, %v2779
      %v2807 = vmul.f32 %v2739, %v2779
      %v2808 = vmul.f32 %v2740, %v2779
      %v2809 = vmul.f32 %v2741, %v2779
      %v2810 = vmul.f32 %v2742, %v2779
      %v2811 = vmul.f32 %v2743, %v2779
      %v2812 = vmul.f32 %v2744, %v2779
      %v2813 = vmul.f32 %v2745, %v2779
      %v2814 = vmul.f32 %v2746, %v2779
      %v2815 = vmul.f32 %v2747, %v2779
      %v2816 = vmul.f32 %v2748, %v2779
      %v2817 = vmul.f32 %v2749, %v2779
      %v2818 = vmul.f32 %v2750, %v2779
      %v2819 = vmul.f32 %v2751, %v2779
      %v2820 = vmul.f32 %v2752, %v2779
      %v2821 = vmul.f32 %v2753, %v2779
      %v2822 = vmul.f32 %v2754, %v2779
      %v2823 = vmul.f32 %v2755, %v2779
      %v2824 = vmul.f32 %v2756, %v2779
      %v2825 = vmul.f32 %v2757, %v2779
      %v2826 = vmul.f32 %v2758, %v2779
      %v2827 = vmul.f32 %v2759, %v2779
      %v2828 = vmul.f32 %v2760, %v2779
      %v2829 = vmul.f32 %v2761, %v2779
      %v2830 = vmul.f32 %v2762, %v2779
      %v2831 = vmul.f32 %v2763, %v2779
      %v2832 = vmul.f32 %v2764, %v2779
      %v2833 = vmul.f32 %v2765, %v2779
      %v2834 = vmul.f32 %v2766, %v2779
      %v2835 = vmul.f32 %v2767, %v2779
      %v2836 = vmul.f32 %v2768, %v2779
      %v2837 = vmul.f32 %v2769, %v2779
      %v2838 = vmul.f32 %v2770, %v2779
      %v2839 = vmul.f32 %v2771, %v2779
      %v2840 = vmul.f32 %v2772, %v2779
      %v2841 = vmul.f32 %v2773, %v2779
      %v2842 = vmul.f32 %v2774, %v2779
      %v2843 = vmul.f32 %v2775, %v2779
      %v2844 = vadd.f32 %v2383, %v2780
      %v2845 = vadd.f32 %v2384, %v2781
      %v2846 = vadd.f32 %v2385, %v2782
      %v2847 = vadd.f32 %v2386, %v2783
      %v2848 = vadd.f32 %v2387, %v2784
      %v2849 = vadd.f32 %v2388, %v2785
      %v2850 = vadd.f32 %v2389, %v2786
      %v2851 = vadd.f32 %v2390, %v2787
      %v2852 = vadd.f32 %v2391, %v2788
      %v2853 = vadd.f32 %v2392, %v2789
      %v2854 = vadd.f32 %v2393, %v2790
      %v2855 = vadd.f32 %v2394, %v2791
      %v2856 = vadd.f32 %v2395, %v2792
      %v2857 = vadd.f32 %v2396, %v2793
      %v2858 = vadd.f32 %v2397, %v2794
      %v2859 = vadd.f32 %v2398, %v2795
      %v2860 = vadd.f32 %v2399, %v2796
      %v2861 = vadd.f32 %v2400, %v2797
      %v2862 = vadd.f32 %v2401, %v2798
      %v2863 = vadd.f32 %v2402, %v2799
      %v2864 = vadd.f32 %v2403, %v2800
      %v2865 = vadd.f32 %v2404, %v2801
      %v2866 = vadd.f32 %v2405, %v2802
      %v2867 = vadd.f32 %v2406, %v2803
      %v2868 = vadd.f32 %v2407, %v2804
      %v2869 = vadd.f32 %v2408, %v2805
      %v2870 = vadd.f32 %v2409, %v2806
      %v2871 = vadd.f32 %v2410, %v2807
      %v2872 = vadd.f32 %v2411, %v2808
      %v2873 = vadd.f32 %v2412, %v2809
      %v2874 = vadd.f32 %v2413, %v2810
      %v2875 = vadd.f32 %v2414, %v2811
      %v2876 = vadd.f32 %v2415, %v2812
      %v2877 = vadd.f32 %v2416, %v2813
      %v2878 = vadd.f32 %v2417, %v2814
      %v2879 = vadd.f32 %v2418, %v2815
      %v2880 = vadd.f32 %v2419, %v2816
      %v2881 = vadd.f32 %v2420, %v2817
      %v2882 = vadd.f32 %v2421, %v2818
      %v2883 = vadd.f32 %v2422, %v2819
      %v2884 = vadd.f32 %v2423, %v2820
      %v2885 = vadd.f32 %v2424, %v2821
      %v2886 = vadd.f32 %v2425, %v2822
      %v2887 = vadd.f32 %v2426, %v2823
      %v2888 = vadd.f32 %v2427, %v2824
      %v2889 = vadd.f32 %v2428, %v2825
      %v2890 = vadd.f32 %v2429, %v2826
      %v2891 = vadd.f32 %v2430, %v2827
      %v2892 = vadd.f32 %v2431, %v2828
      %v2893 = vadd.f32 %v2432, %v2829
      %v2894 = vadd.f32 %v2433, %v2830
      %v2895 = vadd.f32 %v2434, %v2831
      %v2896 = vadd.f32 %v2435, %v2832
      %v2897 = vadd.f32 %v2436, %v2833
      %v2898 = vadd.f32 %v2437, %v2834
      %v2899 = vadd.f32 %v2438, %v2835
      %v2900 = vadd.f32 %v2439, %v2836
      %v2901 = vadd.f32 %v2440, %v2837
      %v2902 = vadd.f32 %v2441, %v2838
      %v2903 = vadd.f32 %v2442, %v2839
      %v2904 = vadd.f32 %v2443, %v2840
      %v2905 = vadd.f32 %v2444, %v2841
      %v2906 = vadd.f32 %v2445, %v2842
      %v2907 = vadd.f32 %v2446, %v2843
      %v2908 = vlaneseq
      %v2909 = vshrl.u32 %v2908, 7
      %v2910 = vsub.s32 1, %v2909
      %v2911 = vrot.slane %v596, %v2910
      %v2912 = vmul.f32 %v2712, %v2911
      %v2913 = vmul.f32 %v2713, %v2911
      %v2914 = vmul.f32 %v2714, %v2911
      %v2915 = vmul.f32 %v2715, %v2911
      %v2916 = vmul.f32 %v2716, %v2911
      %v2917 = vmul.f32 %v2717, %v2911
      %v2918 = vmul.f32 %v2718, %v2911
      %v2919 = vmul.f32 %v2719, %v2911
      %v2920 = vmul.f32 %v2720, %v2911
      %v2921 = vmul.f32 %v2721, %v2911
      %v2922 = vmul.f32 %v2722, %v2911
      %v2923 = vmul.f32 %v2723, %v2911
      %v2924 = vmul.f32 %v2724, %v2911
      %v2925 = vmul.f32 %v2725, %v2911
      %v2926 = vmul.f32 %v2726, %v2911
      %v2927 = vmul.f32 %v2727, %v2911
      %v2928 = vmul.f32 %v2728, %v2911
      %v2929 = vmul.f32 %v2729, %v2911
      %v2930 = vmul.f32 %v2730, %v2911
      %v2931 = vmul.f32 %v2731, %v2911
      %v2932 = vmul.f32 %v2732, %v2911
      %v2933 = vmul.f32 %v2733, %v2911
      %v2934 = vmul.f32 %v2734, %v2911
      %v2935 = vmul.f32 %v2735, %v2911
      %v2936 = vmul.f32 %v2736, %v2911
      %v2937 = vmul.f32 %v2737, %v2911
      %v2938 = vmul.f32 %v2738, %v2911
      %v2939 = vmul.f32 %v2739, %v2911
      %v2940 = vmul.f32 %v2740, %v2911
      %v2941 = vmul.f32 %v2741, %v2911
      %v2942 = vmul.f32 %v2742, %v2911
      %v2943 = vmul.f32 %v2743, %v2911
      %v2944 = vmul.f32 %v2744, %v2911
      %v2945 = vmul.f32 %v2745, %v2911
      %v2946 = vmul.f32 %v2746, %v2911
      %v2947 = vmul.f32 %v2747, %v2911
      %v2948 = vmul.f32 %v2748, %v2911
      %v2949 = vmul.f32 %v2749, %v2911
      %v2950 = vmul.f32 %v2750, %v2911
      %v2951 = vmul.f32 %v2751, %v2911
      %v2952 = vmul.f32 %v2752, %v2911
      %v2953 = vmul.f32 %v2753, %v2911
      %v2954 = vmul.f32 %v2754, %v2911
      %v2955 = vmul.f32 %v2755, %v2911
      %v2956 = vmul.f32 %v2756, %v2911
      %v2957 = vmul.f32 %v2757, %v2911
      %v2958 = vmul.f32 %v2758, %v2911
      %v2959 = vmul.f32 %v2759, %v2911
      %v2960 = vmul.f32 %v2760, %v2911
      %v2961 = vmul.f32 %v2761, %v2911
      %v2962 = vmul.f32 %v2762, %v2911
      %v2963 = vmul.f32 %v2763, %v2911
      %v2964 = vmul.f32 %v2764, %v2911
      %v2965 = vmul.f32 %v2765, %v2911
      %v2966 = vmul.f32 %v2766, %v2911
      %v2967 = vmul.f32 %v2767, %v2911
      %v2968 = vmul.f32 %v2768, %v2911
      %v2969 = vmul.f32 %v2769, %v2911
      %v2970 = vmul.f32 %v2770, %v2911
      %v2971 = vmul.f32 %v2771, %v2911
      %v2972 = vmul.f32 %v2772, %v2911
      %v2973 = vmul.f32 %v2773, %v2911
      %v2974 = vmul.f32 %v2774, %v2911
      %v2975 = vmul.f32 %v2775, %v2911
      %v2976 = vadd.f32 %v2515, %v2912
      %v2977 = vadd.f32 %v2516, %v2913
      %v2978 = vadd.f32 %v2517, %v2914
      %v2979 = vadd.f32 %v2518, %v2915
      %v2980 = vadd.f32 %v2519, %v2916
      %v2981 = vadd.f32 %v2520, %v2917
      %v2982 = vadd.f32 %v2521, %v2918
      %v2983 = vadd.f32 %v2522, %v2919
      %v2984 = vadd.f32 %v2523, %v2920
      %v2985 = vadd.f32 %v2524, %v2921
      %v2986 = vadd.f32 %v2525, %v2922
      %v2987 = vadd.f32 %v2526, %v2923
      %v2988 = vadd.f32 %v2527, %v2924
      %v2989 = vadd.f32 %v2528, %v2925
      %v2990 = vadd.f32 %v2529, %v2926
      %v2991 = vadd.f32 %v2530, %v2927
      %v2992 = vadd.f32 %v2531, %v2928
      %v2993 = vadd.f32 %v2532, %v2929
      %v2994 = vadd.f32 %v2533, %v2930
      %v2995 = vadd.f32 %v2534, %v2931
      %v2996 = vadd.f32 %v2535, %v2932
      %v2997 = vadd.f32 %v2536, %v2933
      %v2998 = vadd.f32 %v2537, %v2934
      %v2999 = vadd.f32 %v2538, %v2935
      %v3000 = vadd.f32 %v2539, %v2936
      %v3001 = vadd.f32 %v2540, %v2937
      %v3002 = vadd.f32 %v2541, %v2938
      %v3003 = vadd.f32 %v2542, %v2939
      %v3004 = vadd.f32 %v2543, %v2940
      %v3005 = vadd.f32 %v2544, %v2941
      %v3006 = vadd.f32 %v2545, %v2942
      %v3007 = vadd.f32 %v2546, %v2943
      %v3008 = vadd.f32 %v2547, %v2944
      %v3009 = vadd.f32 %v2548, %v2945
      %v3010 = vadd.f32 %v2549, %v2946
      %v3011 = vadd.f32 %v2550, %v2947
      %v3012 = vadd.f32 %v2551, %v2948
      %v3013 = vadd.f32 %v2552, %v2949
      %v3014 = vadd.f32 %v2553, %v2950
      %v3015 = vadd.f32 %v2554, %v2951
      %v3016 = vadd.f32 %v2555, %v2952
      %v3017 = vadd.f32 %v2556, %v2953
      %v3018 = vadd.f32 %v2557, %v2954
      %v3019 = vadd.f32 %v2558, %v2955
      %v3020 = vadd.f32 %v2559, %v2956
      %v3021 = vadd.f32 %v2560, %v2957
      %v3022 = vadd.f32 %v2561, %v2958
      %v3023 = vadd.f32 %v2562, %v2959
      %v3024 = vadd.f32 %v2563, %v2960
      %v3025 = vadd.f32 %v2564, %v2961
      %v3026 = vadd.f32 %v2565, %v2962
      %v3027 = vadd.f32 %v2566, %v2963
      %v3028 = vadd.f32 %v2567, %v2964
      %v3029 = vadd.f32 %v2568, %v2965
      %v3030 = vadd.f32 %v2569, %v2966
      %v3031 = vadd.f32 %v2570, %v2967
      %v3032 = vadd.f32 %v2571, %v2968
      %v3033 = vadd.f32 %v2572, %v2969
      %v3034 = vadd.f32 %v2573, %v2970
      %v3035 = vadd.f32 %v2574, %v2971
      %v3036 = vadd.f32 %v2575, %v2972
      %v3037 = vadd.f32 %v2576, %v2973
      %v3038 = vadd.f32 %v2577, %v2974
      %v3039 = vadd.f32 %v2578, %v2975
      %v3040 = vlaneseq
      %v3041 = vshrl.u32 %v3040, 7
      %v3042 = vsub.s32 2, %v3041
      %v3043 = vrot.slane %v596, %v3042
      %v3044 = vmul.f32 %v2712, %v3043
      %v3045 = vmul.f32 %v2713, %v3043
      %v3046 = vmul.f32 %v2714, %v3043
      %v3047 = vmul.f32 %v2715, %v3043
      %v3048 = vmul.f32 %v2716, %v3043
      %v3049 = vmul.f32 %v2717, %v3043
      %v3050 = vmul.f32 %v2718, %v3043
      %v3051 = vmul.f32 %v2719, %v3043
      %v3052 = vmul.f32 %v2720, %v3043
      %v3053 = vmul.f32 %v2721, %v3043
      %v3054 = vmul.f32 %v2722, %v3043
      %v3055 = vmul.f32 %v2723, %v3043
      %v3056 = vmul.f32 %v2724, %v3043
      %v3057 = vmul.f32 %v2725, %v3043
      %v3058 = vmul.f32 %v2726, %v3043
      %v3059 = vmul.f32 %v2727, %v3043
      %v3060 = vmul.f32 %v2728, %v3043
      %v3061 = vmul.f32 %v2729, %v3043
      %v3062 = vmul.f32 %v2730, %v3043
      %v3063 = vmul.f32 %v2731, %v3043
      %v3064 = vmul.f32 %v2732, %v3043
      %v3065 = vmul.f32 %v2733, %v3043
      %v3066 = vmul.f32 %v2734, %v3043
      %v3067 = vmul.f32 %v2735, %v3043
      %v3068 = vmul.f32 %v2736, %v3043
      %v3069 = vmul.f32 %v2737, %v3043
      %v3070 = vmul.f32 %v2738, %v3043
      %v3071 = vmul.f32 %v2739, %v3043
      %v3072 = vmul.f32 %v2740, %v3043
      %v3073 = vmul.f32 %v2741, %v3043
      %v3074 = vmul.f32 %v2742, %v3043
      %v3075 = vmul.f32 %v2743, %v3043
      %v3076 = vmul.f32 %v2744, %v3043
      %v3077 = vmul.f32 %v2745, %v3043
      %v3078 = vmul.f32 %v2746, %v3043
      %v3079 = vmul.f32 %v2747, %v3043
      %v3080 = vmul.f32 %v2748, %v3043
      %v3081 = vmul.f32 %v2749, %v3043
      %v3082 = vmul.f32 %v2750, %v3043
      %v3083 = vmul.f32 %v2751, %v3043
      %v3084 = vmul.f32 %v2752, %v3043
      %v3085 = vmul.f32 %v2753, %v3043
      %v3086 = vmul.f32 %v2754, %v3043
      %v3087 = vmul.f32 %v2755, %v3043
      %v3088 = vmul.f32 %v2756, %v3043
      %v3089 = vmul.f32 %v2757, %v3043
      %v3090 = vmul.f32 %v2758, %v3043
      %v3091 = vmul.f32 %v2759, %v3043
      %v3092 = vmul.f32 %v2760, %v3043
      %v3093 = vmul.f32 %v2761, %v3043
      %v3094 = vmul.f32 %v2762, %v3043
      %v3095 = vmul.f32 %v2763, %v3043
      %v3096 = vmul.f32 %v2764, %v3043
      %v3097 = vmul.f32 %v2765, %v3043
      %v3098 = vmul.f32 %v2766, %v3043
      %v3099 = vmul.f32 %v2767, %v3043
      %v3100 = vmul.f32 %v2768, %v3043
      %v3101 = vmul.f32 %v2769, %v3043
      %v3102 = vmul.f32 %v2770, %v3043
      %v3103 = vmul.f32 %v2771, %v3043
      %v3104 = vmul.f32 %v2772, %v3043
      %v3105 = vmul.f32 %v2773, %v3043
      %v3106 = vmul.f32 %v2774, %v3043
      %v3107 = vmul.f32 %v2775, %v3043
      %v3108 = vadd.f32 %v2647, %v3044
      %v3109 = vadd.f32 %v2648, %v3045
      %v3110 = vadd.f32 %v2649, %v3046
      %v3111 = vadd.f32 %v2650, %v3047
      %v3112 = vadd.f32 %v2651, %v3048
      %v3113 = vadd.f32 %v2652, %v3049
      %v3114 = vadd.f32 %v2653, %v3050
      %v3115 = vadd.f32 %v2654, %v3051
      %v3116 = vadd.f32 %v2655, %v3052
      %v3117 = vadd.f32 %v2656, %v3053
      %v3118 = vadd.f32 %v2657, %v3054
      %v3119 = vadd.f32 %v2658, %v3055
      %v3120 = vadd.f32 %v2659, %v3056
      %v3121 = vadd.f32 %v2660, %v3057
      %v3122 = vadd.f32 %v2661, %v3058
      %v3123 = vadd.f32 %v2662, %v3059
      %v3124 = vadd.f32 %v2663, %v3060
      %v3125 = vadd.f32 %v2664, %v3061
      %v3126 = vadd.f32 %v2665, %v3062
      %v3127 = vadd.f32 %v2666, %v3063
      %v3128 = vadd.f32 %v2667, %v3064
      %v3129 = vadd.f32 %v2668, %v3065
      %v3130 = vadd.f32 %v2669, %v3066
      %v3131 = vadd.f32 %v2670, %v3067
      %v3132 = vadd.f32 %v2671, %v3068
      %v3133 = vadd.f32 %v2672, %v3069
      %v3134 = vadd.f32 %v2673, %v3070
      %v3135 = vadd.f32 %v2674, %v3071
      %v3136 = vadd.f32 %v2675, %v3072
      %v3137 = vadd.f32 %v2676, %v3073
      %v3138 = vadd.f32 %v2677, %v3074
      %v3139 = vadd.f32 %v2678, %v3075
      %v3140 = vadd.f32 %v2679, %v3076
      %v3141 = vadd.f32 %v2680, %v3077
      %v3142 = vadd.f32 %v2681, %v3078
      %v3143 = vadd.f32 %v2682, %v3079
      %v3144 = vadd.f32 %v2683, %v3080
      %v3145 = vadd.f32 %v2684, %v3081
      %v3146 = vadd.f32 %v2685, %v3082
      %v3147 = vadd.f32 %v2686, %v3083
      %v3148 = vadd.f32 %v2687, %v3084
      %v3149 = vadd.f32 %v2688, %v3085
      %v3150 = vadd.f32 %v2689, %v3086
      %v3151 = vadd.f32 %v2690, %v3087
      %v3152 = vadd.f32 %v2691, %v3088
      %v3153 = vadd.f32 %v2692, %v3089
      %v3154 = vadd.f32 %v2693, %v3090
      %v3155 = vadd.f32 %v2694, %v3091
      %v3156 = vadd.f32 %v2695, %v3092
      %v3157 = vadd.f32 %v2696, %v3093
      %v3158 = vadd.f32 %v2697, %v3094
      %v3159 = vadd.f32 %v2698, %v3095
      %v3160 = vadd.f32 %v2699, %v3096
      %v3161 = vadd.f32 %v2700, %v3097
      %v3162 = vadd.f32 %v2701, %v3098
      %v3163 = vadd.f32 %v2702, %v3099
      %v3164 = vadd.f32 %v2703, %v3100
      %v3165 = vadd.f32 %v2704, %v3101
      %v3166 = vadd.f32 %v2705, %v3102
      %v3167 = vadd.f32 %v2706, %v3103
      %v3168 = vadd.f32 %v2707, %v3104
      %v3169 = vadd.f32 %v2708, %v3105
      %v3170 = vadd.f32 %v2709, %v3106
      %v3171 = vadd.f32 %v2710, %v3107
      %s3172 = scalar_lea.vmem [#allocation2], 160
      %v3173 = vld [vmem:[%s3172] sm:$0xff]
      %v3174 = vld [vmem:[%s3172 + $0x8] sm:$0xff]
      %v3175 = vld [vmem:[%s3172 + $0x10] sm:$0xff]
      %v3176 = vld [vmem:[%s3172 + $0x18] sm:$0xff]
      %v3177 = vld [vmem:[%s3172 + $0x20] sm:$0xff]
      %v3178 = vld [vmem:[%s3172 + $0x28] sm:$0xff]
      %v3179 = vld [vmem:[%s3172 + $0x30] sm:$0xff]
      %v3180 = vld [vmem:[%s3172 + $0x38] sm:$0xff]
      %v3181 = vld [vmem:[%s3172 + $0x50] sm:$0xff]
      %v3182 = vld [vmem:[%s3172 + $0x58] sm:$0xff]
      %v3183 = vld [vmem:[%s3172 + $0x60] sm:$0xff]
      %v3184 = vld [vmem:[%s3172 + $0x68] sm:$0xff]
      %v3185 = vld [vmem:[%s3172 + $0x70] sm:$0xff]
      %v3186 = vld [vmem:[%s3172 + $0x78] sm:$0xff]
      %v3187 = vld [vmem:[%s3172 + $0x80] sm:$0xff]
      %v3188 = vld [vmem:[%s3172 + $0x88] sm:$0xff]
      %v3189 = vld [vmem:[%s3172 + $0xa0] sm:$0xff]
      %v3190 = vld [vmem:[%s3172 + $0xa8] sm:$0xff]
      %v3191 = vld [vmem:[%s3172 + $0xb0] sm:$0xff]
      %v3192 = vld [vmem:[%s3172 + $0xb8] sm:$0xff]
      %v3193 = vld [vmem:[%s3172 + $0xc0] sm:$0xff]
      %v3194 = vld [vmem:[%s3172 + $0xc8] sm:$0xff]
      %v3195 = vld [vmem:[%s3172 + $0xd0] sm:$0xff]
      %v3196 = vld [vmem:[%s3172 + $0xd8] sm:$0xff]
      %v3197 = vld [vmem:[%s3172 + $0xf0] sm:$0xff]
      %v3198 = vld [vmem:[%s3172 + $0xf8] sm:$0xff]
      %v3199 = vld [vmem:[%s3172 + $0x100] sm:$0xff]
      %v3200 = vld [vmem:[%s3172 + $0x108] sm:$0xff]
      %v3201 = vld [vmem:[%s3172 + $0x110] sm:$0xff]
      %v3202 = vld [vmem:[%s3172 + $0x118] sm:$0xff]
      %v3203 = vld [vmem:[%s3172 + $0x120] sm:$0xff]
      %v3204 = vld [vmem:[%s3172 + $0x128] sm:$0xff]
      %v3205 = vld [vmem:[%s3172 + $0x140] sm:$0xff]
      %v3206 = vld [vmem:[%s3172 + $0x148] sm:$0xff]
      %v3207 = vld [vmem:[%s3172 + $0x150] sm:$0xff]
      %v3208 = vld [vmem:[%s3172 + $0x158] sm:$0xff]
      %v3209 = vld [vmem:[%s3172 + $0x160] sm:$0xff]
      %v3210 = vld [vmem:[%s3172 + $0x168] sm:$0xff]
      %v3211 = vld [vmem:[%s3172 + $0x170] sm:$0xff]
      %v3212 = vld [vmem:[%s3172 + $0x178] sm:$0xff]
      %v3213 = vld [vmem:[%s3172 + $0x190] sm:$0xff]
      %v3214 = vld [vmem:[%s3172 + $0x198] sm:$0xff]
      %v3215 = vld [vmem:[%s3172 + $0x1a0] sm:$0xff]
      %v3216 = vld [vmem:[%s3172 + $0x1a8] sm:$0xff]
      %v3217 = vld [vmem:[%s3172 + $0x1b0] sm:$0xff]
      %v3218 = vld [vmem:[%s3172 + $0x1b8] sm:$0xff]
      %v3219 = vld [vmem:[%s3172 + $0x1c0] sm:$0xff]
      %v3220 = vld [vmem:[%s3172 + $0x1c8] sm:$0xff]
      %v3221 = vld [vmem:[%s3172 + $0x1e0] sm:$0xff]
      %v3222 = vld [vmem:[%s3172 + $0x1e8] sm:$0xff]
      %v3223 = vld [vmem:[%s3172 + $0x1f0] sm:$0xff]
      %v3224 = vld [vmem:[%s3172 + $0x1f8] sm:$0xff]
      %v3225 = vld [vmem:[%s3172 + $0x200] sm:$0xff]
      %v3226 = vld [vmem:[%s3172 + $0x208] sm:$0xff]
      %v3227 = vld [vmem:[%s3172 + $0x210] sm:$0xff]
      %v3228 = vld [vmem:[%s3172 + $0x218] sm:$0xff]
      %v3229 = vld [vmem:[%s3172 + $0x230] sm:$0xff]
      %v3230 = vld [vmem:[%s3172 + $0x238] sm:$0xff]
      %v3231 = vld [vmem:[%s3172 + $0x240] sm:$0xff]
      %v3232 = vld [vmem:[%s3172 + $0x248] sm:$0xff]
      %v3233 = vld [vmem:[%s3172 + $0x250] sm:$0xff]
      %v3234 = vld [vmem:[%s3172 + $0x258] sm:$0xff]
      %v3235 = vld [vmem:[%s3172 + $0x260] sm:$0xff]
      %v3236 = vld [vmem:[%s3172 + $0x268] sm:$0xff]
      %v3237 = vlaneseq
      %v3238 = vshrl.u32 %v3237, 7
      %v3239 = vsub.s32 0, %v3238
      %v3240 = vrot.slane %v597, %v3239
      %v3241 = vmul.f32 %v3173, %v3240
      %v3242 = vmul.f32 %v3174, %v3240
      %v3243 = vmul.f32 %v3175, %v3240
      %v3244 = vmul.f32 %v3176, %v3240
      %v3245 = vmul.f32 %v3177, %v3240
      %v3246 = vmul.f32 %v3178, %v3240
      %v3247 = vmul.f32 %v3179, %v3240
      %v3248 = vmul.f32 %v3180, %v3240
      %v3249 = vmul.f32 %v3181, %v3240
      %v3250 = vmul.f32 %v3182, %v3240
      %v3251 = vmul.f32 %v3183, %v3240
      %v3252 = vmul.f32 %v3184, %v3240
      %v3253 = vmul.f32 %v3185, %v3240
      %v3254 = vmul.f32 %v3186, %v3240
      %v3255 = vmul.f32 %v3187, %v3240
      %v3256 = vmul.f32 %v3188, %v3240
      %v3257 = vmul.f32 %v3189, %v3240
      %v3258 = vmul.f32 %v3190, %v3240
      %v3259 = vmul.f32 %v3191, %v3240
      %v3260 = vmul.f32 %v3192, %v3240
      %v3261 = vmul.f32 %v3193, %v3240
      %v3262 = vmul.f32 %v3194, %v3240
      %v3263 = vmul.f32 %v3195, %v3240
      %v3264 = vmul.f32 %v3196, %v3240
      %v3265 = vmul.f32 %v3197, %v3240
      %v3266 = vmul.f32 %v3198, %v3240
      %v3267 = vmul.f32 %v3199, %v3240
      %v3268 = vmul.f32 %v3200, %v3240
      %v3269 = vmul.f32 %v3201, %v3240
      %v3270 = vmul.f32 %v3202, %v3240
      %v3271 = vmul.f32 %v3203, %v3240
      %v3272 = vmul.f32 %v3204, %v3240
      %v3273 = vmul.f32 %v3205, %v3240
      %v3274 = vmul.f32 %v3206, %v3240
      %v3275 = vmul.f32 %v3207, %v3240
      %v3276 = vmul.f32 %v3208, %v3240
      %v3277 = vmul.f32 %v3209, %v3240
      %v3278 = vmul.f32 %v3210, %v3240
      %v3279 = vmul.f32 %v3211, %v3240
      %v3280 = vmul.f32 %v3212, %v3240
      %v3281 = vmul.f32 %v3213, %v3240
      %v3282 = vmul.f32 %v3214, %v3240
      %v3283 = vmul.f32 %v3215, %v3240
      %v3284 = vmul.f32 %v3216, %v3240
      %v3285 = vmul.f32 %v3217, %v3240
      %v3286 = vmul.f32 %v3218, %v3240
      %v3287 = vmul.f32 %v3219, %v3240
      %v3288 = vmul.f32 %v3220, %v3240
      %v3289 = vmul.f32 %v3221, %v3240
      %v3290 = vmul.f32 %v3222, %v3240
      %v3291 = vmul.f32 %v3223, %v3240
      %v3292 = vmul.f32 %v3224, %v3240
      %v3293 = vmul.f32 %v3225, %v3240
      %v3294 = vmul.f32 %v3226, %v3240
      %v3295 = vmul.f32 %v3227, %v3240
      %v3296 = vmul.f32 %v3228, %v3240
      %v3297 = vmul.f32 %v3229, %v3240
      %v3298 = vmul.f32 %v3230, %v3240
      %v3299 = vmul.f32 %v3231, %v3240
      %v3300 = vmul.f32 %v3232, %v3240
      %v3301 = vmul.f32 %v3233, %v3240
      %v3302 = vmul.f32 %v3234, %v3240
      %v3303 = vmul.f32 %v3235, %v3240
      %v3304 = vmul.f32 %v3236, %v3240
      %v3305 = vadd.f32 %v2844, %v3241
      %v3306 = vadd.f32 %v2845, %v3242
      %v3307 = vadd.f32 %v2846, %v3243
      %v3308 = vadd.f32 %v2847, %v3244
      %v3309 = vadd.f32 %v2848, %v3245
      %v3310 = vadd.f32 %v2849, %v3246
      %v3311 = vadd.f32 %v2850, %v3247
      %v3312 = vadd.f32 %v2851, %v3248
      %v3313 = vadd.f32 %v2852, %v3249
      %v3314 = vadd.f32 %v2853, %v3250
      %v3315 = vadd.f32 %v2854, %v3251
      %v3316 = vadd.f32 %v2855, %v3252
      %v3317 = vadd.f32 %v2856, %v3253
      %v3318 = vadd.f32 %v2857, %v3254
      %v3319 = vadd.f32 %v2858, %v3255
      %v3320 = vadd.f32 %v2859, %v3256
      %v3321 = vadd.f32 %v2860, %v3257
      %v3322 = vadd.f32 %v2861, %v3258
      %v3323 = vadd.f32 %v2862, %v3259
      %v3324 = vadd.f32 %v2863, %v3260
      %v3325 = vadd.f32 %v2864, %v3261
      %v3326 = vadd.f32 %v2865, %v3262
      %v3327 = vadd.f32 %v2866, %v3263
      %v3328 = vadd.f32 %v2867, %v3264
      %v3329 = vadd.f32 %v2868, %v3265
      %v3330 = vadd.f32 %v2869, %v3266
      %v3331 = vadd.f32 %v2870, %v3267
      %v3332 = vadd.f32 %v2871, %v3268
      %v3333 = vadd.f32 %v2872, %v3269
      %v3334 = vadd.f32 %v2873, %v3270
      %v3335 = vadd.f32 %v2874, %v3271
      %v3336 = vadd.f32 %v2875, %v3272
      %v3337 = vadd.f32 %v2876, %v3273
      %v3338 = vadd.f32 %v2877, %v3274
      %v3339 = vadd.f32 %v2878, %v3275
      %v3340 = vadd.f32 %v2879, %v3276
      %v3341 = vadd.f32 %v2880, %v3277
      %v3342 = vadd.f32 %v2881, %v3278
      %v3343 = vadd.f32 %v2882, %v3279
      %v3344 = vadd.f32 %v2883, %v3280
      %v3345 = vadd.f32 %v2884, %v3281
      %v3346 = vadd.f32 %v2885, %v3282
      %v3347 = vadd.f32 %v2886, %v3283
      %v3348 = vadd.f32 %v2887, %v3284
      %v3349 = vadd.f32 %v2888, %v3285
      %v3350 = vadd.f32 %v2889, %v3286
      %v3351 = vadd.f32 %v2890, %v3287
      %v3352 = vadd.f32 %v2891, %v3288
      %v3353 = vadd.f32 %v2892, %v3289
      %v3354 = vadd.f32 %v2893, %v3290
      %v3355 = vadd.f32 %v2894, %v3291
      %v3356 = vadd.f32 %v2895, %v3292
      %v3357 = vadd.f32 %v2896, %v3293
      %v3358 = vadd.f32 %v2897, %v3294
      %v3359 = vadd.f32 %v2898, %v3295
      %v3360 = vadd.f32 %v2899, %v3296
      %v3361 = vadd.f32 %v2900, %v3297
      %v3362 = vadd.f32 %v2901, %v3298
      %v3363 = vadd.f32 %v2902, %v3299
      %v3364 = vadd.f32 %v2903, %v3300
      %v3365 = vadd.f32 %v2904, %v3301
      %v3366 = vadd.f32 %v2905, %v3302
      %v3367 = vadd.f32 %v2906, %v3303
      %v3368 = vadd.f32 %v2907, %v3304
      %v3369 = vlaneseq
      %v3370 = vshrl.u32 %v3369, 7
      %v3371 = vsub.s32 1, %v3370
      %v3372 = vrot.slane %v597, %v3371
      %v3373 = vmul.f32 %v3173, %v3372
      %v3374 = vmul.f32 %v3174, %v3372
      %v3375 = vmul.f32 %v3175, %v3372
      %v3376 = vmul.f32 %v3176, %v3372
      %v3377 = vmul.f32 %v3177, %v3372
      %v3378 = vmul.f32 %v3178, %v3372
      %v3379 = vmul.f32 %v3179, %v3372
      %v3380 = vmul.f32 %v3180, %v3372
      %v3381 = vmul.f32 %v3181, %v3372
      %v3382 = vmul.f32 %v3182, %v3372
      %v3383 = vmul.f32 %v3183, %v3372
      %v3384 = vmul.f32 %v3184, %v3372
      %v3385 = vmul.f32 %v3185, %v3372
      %v3386 = vmul.f32 %v3186, %v3372
      %v3387 = vmul.f32 %v3187, %v3372
      %v3388 = vmul.f32 %v3188, %v3372
      %v3389 = vmul.f32 %v3189, %v3372
      %v3390 = vmul.f32 %v3190, %v3372
      %v3391 = vmul.f32 %v3191, %v3372
      %v3392 = vmul.f32 %v3192, %v3372
      %v3393 = vmul.f32 %v3193, %v3372
      %v3394 = vmul.f32 %v3194, %v3372
      %v3395 = vmul.f32 %v3195, %v3372
      %v3396 = vmul.f32 %v3196, %v3372
      %v3397 = vmul.f32 %v3197, %v3372
      %v3398 = vmul.f32 %v3198, %v3372
      %v3399 = vmul.f32 %v3199, %v3372
      %v3400 = vmul.f32 %v3200, %v3372
      %v3401 = vmul.f32 %v3201, %v3372
      %v3402 = vmul.f32 %v3202, %v3372
      %v3403 = vmul.f32 %v3203, %v3372
      %v3404 = vmul.f32 %v3204, %v3372
      %v3405 = vmul.f32 %v3205, %v3372
      %v3406 = vmul.f32 %v3206, %v3372
      %v3407 = vmul.f32 %v3207, %v3372
      %v3408 = vmul.f32 %v3208, %v3372
      %v3409 = vmul.f32 %v3209, %v3372
      %v3410 = vmul.f32 %v3210, %v3372
      %v3411 = vmul.f32 %v3211, %v3372
      %v3412 = vmul.f32 %v3212, %v3372
      %v3413 = vmul.f32 %v3213, %v3372
      %v3414 = vmul.f32 %v3214, %v3372
      %v3415 = vmul.f32 %v3215, %v3372
      %v3416 = vmul.f32 %v3216, %v3372
      %v3417 = vmul.f32 %v3217, %v3372
      %v3418 = vmul.f32 %v3218, %v3372
      %v3419 = vmul.f32 %v3219, %v3372
      %v3420 = vmul.f32 %v3220, %v3372
      %v3421 = vmul.f32 %v3221, %v3372
      %v3422 = vmul.f32 %v3222, %v3372
      %v3423 = vmul.f32 %v3223, %v3372
      %v3424 = vmul.f32 %v3224, %v3372
      %v3425 = vmul.f32 %v3225, %v3372
      %v3426 = vmul.f32 %v3226, %v3372
      %v3427 = vmul.f32 %v3227, %v3372
      %v3428 = vmul.f32 %v3228, %v3372
      %v3429 = vmul.f32 %v3229, %v3372
      %v3430 = vmul.f32 %v3230, %v3372
      %v3431 = vmul.f32 %v3231, %v3372
      %v3432 = vmul.f32 %v3232, %v3372
      %v3433 = vmul.f32 %v3233, %v3372
      %v3434 = vmul.f32 %v3234, %v3372
      %v3435 = vmul.f32 %v3235, %v3372
      %v3436 = vmul.f32 %v3236, %v3372
      %v3437 = vadd.f32 %v2976, %v3373
      %v3438 = vadd.f32 %v2977, %v3374
      %v3439 = vadd.f32 %v2978, %v3375
      %v3440 = vadd.f32 %v2979, %v3376
      %v3441 = vadd.f32 %v2980, %v3377
      %v3442 = vadd.f32 %v2981, %v3378
      %v3443 = vadd.f32 %v2982, %v3379
      %v3444 = vadd.f32 %v2983, %v3380
      %v3445 = vadd.f32 %v2984, %v3381
      %v3446 = vadd.f32 %v2985, %v3382
      %v3447 = vadd.f32 %v2986, %v3383
      %v3448 = vadd.f32 %v2987, %v3384
      %v3449 = vadd.f32 %v2988, %v3385
      %v3450 = vadd.f32 %v2989, %v3386
      %v3451 = vadd.f32 %v2990, %v3387
      %v3452 = vadd.f32 %v2991, %v3388
      %v3453 = vadd.f32 %v2992, %v3389
      %v3454 = vadd.f32 %v2993, %v3390
      %v3455 = vadd.f32 %v2994, %v3391
      %v3456 = vadd.f32 %v2995, %v3392
      %v3457 = vadd.f32 %v2996, %v3393
      %v3458 = vadd.f32 %v2997, %v3394
      %v3459 = vadd.f32 %v2998, %v3395
      %v3460 = vadd.f32 %v2999, %v3396
      %v3461 = vadd.f32 %v3000, %v3397
      %v3462 = vadd.f32 %v3001, %v3398
      %v3463 = vadd.f32 %v3002, %v3399
      %v3464 = vadd.f32 %v3003, %v3400
      %v3465 = vadd.f32 %v3004, %v3401
      %v3466 = vadd.f32 %v3005, %v3402
      %v3467 = vadd.f32 %v3006, %v3403
      %v3468 = vadd.f32 %v3007, %v3404
      %v3469 = vadd.f32 %v3008, %v3405
      %v3470 = vadd.f32 %v3009, %v3406
      %v3471 = vadd.f32 %v3010, %v3407
      %v3472 = vadd.f32 %v3011, %v3408
      %v3473 = vadd.f32 %v3012, %v3409
      %v3474 = vadd.f32 %v3013, %v3410
      %v3475 = vadd.f32 %v3014, %v3411
      %v3476 = vadd.f32 %v3015, %v3412
      %v3477 = vadd.f32 %v3016, %v3413
      %v3478 = vadd.f32 %v3017, %v3414
      %v3479 = vadd.f32 %v3018, %v3415
      %v3480 = vadd.f32 %v3019, %v3416
      %v3481 = vadd.f32 %v3020, %v3417
      %v3482 = vadd.f32 %v3021, %v3418
      %v3483 = vadd.f32 %v3022, %v3419
      %v3484 = vadd.f32 %v3023, %v3420
      %v3485 = vadd.f32 %v3024, %v3421
      %v3486 = vadd.f32 %v3025, %v3422
      %v3487 = vadd.f32 %v3026, %v3423
      %v3488 = vadd.f32 %v3027, %v3424
      %v3489 = vadd.f32 %v3028, %v3425
      %v3490 = vadd.f32 %v3029, %v3426
      %v3491 = vadd.f32 %v3030, %v3427
      %v3492 = vadd.f32 %v3031, %v3428
      %v3493 = vadd.f32 %v3032, %v3429
      %v3494 = vadd.f32 %v3033, %v3430
      %v3495 = vadd.f32 %v3034, %v3431
      %v3496 = vadd.f32 %v3035, %v3432
      %v3497 = vadd.f32 %v3036, %v3433
      %v3498 = vadd.f32 %v3037, %v3434
      %v3499 = vadd.f32 %v3038, %v3435
      %v3500 = vadd.f32 %v3039, %v3436
      %v3501 = vlaneseq
      %v3502 = vshrl.u32 %v3501, 7
      %v3503 = vsub.s32 2, %v3502
      %v3504 = vrot.slane %v597, %v3503
      %v3505 = vmul.f32 %v3173, %v3504
      %v3506 = vmul.f32 %v3174, %v3504
      %v3507 = vmul.f32 %v3175, %v3504
      %v3508 = vmul.f32 %v3176, %v3504
      %v3509 = vmul.f32 %v3177, %v3504
      %v3510 = vmul.f32 %v3178, %v3504
      %v3511 = vmul.f32 %v3179, %v3504
      %v3512 = vmul.f32 %v3180, %v3504
      %v3513 = vmul.f32 %v3181, %v3504
      %v3514 = vmul.f32 %v3182, %v3504
      %v3515 = vmul.f32 %v3183, %v3504
      %v3516 = vmul.f32 %v3184, %v3504
      %v3517 = vmul.f32 %v3185, %v3504
      %v3518 = vmul.f32 %v3186, %v3504
      %v3519 = vmul.f32 %v3187, %v3504
      %v3520 = vmul.f32 %v3188, %v3504
      %v3521 = vmul.f32 %v3189, %v3504
      %v3522 = vmul.f32 %v3190, %v3504
      %v3523 = vmul.f32 %v3191, %v3504
      %v3524 = vmul.f32 %v3192, %v3504
      %v3525 = vmul.f32 %v3193, %v3504
      %v3526 = vmul.f32 %v3194, %v3504
      %v3527 = vmul.f32 %v3195, %v3504
      %v3528 = vmul.f32 %v3196, %v3504
      %v3529 = vmul.f32 %v3197, %v3504
      %v3530 = vmul.f32 %v3198, %v3504
      %v3531 = vmul.f32 %v3199, %v3504
      %v3532 = vmul.f32 %v3200, %v3504
      %v3533 = vmul.f32 %v3201, %v3504
      %v3534 = vmul.f32 %v3202, %v3504
      %v3535 = vmul.f32 %v3203, %v3504
      %v3536 = vmul.f32 %v3204, %v3504
      %v3537 = vmul.f32 %v3205, %v3504
      %v3538 = vmul.f32 %v3206, %v3504
      %v3539 = vmul.f32 %v3207, %v3504
      %v3540 = vmul.f32 %v3208, %v3504
      %v3541 = vmul.f32 %v3209, %v3504
      %v3542 = vmul.f32 %v3210, %v3504
      %v3543 = vmul.f32 %v3211, %v3504
      %v3544 = vmul.f32 %v3212, %v3504
      %v3545 = vmul.f32 %v3213, %v3504
      %v3546 = vmul.f32 %v3214, %v3504
      %v3547 = vmul.f32 %v3215, %v3504
      %v3548 = vmul.f32 %v3216, %v3504
      %v3549 = vmul.f32 %v3217, %v3504
      %v3550 = vmul.f32 %v3218, %v3504
      %v3551 = vmul.f32 %v3219, %v3504
      %v3552 = vmul.f32 %v3220, %v3504
      %v3553 = vmul.f32 %v3221, %v3504
      %v3554 = vmul.f32 %v3222, %v3504
      %v3555 = vmul.f32 %v3223, %v3504
      %v3556 = vmul.f32 %v3224, %v3504
      %v3557 = vmul.f32 %v3225, %v3504
      %v3558 = vmul.f32 %v3226, %v3504
      %v3559 = vmul.f32 %v3227, %v3504
      %v3560 = vmul.f32 %v3228, %v3504
      %v3561 = vmul.f32 %v3229, %v3504
      %v3562 = vmul.f32 %v3230, %v3504
      %v3563 = vmul.f32 %v3231, %v3504
      %v3564 = vmul.f32 %v3232, %v3504
      %v3565 = vmul.f32 %v3233, %v3504
      %v3566 = vmul.f32 %v3234, %v3504
      %v3567 = vmul.f32 %v3235, %v3504
      %v3568 = vmul.f32 %v3236, %v3504
      %v3569 = vadd.f32 %v3108, %v3505
      %v3570 = vadd.f32 %v3109, %v3506
      %v3571 = vadd.f32 %v3110, %v3507
      %v3572 = vadd.f32 %v3111, %v3508
      %v3573 = vadd.f32 %v3112, %v3509
      %v3574 = vadd.f32 %v3113, %v3510
      %v3575 = vadd.f32 %v3114, %v3511
      %v3576 = vadd.f32 %v3115, %v3512
      %v3577 = vadd.f32 %v3116, %v3513
      %v3578 = vadd.f32 %v3117, %v3514
      %v3579 = vadd.f32 %v3118, %v3515
      %v3580 = vadd.f32 %v3119, %v3516
      %v3581 = vadd.f32 %v3120, %v3517
      %v3582 = vadd.f32 %v3121, %v3518
      %v3583 = vadd.f32 %v3122, %v3519
      %v3584 = vadd.f32 %v3123, %v3520
      %v3585 = vadd.f32 %v3124, %v3521
      %v3586 = vadd.f32 %v3125, %v3522
      %v3587 = vadd.f32 %v3126, %v3523
      %v3588 = vadd.f32 %v3127, %v3524
      %v3589 = vadd.f32 %v3128, %v3525
      %v3590 = vadd.f32 %v3129, %v3526
      %v3591 = vadd.f32 %v3130, %v3527
      %v3592 = vadd.f32 %v3131, %v3528
      %v3593 = vadd.f32 %v3132, %v3529
      %v3594 = vadd.f32 %v3133, %v3530
      %v3595 = vadd.f32 %v3134, %v3531
      %v3596 = vadd.f32 %v3135, %v3532
      %v3597 = vadd.f32 %v3136, %v3533
      %v3598 = vadd.f32 %v3137, %v3534
      %v3599 = vadd.f32 %v3138, %v3535
      %v3600 = vadd.f32 %v3139, %v3536
      %v3601 = vadd.f32 %v3140, %v3537
      %v3602 = vadd.f32 %v3141, %v3538
      %v3603 = vadd.f32 %v3142, %v3539
      %v3604 = vadd.f32 %v3143, %v3540
      %v3605 = vadd.f32 %v3144, %v3541
      %v3606 = vadd.f32 %v3145, %v3542
      %v3607 = vadd.f32 %v3146, %v3543
      %v3608 = vadd.f32 %v3147, %v3544
      %v3609 = vadd.f32 %v3148, %v3545
      %v3610 = vadd.f32 %v3149, %v3546
      %v3611 = vadd.f32 %v3150, %v3547
      %v3612 = vadd.f32 %v3151, %v3548
      %v3613 = vadd.f32 %v3152, %v3549
      %v3614 = vadd.f32 %v3153, %v3550
      %v3615 = vadd.f32 %v3154, %v3551
      %v3616 = vadd.f32 %v3155, %v3552
      %v3617 = vadd.f32 %v3156, %v3553
      %v3618 = vadd.f32 %v3157, %v3554
      %v3619 = vadd.f32 %v3158, %v3555
      %v3620 = vadd.f32 %v3159, %v3556
      %v3621 = vadd.f32 %v3160, %v3557
      %v3622 = vadd.f32 %v3161, %v3558
      %v3623 = vadd.f32 %v3162, %v3559
      %v3624 = vadd.f32 %v3163, %v3560
      %v3625 = vadd.f32 %v3164, %v3561
      %v3626 = vadd.f32 %v3165, %v3562
      %v3627 = vadd.f32 %v3166, %v3563
      %v3628 = vadd.f32 %v3167, %v3564
      %v3629 = vadd.f32 %v3168, %v3565
      %v3630 = vadd.f32 %v3169, %v3566
      %v3631 = vadd.f32 %v3170, %v3567
      %v3632 = vadd.f32 %v3171, %v3568
      %s3633 = scalar_lea.vmem [#allocation2], 168
      %v3634 = vld [vmem:[%s3633] sm:$0xff]
      %v3635 = vld [vmem:[%s3633 + $0x8] sm:$0xff]
      %v3636 = vld [vmem:[%s3633 + $0x10] sm:$0xff]
      %v3637 = vld [vmem:[%s3633 + $0x18] sm:$0xff]
      %v3638 = vld [vmem:[%s3633 + $0x20] sm:$0xff]
      %v3639 = vld [vmem:[%s3633 + $0x28] sm:$0xff]
      %v3640 = vld [vmem:[%s3633 + $0x30] sm:$0xff]
      %v3641 = vld [vmem:[%s3633 + $0x38] sm:$0xff]
      %v3642 = vld [vmem:[%s3633 + $0x50] sm:$0xff]
      %v3643 = vld [vmem:[%s3633 + $0x58] sm:$0xff]
      %v3644 = vld [vmem:[%s3633 + $0x60] sm:$0xff]
      %v3645 = vld [vmem:[%s3633 + $0x68] sm:$0xff]
      %v3646 = vld [vmem:[%s3633 + $0x70] sm:$0xff]
      %v3647 = vld [vmem:[%s3633 + $0x78] sm:$0xff]
      %v3648 = vld [vmem:[%s3633 + $0x80] sm:$0xff]
      %v3649 = vld [vmem:[%s3633 + $0x88] sm:$0xff]
      %v3650 = vld [vmem:[%s3633 + $0xa0] sm:$0xff]
      %v3651 = vld [vmem:[%s3633 + $0xa8] sm:$0xff]
      %v3652 = vld [vmem:[%s3633 + $0xb0] sm:$0xff]
      %v3653 = vld [vmem:[%s3633 + $0xb8] sm:$0xff]
      %v3654 = vld [vmem:[%s3633 + $0xc0] sm:$0xff]
      %v3655 = vld [vmem:[%s3633 + $0xc8] sm:$0xff]
      %v3656 = vld [vmem:[%s3633 + $0xd0] sm:$0xff]
      %v3657 = vld [vmem:[%s3633 + $0xd8] sm:$0xff]
      %v3658 = vld [vmem:[%s3633 + $0xf0] sm:$0xff]
      %v3659 = vld [vmem:[%s3633 + $0xf8] sm:$0xff]
      %v3660 = vld [vmem:[%s3633 + $0x100] sm:$0xff]
      %v3661 = vld [vmem:[%s3633 + $0x108] sm:$0xff]
      %v3662 = vld [vmem:[%s3633 + $0x110] sm:$0xff]
      %v3663 = vld [vmem:[%s3633 + $0x118] sm:$0xff]
      %v3664 = vld [vmem:[%s3633 + $0x120] sm:$0xff]
      %v3665 = vld [vmem:[%s3633 + $0x128] sm:$0xff]
      %v3666 = vld [vmem:[%s3633 + $0x140] sm:$0xff]
      %v3667 = vld [vmem:[%s3633 + $0x148] sm:$0xff]
      %v3668 = vld [vmem:[%s3633 + $0x150] sm:$0xff]
      %v3669 = vld [vmem:[%s3633 + $0x158] sm:$0xff]
      %v3670 = vld [vmem:[%s3633 + $0x160] sm:$0xff]
      %v3671 = vld [vmem:[%s3633 + $0x168] sm:$0xff]
      %v3672 = vld [vmem:[%s3633 + $0x170] sm:$0xff]
      %v3673 = vld [vmem:[%s3633 + $0x178] sm:$0xff]
      %v3674 = vld [vmem:[%s3633 + $0x190] sm:$0xff]
      %v3675 = vld [vmem:[%s3633 + $0x198] sm:$0xff]
      %v3676 = vld [vmem:[%s3633 + $0x1a0] sm:$0xff]
      %v3677 = vld [vmem:[%s3633 + $0x1a8] sm:$0xff]
      %v3678 = vld [vmem:[%s3633 + $0x1b0] sm:$0xff]
      %v3679 = vld [vmem:[%s3633 + $0x1b8] sm:$0xff]
      %v3680 = vld [vmem:[%s3633 + $0x1c0] sm:$0xff]
      %v3681 = vld [vmem:[%s3633 + $0x1c8] sm:$0xff]
      %v3682 = vld [vmem:[%s3633 + $0x1e0] sm:$0xff]
      %v3683 = vld [vmem:[%s3633 + $0x1e8] sm:$0xff]
      %v3684 = vld [vmem:[%s3633 + $0x1f0] sm:$0xff]
      %v3685 = vld [vmem:[%s3633 + $0x1f8] sm:$0xff]
      %v3686 = vld [vmem:[%s3633 + $0x200] sm:$0xff]
      %v3687 = vld [vmem:[%s3633 + $0x208] sm:$0xff]
      %v3688 = vld [vmem:[%s3633 + $0x210] sm:$0xff]
      %v3689 = vld [vmem:[%s3633 + $0x218] sm:$0xff]
      %v3690 = vld [vmem:[%s3633 + $0x230] sm:$0xff]
      %v3691 = vld [vmem:[%s3633 + $0x238] sm:$0xff]
      %v3692 = vld [vmem:[%s3633 + $0x240] sm:$0xff]
      %v3693 = vld [vmem:[%s3633 + $0x248] sm:$0xff]
      %v3694 = vld [vmem:[%s3633 + $0x250] sm:$0xff]
      %v3695 = vld [vmem:[%s3633 + $0x258] sm:$0xff]
      %v3696 = vld [vmem:[%s3633 + $0x260] sm:$0xff]
      %v3697 = vld [vmem:[%s3633 + $0x268] sm:$0xff]
      %v3698 = vlaneseq
      %v3699 = vshrl.u32 %v3698, 7
      %v3700 = vsub.s32 0, %v3699
      %v3701 = vrot.slane %v598, %v3700
      %v3702 = vmul.f32 %v3634, %v3701
      %v3703 = vmul.f32 %v3635, %v3701
      %v3704 = vmul.f32 %v3636, %v3701
      %v3705 = vmul.f32 %v3637, %v3701
      %v3706 = vmul.f32 %v3638, %v3701
      %v3707 = vmul.f32 %v3639, %v3701
      %v3708 = vmul.f32 %v3640, %v3701
      %v3709 = vmul.f32 %v3641, %v3701
      %v3710 = vmul.f32 %v3642, %v3701
      %v3711 = vmul.f32 %v3643, %v3701
      %v3712 = vmul.f32 %v3644, %v3701
      %v3713 = vmul.f32 %v3645, %v3701
      %v3714 = vmul.f32 %v3646, %v3701
      %v3715 = vmul.f32 %v3647, %v3701
      %v3716 = vmul.f32 %v3648, %v3701
      %v3717 = vmul.f32 %v3649, %v3701
      %v3718 = vmul.f32 %v3650, %v3701
      %v3719 = vmul.f32 %v3651, %v3701
      %v3720 = vmul.f32 %v3652, %v3701
      %v3721 = vmul.f32 %v3653, %v3701
      %v3722 = vmul.f32 %v3654, %v3701
      %v3723 = vmul.f32 %v3655, %v3701
      %v3724 = vmul.f32 %v3656, %v3701
      %v3725 = vmul.f32 %v3657, %v3701
      %v3726 = vmul.f32 %v3658, %v3701
      %v3727 = vmul.f32 %v3659, %v3701
      %v3728 = vmul.f32 %v3660, %v3701
      %v3729 = vmul.f32 %v3661, %v3701
      %v3730 = vmul.f32 %v3662, %v3701
      %v3731 = vmul.f32 %v3663, %v3701
      %v3732 = vmul.f32 %v3664, %v3701
      %v3733 = vmul.f32 %v3665, %v3701
      %v3734 = vmul.f32 %v3666, %v3701
      %v3735 = vmul.f32 %v3667, %v3701
      %v3736 = vmul.f32 %v3668, %v3701
      %v3737 = vmul.f32 %v3669, %v3701
      %v3738 = vmul.f32 %v3670, %v3701
      %v3739 = vmul.f32 %v3671, %v3701
      %v3740 = vmul.f32 %v3672, %v3701
      %v3741 = vmul.f32 %v3673, %v3701
      %v3742 = vmul.f32 %v3674, %v3701
      %v3743 = vmul.f32 %v3675, %v3701
      %v3744 = vmul.f32 %v3676, %v3701
      %v3745 = vmul.f32 %v3677, %v3701
      %v3746 = vmul.f32 %v3678, %v3701
      %v3747 = vmul.f32 %v3679, %v3701
      %v3748 = vmul.f32 %v3680, %v3701
      %v3749 = vmul.f32 %v3681, %v3701
      %v3750 = vmul.f32 %v3682, %v3701
      %v3751 = vmul.f32 %v3683, %v3701
      %v3752 = vmul.f32 %v3684, %v3701
      %v3753 = vmul.f32 %v3685, %v3701
      %v3754 = vmul.f32 %v3686, %v3701
      %v3755 = vmul.f32 %v3687, %v3701
      %v3756 = vmul.f32 %v3688, %v3701
      %v3757 = vmul.f32 %v3689, %v3701
      %v3758 = vmul.f32 %v3690, %v3701
      %v3759 = vmul.f32 %v3691, %v3701
      %v3760 = vmul.f32 %v3692, %v3701
      %v3761 = vmul.f32 %v3693, %v3701
      %v3762 = vmul.f32 %v3694, %v3701
      %v3763 = vmul.f32 %v3695, %v3701
      %v3764 = vmul.f32 %v3696, %v3701
      %v3765 = vmul.f32 %v3697, %v3701
      %v3766 = vadd.f32 %v3305, %v3702
      %v3767 = vadd.f32 %v3306, %v3703
      %v3768 = vadd.f32 %v3307, %v3704
      %v3769 = vadd.f32 %v3308, %v3705
      %v3770 = vadd.f32 %v3309, %v3706
      %v3771 = vadd.f32 %v3310, %v3707
      %v3772 = vadd.f32 %v3311, %v3708
      %v3773 = vadd.f32 %v3312, %v3709
      %v3774 = vadd.f32 %v3313, %v3710
      %v3775 = vadd.f32 %v3314, %v3711
      %v3776 = vadd.f32 %v3315, %v3712
      %v3777 = vadd.f32 %v3316, %v3713
      %v3778 = vadd.f32 %v3317, %v3714
      %v3779 = vadd.f32 %v3318, %v3715
      %v3780 = vadd.f32 %v3319, %v3716
      %v3781 = vadd.f32 %v3320, %v3717
      %v3782 = vadd.f32 %v3321, %v3718
      %v3783 = vadd.f32 %v3322, %v3719
      %v3784 = vadd.f32 %v3323, %v3720
      %v3785 = vadd.f32 %v3324, %v3721
      %v3786 = vadd.f32 %v3325, %v3722
      %v3787 = vadd.f32 %v3326, %v3723
      %v3788 = vadd.f32 %v3327, %v3724
      %v3789 = vadd.f32 %v3328, %v3725
      %v3790 = vadd.f32 %v3329, %v3726
      %v3791 = vadd.f32 %v3330, %v3727
      %v3792 = vadd.f32 %v3331, %v3728
      %v3793 = vadd.f32 %v3332, %v3729
      %v3794 = vadd.f32 %v3333, %v3730
      %v3795 = vadd.f32 %v3334, %v3731
      %v3796 = vadd.f32 %v3335, %v3732
      %v3797 = vadd.f32 %v3336, %v3733
      %v3798 = vadd.f32 %v3337, %v3734
      %v3799 = vadd.f32 %v3338, %v3735
      %v3800 = vadd.f32 %v3339, %v3736
      %v3801 = vadd.f32 %v3340, %v3737
      %v3802 = vadd.f32 %v3341, %v3738
      %v3803 = vadd.f32 %v3342, %v3739
      %v3804 = vadd.f32 %v3343, %v3740
      %v3805 = vadd.f32 %v3344, %v3741
      %v3806 = vadd.f32 %v3345, %v3742
      %v3807 = vadd.f32 %v3346, %v3743
      %v3808 = vadd.f32 %v3347, %v3744
      %v3809 = vadd.f32 %v3348, %v3745
      %v3810 = vadd.f32 %v3349, %v3746
      %v3811 = vadd.f32 %v3350, %v3747
      %v3812 = vadd.f32 %v3351, %v3748
      %v3813 = vadd.f32 %v3352, %v3749
      %v3814 = vadd.f32 %v3353, %v3750
      %v3815 = vadd.f32 %v3354, %v3751
      %v3816 = vadd.f32 %v3355, %v3752
      %v3817 = vadd.f32 %v3356, %v3753
      %v3818 = vadd.f32 %v3357, %v3754
      %v3819 = vadd.f32 %v3358, %v3755
      %v3820 = vadd.f32 %v3359, %v3756
      %v3821 = vadd.f32 %v3360, %v3757
      %v3822 = vadd.f32 %v3361, %v3758
      %v3823 = vadd.f32 %v3362, %v3759
      %v3824 = vadd.f32 %v3363, %v3760
      %v3825 = vadd.f32 %v3364, %v3761
      %v3826 = vadd.f32 %v3365, %v3762
      %v3827 = vadd.f32 %v3366, %v3763
      %v3828 = vadd.f32 %v3367, %v3764
      %v3829 = vadd.f32 %v3368, %v3765
      %v3830 = vlaneseq
      %v3831 = vshrl.u32 %v3830, 7
      %v3832 = vsub.s32 1, %v3831
      %v3833 = vrot.slane %v598, %v3832
      %v3834 = vmul.f32 %v3634, %v3833
      %v3835 = vmul.f32 %v3635, %v3833
      %v3836 = vmul.f32 %v3636, %v3833
      %v3837 = vmul.f32 %v3637, %v3833
      %v3838 = vmul.f32 %v3638, %v3833
      %v3839 = vmul.f32 %v3639, %v3833
      %v3840 = vmul.f32 %v3640, %v3833
      %v3841 = vmul.f32 %v3641, %v3833
      %v3842 = vmul.f32 %v3642, %v3833
      %v3843 = vmul.f32 %v3643, %v3833
      %v3844 = vmul.f32 %v3644, %v3833
      %v3845 = vmul.f32 %v3645, %v3833
      %v3846 = vmul.f32 %v3646, %v3833
      %v3847 = vmul.f32 %v3647, %v3833
      %v3848 = vmul.f32 %v3648, %v3833
      %v3849 = vmul.f32 %v3649, %v3833
      %v3850 = vmul.f32 %v3650, %v3833
      %v3851 = vmul.f32 %v3651, %v3833
      %v3852 = vmul.f32 %v3652, %v3833
      %v3853 = vmul.f32 %v3653, %v3833
      %v3854 = vmul.f32 %v3654, %v3833
      %v3855 = vmul.f32 %v3655, %v3833
      %v3856 = vmul.f32 %v3656, %v3833
      %v3857 = vmul.f32 %v3657, %v3833
      %v3858 = vmul.f32 %v3658, %v3833
      %v3859 = vmul.f32 %v3659, %v3833
      %v3860 = vmul.f32 %v3660, %v3833
      %v3861 = vmul.f32 %v3661, %v3833
      %v3862 = vmul.f32 %v3662, %v3833
      %v3863 = vmul.f32 %v3663, %v3833
      %v3864 = vmul.f32 %v3664, %v3833
      %v3865 = vmul.f32 %v3665, %v3833
      %v3866 = vmul.f32 %v3666, %v3833
      %v3867 = vmul.f32 %v3667, %v3833
      %v3868 = vmul.f32 %v3668, %v3833
      %v3869 = vmul.f32 %v3669, %v3833
      %v3870 = vmul.f32 %v3670, %v3833
      %v3871 = vmul.f32 %v3671, %v3833
      %v3872 = vmul.f32 %v3672, %v3833
      %v3873 = vmul.f32 %v3673, %v3833
      %v3874 = vmul.f32 %v3674, %v3833
      %v3875 = vmul.f32 %v3675, %v3833
      %v3876 = vmul.f32 %v3676, %v3833
      %v3877 = vmul.f32 %v3677, %v3833
      %v3878 = vmul.f32 %v3678, %v3833
      %v3879 = vmul.f32 %v3679, %v3833
      %v3880 = vmul.f32 %v3680, %v3833
      %v3881 = vmul.f32 %v3681, %v3833
      %v3882 = vmul.f32 %v3682, %v3833
      %v3883 = vmul.f32 %v3683, %v3833
      %v3884 = vmul.f32 %v3684, %v3833
      %v3885 = vmul.f32 %v3685, %v3833
      %v3886 = vmul.f32 %v3686, %v3833
      %v3887 = vmul.f32 %v3687, %v3833
      %v3888 = vmul.f32 %v3688, %v3833
      %v3889 = vmul.f32 %v3689, %v3833
      %v3890 = vmul.f32 %v3690, %v3833
      %v3891 = vmul.f32 %v3691, %v3833
      %v3892 = vmul.f32 %v3692, %v3833
      %v3893 = vmul.f32 %v3693, %v3833
      %v3894 = vmul.f32 %v3694, %v3833
      %v3895 = vmul.f32 %v3695, %v3833
      %v3896 = vmul.f32 %v3696, %v3833
      %v3897 = vmul.f32 %v3697, %v3833
      %v3898 = vadd.f32 %v3437, %v3834
      %v3899 = vadd.f32 %v3438, %v3835
      %v3900 = vadd.f32 %v3439, %v3836
      %v3901 = vadd.f32 %v3440, %v3837
      %v3902 = vadd.f32 %v3441, %v3838
      %v3903 = vadd.f32 %v3442, %v3839
      %v3904 = vadd.f32 %v3443, %v3840
      %v3905 = vadd.f32 %v3444, %v3841
      %v3906 = vadd.f32 %v3445, %v3842
      %v3907 = vadd.f32 %v3446, %v3843
      %v3908 = vadd.f32 %v3447, %v3844
      %v3909 = vadd.f32 %v3448, %v3845
      %v3910 = vadd.f32 %v3449, %v3846
      %v3911 = vadd.f32 %v3450, %v3847
      %v3912 = vadd.f32 %v3451, %v3848
      %v3913 = vadd.f32 %v3452, %v3849
      %v3914 = vadd.f32 %v3453, %v3850
      %v3915 = vadd.f32 %v3454, %v3851
      %v3916 = vadd.f32 %v3455, %v3852
      %v3917 = vadd.f32 %v3456, %v3853
      %v3918 = vadd.f32 %v3457, %v3854
      %v3919 = vadd.f32 %v3458, %v3855
      %v3920 = vadd.f32 %v3459, %v3856
      %v3921 = vadd.f32 %v3460, %v3857
      %v3922 = vadd.f32 %v3461, %v3858
      %v3923 = vadd.f32 %v3462, %v3859
      %v3924 = vadd.f32 %v3463, %v3860
      %v3925 = vadd.f32 %v3464, %v3861
      %v3926 = vadd.f32 %v3465, %v3862
      %v3927 = vadd.f32 %v3466, %v3863
      %v3928 = vadd.f32 %v3467, %v3864
      %v3929 = vadd.f32 %v3468, %v3865
      %v3930 = vadd.f32 %v3469, %v3866
      %v3931 = vadd.f32 %v3470, %v3867
      %v3932 = vadd.f32 %v3471, %v3868
      %v3933 = vadd.f32 %v3472, %v3869
      %v3934 = vadd.f32 %v3473, %v3870
      %v3935 = vadd.f32 %v3474, %v3871
      %v3936 = vadd.f32 %v3475, %v3872
      %v3937 = vadd.f32 %v3476, %v3873
      %v3938 = vadd.f32 %v3477, %v3874
      %v3939 = vadd.f32 %v3478, %v3875
      %v3940 = vadd.f32 %v3479, %v3876
      %v3941 = vadd.f32 %v3480, %v3877
      %v3942 = vadd.f32 %v3481, %v3878
      %v3943 = vadd.f32 %v3482, %v3879
      %v3944 = vadd.f32 %v3483, %v3880
      %v3945 = vadd.f32 %v3484, %v3881
      %v3946 = vadd.f32 %v3485, %v3882
      %v3947 = vadd.f32 %v3486, %v3883
      %v3948 = vadd.f32 %v3487, %v3884
      %v3949 = vadd.f32 %v3488, %v3885
      %v3950 = vadd.f32 %v3489, %v3886
      %v3951 = vadd.f32 %v3490, %v3887
      %v3952 = vadd.f32 %v3491, %v3888
      %v3953 = vadd.f32 %v3492, %v3889
      %v3954 = vadd.f32 %v3493, %v3890
      %v3955 = vadd.f32 %v3494, %v3891
      %v3956 = vadd.f32 %v3495, %v3892
      %v3957 = vadd.f32 %v3496, %v3893
      %v3958 = vadd.f32 %v3497, %v3894
      %v3959 = vadd.f32 %v3498, %v3895
      %v3960 = vadd.f32 %v3499, %v3896
      %v3961 = vadd.f32 %v3500, %v3897
      %v3962 = vlaneseq
      %v3963 = vshrl.u32 %v3962, 7
      %v3964 = vsub.s32 2, %v3963
      %v3965 = vrot.slane %v598, %v3964
      %v3966 = vmul.f32 %v3634, %v3965
      %v3967 = vmul.f32 %v3635, %v3965
      %v3968 = vmul.f32 %v3636, %v3965
      %v3969 = vmul.f32 %v3637, %v3965
      %v3970 = vmul.f32 %v3638, %v3965
      %v3971 = vmul.f32 %v3639, %v3965
      %v3972 = vmul.f32 %v3640, %v3965
      %v3973 = vmul.f32 %v3641, %v3965
      %v3974 = vmul.f32 %v3642, %v3965
      %v3975 = vmul.f32 %v3643, %v3965
      %v3976 = vmul.f32 %v3644, %v3965
      %v3977 = vmul.f32 %v3645, %v3965
      %v3978 = vmul.f32 %v3646, %v3965
      %v3979 = vmul.f32 %v3647, %v3965
      %v3980 = vmul.f32 %v3648, %v3965
      %v3981 = vmul.f32 %v3649, %v3965
      %v3982 = vmul.f32 %v3650, %v3965
      %v3983 = vmul.f32 %v3651, %v3965
      %v3984 = vmul.f32 %v3652, %v3965
      %v3985 = vmul.f32 %v3653, %v3965
      %v3986 = vmul.f32 %v3654, %v3965
      %v3987 = vmul.f32 %v3655, %v3965
      %v3988 = vmul.f32 %v3656, %v3965
      %v3989 = vmul.f32 %v3657, %v3965
      %v3990 = vmul.f32 %v3658, %v3965
      %v3991 = vmul.f32 %v3659, %v3965
      %v3992 = vmul.f32 %v3660, %v3965
      %v3993 = vmul.f32 %v3661, %v3965
      %v3994 = vmul.f32 %v3662, %v3965
      %v3995 = vmul.f32 %v3663, %v3965
      %v3996 = vmul.f32 %v3664, %v3965
      %v3997 = vmul.f32 %v3665, %v3965
      %v3998 = vmul.f32 %v3666, %v3965
      %v3999 = vmul.f32 %v3667, %v3965
      %v4000 = vmul.f32 %v3668, %v3965
      %v4001 = vmul.f32 %v3669, %v3965
      %v4002 = vmul.f32 %v3670, %v3965
      %v4003 = vmul.f32 %v3671, %v3965
      %v4004 = vmul.f32 %v3672, %v3965
      %v4005 = vmul.f32 %v3673, %v3965
      %v4006 = vmul.f32 %v3674, %v3965
      %v4007 = vmul.f32 %v3675, %v3965
      %v4008 = vmul.f32 %v3676, %v3965
      %v4009 = vmul.f32 %v3677, %v3965
      %v4010 = vmul.f32 %v3678, %v3965
      %v4011 = vmul.f32 %v3679, %v3965
      %v4012 = vmul.f32 %v3680, %v3965
      %v4013 = vmul.f32 %v3681, %v3965
      %v4014 = vmul.f32 %v3682, %v3965
      %v4015 = vmul.f32 %v3683, %v3965
      %v4016 = vmul.f32 %v3684, %v3965
      %v4017 = vmul.f32 %v3685, %v3965
      %v4018 = vmul.f32 %v3686, %v3965
      %v4019 = vmul.f32 %v3687, %v3965
      %v4020 = vmul.f32 %v3688, %v3965
      %v4021 = vmul.f32 %v3689, %v3965
      %v4022 = vmul.f32 %v3690, %v3965
      %v4023 = vmul.f32 %v3691, %v3965
      %v4024 = vmul.f32 %v3692, %v3965
      %v4025 = vmul.f32 %v3693, %v3965
      %v4026 = vmul.f32 %v3694, %v3965
      %v4027 = vmul.f32 %v3695, %v3965
      %v4028 = vmul.f32 %v3696, %v3965
      %v4029 = vmul.f32 %v3697, %v3965
      %v4030 = vadd.f32 %v3569, %v3966
      %v4031 = vadd.f32 %v3570, %v3967
      %v4032 = vadd.f32 %v3571, %v3968
      %v4033 = vadd.f32 %v3572, %v3969
      %v4034 = vadd.f32 %v3573, %v3970
      %v4035 = vadd.f32 %v3574, %v3971
      %v4036 = vadd.f32 %v3575, %v3972
      %v4037 = vadd.f32 %v3576, %v3973
      %v4038 = vadd.f32 %v3577, %v3974
      %v4039 = vadd.f32 %v3578, %v3975
      %v4040 = vadd.f32 %v3579, %v3976
      %v4041 = vadd.f32 %v3580, %v3977
      %v4042 = vadd.f32 %v3581, %v3978
      %v4043 = vadd.f32 %v3582, %v3979
      %v4044 = vadd.f32 %v3583, %v3980
      %v4045 = vadd.f32 %v3584, %v3981
      %v4046 = vadd.f32 %v3585, %v3982
      %v4047 = vadd.f32 %v3586, %v3983
      %v4048 = vadd.f32 %v3587, %v3984
      %v4049 = vadd.f32 %v3588, %v3985
      %v4050 = vadd.f32 %v3589, %v3986
      %v4051 = vadd.f32 %v3590, %v3987
      %v4052 = vadd.f32 %v3591, %v3988
      %v4053 = vadd.f32 %v3592, %v3989
      %v4054 = vadd.f32 %v3593, %v3990
      %v4055 = vadd.f32 %v3594, %v3991
      %v4056 = vadd.f32 %v3595, %v3992
      %v4057 = vadd.f32 %v3596, %v3993
      %v4058 = vadd.f32 %v3597, %v3994
      %v4059 = vadd.f32 %v3598, %v3995
      %v4060 = vadd.f32 %v3599, %v3996
      %v4061 = vadd.f32 %v3600, %v3997
      %v4062 = vadd.f32 %v3601, %v3998
      %v4063 = vadd.f32 %v3602, %v3999
      %v4064 = vadd.f32 %v3603, %v4000
      %v4065 = vadd.f32 %v3604, %v4001
      %v4066 = vadd.f32 %v3605, %v4002
      %v4067 = vadd.f32 %v3606, %v4003
      %v4068 = vadd.f32 %v3607, %v4004
      %v4069 = vadd.f32 %v3608, %v4005
      %v4070 = vadd.f32 %v3609, %v4006
      %v4071 = vadd.f32 %v3610, %v4007
      %v4072 = vadd.f32 %v3611, %v4008
      %v4073 = vadd.f32 %v3612, %v4009
      %v4074 = vadd.f32 %v3613, %v4010
      %v4075 = vadd.f32 %v3614, %v4011
      %v4076 = vadd.f32 %v3615, %v4012
      %v4077 = vadd.f32 %v3616, %v4013
      %v4078 = vadd.f32 %v3617, %v4014
      %v4079 = vadd.f32 %v3618, %v4015
      %v4080 = vadd.f32 %v3619, %v4016
      %v4081 = vadd.f32 %v3620, %v4017
      %v4082 = vadd.f32 %v3621, %v4018
      %v4083 = vadd.f32 %v3622, %v4019
      %v4084 = vadd.f32 %v3623, %v4020
      %v4085 = vadd.f32 %v3624, %v4021
      %v4086 = vadd.f32 %v3625, %v4022
      %v4087 = vadd.f32 %v3626, %v4023
      %v4088 = vadd.f32 %v3627, %v4024
      %v4089 = vadd.f32 %v3628, %v4025
      %v4090 = vadd.f32 %v3629, %v4026
      %v4091 = vadd.f32 %v3630, %v4027
      %v4092 = vadd.f32 %v3631, %v4028
      %v4093 = vadd.f32 %v3632, %v4029
      %s4094 = scalar_lea.vmem [#allocation2], 176
      %v4095 = vld [vmem:[%s4094] sm:$0xff]
      %v4096 = vld [vmem:[%s4094 + $0x8] sm:$0xff]
      %v4097 = vld [vmem:[%s4094 + $0x10] sm:$0xff]
      %v4098 = vld [vmem:[%s4094 + $0x18] sm:$0xff]
      %v4099 = vld [vmem:[%s4094 + $0x20] sm:$0xff]
      %v4100 = vld [vmem:[%s4094 + $0x28] sm:$0xff]
      %v4101 = vld [vmem:[%s4094 + $0x30] sm:$0xff]
      %v4102 = vld [vmem:[%s4094 + $0x38] sm:$0xff]
      %v4103 = vld [vmem:[%s4094 + $0x50] sm:$0xff]
      %v4104 = vld [vmem:[%s4094 + $0x58] sm:$0xff]
      %v4105 = vld [vmem:[%s4094 + $0x60] sm:$0xff]
      %v4106 = vld [vmem:[%s4094 + $0x68] sm:$0xff]
      %v4107 = vld [vmem:[%s4094 + $0x70] sm:$0xff]
      %v4108 = vld [vmem:[%s4094 + $0x78] sm:$0xff]
      %v4109 = vld [vmem:[%s4094 + $0x80] sm:$0xff]
      %v4110 = vld [vmem:[%s4094 + $0x88] sm:$0xff]
      %v4111 = vld [vmem:[%s4094 + $0xa0] sm:$0xff]
      %v4112 = vld [vmem:[%s4094 + $0xa8] sm:$0xff]
      %v4113 = vld [vmem:[%s4094 + $0xb0] sm:$0xff]
      %v4114 = vld [vmem:[%s4094 + $0xb8] sm:$0xff]
      %v4115 = vld [vmem:[%s4094 + $0xc0] sm:$0xff]
      %v4116 = vld [vmem:[%s4094 + $0xc8] sm:$0xff]
      %v4117 = vld [vmem:[%s4094 + $0xd0] sm:$0xff]
      %v4118 = vld [vmem:[%s4094 + $0xd8] sm:$0xff]
      %v4119 = vld [vmem:[%s4094 + $0xf0] sm:$0xff]
      %v4120 = vld [vmem:[%s4094 + $0xf8] sm:$0xff]
      %v4121 = vld [vmem:[%s4094 + $0x100] sm:$0xff]
      %v4122 = vld [vmem:[%s4094 + $0x108] sm:$0xff]
      %v4123 = vld [vmem:[%s4094 + $0x110] sm:$0xff]
      %v4124 = vld [vmem:[%s4094 + $0x118] sm:$0xff]
      %v4125 = vld [vmem:[%s4094 + $0x120] sm:$0xff]
      %v4126 = vld [vmem:[%s4094 + $0x128] sm:$0xff]
      %v4127 = vld [vmem:[%s4094 + $0x140] sm:$0xff]
      %v4128 = vld [vmem:[%s4094 + $0x148] sm:$0xff]
      %v4129 = vld [vmem:[%s4094 + $0x150] sm:$0xff]
      %v4130 = vld [vmem:[%s4094 + $0x158] sm:$0xff]
      %v4131 = vld [vmem:[%s4094 + $0x160] sm:$0xff]
      %v4132 = vld [vmem:[%s4094 + $0x168] sm:$0xff]
      %v4133 = vld [vmem:[%s4094 + $0x170] sm:$0xff]
      %v4134 = vld [vmem:[%s4094 + $0x178] sm:$0xff]
      %v4135 = vld [vmem:[%s4094 + $0x190] sm:$0xff]
      %v4136 = vld [vmem:[%s4094 + $0x198] sm:$0xff]
      %v4137 = vld [vmem:[%s4094 + $0x1a0] sm:$0xff]
      %v4138 = vld [vmem:[%s4094 + $0x1a8] sm:$0xff]
      %v4139 = vld [vmem:[%s4094 + $0x1b0] sm:$0xff]
      %v4140 = vld [vmem:[%s4094 + $0x1b8] sm:$0xff]
      %v4141 = vld [vmem:[%s4094 + $0x1c0] sm:$0xff]
      %v4142 = vld [vmem:[%s4094 + $0x1c8] sm:$0xff]
      %v4143 = vld [vmem:[%s4094 + $0x1e0] sm:$0xff]
      %v4144 = vld [vmem:[%s4094 + $0x1e8] sm:$0xff]
      %v4145 = vld [vmem:[%s4094 + $0x1f0] sm:$0xff]
      %v4146 = vld [vmem:[%s4094 + $0x1f8] sm:$0xff]
      %v4147 = vld [vmem:[%s4094 + $0x200] sm:$0xff]
      %v4148 = vld [vmem:[%s4094 + $0x208] sm:$0xff]
      %v4149 = vld [vmem:[%s4094 + $0x210] sm:$0xff]
      %v4150 = vld [vmem:[%s4094 + $0x218] sm:$0xff]
      %v4151 = vld [vmem:[%s4094 + $0x230] sm:$0xff]
      %v4152 = vld [vmem:[%s4094 + $0x238] sm:$0xff]
      %v4153 = vld [vmem:[%s4094 + $0x240] sm:$0xff]
      %v4154 = vld [vmem:[%s4094 + $0x248] sm:$0xff]
      %v4155 = vld [vmem:[%s4094 + $0x250] sm:$0xff]
      %v4156 = vld [vmem:[%s4094 + $0x258] sm:$0xff]
      %v4157 = vld [vmem:[%s4094 + $0x260] sm:$0xff]
      %v4158 = vld [vmem:[%s4094 + $0x268] sm:$0xff]
      %v4159 = vlaneseq
      %v4160 = vshrl.u32 %v4159, 7
      %v4161 = vsub.s32 0, %v4160
      %v4162 = vrot.slane %v599, %v4161
      %v4163 = vmul.f32 %v4095, %v4162
      %v4164 = vmul.f32 %v4096, %v4162
      %v4165 = vmul.f32 %v4097, %v4162
      %v4166 = vmul.f32 %v4098, %v4162
      %v4167 = vmul.f32 %v4099, %v4162
      %v4168 = vmul.f32 %v4100, %v4162
      %v4169 = vmul.f32 %v4101, %v4162
      %v4170 = vmul.f32 %v4102, %v4162
      %v4171 = vmul.f32 %v4103, %v4162
      %v4172 = vmul.f32 %v4104, %v4162
      %v4173 = vmul.f32 %v4105, %v4162
      %v4174 = vmul.f32 %v4106, %v4162
      %v4175 = vmul.f32 %v4107, %v4162
      %v4176 = vmul.f32 %v4108, %v4162
      %v4177 = vmul.f32 %v4109, %v4162
      %v4178 = vmul.f32 %v4110, %v4162
      %v4179 = vmul.f32 %v4111, %v4162
      %v4180 = vmul.f32 %v4112, %v4162
      %v4181 = vmul.f32 %v4113, %v4162
      %v4182 = vmul.f32 %v4114, %v4162
      %v4183 = vmul.f32 %v4115, %v4162
      %v4184 = vmul.f32 %v4116, %v4162
      %v4185 = vmul.f32 %v4117, %v4162
      %v4186 = vmul.f32 %v4118, %v4162
      %v4187 = vmul.f32 %v4119, %v4162
      %v4188 = vmul.f32 %v4120, %v4162
      %v4189 = vmul.f32 %v4121, %v4162
      %v4190 = vmul.f32 %v4122, %v4162
      %v4191 = vmul.f32 %v4123, %v4162
      %v4192 = vmul.f32 %v4124, %v4162
      %v4193 = vmul.f32 %v4125, %v4162
      %v4194 = vmul.f32 %v4126, %v4162
      %v4195 = vmul.f32 %v4127, %v4162
      %v4196 = vmul.f32 %v4128, %v4162
      %v4197 = vmul.f32 %v4129, %v4162
      %v4198 = vmul.f32 %v4130, %v4162
      %v4199 = vmul.f32 %v4131, %v4162
      %v4200 = vmul.f32 %v4132, %v4162
      %v4201 = vmul.f32 %v4133, %v4162
      %v4202 = vmul.f32 %v4134, %v4162
      %v4203 = vmul.f32 %v4135, %v4162
      %v4204 = vmul.f32 %v4136, %v4162
      %v4205 = vmul.f32 %v4137, %v4162
      %v4206 = vmul.f32 %v4138, %v4162
      %v4207 = vmul.f32 %v4139, %v4162
      %v4208 = vmul.f32 %v4140, %v4162
      %v4209 = vmul.f32 %v4141, %v4162
      %v4210 = vmul.f32 %v4142, %v4162
      %v4211 = vmul.f32 %v4143, %v4162
      %v4212 = vmul.f32 %v4144, %v4162
      %v4213 = vmul.f32 %v4145, %v4162
      %v4214 = vmul.f32 %v4146, %v4162
      %v4215 = vmul.f32 %v4147, %v4162
      %v4216 = vmul.f32 %v4148, %v4162
      %v4217 = vmul.f32 %v4149, %v4162
      %v4218 = vmul.f32 %v4150, %v4162
      %v4219 = vmul.f32 %v4151, %v4162
      %v4220 = vmul.f32 %v4152, %v4162
      %v4221 = vmul.f32 %v4153, %v4162
      %v4222 = vmul.f32 %v4154, %v4162
      %v4223 = vmul.f32 %v4155, %v4162
      %v4224 = vmul.f32 %v4156, %v4162
      %v4225 = vmul.f32 %v4157, %v4162
      %v4226 = vmul.f32 %v4158, %v4162
      %v4227 = vadd.f32 %v3766, %v4163
      %v4228 = vadd.f32 %v3767, %v4164
      %v4229 = vadd.f32 %v3768, %v4165
      %v4230 = vadd.f32 %v3769, %v4166
      %v4231 = vadd.f32 %v3770, %v4167
      %v4232 = vadd.f32 %v3771, %v4168
      %v4233 = vadd.f32 %v3772, %v4169
      %v4234 = vadd.f32 %v3773, %v4170
      %v4235 = vadd.f32 %v3774, %v4171
      %v4236 = vadd.f32 %v3775, %v4172
      %v4237 = vadd.f32 %v3776, %v4173
      %v4238 = vadd.f32 %v3777, %v4174
      %v4239 = vadd.f32 %v3778, %v4175
      %v4240 = vadd.f32 %v3779, %v4176
      %v4241 = vadd.f32 %v3780, %v4177
      %v4242 = vadd.f32 %v3781, %v4178
      %v4243 = vadd.f32 %v3782, %v4179
      %v4244 = vadd.f32 %v3783, %v4180
      %v4245 = vadd.f32 %v3784, %v4181
      %v4246 = vadd.f32 %v3785, %v4182
      %v4247 = vadd.f32 %v3786, %v4183
      %v4248 = vadd.f32 %v3787, %v4184
      %v4249 = vadd.f32 %v3788, %v4185
      %v4250 = vadd.f32 %v3789, %v4186
      %v4251 = vadd.f32 %v3790, %v4187
      %v4252 = vadd.f32 %v3791, %v4188
      %v4253 = vadd.f32 %v3792, %v4189
      %v4254 = vadd.f32 %v3793, %v4190
      %v4255 = vadd.f32 %v3794, %v4191
      %v4256 = vadd.f32 %v3795, %v4192
      %v4257 = vadd.f32 %v3796, %v4193
      %v4258 = vadd.f32 %v3797, %v4194
      %v4259 = vadd.f32 %v3798, %v4195
      %v4260 = vadd.f32 %v3799, %v4196
      %v4261 = vadd.f32 %v3800, %v4197
      %v4262 = vadd.f32 %v3801, %v4198
      %v4263 = vadd.f32 %v3802, %v4199
      %v4264 = vadd.f32 %v3803, %v4200
      %v4265 = vadd.f32 %v3804, %v4201
      %v4266 = vadd.f32 %v3805, %v4202
      %v4267 = vadd.f32 %v3806, %v4203
      %v4268 = vadd.f32 %v3807, %v4204
      %v4269 = vadd.f32 %v3808, %v4205
      %v4270 = vadd.f32 %v3809, %v4206
      %v4271 = vadd.f32 %v3810, %v4207
      %v4272 = vadd.f32 %v3811, %v4208
      %v4273 = vadd.f32 %v3812, %v4209
      %v4274 = vadd.f32 %v3813, %v4210
      %v4275 = vadd.f32 %v3814, %v4211
      %v4276 = vadd.f32 %v3815, %v4212
      %v4277 = vadd.f32 %v3816, %v4213
      %v4278 = vadd.f32 %v3817, %v4214
      %v4279 = vadd.f32 %v3818, %v4215
      %v4280 = vadd.f32 %v3819, %v4216
      %v4281 = vadd.f32 %v3820, %v4217
      %v4282 = vadd.f32 %v3821, %v4218
      %v4283 = vadd.f32 %v3822, %v4219
      %v4284 = vadd.f32 %v3823, %v4220
      %v4285 = vadd.f32 %v3824, %v4221
      %v4286 = vadd.f32 %v3825, %v4222
      %v4287 = vadd.f32 %v3826, %v4223
      %v4288 = vadd.f32 %v3827, %v4224
      %v4289 = vadd.f32 %v3828, %v4225
      %v4290 = vadd.f32 %v3829, %v4226
      %v4291 = vlaneseq
      %v4292 = vshrl.u32 %v4291, 7
      %v4293 = vsub.s32 1, %v4292
      %v4294 = vrot.slane %v599, %v4293
      %v4295 = vmul.f32 %v4095, %v4294
      %v4296 = vmul.f32 %v4096, %v4294
      %v4297 = vmul.f32 %v4097, %v4294
      %v4298 = vmul.f32 %v4098, %v4294
      %v4299 = vmul.f32 %v4099, %v4294
      %v4300 = vmul.f32 %v4100, %v4294
      %v4301 = vmul.f32 %v4101, %v4294
      %v4302 = vmul.f32 %v4102, %v4294
      %v4303 = vmul.f32 %v4103, %v4294
      %v4304 = vmul.f32 %v4104, %v4294
      %v4305 = vmul.f32 %v4105, %v4294
      %v4306 = vmul.f32 %v4106, %v4294
      %v4307 = vmul.f32 %v4107, %v4294
      %v4308 = vmul.f32 %v4108, %v4294
      %v4309 = vmul.f32 %v4109, %v4294
      %v4310 = vmul.f32 %v4110, %v4294
      %v4311 = vmul.f32 %v4111, %v4294
      %v4312 = vmul.f32 %v4112, %v4294
      %v4313 = vmul.f32 %v4113, %v4294
      %v4314 = vmul.f32 %v4114, %v4294
      %v4315 = vmul.f32 %v4115, %v4294
      %v4316 = vmul.f32 %v4116, %v4294
      %v4317 = vmul.f32 %v4117, %v4294
      %v4318 = vmul.f32 %v4118, %v4294
      %v4319 = vmul.f32 %v4119, %v4294
      %v4320 = vmul.f32 %v4120, %v4294
      %v4321 = vmul.f32 %v4121, %v4294
      %v4322 = vmul.f32 %v4122, %v4294
      %v4323 = vmul.f32 %v4123, %v4294
      %v4324 = vmul.f32 %v4124, %v4294
      %v4325 = vmul.f32 %v4125, %v4294
      %v4326 = vmul.f32 %v4126, %v4294
      %v4327 = vmul.f32 %v4127, %v4294
      %v4328 = vmul.f32 %v4128, %v4294
      %v4329 = vmul.f32 %v4129, %v4294
      %v4330 = vmul.f32 %v4130, %v4294
      %v4331 = vmul.f32 %v4131, %v4294
      %v4332 = vmul.f32 %v4132, %v4294
      %v4333 = vmul.f32 %v4133, %v4294
      %v4334 = vmul.f32 %v4134, %v4294
      %v4335 = vmul.f32 %v4135, %v4294
      %v4336 = vmul.f32 %v4136, %v4294
      %v4337 = vmul.f32 %v4137, %v4294
      %v4338 = vmul.f32 %v4138, %v4294
      %v4339 = vmul.f32 %v4139, %v4294
      %v4340 = vmul.f32 %v4140, %v4294
      %v4341 = vmul.f32 %v4141, %v4294
      %v4342 = vmul.f32 %v4142, %v4294
      %v4343 = vmul.f32 %v4143, %v4294
      %v4344 = vmul.f32 %v4144, %v4294
      %v4345 = vmul.f32 %v4145, %v4294
      %v4346 = vmul.f32 %v4146, %v4294
      %v4347 = vmul.f32 %v4147, %v4294
      %v4348 = vmul.f32 %v4148, %v4294
      %v4349 = vmul.f32 %v4149, %v4294
      %v4350 = vmul.f32 %v4150, %v4294
      %v4351 = vmul.f32 %v4151, %v4294
      %v4352 = vmul.f32 %v4152, %v4294
      %v4353 = vmul.f32 %v4153, %v4294
      %v4354 = vmul.f32 %v4154, %v4294
      %v4355 = vmul.f32 %v4155, %v4294
      %v4356 = vmul.f32 %v4156, %v4294
      %v4357 = vmul.f32 %v4157, %v4294
      %v4358 = vmul.f32 %v4158, %v4294
      %v4359 = vadd.f32 %v3898, %v4295
      %v4360 = vadd.f32 %v3899, %v4296
      %v4361 = vadd.f32 %v3900, %v4297
      %v4362 = vadd.f32 %v3901, %v4298
      %v4363 = vadd.f32 %v3902, %v4299
      %v4364 = vadd.f32 %v3903, %v4300
      %v4365 = vadd.f32 %v3904, %v4301
      %v4366 = vadd.f32 %v3905, %v4302
      %v4367 = vadd.f32 %v3906, %v4303
      %v4368 = vadd.f32 %v3907, %v4304
      %v4369 = vadd.f32 %v3908, %v4305
      %v4370 = vadd.f32 %v3909, %v4306
      %v4371 = vadd.f32 %v3910, %v4307
      %v4372 = vadd.f32 %v3911, %v4308
      %v4373 = vadd.f32 %v3912, %v4309
      %v4374 = vadd.f32 %v3913, %v4310
      %v4375 = vadd.f32 %v3914, %v4311
      %v4376 = vadd.f32 %v3915, %v4312
      %v4377 = vadd.f32 %v3916, %v4313
      %v4378 = vadd.f32 %v3917, %v4314
      %v4379 = vadd.f32 %v3918, %v4315
      %v4380 = vadd.f32 %v3919, %v4316
      %v4381 = vadd.f32 %v3920, %v4317
      %v4382 = vadd.f32 %v3921, %v4318
      %v4383 = vadd.f32 %v3922, %v4319
      %v4384 = vadd.f32 %v3923, %v4320
      %v4385 = vadd.f32 %v3924, %v4321
      %v4386 = vadd.f32 %v3925, %v4322
      %v4387 = vadd.f32 %v3926, %v4323
      %v4388 = vadd.f32 %v3927, %v4324
      %v4389 = vadd.f32 %v3928, %v4325
      %v4390 = vadd.f32 %v3929, %v4326
      %v4391 = vadd.f32 %v3930, %v4327
      %v4392 = vadd.f32 %v3931, %v4328
      %v4393 = vadd.f32 %v3932, %v4329
      %v4394 = vadd.f32 %v3933, %v4330
      %v4395 = vadd.f32 %v3934, %v4331
      %v4396 = vadd.f32 %v3935, %v4332
      %v4397 = vadd.f32 %v3936, %v4333
      %v4398 = vadd.f32 %v3937, %v4334
      %v4399 = vadd.f32 %v3938, %v4335
      %v4400 = vadd.f32 %v3939, %v4336
      %v4401 = vadd.f32 %v3940, %v4337
      %v4402 = vadd.f32 %v3941, %v4338
      %v4403 = vadd.f32 %v3942, %v4339
      %v4404 = vadd.f32 %v3943, %v4340
      %v4405 = vadd.f32 %v3944, %v4341
      %v4406 = vadd.f32 %v3945, %v4342
      %v4407 = vadd.f32 %v3946, %v4343
      %v4408 = vadd.f32 %v3947, %v4344
      %v4409 = vadd.f32 %v3948, %v4345
      %v4410 = vadd.f32 %v3949, %v4346
      %v4411 = vadd.f32 %v3950, %v4347
      %v4412 = vadd.f32 %v3951, %v4348
      %v4413 = vadd.f32 %v3952, %v4349
      %v4414 = vadd.f32 %v3953, %v4350
      %v4415 = vadd.f32 %v3954, %v4351
      %v4416 = vadd.f32 %v3955, %v4352
      %v4417 = vadd.f32 %v3956, %v4353
      %v4418 = vadd.f32 %v3957, %v4354
      %v4419 = vadd.f32 %v3958, %v4355
      %v4420 = vadd.f32 %v3959, %v4356
      %v4421 = vadd.f32 %v3960, %v4357
      %v4422 = vadd.f32 %v3961, %v4358
      %v4423 = vlaneseq
      %v4424 = vshrl.u32 %v4423, 7
      %v4425 = vsub.s32 2, %v4424
      %v4426 = vrot.slane %v599, %v4425
      %v4427 = vmul.f32 %v4095, %v4426
      %v4428 = vmul.f32 %v4096, %v4426
      %v4429 = vmul.f32 %v4097, %v4426
      %v4430 = vmul.f32 %v4098, %v4426
      %v4431 = vmul.f32 %v4099, %v4426
      %v4432 = vmul.f32 %v4100, %v4426
      %v4433 = vmul.f32 %v4101, %v4426
      %v4434 = vmul.f32 %v4102, %v4426
      %v4435 = vmul.f32 %v4103, %v4426
      %v4436 = vmul.f32 %v4104, %v4426
      %v4437 = vmul.f32 %v4105, %v4426
      %v4438 = vmul.f32 %v4106, %v4426
      %v4439 = vmul.f32 %v4107, %v4426
      %v4440 = vmul.f32 %v4108, %v4426
      %v4441 = vmul.f32 %v4109, %v4426
      %v4442 = vmul.f32 %v4110, %v4426
      %v4443 = vmul.f32 %v4111, %v4426
      %v4444 = vmul.f32 %v4112, %v4426
      %v4445 = vmul.f32 %v4113, %v4426
      %v4446 = vmul.f32 %v4114, %v4426
      %v4447 = vmul.f32 %v4115, %v4426
      %v4448 = vmul.f32 %v4116, %v4426
      %v4449 = vmul.f32 %v4117, %v4426
      %v4450 = vmul.f32 %v4118, %v4426
      %v4451 = vmul.f32 %v4119, %v4426
      %v4452 = vmul.f32 %v4120, %v4426
      %v4453 = vmul.f32 %v4121, %v4426
      %v4454 = vmul.f32 %v4122, %v4426
      %v4455 = vmul.f32 %v4123, %v4426
      %v4456 = vmul.f32 %v4124, %v4426
      %v4457 = vmul.f32 %v4125, %v4426
      %v4458 = vmul.f32 %v4126, %v4426
      %v4459 = vmul.f32 %v4127, %v4426
      %v4460 = vmul.f32 %v4128, %v4426
      %v4461 = vmul.f32 %v4129, %v4426
      %v4462 = vmul.f32 %v4130, %v4426
      %v4463 = vmul.f32 %v4131, %v4426
      %v4464 = vmul.f32 %v4132, %v4426
      %v4465 = vmul.f32 %v4133, %v4426
      %v4466 = vmul.f32 %v4134, %v4426
      %v4467 = vmul.f32 %v4135, %v4426
      %v4468 = vmul.f32 %v4136, %v4426
      %v4469 = vmul.f32 %v4137, %v4426
      %v4470 = vmul.f32 %v4138, %v4426
      %v4471 = vmul.f32 %v4139, %v4426
      %v4472 = vmul.f32 %v4140, %v4426
      %v4473 = vmul.f32 %v4141, %v4426
      %v4474 = vmul.f32 %v4142, %v4426
      %v4475 = vmul.f32 %v4143, %v4426
      %v4476 = vmul.f32 %v4144, %v4426
      %v4477 = vmul.f32 %v4145, %v4426
      %v4478 = vmul.f32 %v4146, %v4426
      %v4479 = vmul.f32 %v4147, %v4426
      %v4480 = vmul.f32 %v4148, %v4426
      %v4481 = vmul.f32 %v4149, %v4426
      %v4482 = vmul.f32 %v4150, %v4426
      %v4483 = vmul.f32 %v4151, %v4426
      %v4484 = vmul.f32 %v4152, %v4426
      %v4485 = vmul.f32 %v4153, %v4426
      %v4486 = vmul.f32 %v4154, %v4426
      %v4487 = vmul.f32 %v4155, %v4426
      %v4488 = vmul.f32 %v4156, %v4426
      %v4489 = vmul.f32 %v4157, %v4426
      %v4490 = vmul.f32 %v4158, %v4426
      %v4491 = vadd.f32 %v4030, %v4427
      %v4492 = vadd.f32 %v4031, %v4428
      %v4493 = vadd.f32 %v4032, %v4429
      %v4494 = vadd.f32 %v4033, %v4430
      %v4495 = vadd.f32 %v4034, %v4431
      %v4496 = vadd.f32 %v4035, %v4432
      %v4497 = vadd.f32 %v4036, %v4433
      %v4498 = vadd.f32 %v4037, %v4434
      %v4499 = vadd.f32 %v4038, %v4435
      %v4500 = vadd.f32 %v4039, %v4436
      %v4501 = vadd.f32 %v4040, %v4437
      %v4502 = vadd.f32 %v4041, %v4438
      %v4503 = vadd.f32 %v4042, %v4439
      %v4504 = vadd.f32 %v4043, %v4440
      %v4505 = vadd.f32 %v4044, %v4441
      %v4506 = vadd.f32 %v4045, %v4442
      %v4507 = vadd.f32 %v4046, %v4443
      %v4508 = vadd.f32 %v4047, %v4444
      %v4509 = vadd.f32 %v4048, %v4445
      %v4510 = vadd.f32 %v4049, %v4446
      %v4511 = vadd.f32 %v4050, %v4447
      %v4512 = vadd.f32 %v4051, %v4448
      %v4513 = vadd.f32 %v4052, %v4449
      %v4514 = vadd.f32 %v4053, %v4450
      %v4515 = vadd.f32 %v4054, %v4451
      %v4516 = vadd.f32 %v4055, %v4452
      %v4517 = vadd.f32 %v4056, %v4453
      %v4518 = vadd.f32 %v4057, %v4454
      %v4519 = vadd.f32 %v4058, %v4455
      %v4520 = vadd.f32 %v4059, %v4456
      %v4521 = vadd.f32 %v4060, %v4457
      %v4522 = vadd.f32 %v4061, %v4458
      %v4523 = vadd.f32 %v4062, %v4459
      %v4524 = vadd.f32 %v4063, %v4460
      %v4525 = vadd.f32 %v4064, %v4461
      %v4526 = vadd.f32 %v4065, %v4462
      %v4527 = vadd.f32 %v4066, %v4463
      %v4528 = vadd.f32 %v4067, %v4464
      %v4529 = vadd.f32 %v4068, %v4465
      %v4530 = vadd.f32 %v4069, %v4466
      %v4531 = vadd.f32 %v4070, %v4467
      %v4532 = vadd.f32 %v4071, %v4468
      %v4533 = vadd.f32 %v4072, %v4469
      %v4534 = vadd.f32 %v4073, %v4470
      %v4535 = vadd.f32 %v4074, %v4471
      %v4536 = vadd.f32 %v4075, %v4472
      %v4537 = vadd.f32 %v4076, %v4473
      %v4538 = vadd.f32 %v4077, %v4474
      %v4539 = vadd.f32 %v4078, %v4475
      %v4540 = vadd.f32 %v4079, %v4476
      %v4541 = vadd.f32 %v4080, %v4477
      %v4542 = vadd.f32 %v4081, %v4478
      %v4543 = vadd.f32 %v4082, %v4479
      %v4544 = vadd.f32 %v4083, %v4480
      %v4545 = vadd.f32 %v4084, %v4481
      %v4546 = vadd.f32 %v4085, %v4482
      %v4547 = vadd.f32 %v4086, %v4483
      %v4548 = vadd.f32 %v4087, %v4484
      %v4549 = vadd.f32 %v4088, %v4485
      %v4550 = vadd.f32 %v4089, %v4486
      %v4551 = vadd.f32 %v4090, %v4487
      %v4552 = vadd.f32 %v4091, %v4488
      %v4553 = vadd.f32 %v4092, %v4489
      %v4554 = vadd.f32 %v4093, %v4490
      %v4619 = vrot.slane %v4227, 7
      %v4620 = vrot.slane %v4228, 7
      %v4621 = vrot.slane %v4229, 7
      %v4622 = vrot.slane %v4230, 7
      %v4623 = vrot.slane %v4231, 7
      %v4624 = vrot.slane %v4232, 7
      %v4625 = vrot.slane %v4233, 7
      %v4626 = vrot.slane %v4234, 7
      %v4627 = vrot.slane %v4235, 7
      %v4628 = vrot.slane %v4236, 7
      %v4629 = vrot.slane %v4237, 7
      %v4630 = vrot.slane %v4238, 7
      %v4631 = vrot.slane %v4239, 7
      %v4632 = vrot.slane %v4240, 7
      %v4633 = vrot.slane %v4241, 7
      %v4634 = vrot.slane %v4242, 7
      %v4635 = vrot.slane %v4243, 7
      %v4636 = vrot.slane %v4244, 7
      %v4637 = vrot.slane %v4245, 7
      %v4638 = vrot.slane %v4246, 7
      %v4639 = vrot.slane %v4247, 7
      %v4640 = vrot.slane %v4248, 7
      %v4641 = vrot.slane %v4249, 7
      %v4642 = vrot.slane %v4250, 7
      %v4643 = vrot.slane %v4251, 7
      %v4644 = vrot.slane %v4252, 7
      %v4645 = vrot.slane %v4253, 7
      %v4646 = vrot.slane %v4254, 7
      %v4647 = vrot.slane %v4255, 7
      %v4648 = vrot.slane %v4256, 7
      %v4649 = vrot.slane %v4257, 7
      %v4650 = vrot.slane %v4258, 7
      %v4651 = vrot.slane %v4259, 7
      %v4652 = vrot.slane %v4260, 7
      %v4653 = vrot.slane %v4261, 7
      %v4654 = vrot.slane %v4262, 7
      %v4655 = vrot.slane %v4263, 7
      %v4656 = vrot.slane %v4264, 7
      %v4657 = vrot.slane %v4265, 7
      %v4658 = vrot.slane %v4266, 7
      %v4659 = vrot.slane %v4267, 7
      %v4660 = vrot.slane %v4268, 7
      %v4661 = vrot.slane %v4269, 7
      %v4662 = vrot.slane %v4270, 7
      %v4663 = vrot.slane %v4271, 7
      %v4664 = vrot.slane %v4272, 7
      %v4665 = vrot.slane %v4273, 7
      %v4666 = vrot.slane %v4274, 7
      %v4667 = vrot.slane %v4275, 7
      %v4668 = vrot.slane %v4276, 7
      %v4669 = vrot.slane %v4277, 7
      %v4670 = vrot.slane %v4278, 7
      %v4671 = vrot.slane %v4279, 7
      %v4672 = vrot.slane %v4280, 7
      %v4673 = vrot.slane %v4281, 7
      %v4674 = vrot.slane %v4282, 7
      %v4675 = vrot.slane %v4283, 7
      %v4676 = vrot.slane %v4284, 7
      %v4677 = vrot.slane %v4285, 7
      %v4678 = vrot.slane %v4286, 7
      %v4679 = vrot.slane %v4287, 7
      %v4680 = vrot.slane %v4288, 7
      %v4681 = vrot.slane %v4289, 7
      %v4682 = vrot.slane %v4290, 7
      %vm4747 = vcmask 1040384
      %v4748 = vsel %vm4747, 0.0, %v4619
      %v4749 = vsel %vm4747, 0.0, %v4620
      %v4750 = vsel %vm4747, 0.0, %v4621
      %v4751 = vsel %vm4747, 0.0, %v4622
      %v4752 = vsel %vm4747, 0.0, %v4623
      %v4753 = vsel %vm4747, 0.0, %v4624
      %v4754 = vsel %vm4747, 0.0, %v4625
      %v4755 = vsel %vm4747, 0.0, %v4626
      %v4756 = vsel %vm4747, 0.0, %v4627
      %v4757 = vsel %vm4747, 0.0, %v4628
      %v4758 = vsel %vm4747, 0.0, %v4629
      %v4759 = vsel %vm4747, 0.0, %v4630
      %v4760 = vsel %vm4747, 0.0, %v4631
      %v4761 = vsel %vm4747, 0.0, %v4632
      %v4762 = vsel %vm4747, 0.0, %v4633
      %v4763 = vsel %vm4747, 0.0, %v4634
      %v4764 = vsel %vm4747, 0.0, %v4635
      %v4765 = vsel %vm4747, 0.0, %v4636
      %v4766 = vsel %vm4747, 0.0, %v4637
      %v4767 = vsel %vm4747, 0.0, %v4638
      %v4768 = vsel %vm4747, 0.0, %v4639
      %v4769 = vsel %vm4747, 0.0, %v4640
      %v4770 = vsel %vm4747, 0.0, %v4641
      %v4771 = vsel %vm4747, 0.0, %v4642
      %v4772 = vsel %vm4747, 0.0, %v4643
      %v4773 = vsel %vm4747, 0.0, %v4644
      %v4774 = vsel %vm4747, 0.0, %v4645
      %v4775 = vsel %vm4747, 0.0, %v4646
      %v4776 = vsel %vm4747, 0.0, %v4647
      %v4777 = vsel %vm4747, 0.0, %v4648
      %v4778 = vsel %vm4747, 0.0, %v4649
      %v4779 = vsel %vm4747, 0.0, %v4650
      %v4780 = vsel %vm4747, 0.0, %v4651
      %v4781 = vsel %vm4747, 0.0, %v4652
      %v4782 = vsel %vm4747, 0.0, %v4653
      %v4783 = vsel %vm4747, 0.0, %v4654
      %v4784 = vsel %vm4747, 0.0, %v4655
      %v4785 = vsel %vm4747, 0.0, %v4656
      %v4786 = vsel %vm4747, 0.0, %v4657
      %v4787 = vsel %vm4747, 0.0, %v4658
      %v4788 = vsel %vm4747, 0.0, %v4659
      %v4789 = vsel %vm4747, 0.0, %v4660
      %v4790 = vsel %vm4747, 0.0, %v4661
      %v4791 = vsel %vm4747, 0.0, %v4662
      %v4792 = vsel %vm4747, 0.0, %v4663
      %v4793 = vsel %vm4747, 0.0, %v4664
      %v4794 = vsel %vm4747, 0.0, %v4665
      %v4795 = vsel %vm4747, 0.0, %v4666
      %v4796 = vsel %vm4747, 0.0, %v4667
      %v4797 = vsel %vm4747, 0.0, %v4668
      %v4798 = vsel %vm4747, 0.0, %v4669
      %v4799 = vsel %vm4747, 0.0, %v4670
      %v4800 = vsel %vm4747, 0.0, %v4671
      %v4801 = vsel %vm4747, 0.0, %v4672
      %v4802 = vsel %vm4747, 0.0, %v4673
      %v4803 = vsel %vm4747, 0.0, %v4674
      %v4804 = vsel %vm4747, 0.0, %v4675
      %v4805 = vsel %vm4747, 0.0, %v4676
      %v4806 = vsel %vm4747, 0.0, %v4677
      %v4807 = vsel %vm4747, 0.0, %v4678
      %v4808 = vsel %vm4747, 0.0, %v4679
      %v4809 = vsel %vm4747, 0.0, %v4680
      %v4810 = vsel %vm4747, 0.0, %v4681
      %v4811 = vsel %vm4747, 0.0, %v4682
      %v4812 = vadd.f32 %v4359, %v4748
      %v4813 = vadd.f32 %v4360, %v4749
      %v4814 = vadd.f32 %v4361, %v4750
      %v4815 = vadd.f32 %v4362, %v4751
      %v4816 = vadd.f32 %v4363, %v4752
      %v4817 = vadd.f32 %v4364, %v4753
      %v4818 = vadd.f32 %v4365, %v4754
      %v4819 = vadd.f32 %v4366, %v4755
      %v4820 = vadd.f32 %v4367, %v4756
      %v4821 = vadd.f32 %v4368, %v4757
      %v4822 = vadd.f32 %v4369, %v4758
      %v4823 = vadd.f32 %v4370, %v4759
      %v4824 = vadd.f32 %v4371, %v4760
      %v4825 = vadd.f32 %v4372, %v4761
      %v4826 = vadd.f32 %v4373, %v4762
      %v4827 = vadd.f32 %v4374, %v4763
      %v4828 = vadd.f32 %v4375, %v4764
      %v4829 = vadd.f32 %v4376, %v4765
      %v4830 = vadd.f32 %v4377, %v4766
      %v4831 = vadd.f32 %v4378, %v4767
      %v4832 = vadd.f32 %v4379, %v4768
      %v4833 = vadd.f32 %v4380, %v4769
      %v4834 = vadd.f32 %v4381, %v4770
      %v4835 = vadd.f32 %v4382, %v4771
      %v4836 = vadd.f32 %v4383, %v4772
      %v4837 = vadd.f32 %v4384, %v4773
      %v4838 = vadd.f32 %v4385, %v4774
      %v4839 = vadd.f32 %v4386, %v4775
      %v4840 = vadd.f32 %v4387, %v4776
      %v4841 = vadd.f32 %v4388, %v4777
      %v4842 = vadd.f32 %v4389, %v4778
      %v4843 = vadd.f32 %v4390, %v4779
      %v4844 = vadd.f32 %v4391, %v4780
      %v4845 = vadd.f32 %v4392, %v4781
      %v4846 = vadd.f32 %v4393, %v4782
      %v4847 = vadd.f32 %v4394, %v4783
      %v4848 = vadd.f32 %v4395, %v4784
      %v4849 = vadd.f32 %v4396, %v4785
      %v4850 = vadd.f32 %v4397, %v4786
      %v4851 = vadd.f32 %v4398, %v4787
      %v4852 = vadd.f32 %v4399, %v4788
      %v4853 = vadd.f32 %v4400, %v4789
      %v4854 = vadd.f32 %v4401, %v4790
      %v4855 = vadd.f32 %v4402, %v4791
      %v4856 = vadd.f32 %v4403, %v4792
      %v4857 = vadd.f32 %v4404, %v4793
      %v4858 = vadd.f32 %v4405, %v4794
      %v4859 = vadd.f32 %v4406, %v4795
      %v4860 = vadd.f32 %v4407, %v4796
      %v4861 = vadd.f32 %v4408, %v4797
      %v4862 = vadd.f32 %v4409, %v4798
      %v4863 = vadd.f32 %v4410, %v4799
      %v4864 = vadd.f32 %v4411, %v4800
      %v4865 = vadd.f32 %v4412, %v4801
      %v4866 = vadd.f32 %v4413, %v4802
      %v4867 = vadd.f32 %v4414, %v4803
      %v4868 = vadd.f32 %v4415, %v4804
      %v4869 = vadd.f32 %v4416, %v4805
      %v4870 = vadd.f32 %v4417, %v4806
      %v4871 = vadd.f32 %v4418, %v4807
      %v4872 = vadd.f32 %v4419, %v4808
      %v4873 = vadd.f32 %v4420, %v4809
      %v4874 = vadd.f32 %v4421, %v4810
      %v4875 = vadd.f32 %v4422, %v4811
      %v4940 = vrot.slane %v4491, 1
      %v4941 = vrot.slane %v4492, 1
      %v4942 = vrot.slane %v4493, 1
      %v4943 = vrot.slane %v4494, 1
      %v4944 = vrot.slane %v4495, 1
      %v4945 = vrot.slane %v4496, 1
      %v4946 = vrot.slane %v4497, 1
      %v4947 = vrot.slane %v4498, 1
      %v4948 = vrot.slane %v4499, 1
      %v4949 = vrot.slane %v4500, 1
      %v4950 = vrot.slane %v4501, 1
      %v4951 = vrot.slane %v4502, 1
      %v4952 = vrot.slane %v4503, 1
      %v4953 = vrot.slane %v4504, 1
      %v4954 = vrot.slane %v4505, 1
      %v4955 = vrot.slane %v4506, 1
      %v4956 = vrot.slane %v4507, 1
      %v4957 = vrot.slane %v4508, 1
      %v4958 = vrot.slane %v4509, 1
      %v4959 = vrot.slane %v4510, 1
      %v4960 = vrot.slane %v4511, 1
      %v4961 = vrot.slane %v4512, 1
      %v4962 = vrot.slane %v4513, 1
      %v4963 = vrot.slane %v4514, 1
      %v4964 = vrot.slane %v4515, 1
      %v4965 = vrot.slane %v4516, 1
      %v4966 = vrot.slane %v4517, 1
      %v4967 = vrot.slane %v4518, 1
      %v4968 = vrot.slane %v4519, 1
      %v4969 = vrot.slane %v4520, 1
      %v4970 = vrot.slane %v4521, 1
      %v4971 = vrot.slane %v4522, 1
      %v4972 = vrot.slane %v4523, 1
      %v4973 = vrot.slane %v4524, 1
      %v4974 = vrot.slane %v4525, 1
      %v4975 = vrot.slane %v4526, 1
      %v4976 = vrot.slane %v4527, 1
      %v4977 = vrot.slane %v4528, 1
      %v4978 = vrot.slane %v4529, 1
      %v4979 = vrot.slane %v4530, 1
      %v4980 = vrot.slane %v4531, 1
      %v4981 = vrot.slane %v4532, 1
      %v4982 = vrot.slane %v4533, 1
      %v4983 = vrot.slane %v4534, 1
      %v4984 = vrot.slane %v4535, 1
      %v4985 = vrot.slane %v4536, 1
      %v4986 = vrot.slane %v4537, 1
      %v4987 = vrot.slane %v4538, 1
      %v4988 = vrot.slane %v4539, 1
      %v4989 = vrot.slane %v4540, 1
      %v4990 = vrot.slane %v4541, 1
      %v4991 = vrot.slane %v4542, 1
      %v4992 = vrot.slane %v4543, 1
      %v4993 = vrot.slane %v4544, 1
      %v4994 = vrot.slane %v4545, 1
      %v4995 = vrot.slane %v4546, 1
      %v4996 = vrot.slane %v4547, 1
      %v4997 = vrot.slane %v4548, 1
      %v4998 = vrot.slane %v4549, 1
      %v4999 = vrot.slane %v4550, 1
      %v5000 = vrot.slane %v4551, 1
      %v5001 = vrot.slane %v4552, 1
      %v5002 = vrot.slane %v4553, 1
      %v5003 = vrot.slane %v4554, 1
      %vm5068 = vcmask 1046528
      %v5069 = vsel %vm5068, %v4940, 0.0
      %v5070 = vsel %vm5068, %v4941, 0.0
      %v5071 = vsel %vm5068, %v4942, 0.0
      %v5072 = vsel %vm5068, %v4943, 0.0
      %v5073 = vsel %vm5068, %v4944, 0.0
      %v5074 = vsel %vm5068, %v4945, 0.0
      %v5075 = vsel %vm5068, %v4946, 0.0
      %v5076 = vsel %vm5068, %v4947, 0.0
      %v5077 = vsel %vm5068, %v4948, 0.0
      %v5078 = vsel %vm5068, %v4949, 0.0
      %v5079 = vsel %vm5068, %v4950, 0.0
      %v5080 = vsel %vm5068, %v4951, 0.0
      %v5081 = vsel %vm5068, %v4952, 0.0
      %v5082 = vsel %vm5068, %v4953, 0.0
      %v5083 = vsel %vm5068, %v4954, 0.0
      %v5084 = vsel %vm5068, %v4955, 0.0
      %v5085 = vsel %vm5068, %v4956, 0.0
      %v5086 = vsel %vm5068, %v4957, 0.0
      %v5087 = vsel %vm5068, %v4958, 0.0
      %v5088 = vsel %vm5068, %v4959, 0.0
      %v5089 = vsel %vm5068, %v4960, 0.0
      %v5090 = vsel %vm5068, %v4961, 0.0
      %v5091 = vsel %vm5068, %v4962, 0.0
      %v5092 = vsel %vm5068, %v4963, 0.0
      %v5093 = vsel %vm5068, %v4964, 0.0
      %v5094 = vsel %vm5068, %v4965, 0.0
      %v5095 = vsel %vm5068, %v4966, 0.0
      %v5096 = vsel %vm5068, %v4967, 0.0
      %v5097 = vsel %vm5068, %v4968, 0.0
      %v5098 = vsel %vm5068, %v4969, 0.0
      %v5099 = vsel %vm5068, %v4970, 0.0
      %v5100 = vsel %vm5068, %v4971, 0.0
      %v5101 = vsel %vm5068, %v4972, 0.0
      %v5102 = vsel %vm5068, %v4973, 0.0
      %v5103 = vsel %vm5068, %v4974, 0.0
      %v5104 = vsel %vm5068, %v4975, 0.0
      %v5105 = vsel %vm5068, %v4976, 0.0
      %v5106 = vsel %vm5068, %v4977, 0.0
      %v5107 = vsel %vm5068, %v4978, 0.0
      %v5108 = vsel %vm5068, %v4979, 0.0
      %v5109 = vsel %vm5068, %v4980, 0.0
      %v5110 = vsel %vm5068, %v4981, 0.0
      %v5111 = vsel %vm5068, %v4982, 0.0
      %v5112 = vsel %vm5068, %v4983, 0.0
      %v5113 = vsel %vm5068, %v4984, 0.0
      %v5114 = vsel %vm5068, %v4985, 0.0
      %v5115 = vsel %vm5068, %v4986, 0.0
      %v5116 = vsel %vm5068, %v4987, 0.0
      %v5117 = vsel %vm5068, %v4988, 0.0
      %v5118 = vsel %vm5068, %v4989, 0.0
      %v5119 = vsel %vm5068, %v4990, 0.0
      %v5120 = vsel %vm5068, %v4991, 0.0
      %v5121 = vsel %vm5068, %v4992, 0.0
      %v5122 = vsel %vm5068, %v4993, 0.0
      %v5123 = vsel %vm5068, %v4994, 0.0
      %v5124 = vsel %vm5068, %v4995, 0.0
      %v5125 = vsel %vm5068, %v4996, 0.0
      %v5126 = vsel %vm5068, %v4997, 0.0
      %v5127 = vsel %vm5068, %v4998, 0.0
      %v5128 = vsel %vm5068, %v4999, 0.0
      %v5129 = vsel %vm5068, %v5000, 0.0
      %v5130 = vsel %vm5068, %v5001, 0.0
      %v5131 = vsel %vm5068, %v5002, 0.0
      %v5132 = vsel %vm5068, %v5003, 0.0
      %v5133 = vadd.f32 %v4812, %v5069
      %v5134 = vadd.f32 %v4813, %v5070
      %v5135 = vadd.f32 %v4814, %v5071
      %v5136 = vadd.f32 %v4815, %v5072
      %v5137 = vadd.f32 %v4816, %v5073
      %v5138 = vadd.f32 %v4817, %v5074
      %v5139 = vadd.f32 %v4818, %v5075
      %v5140 = vadd.f32 %v4819, %v5076
      %v5141 = vadd.f32 %v4820, %v5077
      %v5142 = vadd.f32 %v4821, %v5078
      %v5143 = vadd.f32 %v4822, %v5079
      %v5144 = vadd.f32 %v4823, %v5080
      %v5145 = vadd.f32 %v4824, %v5081
      %v5146 = vadd.f32 %v4825, %v5082
      %v5147 = vadd.f32 %v4826, %v5083
      %v5148 = vadd.f32 %v4827, %v5084
      %v5149 = vadd.f32 %v4828, %v5085
      %v5150 = vadd.f32 %v4829, %v5086
      %v5151 = vadd.f32 %v4830, %v5087
      %v5152 = vadd.f32 %v4831, %v5088
      %v5153 = vadd.f32 %v4832, %v5089
      %v5154 = vadd.f32 %v4833, %v5090
      %v5155 = vadd.f32 %v4834, %v5091
      %v5156 = vadd.f32 %v4835, %v5092
      %v5157 = vadd.f32 %v4836, %v5093
      %v5158 = vadd.f32 %v4837, %v5094
      %v5159 = vadd.f32 %v4838, %v5095
      %v5160 = vadd.f32 %v4839, %v5096
      %v5161 = vadd.f32 %v4840, %v5097
      %v5162 = vadd.f32 %v4841, %v5098
      %v5163 = vadd.f32 %v4842, %v5099
      %v5164 = vadd.f32 %v4843, %v5100
      %v5165 = vadd.f32 %v4844, %v5101
      %v5166 = vadd.f32 %v4845, %v5102
      %v5167 = vadd.f32 %v4846, %v5103
      %v5168 = vadd.f32 %v4847, %v5104
      %v5169 = vadd.f32 %v4848, %v5105
      %v5170 = vadd.f32 %v4849, %v5106
      %v5171 = vadd.f32 %v4850, %v5107
      %v5172 = vadd.f32 %v4851, %v5108
      %v5173 = vadd.f32 %v4852, %v5109
      %v5174 = vadd.f32 %v4853, %v5110
      %v5175 = vadd.f32 %v4854, %v5111
      %v5176 = vadd.f32 %v4855, %v5112
      %v5177 = vadd.f32 %v4856, %v5113
      %v5178 = vadd.f32 %v4857, %v5114
      %v5179 = vadd.f32 %v4858, %v5115
      %v5180 = vadd.f32 %v4859, %v5116
      %v5181 = vadd.f32 %v4860, %v5117
      %v5182 = vadd.f32 %v4861, %v5118
      %v5183 = vadd.f32 %v4862, %v5119
      %v5184 = vadd.f32 %v4863, %v5120
      %v5185 = vadd.f32 %v4864, %v5121
      %v5186 = vadd.f32 %v4865, %v5122
      %v5187 = vadd.f32 %v4866, %v5123
      %v5188 = vadd.f32 %v4867, %v5124
      %v5189 = vadd.f32 %v4868, %v5125
      %v5190 = vadd.f32 %v4869, %v5126
      %v5191 = vadd.f32 %v4870, %v5127
      %v5192 = vadd.f32 %v4871, %v5128
      %v5193 = vadd.f32 %v4872, %v5129
      %v5194 = vadd.f32 %v4873, %v5130
      %v5195 = vadd.f32 %v4874, %v5131
      %v5196 = vadd.f32 %v4875, %v5132
      %v5197 = vld [vmem:[%s3] sm:$0x1]
      %v5199 = vlaneseq
      %v5200 = vshrl.u32 %v5199, 7
      %v5201 = vsub.s32 0, %v5200
      %v5202 = vrot.slane %v5197, %v5201
      %v5204 = vadd.f32 %v5133, %v5202
      %v5205 = vadd.f32 %v5134, %v5202
      %v5206 = vadd.f32 %v5135, %v5202
      %v5207 = vadd.f32 %v5136, %v5202
      %v5208 = vadd.f32 %v5137, %v5202
      %v5209 = vadd.f32 %v5138, %v5202
      %v5210 = vadd.f32 %v5139, %v5202
      %v5211 = vadd.f32 %v5140, %v5202
      %v5212 = vadd.f32 %v5141, %v5202
      %v5213 = vadd.f32 %v5142, %v5202
      %v5214 = vadd.f32 %v5143, %v5202
      %v5215 = vadd.f32 %v5144, %v5202
      %v5216 = vadd.f32 %v5145, %v5202
      %v5217 = vadd.f32 %v5146, %v5202
      %v5218 = vadd.f32 %v5147, %v5202
      %v5219 = vadd.f32 %v5148, %v5202
      %v5220 = vadd.f32 %v5149, %v5202
      %v5221 = vadd.f32 %v5150, %v5202
      %v5222 = vadd.f32 %v5151, %v5202
      %v5223 = vadd.f32 %v5152, %v5202
      %v5224 = vadd.f32 %v5153, %v5202
      %v5225 = vadd.f32 %v5154, %v5202
      %v5226 = vadd.f32 %v5155, %v5202
      %v5227 = vadd.f32 %v5156, %v5202
      %v5228 = vadd.f32 %v5157, %v5202
      %v5229 = vadd.f32 %v5158, %v5202
      %v5230 = vadd.f32 %v5159, %v5202
      %v5231 = vadd.f32 %v5160, %v5202
      %v5232 = vadd.f32 %v5161, %v5202
      %v5233 = vadd.f32 %v5162, %v5202
      %v5234 = vadd.f32 %v5163, %v5202
      %v5235 = vadd.f32 %v5164, %v5202
      %v5236 = vadd.f32 %v5165, %v5202
      %v5237 = vadd.f32 %v5166, %v5202
      %v5238 = vadd.f32 %v5167, %v5202
      %v5239 = vadd.f32 %v5168, %v5202
      %v5240 = vadd.f32 %v5169, %v5202
      %v5241 = vadd.f32 %v5170, %v5202
      %v5242 = vadd.f32 %v5171, %v5202
      %v5243 = vadd.f32 %v5172, %v5202
      %v5244 = vadd.f32 %v5173, %v5202
      %v5245 = vadd.f32 %v5174, %v5202
      %v5246 = vadd.f32 %v5175, %v5202
      %v5247 = vadd.f32 %v5176, %v5202
      %v5248 = vadd.f32 %v5177, %v5202
      %v5249 = vadd.f32 %v5178, %v5202
      %v5250 = vadd.f32 %v5179, %v5202
      %v5251 = vadd.f32 %v5180, %v5202
      %v5252 = vadd.f32 %v5181, %v5202
      %v5253 = vadd.f32 %v5182, %v5202
      %v5254 = vadd.f32 %v5183, %v5202
      %v5255 = vadd.f32 %v5184, %v5202
      %v5256 = vadd.f32 %v5185, %v5202
      %v5257 = vadd.f32 %v5186, %v5202
      %v5258 = vadd.f32 %v5187, %v5202
      %v5259 = vadd.f32 %v5188, %v5202
      %v5260 = vadd.f32 %v5189, %v5202
      %v5261 = vadd.f32 %v5190, %v5202
      %v5262 = vadd.f32 %v5191, %v5202
      %v5263 = vadd.f32 %v5192, %v5202
      %v5264 = vadd.f32 %v5193, %v5202
      %v5265 = vadd.f32 %v5194, %v5202
      %v5266 = vadd.f32 %v5195, %v5202
      %v5267 = vadd.f32 %v5196, %v5202
      %v5268 = vmul.f32 %v5204, 0.5
      %v5269 = vmul.f32 %v5205, 0.5
      %v5270 = vmul.f32 %v5206, 0.5
      %v5271 = vmul.f32 %v5207, 0.5
      %v5272 = vmul.f32 %v5208, 0.5
      %v5273 = vmul.f32 %v5209, 0.5
      %v5274 = vmul.f32 %v5210, 0.5
      %v5275 = vmul.f32 %v5211, 0.5
      %v5276 = vmul.f32 %v5212, 0.5
      %v5277 = vmul.f32 %v5213, 0.5
      %v5278 = vmul.f32 %v5214, 0.5
      %v5279 = vmul.f32 %v5215, 0.5
      %v5280 = vmul.f32 %v5216, 0.5
      %v5281 = vmul.f32 %v5217, 0.5
      %v5282 = vmul.f32 %v5218, 0.5
      %v5283 = vmul.f32 %v5219, 0.5
      %v5284 = vmul.f32 %v5220, 0.5
      %v5285 = vmul.f32 %v5221, 0.5
      %v5286 = vmul.f32 %v5222, 0.5
      %v5287 = vmul.f32 %v5223, 0.5
      %v5288 = vmul.f32 %v5224, 0.5
      %v5289 = vmul.f32 %v5225, 0.5
      %v5290 = vmul.f32 %v5226, 0.5
      %v5291 = vmul.f32 %v5227, 0.5
      %v5292 = vmul.f32 %v5228, 0.5
      %v5293 = vmul.f32 %v5229, 0.5
      %v5294 = vmul.f32 %v5230, 0.5
      %v5295 = vmul.f32 %v5231, 0.5
      %v5296 = vmul.f32 %v5232, 0.5
      %v5297 = vmul.f32 %v5233, 0.5
      %v5298 = vmul.f32 %v5234, 0.5
      %v5299 = vmul.f32 %v5235, 0.5
      %v5300 = vmul.f32 %v5236, 0.5
      %v5301 = vmul.f32 %v5237, 0.5
      %v5302 = vmul.f32 %v5238, 0.5
      %v5303 = vmul.f32 %v5239, 0.5
      %v5304 = vmul.f32 %v5240, 0.5
      %v5305 = vmul.f32 %v5241, 0.5
      %v5306 = vmul.f32 %v5242, 0.5
      %v5307 = vmul.f32 %v5243, 0.5
      %v5308 = vmul.f32 %v5244, 0.5
      %v5309 = vmul.f32 %v5245, 0.5
      %v5310 = vmul.f32 %v5246, 0.5
      %v5311 = vmul.f32 %v5247, 0.5
      %v5312 = vmul.f32 %v5248, 0.5
      %v5313 = vmul.f32 %v5249, 0.5
      %v5314 = vmul.f32 %v5250, 0.5
      %v5315 = vmul.f32 %v5251, 0.5
      %v5316 = vmul.f32 %v5252, 0.5
      %v5317 = vmul.f32 %v5253, 0.5
      %v5318 = vmul.f32 %v5254, 0.5
      %v5319 = vmul.f32 %v5255, 0.5
      %v5320 = vmul.f32 %v5256, 0.5
      %v5321 = vmul.f32 %v5257, 0.5
      %v5322 = vmul.f32 %v5258, 0.5
      %v5323 = vmul.f32 %v5259, 0.5
      %v5324 = vmul.f32 %v5260, 0.5
      %v5325 = vmul.f32 %v5261, 0.5
      %v5326 = vmul.f32 %v5262, 0.5
      %v5327 = vmul.f32 %v5263, 0.5
      %v5328 = vmul.f32 %v5264, 0.5
      %v5329 = vmul.f32 %v5265, 0.5
      %v5330 = vmul.f32 %v5266, 0.5
      %v5331 = vmul.f32 %v5267, 0.5
      %v5332 = vmul.f32 %v5204, 0.70710677
      %v5333 = vmul.f32 %v5205, 0.70710677
      %v5334 = vmul.f32 %v5206, 0.70710677
      %v5335 = vmul.f32 %v5207, 0.70710677
      %v5336 = vmul.f32 %v5208, 0.70710677
      %v5337 = vmul.f32 %v5209, 0.70710677
      %v5338 = vmul.f32 %v5210, 0.70710677
      %v5339 = vmul.f32 %v5211, 0.70710677
      %v5340 = vmul.f32 %v5212, 0.70710677
      %v5341 = vmul.f32 %v5213, 0.70710677
      %v5342 = vmul.f32 %v5214, 0.70710677
      %v5343 = vmul.f32 %v5215, 0.70710677
      %v5344 = vmul.f32 %v5216, 0.70710677
      %v5345 = vmul.f32 %v5217, 0.70710677
      %v5346 = vmul.f32 %v5218, 0.70710677
      %v5347 = vmul.f32 %v5219, 0.70710677
      %v5348 = vmul.f32 %v5220, 0.70710677
      %v5349 = vmul.f32 %v5221, 0.70710677
      %v5350 = vmul.f32 %v5222, 0.70710677
      %v5351 = vmul.f32 %v5223, 0.70710677
      %v5352 = vmul.f32 %v5224, 0.70710677
      %v5353 = vmul.f32 %v5225, 0.70710677
      %v5354 = vmul.f32 %v5226, 0.70710677
      %v5355 = vmul.f32 %v5227, 0.70710677
      %v5356 = vmul.f32 %v5228, 0.70710677
      %v5357 = vmul.f32 %v5229, 0.70710677
      %v5358 = vmul.f32 %v5230, 0.70710677
      %v5359 = vmul.f32 %v5231, 0.70710677
      %v5360 = vmul.f32 %v5232, 0.70710677
      %v5361 = vmul.f32 %v5233, 0.70710677
      %v5362 = vmul.f32 %v5234, 0.70710677
      %v5363 = vmul.f32 %v5235, 0.70710677
      %v5364 = vmul.f32 %v5236, 0.70710677
      %v5365 = vmul.f32 %v5237, 0.70710677
      %v5366 = vmul.f32 %v5238, 0.70710677
      %v5367 = vmul.f32 %v5239, 0.70710677
      %v5368 = vmul.f32 %v5240, 0.70710677
      %v5369 = vmul.f32 %v5241, 0.70710677
      %v5370 = vmul.f32 %v5242, 0.70710677
      %v5371 = vmul.f32 %v5243, 0.70710677
      %v5372 = vmul.f32 %v5244, 0.70710677
      %v5373 = vmul.f32 %v5245, 0.70710677
      %v5374 = vmul.f32 %v5246, 0.70710677
      %v5375 = vmul.f32 %v5247, 0.70710677
      %v5376 = vmul.f32 %v5248, 0.70710677
      %v5377 = vmul.f32 %v5249, 0.70710677
      %v5378 = vmul.f32 %v5250, 0.70710677
      %v5379 = vmul.f32 %v5251, 0.70710677
      %v5380 = vmul.f32 %v5252, 0.70710677
      %v5381 = vmul.f32 %v5253, 0.70710677
      %v5382 = vmul.f32 %v5254, 0.70710677
      %v5383 = vmul.f32 %v5255, 0.70710677
      %v5384 = vmul.f32 %v5256, 0.70710677
      %v5385 = vmul.f32 %v5257, 0.70710677
      %v5386 = vmul.f32 %v5258, 0.70710677
      %v5387 = vmul.f32 %v5259, 0.70710677
      %v5388 = vmul.f32 %v5260, 0.70710677
      %v5389 = vmul.f32 %v5261, 0.70710677
      %v5390 = vmul.f32 %v5262, 0.70710677
      %v5391 = vmul.f32 %v5263, 0.70710677
      %v5392 = vmul.f32 %v5264, 0.70710677
      %v5393 = vmul.f32 %v5265, 0.70710677
      %v5394 = vmul.f32 %v5266, 0.70710677
      %v5395 = vmul.f32 %v5267, 0.70710677
      %v5396 = verf.f32.pop %v5332
      %v5397 = verf.f32.pop %v5333
      %v5398 = verf.f32.pop %v5334
      %v5399 = verf.f32.pop %v5335
      %v5400 = verf.f32.pop %v5336
      %v5401 = verf.f32.pop %v5337
      %v5402 = verf.f32.pop %v5338
      %v5403 = verf.f32.pop %v5339
      %v5404 = verf.f32.pop %v5340
      %v5405 = verf.f32.pop %v5341
      %v5406 = verf.f32.pop %v5342
      %v5407 = verf.f32.pop %v5343
      %v5408 = verf.f32.pop %v5344
      %v5409 = verf.f32.pop %v5345
      %v5410 = verf.f32.pop %v5346
      %v5411 = verf.f32.pop %v5347
      %v5412 = verf.f32.pop %v5348
      %v5413 = verf.f32.pop %v5349
      %v5414 = verf.f32.pop %v5350
      %v5415 = verf.f32.pop %v5351
      %v5416 = verf.f32.pop %v5352
      %v5417 = verf.f32.pop %v5353
      %v5418 = verf.f32.pop %v5354
      %v5419 = verf.f32.pop %v5355
      %v5420 = verf.f32.pop %v5356
      %v5421 = verf.f32.pop %v5357
      %v5422 = verf.f32.pop %v5358
      %v5423 = verf.f32.pop %v5359
      %v5424 = verf.f32.pop %v5360
      %v5425 = verf.f32.pop %v5361
      %v5426 = verf.f32.pop %v5362
      %v5427 = verf.f32.pop %v5363
      %v5428 = verf.f32.pop %v5364
      %v5429 = verf.f32.pop %v5365
      %v5430 = verf.f32.pop %v5366
      %v5431 = verf.f32.pop %v5367
      %v5432 = verf.f32.pop %v5368
      %v5433 = verf.f32.pop %v5369
      %v5434 = verf.f32.pop %v5370
      %v5435 = verf.f32.pop %v5371
      %v5436 = verf.f32.pop %v5372
      %v5437 = verf.f32.pop %v5373
      %v5438 = verf.f32.pop %v5374
      %v5439 = verf.f32.pop %v5375
      %v5440 = verf.f32.pop %v5376
      %v5441 = verf.f32.pop %v5377
      %v5442 = verf.f32.pop %v5378
      %v5443 = verf.f32.pop %v5379
      %v5444 = verf.f32.pop %v5380
      %v5445 = verf.f32.pop %v5381
      %v5446 = verf.f32.pop %v5382
      %v5447 = verf.f32.pop %v5383
      %v5448 = verf.f32.pop %v5384
      %v5449 = verf.f32.pop %v5385
      %v5450 = verf.f32.pop %v5386
      %v5451 = verf.f32.pop %v5387
      %v5452 = verf.f32.pop %v5388
      %v5453 = verf.f32.pop %v5389
      %v5454 = verf.f32.pop %v5390
      %v5455 = verf.f32.pop %v5391
      %v5456 = verf.f32.pop %v5392
      %v5457 = verf.f32.pop %v5393
      %v5458 = verf.f32.pop %v5394
      %v5459 = verf.f32.pop %v5395
      %v5460 = vadd.f32 %v5396, 1.0
      %v5461 = vadd.f32 %v5397, 1.0
      %v5462 = vadd.f32 %v5398, 1.0
      %v5463 = vadd.f32 %v5399, 1.0
      %v5464 = vadd.f32 %v5400, 1.0
      %v5465 = vadd.f32 %v5401, 1.0
      %v5466 = vadd.f32 %v5402, 1.0
      %v5467 = vadd.f32 %v5403, 1.0
      %v5468 = vadd.f32 %v5404, 1.0
      %v5469 = vadd.f32 %v5405, 1.0
      %v5470 = vadd.f32 %v5406, 1.0
      %v5471 = vadd.f32 %v5407, 1.0
      %v5472 = vadd.f32 %v5408, 1.0
      %v5473 = vadd.f32 %v5409, 1.0
      %v5474 = vadd.f32 %v5410, 1.0
      %v5475 = vadd.f32 %v5411, 1.0
      %v5476 = vadd.f32 %v5412, 1.0
      %v5477 = vadd.f32 %v5413, 1.0
      %v5478 = vadd.f32 %v5414, 1.0
      %v5479 = vadd.f32 %v5415, 1.0
      %v5480 = vadd.f32 %v5416, 1.0
      %v5481 = vadd.f32 %v5417, 1.0
      %v5482 = vadd.f32 %v5418, 1.0
      %v5483 = vadd.f32 %v5419, 1.0
      %v5484 = vadd.f32 %v5420, 1.0
      %v5485 = vadd.f32 %v5421, 1.0
      %v5486 = vadd.f32 %v5422, 1.0
      %v5487 = vadd.f32 %v5423, 1.0
      %v5488 = vadd.f32 %v5424, 1.0
      %v5489 = vadd.f32 %v5425, 1.0
      %v5490 = vadd.f32 %v5426, 1.0
      %v5491 = vadd.f32 %v5427, 1.0
      %v5492 = vadd.f32 %v5428, 1.0
      %v5493 = vadd.f32 %v5429, 1.0
      %v5494 = vadd.f32 %v5430, 1.0
      %v5495 = vadd.f32 %v5431, 1.0
      %v5496 = vadd.f32 %v5432, 1.0
      %v5497 = vadd.f32 %v5433, 1.0
      %v5498 = vadd.f32 %v5434, 1.0
      %v5499 = vadd.f32 %v5435, 1.0
      %v5500 = vadd.f32 %v5436, 1.0
      %v5501 = vadd.f32 %v5437, 1.0
      %v5502 = vadd.f32 %v5438, 1.0
      %v5503 = vadd.f32 %v5439, 1.0
      %v5504 = vadd.f32 %v5440, 1.0
      %v5505 = vadd.f32 %v5441, 1.0
      %v5506 = vadd.f32 %v5442, 1.0
      %v5507 = vadd.f32 %v5443, 1.0
      %v5508 = vadd.f32 %v5444, 1.0
      %v5509 = vadd.f32 %v5445, 1.0
      %v5510 = vadd.f32 %v5446, 1.0
      %v5511 = vadd.f32 %v5447, 1.0
      %v5512 = vadd.f32 %v5448, 1.0
      %v5513 = vadd.f32 %v5449, 1.0
      %v5514 = vadd.f32 %v5450, 1.0
      %v5515 = vadd.f32 %v5451, 1.0
      %v5516 = vadd.f32 %v5452, 1.0
      %v5517 = vadd.f32 %v5453, 1.0
      %v5518 = vadd.f32 %v5454, 1.0
      %v5519 = vadd.f32 %v5455, 1.0
      %v5520 = vadd.f32 %v5456, 1.0
      %v5521 = vadd.f32 %v5457, 1.0
      %v5522 = vadd.f32 %v5458, 1.0
      %v5523 = vadd.f32 %v5459, 1.0
      %v5524 = vmul.f32 %v5268, %v5460
      %v5525 = vmul.f32 %v5269, %v5461
      %v5526 = vmul.f32 %v5270, %v5462
      %v5527 = vmul.f32 %v5271, %v5463
      %v5528 = vmul.f32 %v5272, %v5464
      %v5529 = vmul.f32 %v5273, %v5465
      %v5530 = vmul.f32 %v5274, %v5466
      %v5531 = vmul.f32 %v5275, %v5467
      %v5532 = vmul.f32 %v5276, %v5468
      %v5533 = vmul.f32 %v5277, %v5469
      %v5534 = vmul.f32 %v5278, %v5470
      %v5535 = vmul.f32 %v5279, %v5471
      %v5536 = vmul.f32 %v5280, %v5472
      %v5537 = vmul.f32 %v5281, %v5473
      %v5538 = vmul.f32 %v5282, %v5474
      %v5539 = vmul.f32 %v5283, %v5475
      %v5540 = vmul.f32 %v5284, %v5476
      %v5541 = vmul.f32 %v5285, %v5477
      %v5542 = vmul.f32 %v5286, %v5478
      %v5543 = vmul.f32 %v5287, %v5479
      %v5544 = vmul.f32 %v5288, %v5480
      %v5545 = vmul.f32 %v5289, %v5481
      %v5546 = vmul.f32 %v5290, %v5482
      %v5547 = vmul.f32 %v5291, %v5483
      %v5548 = vmul.f32 %v5292, %v5484
      %v5549 = vmul.f32 %v5293, %v5485
      %v5550 = vmul.f32 %v5294, %v5486
      %v5551 = vmul.f32 %v5295, %v5487
      %v5552 = vmul.f32 %v5296, %v5488
      %v5553 = vmul.f32 %v5297, %v5489
      %v5554 = vmul.f32 %v5298, %v5490
      %v5555 = vmul.f32 %v5299, %v5491
      %v5556 = vmul.f32 %v5300, %v5492
      %v5557 = vmul.f32 %v5301, %v5493
      %v5558 = vmul.f32 %v5302, %v5494
      %v5559 = vmul.f32 %v5303, %v5495
      %v5560 = vmul.f32 %v5304, %v5496
      %v5561 = vmul.f32 %v5305, %v5497
      %v5562 = vmul.f32 %v5306, %v5498
      %v5563 = vmul.f32 %v5307, %v5499
      %v5564 = vmul.f32 %v5308, %v5500
      %v5565 = vmul.f32 %v5309, %v5501
      %v5566 = vmul.f32 %v5310, %v5502
      %v5567 = vmul.f32 %v5311, %v5503
      %v5568 = vmul.f32 %v5312, %v5504
      %v5569 = vmul.f32 %v5313, %v5505
      %v5570 = vmul.f32 %v5314, %v5506
      %v5571 = vmul.f32 %v5315, %v5507
      %v5572 = vmul.f32 %v5316, %v5508
      %v5573 = vmul.f32 %v5317, %v5509
      %v5574 = vmul.f32 %v5318, %v5510
      %v5575 = vmul.f32 %v5319, %v5511
      %v5576 = vmul.f32 %v5320, %v5512
      %v5577 = vmul.f32 %v5321, %v5513
      %v5578 = vmul.f32 %v5322, %v5514
      %v5579 = vmul.f32 %v5323, %v5515
      %v5580 = vmul.f32 %v5324, %v5516
      %v5581 = vmul.f32 %v5325, %v5517
      %v5582 = vmul.f32 %v5326, %v5518
      %v5583 = vmul.f32 %v5327, %v5519
      %v5584 = vmul.f32 %v5328, %v5520
      %v5585 = vmul.f32 %v5329, %v5521
      %v5586 = vmul.f32 %v5330, %v5522
      %v5587 = vmul.f32 %v5331, %v5523
      %v5588 = vld [vmem:[%s1] sm:$0x1f]
      %v5589 = vlaneseq
      %v5590 = vshrl.u32 %v5589, 7
      %v5591 = vsub.s32 0, %v5590
      %v5592 = vrot.slane %v5588, %v5591
      %v5593 = vmul.f32 %v5540, %v5592
      %v5594 = vmul.f32 %v5541, %v5592
      %v5595 = vmul.f32 %v5542, %v5592
      %v5596 = vmul.f32 %v5543, %v5592
      %v5597 = vmul.f32 %v5544, %v5592
      %v5598 = vmul.f32 %v5545, %v5592
      %v5599 = vmul.f32 %v5546, %v5592
      %v5600 = vmul.f32 %v5547, %v5592
      %v5601 = vmul.f32 %v5548, %v5592
      %v5602 = vmul.f32 %v5549, %v5592
      %v5603 = vmul.f32 %v5550, %v5592
      %v5604 = vmul.f32 %v5551, %v5592
      %v5605 = vmul.f32 %v5552, %v5592
      %v5606 = vmul.f32 %v5553, %v5592
      %v5607 = vmul.f32 %v5554, %v5592
      %v5608 = vmul.f32 %v5555, %v5592
      %v5609 = vmul.f32 %v5556, %v5592
      %v5610 = vmul.f32 %v5557, %v5592
      %v5611 = vmul.f32 %v5558, %v5592
      %v5612 = vmul.f32 %v5559, %v5592
      %v5613 = vmul.f32 %v5560, %v5592
      %v5614 = vmul.f32 %v5561, %v5592
      %v5615 = vmul.f32 %v5562, %v5592
      %v5616 = vmul.f32 %v5563, %v5592
      %v5617 = vmul.f32 %v5564, %v5592
      %v5618 = vmul.f32 %v5565, %v5592
      %v5619 = vmul.f32 %v5566, %v5592
      %v5620 = vmul.f32 %v5567, %v5592
      %v5621 = vmul.f32 %v5568, %v5592
      %v5622 = vmul.f32 %v5569, %v5592
      %v5623 = vmul.f32 %v5570, %v5592
      %v5624 = vmul.f32 %v5571, %v5592
      %v5625 = vmul.f32 %v5572, %v5592
      %v5626 = vmul.f32 %v5573, %v5592
      %v5627 = vmul.f32 %v5574, %v5592
      %v5628 = vmul.f32 %v5575, %v5592
      %v5629 = vmul.f32 %v5576, %v5592
      %v5630 = vmul.f32 %v5577, %v5592
      %v5631 = vmul.f32 %v5578, %v5592
      %v5632 = vmul.f32 %v5579, %v5592
      %v5633 = vmul.f32 %v5580, %v5592
      %v5634 = vmul.f32 %v5581, %v5592
      %v5635 = vmul.f32 %v5582, %v5592
      %v5636 = vmul.f32 %v5583, %v5592
      %v5637 = vmul.f32 %v5584, %v5592
      %v5638 = vmul.f32 %v5585, %v5592
      %v5639 = vmul.f32 %v5586, %v5592
      %v5640 = vmul.f32 %v5587, %v5592
      %v5641 = vmul.f32 %v5592, 0.0
      %v5642 = vlaneseq
      %v5643 = vshrl.u32 %v5642, 7
      %v5644 = vsub.s32 1, %v5643
      %v5645 = vrot.slane %v5588, %v5644
      %v5646 = vmul.f32 %v5532, %v5645
      %v5647 = vmul.f32 %v5533, %v5645
      %v5648 = vmul.f32 %v5534, %v5645
      %v5649 = vmul.f32 %v5535, %v5645
      %v5650 = vmul.f32 %v5536, %v5645
      %v5651 = vmul.f32 %v5537, %v5645
      %v5652 = vmul.f32 %v5538, %v5645
      %v5653 = vmul.f32 %v5539, %v5645
      %v5654 = vmul.f32 %v5540, %v5645
      %v5655 = vmul.f32 %v5541, %v5645
      %v5656 = vmul.f32 %v5542, %v5645
      %v5657 = vmul.f32 %v5543, %v5645
      %v5658 = vmul.f32 %v5544, %v5645
      %v5659 = vmul.f32 %v5545, %v5645
      %v5660 = vmul.f32 %v5546, %v5645
      %v5661 = vmul.f32 %v5547, %v5645
      %v5662 = vmul.f32 %v5548, %v5645
      %v5663 = vmul.f32 %v5549, %v5645
      %v5664 = vmul.f32 %v5550, %v5645
      %v5665 = vmul.f32 %v5551, %v5645
      %v5666 = vmul.f32 %v5552, %v5645
      %v5667 = vmul.f32 %v5553, %v5645
      %v5668 = vmul.f32 %v5554, %v5645
      %v5669 = vmul.f32 %v5555, %v5645
      %v5670 = vmul.f32 %v5556, %v5645
      %v5671 = vmul.f32 %v5557, %v5645
      %v5672 = vmul.f32 %v5558, %v5645
      %v5673 = vmul.f32 %v5559, %v5645
      %v5674 = vmul.f32 %v5560, %v5645
      %v5675 = vmul.f32 %v5561, %v5645
      %v5676 = vmul.f32 %v5562, %v5645
      %v5677 = vmul.f32 %v5563, %v5645
      %v5678 = vmul.f32 %v5564, %v5645
      %v5679 = vmul.f32 %v5565, %v5645
      %v5680 = vmul.f32 %v5566, %v5645
      %v5681 = vmul.f32 %v5567, %v5645
      %v5682 = vmul.f32 %v5568, %v5645
      %v5683 = vmul.f32 %v5569, %v5645
      %v5684 = vmul.f32 %v5570, %v5645
      %v5685 = vmul.f32 %v5571, %v5645
      %v5686 = vmul.f32 %v5572, %v5645
      %v5687 = vmul.f32 %v5573, %v5645
      %v5688 = vmul.f32 %v5574, %v5645
      %v5689 = vmul.f32 %v5575, %v5645
      %v5690 = vmul.f32 %v5576, %v5645
      %v5691 = vmul.f32 %v5577, %v5645
      %v5692 = vmul.f32 %v5578, %v5645
      %v5693 = vmul.f32 %v5579, %v5645
      %v5694 = vmul.f32 %v5580, %v5645
      %v5695 = vmul.f32 %v5581, %v5645
      %v5696 = vmul.f32 %v5582, %v5645
      %v5697 = vmul.f32 %v5583, %v5645
      %v5698 = vmul.f32 %v5584, %v5645
      %v5699 = vmul.f32 %v5585, %v5645
      %v5700 = vmul.f32 %v5586, %v5645
      %v5701 = vmul.f32 %v5587, %v5645
      %v5702 = vmul.f32 %v5645, 0.0
      %v5703 = vadd.f32 %v5593, %v5646
      %v5704 = vadd.f32 %v5594, %v5647
      %v5705 = vadd.f32 %v5595, %v5648
      %v5706 = vadd.f32 %v5596, %v5649
      %v5707 = vadd.f32 %v5597, %v5650
      %v5708 = vadd.f32 %v5598, %v5651
      %v5709 = vadd.f32 %v5599, %v5652
      %v5710 = vadd.f32 %v5600, %v5653
      %v5711 = vadd.f32 %v5601, %v5654
      %v5712 = vadd.f32 %v5602, %v5655
      %v5713 = vadd.f32 %v5603, %v5656
      %v5714 = vadd.f32 %v5604, %v5657
      %v5715 = vadd.f32 %v5605, %v5658
      %v5716 = vadd.f32 %v5606, %v5659
      %v5717 = vadd.f32 %v5607, %v5660
      %v5718 = vadd.f32 %v5608, %v5661
      %v5719 = vadd.f32 %v5609, %v5662
      %v5720 = vadd.f32 %v5610, %v5663
      %v5721 = vadd.f32 %v5611, %v5664
      %v5722 = vadd.f32 %v5612, %v5665
      %v5723 = vadd.f32 %v5613, %v5666
      %v5724 = vadd.f32 %v5614, %v5667
      %v5725 = vadd.f32 %v5615, %v5668
      %v5726 = vadd.f32 %v5616, %v5669
      %v5727 = vadd.f32 %v5617, %v5670
      %v5728 = vadd.f32 %v5618, %v5671
      %v5729 = vadd.f32 %v5619, %v5672
      %v5730 = vadd.f32 %v5620, %v5673
      %v5731 = vadd.f32 %v5621, %v5674
      %v5732 = vadd.f32 %v5622, %v5675
      %v5733 = vadd.f32 %v5623, %v5676
      %v5734 = vadd.f32 %v5624, %v5677
      %v5735 = vadd.f32 %v5625, %v5678
      %v5736 = vadd.f32 %v5626, %v5679
      %v5737 = vadd.f32 %v5627, %v5680
      %v5738 = vadd.f32 %v5628, %v5681
      %v5739 = vadd.f32 %v5629, %v5682
      %v5740 = vadd.f32 %v5630, %v5683
      %v5741 = vadd.f32 %v5631, %v5684
      %v5742 = vadd.f32 %v5632, %v5685
      %v5743 = vadd.f32 %v5633, %v5686
      %v5744 = vadd.f32 %v5634, %v5687
      %v5745 = vadd.f32 %v5635, %v5688
      %v5746 = vadd.f32 %v5636, %v5689
      %v5747 = vadd.f32 %v5637, %v5690
      %v5748 = vadd.f32 %v5638, %v5691
      %v5749 = vadd.f32 %v5639, %v5692
      %v5750 = vadd.f32 %v5640, %v5693
      %v5751 = vadd.f32 %v5641, %v5694
      %v5752 = vadd.f32 %v5641, %v5695
      %v5753 = vadd.f32 %v5641, %v5696
      %v5754 = vadd.f32 %v5641, %v5697
      %v5755 = vadd.f32 %v5641, %v5698
      %v5756 = vadd.f32 %v5641, %v5699
      %v5757 = vadd.f32 %v5641, %v5700
      %v5758 = vadd.f32 %v5641, %v5701
      %v5759 = vadd.f32 %v5641, %v5702
      %v5760 = vlaneseq
      %v5761 = vshrl.u32 %v5760, 7
      %v5762 = vsub.s32 2, %v5761
      %v5763 = vrot.slane %v5588, %v5762
      %v5764 = vmul.f32 %v5524, %v5763
      %v5765 = vmul.f32 %v5525, %v5763
      %v5766 = vmul.f32 %v5526, %v5763
      %v5767 = vmul.f32 %v5527, %v5763
      %v5768 = vmul.f32 %v5528, %v5763
      %v5769 = vmul.f32 %v5529, %v5763
      %v5770 = vmul.f32 %v5530, %v5763
      %v5771 = vmul.f32 %v5531, %v5763
      %v5772 = vmul.f32 %v5532, %v5763
      %v5773 = vmul.f32 %v5533, %v5763
      %v5774 = vmul.f32 %v5534, %v5763
      %v5775 = vmul.f32 %v5535, %v5763
      %v5776 = vmul.f32 %v5536, %v5763
      %v5777 = vmul.f32 %v5537, %v5763
      %v5778 = vmul.f32 %v5538, %v5763
      %v5779 = vmul.f32 %v5539, %v5763
      %v5780 = vmul.f32 %v5540, %v5763
      %v5781 = vmul.f32 %v5541, %v5763
      %v5782 = vmul.f32 %v5542, %v5763
      %v5783 = vmul.f32 %v5543, %v5763
      %v5784 = vmul.f32 %v5544, %v5763
      %v5785 = vmul.f32 %v5545, %v5763
      %v5786 = vmul.f32 %v5546, %v5763
      %v5787 = vmul.f32 %v5547, %v5763
      %v5788 = vmul.f32 %v5548, %v5763
      %v5789 = vmul.f32 %v5549, %v5763
      %v5790 = vmul.f32 %v5550, %v5763
      %v5791 = vmul.f32 %v5551, %v5763
      %v5792 = vmul.f32 %v5552, %v5763
      %v5793 = vmul.f32 %v5553, %v5763
      %v5794 = vmul.f32 %v5554, %v5763
      %v5795 = vmul.f32 %v5555, %v5763
      %v5796 = vmul.f32 %v5556, %v5763
      %v5797 = vmul.f32 %v5557, %v5763
      %v5798 = vmul.f32 %v5558, %v5763
      %v5799 = vmul.f32 %v5559, %v5763
      %v5800 = vmul.f32 %v5560, %v5763
      %v5801 = vmul.f32 %v5561, %v5763
      %v5802 = vmul.f32 %v5562, %v5763
      %v5803 = vmul.f32 %v5563, %v5763
      %v5804 = vmul.f32 %v5564, %v5763
      %v5805 = vmul.f32 %v5565, %v5763
      %v5806 = vmul.f32 %v5566, %v5763
      %v5807 = vmul.f32 %v5567, %v5763
      %v5808 = vmul.f32 %v5568, %v5763
      %v5809 = vmul.f32 %v5569, %v5763
      %v5810 = vmul.f32 %v5570, %v5763
      %v5811 = vmul.f32 %v5571, %v5763
      %v5812 = vmul.f32 %v5572, %v5763
      %v5813 = vmul.f32 %v5573, %v5763
      %v5814 = vmul.f32 %v5574, %v5763
      %v5815 = vmul.f32 %v5575, %v5763
      %v5816 = vmul.f32 %v5576, %v5763
      %v5817 = vmul.f32 %v5577, %v5763
      %v5818 = vmul.f32 %v5578, %v5763
      %v5819 = vmul.f32 %v5579, %v5763
      %v5820 = vmul.f32 %v5580, %v5763
      %v5821 = vmul.f32 %v5581, %v5763
      %v5822 = vmul.f32 %v5582, %v5763
      %v5823 = vmul.f32 %v5583, %v5763
      %v5824 = vmul.f32 %v5584, %v5763
      %v5825 = vmul.f32 %v5585, %v5763
      %v5826 = vmul.f32 %v5586, %v5763
      %v5827 = vmul.f32 %v5587, %v5763
      %v5828 = vadd.f32 %v5703, %v5764
      %v5829 = vadd.f32 %v5704, %v5765
      %v5830 = vadd.f32 %v5705, %v5766
      %v5831 = vadd.f32 %v5706, %v5767
      %v5832 = vadd.f32 %v5707, %v5768
      %v5833 = vadd.f32 %v5708, %v5769
      %v5834 = vadd.f32 %v5709, %v5770
      %v5835 = vadd.f32 %v5710, %v5771
      %v5836 = vadd.f32 %v5711, %v5772
      %v5837 = vadd.f32 %v5712, %v5773
      %v5838 = vadd.f32 %v5713, %v5774
      %v5839 = vadd.f32 %v5714, %v5775
      %v5840 = vadd.f32 %v5715, %v5776
      %v5841 = vadd.f32 %v5716, %v5777
      %v5842 = vadd.f32 %v5717, %v5778
      %v5843 = vadd.f32 %v5718, %v5779
      %v5844 = vadd.f32 %v5719, %v5780
      %v5845 = vadd.f32 %v5720, %v5781
      %v5846 = vadd.f32 %v5721, %v5782
      %v5847 = vadd.f32 %v5722, %v5783
      %v5848 = vadd.f32 %v5723, %v5784
      %v5849 = vadd.f32 %v5724, %v5785
      %v5850 = vadd.f32 %v5725, %v5786
      %v5851 = vadd.f32 %v5726, %v5787
      %v5852 = vadd.f32 %v5727, %v5788
      %v5853 = vadd.f32 %v5728, %v5789
      %v5854 = vadd.f32 %v5729, %v5790
      %v5855 = vadd.f32 %v5730, %v5791
      %v5856 = vadd.f32 %v5731, %v5792
      %v5857 = vadd.f32 %v5732, %v5793
      %v5858 = vadd.f32 %v5733, %v5794
      %v5859 = vadd.f32 %v5734, %v5795
      %v5860 = vadd.f32 %v5735, %v5796
      %v5861 = vadd.f32 %v5736, %v5797
      %v5862 = vadd.f32 %v5737, %v5798
      %v5863 = vadd.f32 %v5738, %v5799
      %v5864 = vadd.f32 %v5739, %v5800
      %v5865 = vadd.f32 %v5740, %v5801
      %v5866 = vadd.f32 %v5741, %v5802
      %v5867 = vadd.f32 %v5742, %v5803
      %v5868 = vadd.f32 %v5743, %v5804
      %v5869 = vadd.f32 %v5744, %v5805
      %v5870 = vadd.f32 %v5745, %v5806
      %v5871 = vadd.f32 %v5746, %v5807
      %v5872 = vadd.f32 %v5747, %v5808
      %v5873 = vadd.f32 %v5748, %v5809
      %v5874 = vadd.f32 %v5749, %v5810
      %v5875 = vadd.f32 %v5750, %v5811
      %v5876 = vadd.f32 %v5751, %v5812
      %v5877 = vadd.f32 %v5752, %v5813
      %v5878 = vadd.f32 %v5753, %v5814
      %v5879 = vadd.f32 %v5754, %v5815
      %v5880 = vadd.f32 %v5755, %v5816
      %v5881 = vadd.f32 %v5756, %v5817
      %v5882 = vadd.f32 %v5757, %v5818
      %v5883 = vadd.f32 %v5758, %v5819
      %v5884 = vadd.f32 %v5759, %v5820
      %v5885 = vadd.f32 %v5759, %v5821
      %v5886 = vadd.f32 %v5759, %v5822
      %v5887 = vadd.f32 %v5759, %v5823
      %v5888 = vadd.f32 %v5759, %v5824
      %v5889 = vadd.f32 %v5759, %v5825
      %v5890 = vadd.f32 %v5759, %v5826
      %v5891 = vadd.f32 %v5759, %v5827
      %v5892 = vlaneseq
      %v5893 = vshrl.u32 %v5892, 7
      %v5894 = vsub.s32 3, %v5893
      %v5895 = vrot.slane %v5588, %v5894
      %v5896 = vmul.f32 %v5895, 0.0
      %v5897 = vmul.f32 %v5524, %v5895
      %v5898 = vmul.f32 %v5525, %v5895
      %v5899 = vmul.f32 %v5526, %v5895
      %v5900 = vmul.f32 %v5527, %v5895
      %v5901 = vmul.f32 %v5528, %v5895
      %v5902 = vmul.f32 %v5529, %v5895
      %v5903 = vmul.f32 %v5530, %v5895
      %v5904 = vmul.f32 %v5531, %v5895
      %v5905 = vmul.f32 %v5532, %v5895
      %v5906 = vmul.f32 %v5533, %v5895
      %v5907 = vmul.f32 %v5534, %v5895
      %v5908 = vmul.f32 %v5535, %v5895
      %v5909 = vmul.f32 %v5536, %v5895
      %v5910 = vmul.f32 %v5537, %v5895
      %v5911 = vmul.f32 %v5538, %v5895
      %v5912 = vmul.f32 %v5539, %v5895
      %v5913 = vmul.f32 %v5540, %v5895
      %v5914 = vmul.f32 %v5541, %v5895
      %v5915 = vmul.f32 %v5542, %v5895
      %v5916 = vmul.f32 %v5543, %v5895
      %v5917 = vmul.f32 %v5544, %v5895
      %v5918 = vmul.f32 %v5545, %v5895
      %v5919 = vmul.f32 %v5546, %v5895
      %v5920 = vmul.f32 %v5547, %v5895
      %v5921 = vmul.f32 %v5548, %v5895
      %v5922 = vmul.f32 %v5549, %v5895
      %v5923 = vmul.f32 %v5550, %v5895
      %v5924 = vmul.f32 %v5551, %v5895
      %v5925 = vmul.f32 %v5552, %v5895
      %v5926 = vmul.f32 %v5553, %v5895
      %v5927 = vmul.f32 %v5554, %v5895
      %v5928 = vmul.f32 %v5555, %v5895
      %v5929 = vmul.f32 %v5556, %v5895
      %v5930 = vmul.f32 %v5557, %v5895
      %v5931 = vmul.f32 %v5558, %v5895
      %v5932 = vmul.f32 %v5559, %v5895
      %v5933 = vmul.f32 %v5560, %v5895
      %v5934 = vmul.f32 %v5561, %v5895
      %v5935 = vmul.f32 %v5562, %v5895
      %v5936 = vmul.f32 %v5563, %v5895
      %v5937 = vmul.f32 %v5564, %v5895
      %v5938 = vmul.f32 %v5565, %v5895
      %v5939 = vmul.f32 %v5566, %v5895
      %v5940 = vmul.f32 %v5567, %v5895
      %v5941 = vmul.f32 %v5568, %v5895
      %v5942 = vmul.f32 %v5569, %v5895
      %v5943 = vmul.f32 %v5570, %v5895
      %v5944 = vmul.f32 %v5571, %v5895
      %v5945 = vmul.f32 %v5572, %v5895
      %v5946 = vmul.f32 %v5573, %v5895
      %v5947 = vmul.f32 %v5574, %v5895
      %v5948 = vmul.f32 %v5575, %v5895
      %v5949 = vmul.f32 %v5576, %v5895
      %v5950 = vmul.f32 %v5577, %v5895
      %v5951 = vmul.f32 %v5578, %v5895
      %v5952 = vmul.f32 %v5579, %v5895
      %v5953 = vadd.f32 %v5828, %v5896
      %v5954 = vadd.f32 %v5829, %v5896
      %v5955 = vadd.f32 %v5830, %v5896
      %v5956 = vadd.f32 %v5831, %v5896
      %v5957 = vadd.f32 %v5832, %v5896
      %v5958 = vadd.f32 %v5833, %v5896
      %v5959 = vadd.f32 %v5834, %v5896
      %v5960 = vadd.f32 %v5835, %v5896
      %v5961 = vadd.f32 %v5836, %v5897
      %v5962 = vadd.f32 %v5837, %v5898
      %v5963 = vadd.f32 %v5838, %v5899
      %v5964 = vadd.f32 %v5839, %v5900
      %v5965 = vadd.f32 %v5840, %v5901
      %v5966 = vadd.f32 %v5841, %v5902
      %v5967 = vadd.f32 %v5842, %v5903
      %v5968 = vadd.f32 %v5843, %v5904
      %v5969 = vadd.f32 %v5844, %v5905
      %v5970 = vadd.f32 %v5845, %v5906
      %v5971 = vadd.f32 %v5846, %v5907
      %v5972 = vadd.f32 %v5847, %v5908
      %v5973 = vadd.f32 %v5848, %v5909
      %v5974 = vadd.f32 %v5849, %v5910
      %v5975 = vadd.f32 %v5850, %v5911
      %v5976 = vadd.f32 %v5851, %v5912
      %v5977 = vadd.f32 %v5852, %v5913
      %v5978 = vadd.f32 %v5853, %v5914
      %v5979 = vadd.f32 %v5854, %v5915
      %v5980 = vadd.f32 %v5855, %v5916
      %v5981 = vadd.f32 %v5856, %v5917
      %v5982 = vadd.f32 %v5857, %v5918
      %v5983 = vadd.f32 %v5858, %v5919
      %v5984 = vadd.f32 %v5859, %v5920
      %v5985 = vadd.f32 %v5860, %v5921
      %v5986 = vadd.f32 %v5861, %v5922
      %v5987 = vadd.f32 %v5862, %v5923
      %v5988 = vadd.f32 %v5863, %v5924
      %v5989 = vadd.f32 %v5864, %v5925
      %v5990 = vadd.f32 %v5865, %v5926
      %v5991 = vadd.f32 %v5866, %v5927
      %v5992 = vadd.f32 %v5867, %v5928
      %v5993 = vadd.f32 %v5868, %v5929
      %v5994 = vadd.f32 %v5869, %v5930
      %v5995 = vadd.f32 %v5870, %v5931
      %v5996 = vadd.f32 %v5871, %v5932
      %v5997 = vadd.f32 %v5872, %v5933
      %v5998 = vadd.f32 %v5873, %v5934
      %v5999 = vadd.f32 %v5874, %v5935
      %v6000 = vadd.f32 %v5875, %v5936
      %v6001 = vadd.f32 %v5876, %v5937
      %v6002 = vadd.f32 %v5877, %v5938
      %v6003 = vadd.f32 %v5878, %v5939
      %v6004 = vadd.f32 %v5879, %v5940
      %v6005 = vadd.f32 %v5880, %v5941
      %v6006 = vadd.f32 %v5881, %v5942
      %v6007 = vadd.f32 %v5882, %v5943
      %v6008 = vadd.f32 %v5883, %v5944
      %v6009 = vadd.f32 %v5884, %v5945
      %v6010 = vadd.f32 %v5885, %v5946
      %v6011 = vadd.f32 %v5886, %v5947
      %v6012 = vadd.f32 %v5887, %v5948
      %v6013 = vadd.f32 %v5888, %v5949
      %v6014 = vadd.f32 %v5889, %v5950
      %v6015 = vadd.f32 %v5890, %v5951
      %v6016 = vadd.f32 %v5891, %v5952
      %v6017 = vlaneseq
      %v6018 = vshrl.u32 %v6017, 7
      %v6019 = vsub.s32 4, %v6018
      %v6020 = vrot.slane %v5588, %v6019
      %v6021 = vmul.f32 %v6020, 0.0
      %v6022 = vmul.f32 %v5524, %v6020
      %v6023 = vmul.f32 %v5525, %v6020
      %v6024 = vmul.f32 %v5526, %v6020
      %v6025 = vmul.f32 %v5527, %v6020
      %v6026 = vmul.f32 %v5528, %v6020
      %v6027 = vmul.f32 %v5529, %v6020
      %v6028 = vmul.f32 %v5530, %v6020
      %v6029 = vmul.f32 %v5531, %v6020
      %v6030 = vmul.f32 %v5532, %v6020
      %v6031 = vmul.f32 %v5533, %v6020
      %v6032 = vmul.f32 %v5534, %v6020
      %v6033 = vmul.f32 %v5535, %v6020
      %v6034 = vmul.f32 %v5536, %v6020
      %v6035 = vmul.f32 %v5537, %v6020
      %v6036 = vmul.f32 %v5538, %v6020
      %v6037 = vmul.f32 %v5539, %v6020
      %v6038 = vmul.f32 %v5540, %v6020
      %v6039 = vmul.f32 %v5541, %v6020
      %v6040 = vmul.f32 %v5542, %v6020
      %v6041 = vmul.f32 %v5543, %v6020
      %v6042 = vmul.f32 %v5544, %v6020
      %v6043 = vmul.f32 %v5545, %v6020
      %v6044 = vmul.f32 %v5546, %v6020
      %v6045 = vmul.f32 %v5547, %v6020
      %v6046 = vmul.f32 %v5548, %v6020
      %v6047 = vmul.f32 %v5549, %v6020
      %v6048 = vmul.f32 %v5550, %v6020
      %v6049 = vmul.f32 %v5551, %v6020
      %v6050 = vmul.f32 %v5552, %v6020
      %v6051 = vmul.f32 %v5553, %v6020
      %v6052 = vmul.f32 %v5554, %v6020
      %v6053 = vmul.f32 %v5555, %v6020
      %v6054 = vmul.f32 %v5556, %v6020
      %v6055 = vmul.f32 %v5557, %v6020
      %v6056 = vmul.f32 %v5558, %v6020
      %v6057 = vmul.f32 %v5559, %v6020
      %v6058 = vmul.f32 %v5560, %v6020
      %v6059 = vmul.f32 %v5561, %v6020
      %v6060 = vmul.f32 %v5562, %v6020
      %v6061 = vmul.f32 %v5563, %v6020
      %v6062 = vmul.f32 %v5564, %v6020
      %v6063 = vmul.f32 %v5565, %v6020
      %v6064 = vmul.f32 %v5566, %v6020
      %v6065 = vmul.f32 %v5567, %v6020
      %v6066 = vmul.f32 %v5568, %v6020
      %v6067 = vmul.f32 %v5569, %v6020
      %v6068 = vmul.f32 %v5570, %v6020
      %v6069 = vmul.f32 %v5571, %v6020
      %v6070 = vadd.f32 %v5953, %v6021
      %v6071 = vadd.f32 %v5954, %v6021
      %v6072 = vadd.f32 %v5955, %v6021
      %v6073 = vadd.f32 %v5956, %v6021
      %v6074 = vadd.f32 %v5957, %v6021
      %v6075 = vadd.f32 %v5958, %v6021
      %v6076 = vadd.f32 %v5959, %v6021
      %v6077 = vadd.f32 %v5960, %v6021
      %v6078 = vadd.f32 %v5961, %v6021
      %v6079 = vadd.f32 %v5962, %v6021
      %v6080 = vadd.f32 %v5963, %v6021
      %v6081 = vadd.f32 %v5964, %v6021
      %v6082 = vadd.f32 %v5965, %v6021
      %v6083 = vadd.f32 %v5966, %v6021
      %v6084 = vadd.f32 %v5967, %v6021
      %v6085 = vadd.f32 %v5968, %v6021
      %v6086 = vadd.f32 %v5969, %v6022
      %v6087 = vadd.f32 %v5970, %v6023
      %v6088 = vadd.f32 %v5971, %v6024
      %v6089 = vadd.f32 %v5972, %v6025
      %v6090 = vadd.f32 %v5973, %v6026
      %v6091 = vadd.f32 %v5974, %v6027
      %v6092 = vadd.f32 %v5975, %v6028
      %v6093 = vadd.f32 %v5976, %v6029
      %v6094 = vadd.f32 %v5977, %v6030
      %v6095 = vadd.f32 %v5978, %v6031
      %v6096 = vadd.f32 %v5979, %v6032
      %v6097 = vadd.f32 %v5980, %v6033
      %v6098 = vadd.f32 %v5981, %v6034
      %v6099 = vadd.f32 %v5982, %v6035
      %v6100 = vadd.f32 %v5983, %v6036
      %v6101 = vadd.f32 %v5984, %v6037
      %v6102 = vadd.f32 %v5985, %v6038
      %v6103 = vadd.f32 %v5986, %v6039
      %v6104 = vadd.f32 %v5987, %v6040
      %v6105 = vadd.f32 %v5988, %v6041
      %v6106 = vadd.f32 %v5989, %v6042
      %v6107 = vadd.f32 %v5990, %v6043
      %v6108 = vadd.f32 %v5991, %v6044
      %v6109 = vadd.f32 %v5992, %v6045
      %v6110 = vadd.f32 %v5993, %v6046
      %v6111 = vadd.f32 %v5994, %v6047
      %v6112 = vadd.f32 %v5995, %v6048
      %v6113 = vadd.f32 %v5996, %v6049
      %v6114 = vadd.f32 %v5997, %v6050
      %v6115 = vadd.f32 %v5998, %v6051
      %v6116 = vadd.f32 %v5999, %v6052
      %v6117 = vadd.f32 %v6000, %v6053
      %v6118 = vadd.f32 %v6001, %v6054
      %v6119 = vadd.f32 %v6002, %v6055
      %v6120 = vadd.f32 %v6003, %v6056
      %v6121 = vadd.f32 %v6004, %v6057
      %v6122 = vadd.f32 %v6005, %v6058
      %v6123 = vadd.f32 %v6006, %v6059
      %v6124 = vadd.f32 %v6007, %v6060
      %v6125 = vadd.f32 %v6008, %v6061
      %v6126 = vadd.f32 %v6009, %v6062
      %v6127 = vadd.f32 %v6010, %v6063
      %v6128 = vadd.f32 %v6011, %v6064
      %v6129 = vadd.f32 %v6012, %v6065
      %v6130 = vadd.f32 %v6013, %v6066
      %v6131 = vadd.f32 %v6014, %v6067
      %v6132 = vadd.f32 %v6015, %v6068
      %v6133 = vadd.f32 %v6016, %v6069
      %v6134 = vpack.c.bf16 %v6071, %v6070
      %v6135 = vpack.c.bf16 %v6073, %v6072
      %v6136 = vpack.c.bf16 %v6075, %v6074
      %v6137 = vpack.c.bf16 %v6077, %v6076
      %v6138 = vpack.c.bf16 %v6079, %v6078
      %v6139 = vpack.c.bf16 %v6081, %v6080
      %v6140 = vpack.c.bf16 %v6083, %v6082
      %v6141 = vpack.c.bf16 %v6085, %v6084
      %v6142 = vpack.c.bf16 %v6087, %v6086
      %v6143 = vpack.c.bf16 %v6089, %v6088
      %v6144 = vpack.c.bf16 %v6091, %v6090
      %v6145 = vpack.c.bf16 %v6093, %v6092
      %v6146 = vpack.c.bf16 %v6095, %v6094
      %v6147 = vpack.c.bf16 %v6097, %v6096
      %v6148 = vpack.c.bf16 %v6099, %v6098
      %v6149 = vpack.c.bf16 %v6101, %v6100
      %v6150 = vpack.c.bf16 %v6103, %v6102
      %v6151 = vpack.c.bf16 %v6105, %v6104
      %v6152 = vpack.c.bf16 %v6107, %v6106
      %v6153 = vpack.c.bf16 %v6109, %v6108
      %v6154 = vpack.c.bf16 %v6111, %v6110
      %v6155 = vpack.c.bf16 %v6113, %v6112
      %v6156 = vpack.c.bf16 %v6115, %v6114
      %v6157 = vpack.c.bf16 %v6117, %v6116
      %v6158 = vpack.c.bf16 %v6119, %v6118
      %v6159 = vpack.c.bf16 %v6121, %v6120
      %v6160 = vpack.c.bf16 %v6123, %v6122
      %v6161 = vpack.c.bf16 %v6125, %v6124
      %v6162 = vpack.c.bf16 %v6127, %v6126
      %v6163 = vpack.c.bf16 %v6129, %v6128
      %v6164 = vpack.c.bf16 %v6131, %v6130
      %v6165 = vpack.c.bf16 %v6133, %v6132
      %v6166 = vld [vmem:[%s4] sm:$0xf]
      %v6167 = vld [vmem:[%s4 + $0x4] sm:$0xf]
      %v6168 = vld [vmem:[%s4 + $0x8] sm:$0x3]
      %v6169 = vld [vmem:[%s5] sm:$0x1]
      %v6171 = vlaneseq
      %v6172 = vshrl.u32 %v6171, 7
      %v6173 = vsub.s32 0, %v6172
      %v6174 = vrot.slane %v6169, %v6173
      %v6179 = vunpack.c.l.b16 %v6166
      %v6180 = vunpack.c.l.b16 %v6167
      %v6181 = vunpack.c.l.b16 %v6168
      %v6182 = vpack.c.b16 %v6180, %v6179
      %v6183 = vpack.c.b16 %v6181, %v6181
      %v6186 = vsel %vm361, %v6134, 0
      %v6189 = vsel %vm361, %v6135, 0
      %v6192 = vsel %vm361, %v6136, 0
      %v6195 = vsel %vm361, %v6137, 0
      %v6198 = vsel %vm361, %v6138, 0
      %v6201 = vsel %vm361, %v6139, 0
      %v6204 = vsel %vm361, %v6140, 0
      %v6207 = vsel %vm361, %v6141, 0
      %v6210 = vsel %vm361, %v6142, 0
      %v6213 = vsel %vm361, %v6143, 0
      %v6216 = vsel %vm361, %v6144, 0
      %v6219 = vsel %vm361, %v6145, 0
      %v6222 = vsel %vm361, %v6146, 0
      %v6225 = vsel %vm361, %v6147, 0
      %v6228 = vsel %vm361, %v6148, 0
      %v6231 = vsel %vm361, %v6149, 0
      %v6234 = vsel %vm361, %v6150, 0
      %v6237 = vsel %vm361, %v6151, 0
      %v6240 = vsel %vm361, %v6152, 0
      %v6243 = vsel %vm361, %v6153, 0
      %v6246 = vsel %vm361, %v6154, 0
      %v6249 = vsel %vm361, %v6155, 0
      %v6252 = vsel %vm361, %v6156, 0
      %v6255 = vsel %vm361, %v6157, 0
      %v6258 = vsel %vm361, %v6158, 0
      %v6261 = vsel %vm361, %v6159, 0
      %v6264 = vsel %vm361, %v6160, 0
      %v6267 = vsel %vm361, %v6161, 0
      %v6270 = vsel %vm361, %v6162, 0
      %v6273 = vsel %vm361, %v6163, 0
      %v6276 = vsel %vm361, %v6164, 0
      %v6279 = vsel %vm361, %v6165, 0
      %vm6281 = vcmask 1041408
      %v6283 = vsel %vm6281, %v6183, 0
      %6285 = vmatprep.subr.bf16.mxu0 0
      %6286 = vmatpush1.bf16.msra.mxu0 %v6182
      %6287 = vmatprep.subr.bf16.mxu0 0
      %6288 = vmatpush1.bf16.msra.mxu0 %v6283
      %6289 = vmatprep.subr.bf16.mxu0 0
      %6290 = vmatpush1.bf16.msra.mxu0 0
      %6291 = vmatprep.subr.bf16.mxu0 0
      %6292 = vmatpush1.bf16.msra.mxu0 0
      %6293 = vmatprep.subr.bf16.mxu0 0
      %6294 = vmatpush1.bf16.msra.mxu0 0
      %6295 = vmatprep.subr.bf16.mxu0 0
      %6296 = vmatpush1.bf16.msra.mxu0 0
      %6297 = vmatprep.subr.bf16.mxu0 0
      %6298 = vmatpush1.bf16.msra.mxu0 0
      %6299 = vmatprep.subr.bf16.mxu0 0
      %6300 = vmatpush1.bf16.msra.mxu0 0
      %6301 = vmatprep.subr.bf16.mxu0 0
      %6302 = vmatpush1.bf16.msra.mxu0 0
      %6303 = vmatprep.subr.bf16.mxu0 0
      %6304 = vmatpush1.bf16.msra.mxu0 0
      %6305 = vmatprep.subr.bf16.mxu0 0
      %6306 = vmatpush1.bf16.msra.mxu0 0
      %6307 = vmatprep.subr.bf16.mxu0 0
      %6308 = vmatpush1.bf16.msra.mxu0 0
      %6309 = vmatprep.subr.bf16.mxu0 0
      %6310 = vmatpush1.bf16.msra.mxu0 0
      %6311 = vmatprep.subr.bf16.mxu0 0
      %6312 = vmatpush1.bf16.msra.mxu0 0
      %6313 = vmatprep.subr.bf16.mxu0 0
      %6314 = vmatpush1.bf16.msra.mxu0 0
      %6315 = vmatprep.subr.bf16.mxu0 0
      %6316 = vmatpush1.bf16.msra.mxu0 0
      %6317 = vmatprep.mubr.bf16.mxu0 0
      %6318 = vmatmul.mubr.bf16.gmra.mrb[0].mxu0 %v6186
      %v6319 = vpop.f32.mrb[0].mxu0
      %v6320 = vadd.f32 %v6174, %v6319
      %v6321 = vpop.f32.mrb[0].mxu0
      %v6322 = vpop.f32.mrb[0].mxu0
      %v6323 = vadd.f32 %v6174, %v6322
      %v6324 = vpop.f32.mrb[0].mxu0
      %6325 = vmatprep.mubr.bf16.mxu0 0
      %6326 = vmatmul.mubr.bf16.gmra.mrb[0].mxu0 %v6189
      %v6327 = vpop.f32.mrb[0].mxu0
      %v6328 = vadd.f32 %v6174, %v6327
      %v6329 = vpop.f32.mrb[0].mxu0
      %v6330 = vpop.f32.mrb[0].mxu0
      %v6331 = vadd.f32 %v6174, %v6330
      %v6332 = vpop.f32.mrb[0].mxu0
      %6333 = vmatprep.mubr.bf16.mxu0 0
      %6334 = vmatmul.mubr.bf16.gmra.mrb[0].mxu0 %v6192
      %v6335 = vpop.f32.mrb[0].mxu0
      %v6336 = vadd.f32 %v6174, %v6335
      %v6337 = vpop.f32.mrb[0].mxu0
      %v6338 = vpop.f32.mrb[0].mxu0
      %v6339 = vadd.f32 %v6174, %v6338
      %v6340 = vpop.f32.mrb[0].mxu0
      %6341 = vmatprep.mubr.bf16.mxu0 0
      %6342 = vmatmul.mubr.bf16.gmra.mrb[0].mxu0 %v6195
      %v6343 = vpop.f32.mrb[0].mxu0
      %v6344 = vadd.f32 %v6174, %v6343
      %v6345 = vpop.f32.mrb[0].mxu0
      %v6346 = vpop.f32.mrb[0].mxu0
      %v6347 = vadd.f32 %v6174, %v6346
      %v6348 = vpop.f32.mrb[0].mxu0
      %6349 = vmatprep.mubr.bf16.mxu0 0
      %6350 = vmatmul.mubr.bf16.gmra.mrb[0].mxu0 %v6198
      %v6351 = vpop.f32.mrb[0].mxu0
      %v6352 = vadd.f32 %v6174, %v6351
      %v6353 = vpop.f32.mrb[0].mxu0
      %v6354 = vpop.f32.mrb[0].mxu0
      %v6355 = vadd.f32 %v6174, %v6354
      %v6356 = vpop.f32.mrb[0].mxu0
      %6357 = vmatprep.mubr.bf16.mxu0 0
      %6358 = vmatmul.mubr.bf16.gmra.mrb[0].mxu0 %v6201
      %v6359 = vpop.f32.mrb[0].mxu0
      %v6360 = vadd.f32 %v6174, %v6359
      %v6361 = vpop.f32.mrb[0].mxu0
      %v6362 = vpop.f32.mrb[0].mxu0
      %v6363 = vadd.f32 %v6174, %v6362
      %v6364 = vpop.f32.mrb[0].mxu0
      %6365 = vmatprep.mubr.bf16.mxu0 0
      %6366 = vmatmul.mubr.bf16.gmra.mrb[0].mxu0 %v6204
      %v6367 = vpop.f32.mrb[0].mxu0
      %v6368 = vadd.f32 %v6174, %v6367
      %v6369 = vpop.f32.mrb[0].mxu0
      %v6370 = vpop.f32.mrb[0].mxu0
      %v6371 = vadd.f32 %v6174, %v6370
      %v6372 = vpop.f32.mrb[0].mxu0
      %6373 = vmatprep.mubr.bf16.mxu0 0
      %6374 = vmatmul.mubr.bf16.gmra.mrb[0].mxu0 %v6207
      %v6375 = vpop.f32.mrb[0].mxu0
      %v6376 = vadd.f32 %v6174, %v6375
      %v6377 = vpop.f32.mrb[0].mxu0
      %v6378 = vpop.f32.mrb[0].mxu0
      %v6379 = vadd.f32 %v6174, %v6378
      %v6380 = vpop.f32.mrb[0].mxu0
      %6381 = vmatprep.mubr.bf16.mxu0 0
      %6382 = vmatmul.mubr.bf16.gmra.mrb[0].mxu0 %v6210
      %v6383 = vpop.f32.mrb[0].mxu0
      %v6384 = vadd.f32 %v6174, %v6383
      %v6385 = vpop.f32.mrb[0].mxu0
      %v6386 = vpop.f32.mrb[0].mxu0
      %v6387 = vadd.f32 %v6174, %v6386
      %v6388 = vpop.f32.mrb[0].mxu0
      %6389 = vmatprep.mubr.bf16.mxu0 0
      %6390 = vmatmul.mubr.bf16.gmra.mrb[0].mxu0 %v6213
      %v6391 = vpop.f32.mrb[0].mxu0
      %v6392 = vadd.f32 %v6174, %v6391
      %v6393 = vpop.f32.mrb[0].mxu0
      %v6394 = vpop.f32.mrb[0].mxu0
      %v6395 = vadd.f32 %v6174, %v6394
      %v6396 = vpop.f32.mrb[0].mxu0
      %6397 = vmatprep.mubr.bf16.mxu0 0
      %6398 = vmatmul.mubr.bf16.gmra.mrb[0].mxu0 %v6216
      %v6399 = vpop.f32.mrb[0].mxu0
      %v6400 = vadd.f32 %v6174, %v6399
      %v6401 = vpop.f32.mrb[0].mxu0
      %v6402 = vpop.f32.mrb[0].mxu0
      %v6403 = vadd.f32 %v6174, %v6402
      %v6404 = vpop.f32.mrb[0].mxu0
      %6405 = vmatprep.mubr.bf16.mxu0 0
      %6406 = vmatmul.mubr.bf16.gmra.mrb[0].mxu0 %v6219
      %v6407 = vpop.f32.mrb[0].mxu0
      %v6408 = vadd.f32 %v6174, %v6407
      %v6409 = vpop.f32.mrb[0].mxu0
      %v6410 = vpop.f32.mrb[0].mxu0
      %v6411 = vadd.f32 %v6174, %v6410
      %v6412 = vpop.f32.mrb[0].mxu0
      %6413 = vmatprep.mubr.bf16.mxu0 0
      %6414 = vmatmul.mubr.bf16.gmra.mrb[0].mxu0 %v6222
      %v6415 = vpop.f32.mrb[0].mxu0
      %v6416 = vadd.f32 %v6174, %v6415
      %v6417 = vpop.f32.mrb[0].mxu0
      %v6418 = vpop.f32.mrb[0].mxu0
      %v6419 = vadd.f32 %v6174, %v6418
      %v6420 = vpop.f32.mrb[0].mxu0
      %6421 = vmatprep.mubr.bf16.mxu0 0
      %6422 = vmatmul.mubr.bf16.gmra.mrb[0].mxu0 %v6225
      %v6423 = vpop.f32.mrb[0].mxu0
      %v6424 = vadd.f32 %v6174, %v6423
      %v6425 = vpop.f32.mrb[0].mxu0
      %v6426 = vpop.f32.mrb[0].mxu0
      %v6427 = vadd.f32 %v6174, %v6426
      %v6428 = vpop.f32.mrb[0].mxu0
      %6429 = vmatprep.mubr.bf16.mxu0 0
      %6430 = vmatmul.mubr.bf16.gmra.mrb[0].mxu0 %v6228
      %v6431 = vpop.f32.mrb[0].mxu0
      %v6432 = vadd.f32 %v6174, %v6431
      %v6433 = vpop.f32.mrb[0].mxu0
      %v6434 = vpop.f32.mrb[0].mxu0
      %v6435 = vadd.f32 %v6174, %v6434
      %v6436 = vpop.f32.mrb[0].mxu0
      %6437 = vmatprep.mubr.bf16.mxu0 0
      %6438 = vmatmul.mubr.bf16.gmra.mrb[0].mxu0 %v6231
      %v6439 = vpop.f32.mrb[0].mxu0
      %v6440 = vadd.f32 %v6174, %v6439
      %v6441 = vpop.f32.mrb[0].mxu0
      %v6442 = vpop.f32.mrb[0].mxu0
      %v6443 = vadd.f32 %v6174, %v6442
      %v6444 = vpop.f32.mrb[0].mxu0
      %6445 = vmatprep.mubr.bf16.mxu0 0
      %6446 = vmatmul.mubr.bf16.gmra.mrb[0].mxu0 %v6234
      %v6447 = vpop.f32.mrb[0].mxu0
      %v6448 = vadd.f32 %v6174, %v6447
      %v6449 = vpop.f32.mrb[0].mxu0
      %v6450 = vpop.f32.mrb[0].mxu0
      %v6451 = vadd.f32 %v6174, %v6450
      %v6452 = vpop.f32.mrb[0].mxu0
      %6453 = vmatprep.mubr.bf16.mxu0 0
      %6454 = vmatmul.mubr.bf16.gmra.mrb[0].mxu0 %v6237
      %v6455 = vpop.f32.mrb[0].mxu0
      %v6456 = vadd.f32 %v6174, %v6455
      %v6457 = vpop.f32.mrb[0].mxu0
      %v6458 = vpop.f32.mrb[0].mxu0
      %v6459 = vadd.f32 %v6174, %v6458
      %v6460 = vpop.f32.mrb[0].mxu0
      %6461 = vmatprep.mubr.bf16.mxu0 0
      %6462 = vmatmul.mubr.bf16.gmra.mrb[0].mxu0 %v6240
      %v6463 = vpop.f32.mrb[0].mxu0
      %v6464 = vadd.f32 %v6174, %v6463
      %v6465 = vpop.f32.mrb[0].mxu0
      %v6466 = vpop.f32.mrb[0].mxu0
      %v6467 = vadd.f32 %v6174, %v6466
      %v6468 = vpop.f32.mrb[0].mxu0
      %6469 = vmatprep.mubr.bf16.mxu0 0
      %6470 = vmatmul.mubr.bf16.gmra.mrb[0].mxu0 %v6243
      %v6471 = vpop.f32.mrb[0].mxu0
      %v6472 = vadd.f32 %v6174, %v6471
      %v6473 = vpop.f32.mrb[0].mxu0
      %v6474 = vpop.f32.mrb[0].mxu0
      %v6475 = vadd.f32 %v6174, %v6474
      %v6476 = vpop.f32.mrb[0].mxu0
      %6477 = vmatprep.mubr.bf16.mxu0 0
      %6478 = vmatmul.mubr.bf16.gmra.mrb[0].mxu0 %v6246
      %v6479 = vpop.f32.mrb[0].mxu0
      %v6480 = vadd.f32 %v6174, %v6479
      %v6481 = vpop.f32.mrb[0].mxu0
      %v6482 = vpop.f32.mrb[0].mxu0
      %v6483 = vadd.f32 %v6174, %v6482
      %v6484 = vpop.f32.mrb[0].mxu0
      %6485 = vmatprep.mubr.bf16.mxu0 0
      %6486 = vmatmul.mubr.bf16.gmra.mrb[0].mxu0 %v6249
      %v6487 = vpop.f32.mrb[0].mxu0
      %v6488 = vadd.f32 %v6174, %v6487
      %v6489 = vpop.f32.mrb[0].mxu0
      %v6490 = vpop.f32.mrb[0].mxu0
      %v6491 = vadd.f32 %v6174, %v6490
      %v6492 = vpop.f32.mrb[0].mxu0
      %6493 = vmatprep.mubr.bf16.mxu0 0
      %6494 = vmatmul.mubr.bf16.gmra.mrb[0].mxu0 %v6252
      %v6495 = vpop.f32.mrb[0].mxu0
      %v6496 = vadd.f32 %v6174, %v6495
      %v6497 = vpop.f32.mrb[0].mxu0
      %v6498 = vpop.f32.mrb[0].mxu0
      %v6499 = vadd.f32 %v6174, %v6498
      %v6500 = vpop.f32.mrb[0].mxu0
      %6501 = vmatprep.mubr.bf16.mxu0 0
      %6502 = vmatmul.mubr.bf16.gmra.mrb[0].mxu0 %v6255
      %v6503 = vpop.f32.mrb[0].mxu0
      %v6504 = vadd.f32 %v6174, %v6503
      %v6505 = vpop.f32.mrb[0].mxu0
      %v6506 = vpop.f32.mrb[0].mxu0
      %v6507 = vadd.f32 %v6174, %v6506
      %v6508 = vpop.f32.mrb[0].mxu0
      %6509 = vmatprep.mubr.bf16.mxu0 0
      %6510 = vmatmul.mubr.bf16.gmra.mrb[0].mxu0 %v6258
      %v6511 = vpop.f32.mrb[0].mxu0
      %v6512 = vadd.f32 %v6174, %v6511
      %v6513 = vpop.f32.mrb[0].mxu0
      %v6514 = vpop.f32.mrb[0].mxu0
      %v6515 = vadd.f32 %v6174, %v6514
      %v6516 = vpop.f32.mrb[0].mxu0
      %6517 = vmatprep.mubr.bf16.mxu0 0
      %6518 = vmatmul.mubr.bf16.gmra.mrb[0].mxu0 %v6261
      %v6519 = vpop.f32.mrb[0].mxu0
      %v6520 = vadd.f32 %v6174, %v6519
      %v6521 = vpop.f32.mrb[0].mxu0
      %v6522 = vpop.f32.mrb[0].mxu0
      %v6523 = vadd.f32 %v6174, %v6522
      %v6524 = vpop.f32.mrb[0].mxu0
      %6525 = vmatprep.mubr.bf16.mxu0 0
      %6526 = vmatmul.mubr.bf16.gmra.mrb[0].mxu0 %v6264
      %v6527 = vpop.f32.mrb[0].mxu0
      %v6528 = vadd.f32 %v6174, %v6527
      %v6529 = vpop.f32.mrb[0].mxu0
      %v6530 = vpop.f32.mrb[0].mxu0
      %v6531 = vadd.f32 %v6174, %v6530
      %v6532 = vpop.f32.mrb[0].mxu0
      %6533 = vmatprep.mubr.bf16.mxu0 0
      %6534 = vmatmul.mubr.bf16.gmra.mrb[0].mxu0 %v6267
      %v6535 = vpop.f32.mrb[0].mxu0
      %v6536 = vadd.f32 %v6174, %v6535
      %v6537 = vpop.f32.mrb[0].mxu0
      %v6538 = vpop.f32.mrb[0].mxu0
      %v6539 = vadd.f32 %v6174, %v6538
      %v6540 = vpop.f32.mrb[0].mxu0
      %6541 = vmatprep.mubr.bf16.mxu0 0
      %6542 = vmatmul.mubr.bf16.gmra.mrb[0].mxu0 %v6270
      %v6543 = vpop.f32.mrb[0].mxu0
      %v6544 = vadd.f32 %v6174, %v6543
      %v6545 = vpop.f32.mrb[0].mxu0
      %v6546 = vpop.f32.mrb[0].mxu0
      %v6547 = vadd.f32 %v6174, %v6546
      %v6548 = vpop.f32.mrb[0].mxu0
      %6549 = vmatprep.mubr.bf16.mxu0 0
      %6550 = vmatmul.mubr.bf16.gmra.mrb[0].mxu0 %v6273
      %v6551 = vpop.f32.mrb[0].mxu0
      %v6552 = vadd.f32 %v6174, %v6551
      %v6553 = vpop.f32.mrb[0].mxu0
      %v6554 = vpop.f32.mrb[0].mxu0
      %v6555 = vadd.f32 %v6174, %v6554
      %v6556 = vpop.f32.mrb[0].mxu0
      %6557 = vmatprep.mubr.bf16.mxu0 0
      %6558 = vmatmul.mubr.bf16.gmra.mrb[0].mxu0 %v6276
      %v6559 = vpop.f32.mrb[0].mxu0
      %v6560 = vadd.f32 %v6174, %v6559
      %v6561 = vpop.f32.mrb[0].mxu0
      %v6562 = vpop.f32.mrb[0].mxu0
      %v6563 = vadd.f32 %v6174, %v6562
      %v6564 = vpop.f32.mrb[0].mxu0
      %6565 = vmatprep.mubr.bf16.mxu0 0
      %6566 = vmatmul.mubr.bf16.gmra.mrb[0].mxu0 %v6279
      %v6567 = vpop.f32.mrb[0].mxu0
      %v6568 = vadd.f32 %v6174, %v6567
      %v6569 = vpop.f32.mrb[0].mxu0
      %v6570 = vpop.f32.mrb[0].mxu0
      %v6571 = vadd.f32 %v6174, %v6570
      %v6572 = vpop.f32.mrb[0].mxu0
      %6573 = vdwg.mxu0
      %v6574 = vmul.f32 %v6328, %v5592
      %v6575 = vmul.f32 %v6331, %v5592
      %v6576 = vmul.f32 %v6336, %v5592
      %v6577 = vmul.f32 %v6339, %v5592
      %v6578 = vmul.f32 %v6344, %v5592
      %v6579 = vmul.f32 %v6347, %v5592
      %v6580 = vmul.f32 %v6360, %v5592
      %v6581 = vmul.f32 %v6363, %v5592
      %v6582 = vmul.f32 %v6368, %v5592
      %v6583 = vmul.f32 %v6371, %v5592
      %v6584 = vmul.f32 %v6376, %v5592
      %v6585 = vmul.f32 %v6379, %v5592
      %v6586 = vmul.f32 %v6392, %v5592
      %v6587 = vmul.f32 %v6395, %v5592
      %v6588 = vmul.f32 %v6400, %v5592
      %v6589 = vmul.f32 %v6403, %v5592
      %v6590 = vmul.f32 %v6408, %v5592
      %v6591 = vmul.f32 %v6411, %v5592
      %v6592 = vmul.f32 %v6424, %v5592
      %v6593 = vmul.f32 %v6427, %v5592
      %v6594 = vmul.f32 %v6432, %v5592
      %v6595 = vmul.f32 %v6435, %v5592
      %v6596 = vmul.f32 %v6440, %v5592
      %v6597 = vmul.f32 %v6443, %v5592
      %v6598 = vmul.f32 %v6456, %v5592
      %v6599 = vmul.f32 %v6459, %v5592
      %v6600 = vmul.f32 %v6464, %v5592
      %v6601 = vmul.f32 %v6467, %v5592
      %v6602 = vmul.f32 %v6472, %v5592
      %v6603 = vmul.f32 %v6475, %v5592
      %v6604 = vmul.f32 %v6488, %v5592
      %v6605 = vmul.f32 %v6491, %v5592
      %v6606 = vmul.f32 %v6496, %v5592
      %v6607 = vmul.f32 %v6499, %v5592
      %v6608 = vmul.f32 %v6504, %v5592
      %v6609 = vmul.f32 %v6507, %v5592
      %v6610 = vmul.f32 %v6520, %v5592
      %v6611 = vmul.f32 %v6523, %v5592
      %v6612 = vmul.f32 %v6528, %v5592
      %v6613 = vmul.f32 %v6531, %v5592
      %v6614 = vmul.f32 %v6536, %v5592
      %v6615 = vmul.f32 %v6539, %v5592
      %v6616 = vmul.f32 %v6552, %v5592
      %v6617 = vmul.f32 %v6555, %v5592
      %v6618 = vmul.f32 %v6560, %v5592
      %v6619 = vmul.f32 %v6563, %v5592
      %v6620 = vmul.f32 %v6568, %v5592
      %v6621 = vmul.f32 %v6571, %v5592
      %v6622 = vmul.f32 %v6323, %v5645
      %v6623 = vmul.f32 %v6328, %v5645
      %v6624 = vmul.f32 %v6331, %v5645
      %v6625 = vmul.f32 %v6336, %v5645
      %v6626 = vmul.f32 %v6339, %v5645
      %v6627 = vmul.f32 %v6344, %v5645
      %v6628 = vmul.f32 %v6347, %v5645
      %v6629 = vmul.f32 %v6355, %v5645
      %v6630 = vmul.f32 %v6360, %v5645
      %v6631 = vmul.f32 %v6363, %v5645
      %v6632 = vmul.f32 %v6368, %v5645
      %v6633 = vmul.f32 %v6371, %v5645
      %v6634 = vmul.f32 %v6376, %v5645
      %v6635 = vmul.f32 %v6379, %v5645
      %v6636 = vmul.f32 %v6387, %v5645
      %v6637 = vmul.f32 %v6392, %v5645
      %v6638 = vmul.f32 %v6395, %v5645
      %v6639 = vmul.f32 %v6400, %v5645
      %v6640 = vmul.f32 %v6403, %v5645
      %v6641 = vmul.f32 %v6408, %v5645
      %v6642 = vmul.f32 %v6411, %v5645
      %v6643 = vmul.f32 %v6419, %v5645
      %v6644 = vmul.f32 %v6424, %v5645
      %v6645 = vmul.f32 %v6427, %v5645
      %v6646 = vmul.f32 %v6432, %v5645
      %v6647 = vmul.f32 %v6435, %v5645
      %v6648 = vmul.f32 %v6440, %v5645
      %v6649 = vmul.f32 %v6443, %v5645
      %v6650 = vmul.f32 %v6451, %v5645
      %v6651 = vmul.f32 %v6456, %v5645
      %v6652 = vmul.f32 %v6459, %v5645
      %v6653 = vmul.f32 %v6464, %v5645
      %v6654 = vmul.f32 %v6467, %v5645
      %v6655 = vmul.f32 %v6472, %v5645
      %v6656 = vmul.f32 %v6475, %v5645
      %v6657 = vmul.f32 %v6483, %v5645
      %v6658 = vmul.f32 %v6488, %v5645
      %v6659 = vmul.f32 %v6491, %v5645
      %v6660 = vmul.f32 %v6496, %v5645
      %v6661 = vmul.f32 %v6499, %v5645
      %v6662 = vmul.f32 %v6504, %v5645
      %v6663 = vmul.f32 %v6507, %v5645
      %v6664 = vmul.f32 %v6515, %v5645
      %v6665 = vmul.f32 %v6520, %v5645
      %v6666 = vmul.f32 %v6523, %v5645
      %v6667 = vmul.f32 %v6528, %v5645
      %v6668 = vmul.f32 %v6531, %v5645
      %v6669 = vmul.f32 %v6536, %v5645
      %v6670 = vmul.f32 %v6539, %v5645
      %v6671 = vmul.f32 %v6547, %v5645
      %v6672 = vmul.f32 %v6552, %v5645
      %v6673 = vmul.f32 %v6555, %v5645
      %v6674 = vmul.f32 %v6560, %v5645
      %v6675 = vmul.f32 %v6563, %v5645
      %v6676 = vmul.f32 %v6568, %v5645
      %v6677 = vmul.f32 %v6571, %v5645
      %v6678 = vadd.f32 %v6574, %v6622
      %v6679 = vadd.f32 %v6575, %v6623
      %v6680 = vadd.f32 %v6576, %v6624
      %v6681 = vadd.f32 %v6577, %v6625
      %v6682 = vadd.f32 %v6578, %v6626
      %v6683 = vadd.f32 %v6579, %v6627
      %v6684 = vadd.f32 %v5641, %v6628
      %v6685 = vadd.f32 %v6580, %v6629
      %v6686 = vadd.f32 %v6581, %v6630
      %v6687 = vadd.f32 %v6582, %v6631
      %v6688 = vadd.f32 %v6583, %v6632
      %v6689 = vadd.f32 %v6584, %v6633
      %v6690 = vadd.f32 %v6585, %v6634
      %v6691 = vadd.f32 %v5641, %v6635
      %v6692 = vadd.f32 %v6586, %v6636
      %v6693 = vadd.f32 %v6587, %v6637
      %v6694 = vadd.f32 %v6588, %v6638
      %v6695 = vadd.f32 %v6589, %v6639
      %v6696 = vadd.f32 %v6590, %v6640
      %v6697 = vadd.f32 %v6591, %v6641
      %v6698 = vadd.f32 %v5641, %v6642
      %v6699 = vadd.f32 %v6592, %v6643
      %v6700 = vadd.f32 %v6593, %v6644
      %v6701 = vadd.f32 %v6594, %v6645
      %v6702 = vadd.f32 %v6595, %v6646
      %v6703 = vadd.f32 %v6596, %v6647
      %v6704 = vadd.f32 %v6597, %v6648
      %v6705 = vadd.f32 %v5641, %v6649
      %v6706 = vadd.f32 %v6598, %v6650
      %v6707 = vadd.f32 %v6599, %v6651
      %v6708 = vadd.f32 %v6600, %v6652
      %v6709 = vadd.f32 %v6601, %v6653
      %v6710 = vadd.f32 %v6602, %v6654
      %v6711 = vadd.f32 %v6603, %v6655
      %v6712 = vadd.f32 %v5641, %v6656
      %v6713 = vadd.f32 %v6604, %v6657
      %v6714 = vadd.f32 %v6605, %v6658
      %v6715 = vadd.f32 %v6606, %v6659
      %v6716 = vadd.f32 %v6607, %v6660
      %v6717 = vadd.f32 %v6608, %v6661
      %v6718 = vadd.f32 %v6609, %v6662
      %v6719 = vadd.f32 %v5641, %v6663
      %v6720 = vadd.f32 %v6610, %v6664
      %v6721 = vadd.f32 %v6611, %v6665
      %v6722 = vadd.f32 %v6612, %v6666
      %v6723 = vadd.f32 %v6613, %v6667
      %v6724 = vadd.f32 %v6614, %v6668
      %v6725 = vadd.f32 %v6615, %v6669
      %v6726 = vadd.f32 %v5641, %v6670
      %v6727 = vadd.f32 %v6616, %v6671
      %v6728 = vadd.f32 %v6617, %v6672
      %v6729 = vadd.f32 %v6618, %v6673
      %v6730 = vadd.f32 %v6619, %v6674
      %v6731 = vadd.f32 %v6620, %v6675
      %v6732 = vadd.f32 %v6621, %v6676
      %v6733 = vadd.f32 %v5641, %v6677
      %v6734 = vmul.f32 %v6320, %v5763
      %v6735 = vmul.f32 %v6323, %v5763
      %v6736 = vmul.f32 %v6328, %v5763
      %v6737 = vmul.f32 %v6331, %v5763
      %v6738 = vmul.f32 %v6336, %v5763
      %v6739 = vmul.f32 %v6339, %v5763
      %v6740 = vmul.f32 %v6344, %v5763
      %v6741 = vmul.f32 %v6347, %v5763
      %v6742 = vmul.f32 %v6352, %v5763
      %v6743 = vmul.f32 %v6355, %v5763
      %v6744 = vmul.f32 %v6360, %v5763
      %v6745 = vmul.f32 %v6363, %v5763
      %v6746 = vmul.f32 %v6368, %v5763
      %v6747 = vmul.f32 %v6371, %v5763
      %v6748 = vmul.f32 %v6376, %v5763
      %v6749 = vmul.f32 %v6379, %v5763
      %v6750 = vmul.f32 %v6384, %v5763
      %v6751 = vmul.f32 %v6387, %v5763
      %v6752 = vmul.f32 %v6392, %v5763
      %v6753 = vmul.f32 %v6395, %v5763
      %v6754 = vmul.f32 %v6400, %v5763
      %v6755 = vmul.f32 %v6403, %v5763
      %v6756 = vmul.f32 %v6408, %v5763
      %v6757 = vmul.f32 %v6411, %v5763
      %v6758 = vmul.f32 %v6416, %v5763
      %v6759 = vmul.f32 %v6419, %v5763
      %v6760 = vmul.f32 %v6424, %v5763
      %v6761 = vmul.f32 %v6427, %v5763
      %v6762 = vmul.f32 %v6432, %v5763
      %v6763 = vmul.f32 %v6435, %v5763
      %v6764 = vmul.f32 %v6440, %v5763
      %v6765 = vmul.f32 %v6443, %v5763
      %v6766 = vmul.f32 %v6448, %v5763
      %v6767 = vmul.f32 %v6451, %v5763
      %v6768 = vmul.f32 %v6456, %v5763
      %v6769 = vmul.f32 %v6459, %v5763
      %v6770 = vmul.f32 %v6464, %v5763
      %v6771 = vmul.f32 %v6467, %v5763
      %v6772 = vmul.f32 %v6472, %v5763
      %v6773 = vmul.f32 %v6475, %v5763
      %v6774 = vmul.f32 %v6480, %v5763
      %v6775 = vmul.f32 %v6483, %v5763
      %v6776 = vmul.f32 %v6488, %v5763
      %v6777 = vmul.f32 %v6491, %v5763
      %v6778 = vmul.f32 %v6496, %v5763
      %v6779 = vmul.f32 %v6499, %v5763
      %v6780 = vmul.f32 %v6504, %v5763
      %v6781 = vmul.f32 %v6507, %v5763
      %v6782 = vmul.f32 %v6512, %v5763
      %v6783 = vmul.f32 %v6515, %v5763
      %v6784 = vmul.f32 %v6520, %v5763
      %v6785 = vmul.f32 %v6523, %v5763
      %v6786 = vmul.f32 %v6528, %v5763
      %v6787 = vmul.f32 %v6531, %v5763
      %v6788 = vmul.f32 %v6536, %v5763
      %v6789 = vmul.f32 %v6539, %v5763
      %v6790 = vmul.f32 %v6544, %v5763
      %v6791 = vmul.f32 %v6547, %v5763
      %v6792 = vmul.f32 %v6552, %v5763
      %v6793 = vmul.f32 %v6555, %v5763
      %v6794 = vmul.f32 %v6560, %v5763
      %v6795 = vmul.f32 %v6563, %v5763
      %v6796 = vmul.f32 %v6568, %v5763
      %v6797 = vmul.f32 %v6571, %v5763
      %v6798 = vadd.f32 %v6678, %v6734
      %v6799 = vadd.f32 %v6679, %v6735
      %v6800 = vadd.f32 %v6680, %v6736
      %v6801 = vadd.f32 %v6681, %v6737
      %v6802 = vadd.f32 %v6682, %v6738
      %v6803 = vadd.f32 %v6683, %v6739
      %v6804 = vadd.f32 %v6684, %v6740
      %v6805 = vadd.f32 %v5759, %v6741
      %v6806 = vadd.f32 %v6685, %v6742
      %v6807 = vadd.f32 %v6686, %v6743
      %v6808 = vadd.f32 %v6687, %v6744
      %v6809 = vadd.f32 %v6688, %v6745
      %v6810 = vadd.f32 %v6689, %v6746
      %v6811 = vadd.f32 %v6690, %v6747
      %v6812 = vadd.f32 %v6691, %v6748
      %v6813 = vadd.f32 %v5759, %v6749
      %v6814 = vadd.f32 %v6692, %v6750
      %v6815 = vadd.f32 %v6693, %v6751
      %v6816 = vadd.f32 %v6694, %v6752
      %v6817 = vadd.f32 %v6695, %v6753
      %v6818 = vadd.f32 %v6696, %v6754
      %v6819 = vadd.f32 %v6697, %v6755
      %v6820 = vadd.f32 %v6698, %v6756
      %v6821 = vadd.f32 %v5759, %v6757
      %v6822 = vadd.f32 %v6699, %v6758
      %v6823 = vadd.f32 %v6700, %v6759
      %v6824 = vadd.f32 %v6701, %v6760
      %v6825 = vadd.f32 %v6702, %v6761
      %v6826 = vadd.f32 %v6703, %v6762
      %v6827 = vadd.f32 %v6704, %v6763
      %v6828 = vadd.f32 %v6705, %v6764
      %v6829 = vadd.f32 %v5759, %v6765
      %v6830 = vadd.f32 %v6706, %v6766
      %v6831 = vadd.f32 %v6707, %v6767
      %v6832 = vadd.f32 %v6708, %v6768
      %v6833 = vadd.f32 %v6709, %v6769
      %v6834 = vadd.f32 %v6710, %v6770
      %v6835 = vadd.f32 %v6711, %v6771
      %v6836 = vadd.f32 %v6712, %v6772
      %v6837 = vadd.f32 %v5759, %v6773
      %v6838 = vadd.f32 %v6713, %v6774
      %v6839 = vadd.f32 %v6714, %v6775
      %v6840 = vadd.f32 %v6715, %v6776
      %v6841 = vadd.f32 %v6716, %v6777
      %v6842 = vadd.f32 %v6717, %v6778
      %v6843 = vadd.f32 %v6718, %v6779
      %v6844 = vadd.f32 %v6719, %v6780
      %v6845 = vadd.f32 %v5759, %v6781
      %v6846 = vadd.f32 %v6720, %v6782
      %v6847 = vadd.f32 %v6721, %v6783
      %v6848 = vadd.f32 %v6722, %v6784
      %v6849 = vadd.f32 %v6723, %v6785
      %v6850 = vadd.f32 %v6724, %v6786
      %v6851 = vadd.f32 %v6725, %v6787
      %v6852 = vadd.f32 %v6726, %v6788
      %v6853 = vadd.f32 %v5759, %v6789
      %v6854 = vadd.f32 %v6727, %v6790
      %v6855 = vadd.f32 %v6728, %v6791
      %v6856 = vadd.f32 %v6729, %v6792
      %v6857 = vadd.f32 %v6730, %v6793
      %v6858 = vadd.f32 %v6731, %v6794
      %v6859 = vadd.f32 %v6732, %v6795
      %v6860 = vadd.f32 %v6733, %v6796
      %v6861 = vadd.f32 %v5759, %v6797
      %v6862 = vmul.f32 %v6320, %v5895
      %v6863 = vmul.f32 %v6323, %v5895
      %v6864 = vmul.f32 %v6328, %v5895
      %v6865 = vmul.f32 %v6331, %v5895
      %v6866 = vmul.f32 %v6336, %v5895
      %v6867 = vmul.f32 %v6339, %v5895
      %v6868 = vmul.f32 %v6344, %v5895
      %v6869 = vmul.f32 %v6352, %v5895
      %v6870 = vmul.f32 %v6355, %v5895
      %v6871 = vmul.f32 %v6360, %v5895
      %v6872 = vmul.f32 %v6363, %v5895
      %v6873 = vmul.f32 %v6368, %v5895
      %v6874 = vmul.f32 %v6371, %v5895
      %v6875 = vmul.f32 %v6376, %v5895
      %v6876 = vmul.f32 %v6384, %v5895
      %v6877 = vmul.f32 %v6387, %v5895
      %v6878 = vmul.f32 %v6392, %v5895
      %v6879 = vmul.f32 %v6395, %v5895
      %v6880 = vmul.f32 %v6400, %v5895
      %v6881 = vmul.f32 %v6403, %v5895
      %v6882 = vmul.f32 %v6408, %v5895
      %v6883 = vmul.f32 %v6416, %v5895
      %v6884 = vmul.f32 %v6419, %v5895
      %v6885 = vmul.f32 %v6424, %v5895
      %v6886 = vmul.f32 %v6427, %v5895
      %v6887 = vmul.f32 %v6432, %v5895
      %v6888 = vmul.f32 %v6435, %v5895
      %v6889 = vmul.f32 %v6440, %v5895
      %v6890 = vmul.f32 %v6448, %v5895
      %v6891 = vmul.f32 %v6451, %v5895
      %v6892 = vmul.f32 %v6456, %v5895
      %v6893 = vmul.f32 %v6459, %v5895
      %v6894 = vmul.f32 %v6464, %v5895
      %v6895 = vmul.f32 %v6467, %v5895
      %v6896 = vmul.f32 %v6472, %v5895
      %v6897 = vmul.f32 %v6480, %v5895
      %v6898 = vmul.f32 %v6483, %v5895
      %v6899 = vmul.f32 %v6488, %v5895
      %v6900 = vmul.f32 %v6491, %v5895
      %v6901 = vmul.f32 %v6496, %v5895
      %v6902 = vmul.f32 %v6499, %v5895
      %v6903 = vmul.f32 %v6504, %v5895
      %v6904 = vmul.f32 %v6512, %v5895
      %v6905 = vmul.f32 %v6515, %v5895
      %v6906 = vmul.f32 %v6520, %v5895
      %v6907 = vmul.f32 %v6523, %v5895
      %v6908 = vmul.f32 %v6528, %v5895
      %v6909 = vmul.f32 %v6531, %v5895
      %v6910 = vmul.f32 %v6536, %v5895
      %v6911 = vmul.f32 %v6544, %v5895
      %v6912 = vmul.f32 %v6547, %v5895
      %v6913 = vmul.f32 %v6552, %v5895
      %v6914 = vmul.f32 %v6555, %v5895
      %v6915 = vmul.f32 %v6560, %v5895
      %v6916 = vmul.f32 %v6563, %v5895
      %v6917 = vmul.f32 %v6568, %v5895
      %v6918 = vadd.f32 %v6798, %v5896
      %v6919 = vadd.f32 %v6799, %v6862
      %v6920 = vadd.f32 %v6800, %v6863
      %v6921 = vadd.f32 %v6801, %v6864
      %v6922 = vadd.f32 %v6802, %v6865
      %v6923 = vadd.f32 %v6803, %v6866
      %v6924 = vadd.f32 %v6804, %v6867
      %v6925 = vadd.f32 %v6805, %v6868
      %v6926 = vadd.f32 %v6806, %v5896
      %v6927 = vadd.f32 %v6807, %v6869
      %v6928 = vadd.f32 %v6808, %v6870
      %v6929 = vadd.f32 %v6809, %v6871
      %v6930 = vadd.f32 %v6810, %v6872
      %v6931 = vadd.f32 %v6811, %v6873
      %v6932 = vadd.f32 %v6812, %v6874
      %v6933 = vadd.f32 %v6813, %v6875
      %v6934 = vadd.f32 %v6814, %v5896
      %v6935 = vadd.f32 %v6815, %v6876
      %v6936 = vadd.f32 %v6816, %v6877
      %v6937 = vadd.f32 %v6817, %v6878
      %v6938 = vadd.f32 %v6818, %v6879
      %v6939 = vadd.f32 %v6819, %v6880
      %v6940 = vadd.f32 %v6820, %v6881
      %v6941 = vadd.f32 %v6821, %v6882
      %v6942 = vadd.f32 %v6822, %v5896
      %v6943 = vadd.f32 %v6823, %v6883
      %v6944 = vadd.f32 %v6824, %v6884
      %v6945 = vadd.f32 %v6825, %v6885
      %v6946 = vadd.f32 %v6826, %v6886
      %v6947 = vadd.f32 %v6827, %v6887
      %v6948 = vadd.f32 %v6828, %v6888
      %v6949 = vadd.f32 %v6829, %v6889
      %v6950 = vadd.f32 %v6830, %v5896
      %v6951 = vadd.f32 %v6831, %v6890
      %v6952 = vadd.f32 %v6832, %v6891
      %v6953 = vadd.f32 %v6833, %v6892
      %v6954 = vadd.f32 %v6834, %v6893
      %v6955 = vadd.f32 %v6835, %v6894
      %v6956 = vadd.f32 %v6836, %v6895
      %v6957 = vadd.f32 %v6837, %v6896
      %v6958 = vadd.f32 %v6838, %v5896
      %v6959 = vadd.f32 %v6839, %v6897
      %v6960 = vadd.f32 %v6840, %v6898
      %v6961 = vadd.f32 %v6841, %v6899
      %v6962 = vadd.f32 %v6842, %v6900
      %v6963 = vadd.f32 %v6843, %v6901
      %v6964 = vadd.f32 %v6844, %v6902
      %v6965 = vadd.f32 %v6845, %v6903
      %v6966 = vadd.f32 %v6846, %v5896
      %v6967 = vadd.f32 %v6847, %v6904
      %v6968 = vadd.f32 %v6848, %v6905
      %v6969 = vadd.f32 %v6849, %v6906
      %v6970 = vadd.f32 %v6850, %v6907
      %v6971 = vadd.f32 %v6851, %v6908
      %v6972 = vadd.f32 %v6852, %v6909
      %v6973 = vadd.f32 %v6853, %v6910
      %v6974 = vadd.f32 %v6854, %v5896
      %v6975 = vadd.f32 %v6855, %v6911
      %v6976 = vadd.f32 %v6856, %v6912
      %v6977 = vadd.f32 %v6857, %v6913
      %v6978 = vadd.f32 %v6858, %v6914
      %v6979 = vadd.f32 %v6859, %v6915
      %v6980 = vadd.f32 %v6860, %v6916
      %v6981 = vadd.f32 %v6861, %v6917
      %v6982 = vmul.f32 %v6320, %v6020
      %v6983 = vmul.f32 %v6323, %v6020
      %v6984 = vmul.f32 %v6328, %v6020
      %v6985 = vmul.f32 %v6331, %v6020
      %v6986 = vmul.f32 %v6336, %v6020
      %v6987 = vmul.f32 %v6339, %v6020
      %v6988 = vmul.f32 %v6352, %v6020
      %v6989 = vmul.f32 %v6355, %v6020
      %v6990 = vmul.f32 %v6360, %v6020
      %v6991 = vmul.f32 %v6363, %v6020
      %v6992 = vmul.f32 %v6368, %v6020
      %v6993 = vmul.f32 %v6371, %v6020
      %v6994 = vmul.f32 %v6384, %v6020
      %v6995 = vmul.f32 %v6387, %v6020
      %v6996 = vmul.f32 %v6392, %v6020
      %v6997 = vmul.f32 %v6395, %v6020
      %v6998 = vmul.f32 %v6400, %v6020
      %v6999 = vmul.f32 %v6403, %v6020
      %v7000 = vmul.f32 %v6416, %v6020
      %v7001 = vmul.f32 %v6419, %v6020
      %v7002 = vmul.f32 %v6424, %v6020
      %v7003 = vmul.f32 %v6427, %v6020
      %v7004 = vmul.f32 %v6432, %v6020
      %v7005 = vmul.f32 %v6435, %v6020
      %v7006 = vmul.f32 %v6448, %v6020
      %v7007 = vmul.f32 %v6451, %v6020
      %v7008 = vmul.f32 %v6456, %v6020
      %v7009 = vmul.f32 %v6459, %v6020
      %v7010 = vmul.f32 %v6464, %v6020
      %v7011 = vmul.f32 %v6467, %v6020
      %v7012 = vmul.f32 %v6480, %v6020
      %v7013 = vmul.f32 %v6483, %v6020
      %v7014 = vmul.f32 %v6488, %v6020
      %v7015 = vmul.f32 %v6491, %v6020
      %v7016 = vmul.f32 %v6496, %v6020
      %v7017 = vmul.f32 %v6499, %v6020
      %v7018 = vmul.f32 %v6512, %v6020
      %v7019 = vmul.f32 %v6515, %v6020
      %v7020 = vmul.f32 %v6520, %v6020
      %v7021 = vmul.f32 %v6523, %v6020
      %v7022 = vmul.f32 %v6528, %v6020
      %v7023 = vmul.f32 %v6531, %v6020
      %v7024 = vmul.f32 %v6544, %v6020
      %v7025 = vmul.f32 %v6547, %v6020
      %v7026 = vmul.f32 %v6552, %v6020
      %v7027 = vmul.f32 %v6555, %v6020
      %v7028 = vmul.f32 %v6560, %v6020
      %v7029 = vmul.f32 %v6563, %v6020
      %v7030 = vadd.f32 %v6918, %v6021
      %v7031 = vadd.f32 %v6919, %v6021
      %v7032 = vadd.f32 %v6920, %v6982
      %v7033 = vadd.f32 %v6921, %v6983
      %v7034 = vadd.f32 %v6922, %v6984
      %v7035 = vadd.f32 %v6923, %v6985
      %v7036 = vadd.f32 %v6924, %v6986
      %v7037 = vadd.f32 %v6925, %v6987
      %v7038 = vadd.f32 %v6926, %v6021
      %v7039 = vadd.f32 %v6927, %v6021
      %v7040 = vadd.f32 %v6928, %v6988
      %v7041 = vadd.f32 %v6929, %v6989
      %v7042 = vadd.f32 %v6930, %v6990
      %v7043 = vadd.f32 %v6931, %v6991
      %v7044 = vadd.f32 %v6932, %v6992
      %v7045 = vadd.f32 %v6933, %v6993
      %v7046 = vadd.f32 %v6934, %v6021
      %v7047 = vadd.f32 %v6935, %v6021
      %v7048 = vadd.f32 %v6936, %v6994
      %v7049 = vadd.f32 %v6937, %v6995
      %v7050 = vadd.f32 %v6938, %v6996
      %v7051 = vadd.f32 %v6939, %v6997
      %v7052 = vadd.f32 %v6940, %v6998
      %v7053 = vadd.f32 %v6941, %v6999
      %v7054 = vadd.f32 %v6942, %v6021
      %v7055 = vadd.f32 %v6943, %v6021
      %v7056 = vadd.f32 %v6944, %v7000
      %v7057 = vadd.f32 %v6945, %v7001
      %v7058 = vadd.f32 %v6946, %v7002
      %v7059 = vadd.f32 %v6947, %v7003
      %v7060 = vadd.f32 %v6948, %v7004
      %v7061 = vadd.f32 %v6949, %v7005
      %v7062 = vadd.f32 %v6950, %v6021
      %v7063 = vadd.f32 %v6951, %v6021
      %v7064 = vadd.f32 %v6952, %v7006
      %v7065 = vadd.f32 %v6953, %v7007
      %v7066 = vadd.f32 %v6954, %v7008
      %v7067 = vadd.f32 %v6955, %v7009
      %v7068 = vadd.f32 %v6956, %v7010
      %v7069 = vadd.f32 %v6957, %v7011
      %v7070 = vadd.f32 %v6958, %v6021
      %v7071 = vadd.f32 %v6959, %v6021
      %v7072 = vadd.f32 %v6960, %v7012
      %v7073 = vadd.f32 %v6961, %v7013
      %v7074 = vadd.f32 %v6962, %v7014
      %v7075 = vadd.f32 %v6963, %v7015
      %v7076 = vadd.f32 %v6964, %v7016
      %v7077 = vadd.f32 %v6965, %v7017
      %v7078 = vadd.f32 %v6966, %v6021
      %v7079 = vadd.f32 %v6967, %v6021
      %v7080 = vadd.f32 %v6968, %v7018
      %v7081 = vadd.f32 %v6969, %v7019
      %v7082 = vadd.f32 %v6970, %v7020
      %v7083 = vadd.f32 %v6971, %v7021
      %v7084 = vadd.f32 %v6972, %v7022
      %v7085 = vadd.f32 %v6973, %v7023
      %v7086 = vadd.f32 %v6974, %v6021
      %v7087 = vadd.f32 %v6975, %v6021
      %v7088 = vadd.f32 %v6976, %v7024
      %v7089 = vadd.f32 %v6977, %v7025
      %v7090 = vadd.f32 %v6978, %v7026
      %v7091 = vadd.f32 %v6979, %v7027
      %v7092 = vadd.f32 %v6980, %v7028
      %v7093 = vadd.f32 %v6981, %v7029
      %v7094 = vpack.c.bf16 %v7031, %v7030
      %v7095 = vpack.c.bf16 %v7033, %v7032
      %v7096 = vpack.c.bf16 %v7035, %v7034
      %v7097 = vpack.c.bf16 %v7037, %v7036
      %v7098 = vpack.c.bf16 %v7039, %v7038
      %v7099 = vpack.c.bf16 %v7041, %v7040
      %v7100 = vpack.c.bf16 %v7043, %v7042
      %v7101 = vpack.c.bf16 %v7045, %v7044
      %v7102 = vpack.c.bf16 %v7047, %v7046
      %v7103 = vpack.c.bf16 %v7049, %v7048
      %v7104 = vpack.c.bf16 %v7051, %v7050
      %v7105 = vpack.c.bf16 %v7053, %v7052
      %v7106 = vpack.c.bf16 %v7055, %v7054
      %v7107 = vpack.c.bf16 %v7057, %v7056
      %v7108 = vpack.c.bf16 %v7059, %v7058
      %v7109 = vpack.c.bf16 %v7061, %v7060
      %v7110 = vpack.c.bf16 %v7063, %v7062
      %v7111 = vpack.c.bf16 %v7065, %v7064
      %v7112 = vpack.c.bf16 %v7067, %v7066
      %v7113 = vpack.c.bf16 %v7069, %v7068
      %v7114 = vpack.c.bf16 %v7071, %v7070
      %v7115 = vpack.c.bf16 %v7073, %v7072
      %v7116 = vpack.c.bf16 %v7075, %v7074
      %v7117 = vpack.c.bf16 %v7077, %v7076
      %v7118 = vpack.c.bf16 %v7079, %v7078
      %v7119 = vpack.c.bf16 %v7081, %v7080
      %v7120 = vpack.c.bf16 %v7083, %v7082
      %v7121 = vpack.c.bf16 %v7085, %v7084
      %v7122 = vpack.c.bf16 %v7087, %v7086
      %v7123 = vpack.c.bf16 %v7089, %v7088
      %v7124 = vpack.c.bf16 %v7091, %v7090
      %v7125 = vpack.c.bf16 %v7093, %v7092
      %v7126 = vld [vmem:[%s6] sm:$0xf]
      %v7127 = vld [vmem:[%s6 + $0x4] sm:$0xf]
      %v7128 = vld [vmem:[%s6 + $0x8] sm:$0x3]
      %v7129 = vld [vmem:[%s7] sm:$0x1]
      %v7131 = vlaneseq
      %v7132 = vshrl.u32 %v7131, 7
      %v7133 = vsub.s32 0, %v7132
      %v7134 = vrot.slane %v7129, %v7133
      %v7139 = vunpack.c.l.b16 %v7126
      %v7140 = vunpack.c.l.b16 %v7127
      %v7141 = vunpack.c.l.b16 %v7128
      %v7142 = vpack.c.b16 %v7140, %v7139
      %v7143 = vpack.c.b16 %v7141, %v7141
      %v7146 = vsel %vm361, %v7094, 0
      %v7149 = vsel %vm361, %v7095, 0
      %v7152 = vsel %vm361, %v7096, 0
      %v7155 = vsel %vm361, %v7097, 0
      %v7158 = vsel %vm361, %v7098, 0
      %v7161 = vsel %vm361, %v7099, 0
      %v7164 = vsel %vm361, %v7100, 0
      %v7167 = vsel %vm361, %v7101, 0
      %v7170 = vsel %vm361, %v7102, 0
      %v7173 = vsel %vm361, %v7103, 0
      %v7176 = vsel %vm361, %v7104, 0
      %v7179 = vsel %vm361, %v7105, 0
      %v7182 = vsel %vm361, %v7106, 0
      %v7185 = vsel %vm361, %v7107, 0
      %v7188 = vsel %vm361, %v7108, 0
      %v7191 = vsel %vm361, %v7109, 0
      %v7194 = vsel %vm361, %v7110, 0
      %v7197 = vsel %vm361, %v7111, 0
      %v7200 = vsel %vm361, %v7112, 0
      %v7203 = vsel %vm361, %v7113, 0
      %v7206 = vsel %vm361, %v7114, 0
      %v7209 = vsel %vm361, %v7115, 0
      %v7212 = vsel %vm361, %v7116, 0
      %v7215 = vsel %vm361, %v7117, 0
      %v7218 = vsel %vm361, %v7118, 0
      %v7221 = vsel %vm361, %v7119, 0
      %v7224 = vsel %vm361, %v7120, 0
      %v7227 = vsel %vm361, %v7121, 0
      %v7230 = vsel %vm361, %v7122, 0
      %v7233 = vsel %vm361, %v7123, 0
      %v7236 = vsel %vm361, %v7124, 0
      %v7239 = vsel %vm361, %v7125, 0
      %v7242 = vsel %vm6281, %v7143, 0
      %7244 = vmatprep.subr.bf16.mxu0 0
      %7245 = vmatpush1.bf16.msra.mxu0 %v7142
      %7246 = vmatprep.subr.bf16.mxu0 0
      %7247 = vmatpush1.bf16.msra.mxu0 %v7242
      %7248 = vmatprep.subr.bf16.mxu0 0
      %7249 = vmatpush1.bf16.msra.mxu0 0
      %7250 = vmatprep.subr.bf16.mxu0 0
      %7251 = vmatpush1.bf16.msra.mxu0 0
      %7252 = vmatprep.subr.bf16.mxu0 0
      %7253 = vmatpush1.bf16.msra.mxu0 0
      %7254 = vmatprep.subr.bf16.mxu0 0
      %7255 = vmatpush1.bf16.msra.mxu0 0
      %7256 = vmatprep.subr.bf16.mxu0 0
      %7257 = vmatpush1.bf16.msra.mxu0 0
      %7258 = vmatprep.subr.bf16.mxu0 0
      %7259 = vmatpush1.bf16.msra.mxu0 0
      %7260 = vmatprep.subr.bf16.mxu0 0
      %7261 = vmatpush1.bf16.msra.mxu0 0
      %7262 = vmatprep.subr.bf16.mxu0 0
      %7263 = vmatpush1.bf16.msra.mxu0 0
      %7264 = vmatprep.subr.bf16.mxu0 0
      %7265 = vmatpush1.bf16.msra.mxu0 0
      %7266 = vmatprep.subr.bf16.mxu0 0
      %7267 = vmatpush1.bf16.msra.mxu0 0
      %7268 = vmatprep.subr.bf16.mxu0 0
      %7269 = vmatpush1.bf16.msra.mxu0 0
      %7270 = vmatprep.subr.bf16.mxu0 0
      %7271 = vmatpush1.bf16.msra.mxu0 0
      %7272 = vmatprep.subr.bf16.mxu0 0
      %7273 = vmatpush1.bf16.msra.mxu0 0
      %7274 = vmatprep.subr.bf16.mxu0 0
      %7275 = vmatpush1.bf16.msra.mxu0 0
      %7276 = vmatprep.mubr.bf16.mxu0 0
      %7277 = vmatmul.mubr.bf16.gmra.mrb[0].mxu0 %v7146
      %v7278 = vpop.f32.mrb[0].mxu0
      %v7279 = vadd.f32 %v7134, %v7278
      %v7280 = vpop.f32.mrb[0].mxu0
      %v7281 = vpop.f32.mrb[0].mxu0
      %v7282 = vadd.f32 %v7134, %v7281
      %v7283 = vpop.f32.mrb[0].mxu0
      %7284 = vmatprep.mubr.bf16.mxu0 0
      %7285 = vmatmul.mubr.bf16.gmra.mrb[0].mxu0 %v7149
      %v7286 = vpop.f32.mrb[0].mxu0
      %v7287 = vadd.f32 %v7134, %v7286
      %v7288 = vpop.f32.mrb[0].mxu0
      %v7289 = vpop.f32.mrb[0].mxu0
      %v7290 = vadd.f32 %v7134, %v7289
      %v7291 = vpop.f32.mrb[0].mxu0
      %7292 = vmatprep.mubr.bf16.mxu0 0
      %7293 = vmatmul.mubr.bf16.gmra.mrb[0].mxu0 %v7152
      %v7294 = vpop.f32.mrb[0].mxu0
      %v7295 = vadd.f32 %v7134, %v7294
      %v7296 = vpop.f32.mrb[0].mxu0
      %v7297 = vpop.f32.mrb[0].mxu0
      %v7298 = vadd.f32 %v7134, %v7297
      %v7299 = vpop.f32.mrb[0].mxu0
      %7300 = vmatprep.mubr.bf16.mxu0 0
      %7301 = vmatmul.mubr.bf16.gmra.mrb[0].mxu0 %v7155
      %v7302 = vpop.f32.mrb[0].mxu0
      %v7303 = vadd.f32 %v7134, %v7302
      %v7304 = vpop.f32.mrb[0].mxu0
      %v7305 = vpop.f32.mrb[0].mxu0
      %v7306 = vadd.f32 %v7134, %v7305
      %v7307 = vpop.f32.mrb[0].mxu0
      %7308 = vmatprep.mubr.bf16.mxu0 0
      %7309 = vmatmul.mubr.bf16.gmra.mrb[0].mxu0 %v7158
      %v7310 = vpop.f32.mrb[0].mxu0
      %v7311 = vadd.f32 %v7134, %v7310
      %v7312 = vpop.f32.mrb[0].mxu0
      %v7313 = vpop.f32.mrb[0].mxu0
      %v7314 = vadd.f32 %v7134, %v7313
      %v7315 = vpop.f32.mrb[0].mxu0
      %7316 = vmatprep.mubr.bf16.mxu0 0
      %7317 = vmatmul.mubr.bf16.gmra.mrb[0].mxu0 %v7161
      %v7318 = vpop.f32.mrb[0].mxu0
      %v7319 = vadd.f32 %v7134, %v7318
      %v7320 = vpop.f32.mrb[0].mxu0
      %v7321 = vpop.f32.mrb[0].mxu0
      %v7322 = vadd.f32 %v7134, %v7321
      %v7323 = vpop.f32.mrb[0].mxu0
      %7324 = vmatprep.mubr.bf16.mxu0 0
      %7325 = vmatmul.mubr.bf16.gmra.mrb[0].mxu0 %v7164
      %v7326 = vpop.f32.mrb[0].mxu0
      %v7327 = vadd.f32 %v7134, %v7326
      %v7328 = vpop.f32.mrb[0].mxu0
      %v7329 = vpop.f32.mrb[0].mxu0
      %v7330 = vadd.f32 %v7134, %v7329
      %v7331 = vpop.f32.mrb[0].mxu0
      %7332 = vmatprep.mubr.bf16.mxu0 0
      %7333 = vmatmul.mubr.bf16.gmra.mrb[0].mxu0 %v7167
      %v7334 = vpop.f32.mrb[0].mxu0
      %v7335 = vadd.f32 %v7134, %v7334
      %v7336 = vpop.f32.mrb[0].mxu0
      %v7337 = vpop.f32.mrb[0].mxu0
      %v7338 = vadd.f32 %v7134, %v7337
      %v7339 = vpop.f32.mrb[0].mxu0
      %7340 = vmatprep.mubr.bf16.mxu0 0
      %7341 = vmatmul.mubr.bf16.gmra.mrb[0].mxu0 %v7170
      %v7342 = vpop.f32.mrb[0].mxu0
      %v7343 = vadd.f32 %v7134, %v7342
      %v7344 = vpop.f32.mrb[0].mxu0
      %v7345 = vpop.f32.mrb[0].mxu0
      %v7346 = vadd.f32 %v7134, %v7345
      %v7347 = vpop.f32.mrb[0].mxu0
      %7348 = vmatprep.mubr.bf16.mxu0 0
      %7349 = vmatmul.mubr.bf16.gmra.mrb[0].mxu0 %v7173
      %v7350 = vpop.f32.mrb[0].mxu0
      %v7351 = vadd.f32 %v7134, %v7350
      %v7352 = vpop.f32.mrb[0].mxu0
      %v7353 = vpop.f32.mrb[0].mxu0
      %v7354 = vadd.f32 %v7134, %v7353
      %v7355 = vpop.f32.mrb[0].mxu0
      %7356 = vmatprep.mubr.bf16.mxu0 0
      %7357 = vmatmul.mubr.bf16.gmra.mrb[0].mxu0 %v7176
      %v7358 = vpop.f32.mrb[0].mxu0
      %v7359 = vadd.f32 %v7134, %v7358
      %v7360 = vpop.f32.mrb[0].mxu0
      %v7361 = vpop.f32.mrb[0].mxu0
      %v7362 = vadd.f32 %v7134, %v7361
      %v7363 = vpop.f32.mrb[0].mxu0
      %7364 = vmatprep.mubr.bf16.mxu0 0
      %7365 = vmatmul.mubr.bf16.gmra.mrb[0].mxu0 %v7179
      %v7366 = vpop.f32.mrb[0].mxu0
      %v7367 = vadd.f32 %v7134, %v7366
      %v7368 = vpop.f32.mrb[0].mxu0
      %v7369 = vpop.f32.mrb[0].mxu0
      %v7370 = vadd.f32 %v7134, %v7369
      %v7371 = vpop.f32.mrb[0].mxu0
      %7372 = vmatprep.mubr.bf16.mxu0 0
      %7373 = vmatmul.mubr.bf16.gmra.mrb[0].mxu0 %v7182
      %v7374 = vpop.f32.mrb[0].mxu0
      %v7375 = vadd.f32 %v7134, %v7374
      %v7376 = vpop.f32.mrb[0].mxu0
      %v7377 = vpop.f32.mrb[0].mxu0
      %v7378 = vadd.f32 %v7134, %v7377
      %v7379 = vpop.f32.mrb[0].mxu0
      %7380 = vmatprep.mubr.bf16.mxu0 0
      %7381 = vmatmul.mubr.bf16.gmra.mrb[0].mxu0 %v7185
      %v7382 = vpop.f32.mrb[0].mxu0
      %v7383 = vadd.f32 %v7134, %v7382
      %v7384 = vpop.f32.mrb[0].mxu0
      %v7385 = vpop.f32.mrb[0].mxu0
      %v7386 = vadd.f32 %v7134, %v7385
      %v7387 = vpop.f32.mrb[0].mxu0
      %7388 = vmatprep.mubr.bf16.mxu0 0
      %7389 = vmatmul.mubr.bf16.gmra.mrb[0].mxu0 %v7188
      %v7390 = vpop.f32.mrb[0].mxu0
      %v7391 = vadd.f32 %v7134, %v7390
      %v7392 = vpop.f32.mrb[0].mxu0
      %v7393 = vpop.f32.mrb[0].mxu0
      %v7394 = vadd.f32 %v7134, %v7393
      %v7395 = vpop.f32.mrb[0].mxu0
      %7396 = vmatprep.mubr.bf16.mxu0 0
      %7397 = vmatmul.mubr.bf16.gmra.mrb[0].mxu0 %v7191
      %v7398 = vpop.f32.mrb[0].mxu0
      %v7399 = vadd.f32 %v7134, %v7398
      %v7400 = vpop.f32.mrb[0].mxu0
      %v7401 = vpop.f32.mrb[0].mxu0
      %v7402 = vadd.f32 %v7134, %v7401
      %v7403 = vpop.f32.mrb[0].mxu0
      %7404 = vmatprep.mubr.bf16.mxu0 0
      %7405 = vmatmul.mubr.bf16.gmra.mrb[0].mxu0 %v7194
      %v7406 = vpop.f32.mrb[0].mxu0
      %v7407 = vadd.f32 %v7134, %v7406
      %v7408 = vpop.f32.mrb[0].mxu0
      %v7409 = vpop.f32.mrb[0].mxu0
      %v7410 = vadd.f32 %v7134, %v7409
      %v7411 = vpop.f32.mrb[0].mxu0
      %7412 = vmatprep.mubr.bf16.mxu0 0
      %7413 = vmatmul.mubr.bf16.gmra.mrb[0].mxu0 %v7197
      %v7414 = vpop.f32.mrb[0].mxu0
      %v7415 = vadd.f32 %v7134, %v7414
      %v7416 = vpop.f32.mrb[0].mxu0
      %v7417 = vpop.f32.mrb[0].mxu0
      %v7418 = vadd.f32 %v7134, %v7417
      %v7419 = vpop.f32.mrb[0].mxu0
      %7420 = vmatprep.mubr.bf16.mxu0 0
      %7421 = vmatmul.mubr.bf16.gmra.mrb[0].mxu0 %v7200
      %v7422 = vpop.f32.mrb[0].mxu0
      %v7423 = vadd.f32 %v7134, %v7422
      %v7424 = vpop.f32.mrb[0].mxu0
      %v7425 = vpop.f32.mrb[0].mxu0
      %v7426 = vadd.f32 %v7134, %v7425
      %v7427 = vpop.f32.mrb[0].mxu0
      %7428 = vmatprep.mubr.bf16.mxu0 0
      %7429 = vmatmul.mubr.bf16.gmra.mrb[0].mxu0 %v7203
      %v7430 = vpop.f32.mrb[0].mxu0
      %v7431 = vadd.f32 %v7134, %v7430
      %v7432 = vpop.f32.mrb[0].mxu0
      %v7433 = vpop.f32.mrb[0].mxu0
      %v7434 = vadd.f32 %v7134, %v7433
      %v7435 = vpop.f32.mrb[0].mxu0
      %7436 = vmatprep.mubr.bf16.mxu0 0
      %7437 = vmatmul.mubr.bf16.gmra.mrb[0].mxu0 %v7206
      %v7438 = vpop.f32.mrb[0].mxu0
      %v7439 = vadd.f32 %v7134, %v7438
      %v7440 = vpop.f32.mrb[0].mxu0
      %v7441 = vpop.f32.mrb[0].mxu0
      %v7442 = vadd.f32 %v7134, %v7441
      %v7443 = vpop.f32.mrb[0].mxu0
      %7444 = vmatprep.mubr.bf16.mxu0 0
      %7445 = vmatmul.mubr.bf16.gmra.mrb[0].mxu0 %v7209
      %v7446 = vpop.f32.mrb[0].mxu0
      %v7447 = vadd.f32 %v7134, %v7446
      %v7448 = vpop.f32.mrb[0].mxu0
      %v7449 = vpop.f32.mrb[0].mxu0
      %v7450 = vadd.f32 %v7134, %v7449
      %v7451 = vpop.f32.mrb[0].mxu0
      %7452 = vmatprep.mubr.bf16.mxu0 0
      %7453 = vmatmul.mubr.bf16.gmra.mrb[0].mxu0 %v7212
      %v7454 = vpop.f32.mrb[0].mxu0
      %v7455 = vadd.f32 %v7134, %v7454
      %v7456 = vpop.f32.mrb[0].mxu0
      %v7457 = vpop.f32.mrb[0].mxu0
      %v7458 = vadd.f32 %v7134, %v7457
      %v7459 = vpop.f32.mrb[0].mxu0
      %7460 = vmatprep.mubr.bf16.mxu0 0
      %7461 = vmatmul.mubr.bf16.gmra.mrb[0].mxu0 %v7215
      %v7462 = vpop.f32.mrb[0].mxu0
      %v7463 = vadd.f32 %v7134, %v7462
      %v7464 = vpop.f32.mrb[0].mxu0
      %v7465 = vpop.f32.mrb[0].mxu0
      %v7466 = vadd.f32 %v7134, %v7465
      %v7467 = vpop.f32.mrb[0].mxu0
      %7468 = vmatprep.mubr.bf16.mxu0 0
      %7469 = vmatmul.mubr.bf16.gmra.mrb[0].mxu0 %v7218
      %v7470 = vpop.f32.mrb[0].mxu0
      %v7471 = vadd.f32 %v7134, %v7470
      %v7472 = vpop.f32.mrb[0].mxu0
      %v7473 = vpop.f32.mrb[0].mxu0
      %v7474 = vadd.f32 %v7134, %v7473
      %v7475 = vpop.f32.mrb[0].mxu0
      %7476 = vmatprep.mubr.bf16.mxu0 0
      %7477 = vmatmul.mubr.bf16.gmra.mrb[0].mxu0 %v7221
      %v7478 = vpop.f32.mrb[0].mxu0
      %v7479 = vadd.f32 %v7134, %v7478
      %v7480 = vpop.f32.mrb[0].mxu0
      %v7481 = vpop.f32.mrb[0].mxu0
      %v7482 = vadd.f32 %v7134, %v7481
      %v7483 = vpop.f32.mrb[0].mxu0
      %7484 = vmatprep.mubr.bf16.mxu0 0
      %7485 = vmatmul.mubr.bf16.gmra.mrb[0].mxu0 %v7224
      %v7486 = vpop.f32.mrb[0].mxu0
      %v7487 = vadd.f32 %v7134, %v7486
      %v7488 = vpop.f32.mrb[0].mxu0
      %v7489 = vpop.f32.mrb[0].mxu0
      %v7490 = vadd.f32 %v7134, %v7489
      %v7491 = vpop.f32.mrb[0].mxu0
      %7492 = vmatprep.mubr.bf16.mxu0 0
      %7493 = vmatmul.mubr.bf16.gmra.mrb[0].mxu0 %v7227
      %v7494 = vpop.f32.mrb[0].mxu0
      %v7495 = vadd.f32 %v7134, %v7494
      %v7496 = vpop.f32.mrb[0].mxu0
      %v7497 = vpop.f32.mrb[0].mxu0
      %v7498 = vadd.f32 %v7134, %v7497
      %v7499 = vpop.f32.mrb[0].mxu0
      %7500 = vmatprep.mubr.bf16.mxu0 0
      %7501 = vmatmul.mubr.bf16.gmra.mrb[0].mxu0 %v7230
      %v7502 = vpop.f32.mrb[0].mxu0
      %v7503 = vadd.f32 %v7134, %v7502
      %v7504 = vpop.f32.mrb[0].mxu0
      %v7505 = vpop.f32.mrb[0].mxu0
      %v7506 = vadd.f32 %v7134, %v7505
      %v7507 = vpop.f32.mrb[0].mxu0
      %7508 = vmatprep.mubr.bf16.mxu0 0
      %7509 = vmatmul.mubr.bf16.gmra.mrb[0].mxu0 %v7233
      %v7510 = vpop.f32.mrb[0].mxu0
      %v7511 = vadd.f32 %v7134, %v7510
      %v7512 = vpop.f32.mrb[0].mxu0
      %v7513 = vpop.f32.mrb[0].mxu0
      %v7514 = vadd.f32 %v7134, %v7513
      %v7515 = vpop.f32.mrb[0].mxu0
      %7516 = vmatprep.mubr.bf16.mxu0 0
      %7517 = vmatmul.mubr.bf16.gmra.mrb[0].mxu0 %v7236
      %v7518 = vpop.f32.mrb[0].mxu0
      %v7519 = vadd.f32 %v7134, %v7518
      %v7520 = vpop.f32.mrb[0].mxu0
      %v7521 = vpop.f32.mrb[0].mxu0
      %v7522 = vadd.f32 %v7134, %v7521
      %v7523 = vpop.f32.mrb[0].mxu0
      %7524 = vmatprep.mubr.bf16.mxu0 0
      %7525 = vmatmul.mubr.bf16.gmra.mrb[0].mxu0 %v7239
      %v7526 = vpop.f32.mrb[0].mxu0
      %v7527 = vadd.f32 %v7134, %v7526
      %v7528 = vpop.f32.mrb[0].mxu0
      %v7529 = vpop.f32.mrb[0].mxu0
      %v7530 = vadd.f32 %v7134, %v7529
      %v7531 = vpop.f32.mrb[0].mxu0
      %7532 = vdwg.mxu0
      %v7597 = vrot.slane %v7279, 2
      %v7598 = vrot.slane %v7282, 2
      %v7599 = vrot.slane %v7287, 2
      %v7600 = vrot.slane %v7290, 2
      %v7601 = vrot.slane %v7295, 2
      %v7602 = vrot.slane %v7298, 2
      %v7603 = vrot.slane %v7303, 2
      %v7604 = vrot.slane %v7306, 2
      %v7605 = vrot.slane %v7311, 2
      %v7606 = vrot.slane %v7314, 2
      %v7607 = vrot.slane %v7319, 2
      %v7608 = vrot.slane %v7322, 2
      %v7609 = vrot.slane %v7327, 2
      %v7610 = vrot.slane %v7330, 2
      %v7611 = vrot.slane %v7335, 2
      %v7612 = vrot.slane %v7338, 2
      %v7613 = vrot.slane %v7343, 2
      %v7614 = vrot.slane %v7346, 2
      %v7615 = vrot.slane %v7351, 2
      %v7616 = vrot.slane %v7354, 2
      %v7617 = vrot.slane %v7359, 2
      %v7618 = vrot.slane %v7362, 2
      %v7619 = vrot.slane %v7367, 2
      %v7620 = vrot.slane %v7370, 2
      %v7621 = vrot.slane %v7375, 2
      %v7622 = vrot.slane %v7378, 2
      %v7623 = vrot.slane %v7383, 2
      %v7624 = vrot.slane %v7386, 2
      %v7625 = vrot.slane %v7391, 2
      %v7626 = vrot.slane %v7394, 2
      %v7627 = vrot.slane %v7399, 2
      %v7628 = vrot.slane %v7402, 2
      %v7629 = vrot.slane %v7407, 2
      %v7630 = vrot.slane %v7410, 2
      %v7631 = vrot.slane %v7415, 2
      %v7632 = vrot.slane %v7418, 2
      %v7633 = vrot.slane %v7423, 2
      %v7634 = vrot.slane %v7426, 2
      %v7635 = vrot.slane %v7431, 2
      %v7636 = vrot.slane %v7434, 2
      %v7637 = vrot.slane %v7439, 2
      %v7638 = vrot.slane %v7442, 2
      %v7639 = vrot.slane %v7447, 2
      %v7640 = vrot.slane %v7450, 2
      %v7641 = vrot.slane %v7455, 2
      %v7642 = vrot.slane %v7458, 2
      %v7643 = vrot.slane %v7463, 2
      %v7644 = vrot.slane %v7466, 2
      %v7645 = vrot.slane %v7471, 2
      %v7646 = vrot.slane %v7474, 2
      %v7647 = vrot.slane %v7479, 2
      %v7648 = vrot.slane %v7482, 2
      %v7649 = vrot.slane %v7487, 2
      %v7650 = vrot.slane %v7490, 2
      %v7651 = vrot.slane %v7495, 2
      %v7652 = vrot.slane %v7498, 2
      %v7653 = vrot.slane %v7503, 2
      %v7654 = vrot.slane %v7506, 2
      %v7655 = vrot.slane %v7511, 2
      %v7656 = vrot.slane %v7514, 2
      %v7657 = vrot.slane %v7519, 2
      %v7658 = vrot.slane %v7522, 2
      %v7659 = vrot.slane %v7527, 2
      %v7660 = vrot.slane %v7530, 2
      %vm7725 = vcmask 1045504
      %v7726 = vsel %vm7725, %v7597, 0.0
      %v7727 = vsel %vm7725, %v7598, 0.0
      %v7728 = vsel %vm7725, %v7599, 0.0
      %v7729 = vsel %vm7725, %v7600, 0.0
      %v7730 = vsel %vm7725, %v7601, 0.0
      %v7731 = vsel %vm7725, %v7602, 0.0
      %v7732 = vsel %vm7725, %v7603, 0.0
      %v7733 = vsel %vm7725, %v7604, 0.0
      %v7734 = vsel %vm7725, %v7605, 0.0
      %v7735 = vsel %vm7725, %v7606, 0.0
      %v7736 = vsel %vm7725, %v7607, 0.0
      %v7737 = vsel %vm7725, %v7608, 0.0
      %v7738 = vsel %vm7725, %v7609, 0.0
      %v7739 = vsel %vm7725, %v7610, 0.0
      %v7740 = vsel %vm7725, %v7611, 0.0
      %v7741 = vsel %vm7725, %v7612, 0.0
      %v7742 = vsel %vm7725, %v7613, 0.0
      %v7743 = vsel %vm7725, %v7614, 0.0
      %v7744 = vsel %vm7725, %v7615, 0.0
      %v7745 = vsel %vm7725, %v7616, 0.0
      %v7746 = vsel %vm7725, %v7617, 0.0
      %v7747 = vsel %vm7725, %v7618, 0.0
      %v7748 = vsel %vm7725, %v7619, 0.0
      %v7749 = vsel %vm7725, %v7620, 0.0
      %v7750 = vsel %vm7725, %v7621, 0.0
      %v7751 = vsel %vm7725, %v7622, 0.0
      %v7752 = vsel %vm7725, %v7623, 0.0
      %v7753 = vsel %vm7725, %v7624, 0.0
      %v7754 = vsel %vm7725, %v7625, 0.0
      %v7755 = vsel %vm7725, %v7626, 0.0
      %v7756 = vsel %vm7725, %v7627, 0.0
      %v7757 = vsel %vm7725, %v7628, 0.0
      %v7758 = vsel %vm7725, %v7629, 0.0
      %v7759 = vsel %vm7725, %v7630, 0.0
      %v7760 = vsel %vm7725, %v7631, 0.0
      %v7761 = vsel %vm7725, %v7632, 0.0
      %v7762 = vsel %vm7725, %v7633, 0.0
      %v7763 = vsel %vm7725, %v7634, 0.0
      %v7764 = vsel %vm7725, %v7635, 0.0
      %v7765 = vsel %vm7725, %v7636, 0.0
      %v7766 = vsel %vm7725, %v7637, 0.0
      %v7767 = vsel %vm7725, %v7638, 0.0
      %v7768 = vsel %vm7725, %v7639, 0.0
      %v7769 = vsel %vm7725, %v7640, 0.0
      %v7770 = vsel %vm7725, %v7641, 0.0
      %v7771 = vsel %vm7725, %v7642, 0.0
      %v7772 = vsel %vm7725, %v7643, 0.0
      %v7773 = vsel %vm7725, %v7644, 0.0
      %v7774 = vsel %vm7725, %v7645, 0.0
      %v7775 = vsel %vm7725, %v7646, 0.0
      %v7776 = vsel %vm7725, %v7647, 0.0
      %v7777 = vsel %vm7725, %v7648, 0.0
      %v7778 = vsel %vm7725, %v7649, 0.0
      %v7779 = vsel %vm7725, %v7650, 0.0
      %v7780 = vsel %vm7725, %v7651, 0.0
      %v7781 = vsel %vm7725, %v7652, 0.0
      %v7782 = vsel %vm7725, %v7653, 0.0
      %v7783 = vsel %vm7725, %v7654, 0.0
      %v7784 = vsel %vm7725, %v7655, 0.0
      %v7785 = vsel %vm7725, %v7656, 0.0
      %v7786 = vsel %vm7725, %v7657, 0.0
      %v7787 = vsel %vm7725, %v7658, 0.0
      %v7788 = vsel %vm7725, %v7659, 0.0
      %v7789 = vsel %vm7725, %v7660, 0.0
      %v7790 = vmul.f32 %v7726, %v5592
      %v7791 = vmul.f32 %v7727, %v5592
      %v7792 = vmul.f32 %v7728, %v5592
      %v7793 = vmul.f32 %v7729, %v5592
      %v7794 = vmul.f32 %v7730, %v5592
      %v7795 = vmul.f32 %v7731, %v5592
      %v7796 = vmul.f32 %v7732, %v5592
      %v7797 = vmul.f32 %v7733, %v5592
      %v7798 = vmul.f32 %v7734, %v5592
      %v7799 = vmul.f32 %v7735, %v5592
      %v7800 = vmul.f32 %v7736, %v5592
      %v7801 = vmul.f32 %v7737, %v5592
      %v7802 = vmul.f32 %v7738, %v5592
      %v7803 = vmul.f32 %v7739, %v5592
      %v7804 = vmul.f32 %v7740, %v5592
      %v7805 = vmul.f32 %v7741, %v5592
      %v7806 = vmul.f32 %v7742, %v5592
      %v7807 = vmul.f32 %v7743, %v5592
      %v7808 = vmul.f32 %v7744, %v5592
      %v7809 = vmul.f32 %v7745, %v5592
      %v7810 = vmul.f32 %v7746, %v5592
      %v7811 = vmul.f32 %v7747, %v5592
      %v7812 = vmul.f32 %v7748, %v5592
      %v7813 = vmul.f32 %v7749, %v5592
      %v7814 = vmul.f32 %v7750, %v5592
      %v7815 = vmul.f32 %v7751, %v5592
      %v7816 = vmul.f32 %v7752, %v5592
      %v7817 = vmul.f32 %v7753, %v5592
      %v7818 = vmul.f32 %v7754, %v5592
      %v7819 = vmul.f32 %v7755, %v5592
      %v7820 = vmul.f32 %v7756, %v5592
      %v7821 = vmul.f32 %v7757, %v5592
      %v7822 = vmul.f32 %v7758, %v5592
      %v7823 = vmul.f32 %v7759, %v5592
      %v7824 = vmul.f32 %v7760, %v5592
      %v7825 = vmul.f32 %v7761, %v5592
      %v7826 = vmul.f32 %v7762, %v5592
      %v7827 = vmul.f32 %v7763, %v5592
      %v7828 = vmul.f32 %v7764, %v5592
      %v7829 = vmul.f32 %v7765, %v5592
      %v7830 = vmul.f32 %v7766, %v5592
      %v7831 = vmul.f32 %v7767, %v5592
      %v7832 = vmul.f32 %v7768, %v5592
      %v7833 = vmul.f32 %v7769, %v5592
      %v7834 = vmul.f32 %v7770, %v5592
      %v7835 = vmul.f32 %v7771, %v5592
      %v7836 = vmul.f32 %v7772, %v5592
      %v7837 = vmul.f32 %v7773, %v5592
      %v7838 = vmul.f32 %v7774, %v5592
      %v7839 = vmul.f32 %v7775, %v5592
      %v7840 = vmul.f32 %v7776, %v5592
      %v7841 = vmul.f32 %v7777, %v5592
      %v7842 = vmul.f32 %v7778, %v5592
      %v7843 = vmul.f32 %v7779, %v5592
      %v7844 = vmul.f32 %v7780, %v5592
      %v7845 = vmul.f32 %v7781, %v5592
      %v7846 = vmul.f32 %v7782, %v5592
      %v7847 = vmul.f32 %v7783, %v5592
      %v7848 = vmul.f32 %v7784, %v5592
      %v7849 = vmul.f32 %v7785, %v5592
      %v7850 = vmul.f32 %v7786, %v5592
      %v7851 = vmul.f32 %v7787, %v5592
      %v7852 = vmul.f32 %v7788, %v5592
      %v7853 = vmul.f32 %v7789, %v5592
      %v7854 = vrot.slane %v7279, 1
      %v7855 = vrot.slane %v7282, 1
      %v7856 = vrot.slane %v7287, 1
      %v7857 = vrot.slane %v7290, 1
      %v7858 = vrot.slane %v7295, 1
      %v7859 = vrot.slane %v7298, 1
      %v7860 = vrot.slane %v7303, 1
      %v7861 = vrot.slane %v7306, 1
      %v7862 = vrot.slane %v7311, 1
      %v7863 = vrot.slane %v7314, 1
      %v7864 = vrot.slane %v7319, 1
      %v7865 = vrot.slane %v7322, 1
      %v7866 = vrot.slane %v7327, 1
      %v7867 = vrot.slane %v7330, 1
      %v7868 = vrot.slane %v7335, 1
      %v7869 = vrot.slane %v7338, 1
      %v7870 = vrot.slane %v7343, 1
      %v7871 = vrot.slane %v7346, 1
      %v7872 = vrot.slane %v7351, 1
      %v7873 = vrot.slane %v7354, 1
      %v7874 = vrot.slane %v7359, 1
      %v7875 = vrot.slane %v7362, 1
      %v7876 = vrot.slane %v7367, 1
      %v7877 = vrot.slane %v7370, 1
      %v7878 = vrot.slane %v7375, 1
      %v7879 = vrot.slane %v7378, 1
      %v7880 = vrot.slane %v7383, 1
      %v7881 = vrot.slane %v7386, 1
      %v7882 = vrot.slane %v7391, 1
      %v7883 = vrot.slane %v7394, 1
      %v7884 = vrot.slane %v7399, 1
      %v7885 = vrot.slane %v7402, 1
      %v7886 = vrot.slane %v7407, 1
      %v7887 = vrot.slane %v7410, 1
      %v7888 = vrot.slane %v7415, 1
      %v7889 = vrot.slane %v7418, 1
      %v7890 = vrot.slane %v7423, 1
      %v7891 = vrot.slane %v7426, 1
      %v7892 = vrot.slane %v7431, 1
      %v7893 = vrot.slane %v7434, 1
      %v7894 = vrot.slane %v7439, 1
      %v7895 = vrot.slane %v7442, 1
      %v7896 = vrot.slane %v7447, 1
      %v7897 = vrot.slane %v7450, 1
      %v7898 = vrot.slane %v7455, 1
      %v7899 = vrot.slane %v7458, 1
      %v7900 = vrot.slane %v7463, 1
      %v7901 = vrot.slane %v7466, 1
      %v7902 = vrot.slane %v7471, 1
      %v7903 = vrot.slane %v7474, 1
      %v7904 = vrot.slane %v7479, 1
      %v7905 = vrot.slane %v7482, 1
      %v7906 = vrot.slane %v7487, 1
      %v7907 = vrot.slane %v7490, 1
      %v7908 = vrot.slane %v7495, 1
      %v7909 = vrot.slane %v7498, 1
      %v7910 = vrot.slane %v7503, 1
      %v7911 = vrot.slane %v7506, 1
      %v7912 = vrot.slane %v7511, 1
      %v7913 = vrot.slane %v7514, 1
      %v7914 = vrot.slane %v7519, 1
      %v7915 = vrot.slane %v7522, 1
      %v7916 = vrot.slane %v7527, 1
      %v7917 = vrot.slane %v7530, 1
      %v7982 = vsel %vm5068, %v7854, 0.0
      %v7983 = vsel %vm5068, %v7855, 0.0
      %v7984 = vsel %vm5068, %v7856, 0.0
      %v7985 = vsel %vm5068, %v7857, 0.0
      %v7986 = vsel %vm5068, %v7858, 0.0
      %v7987 = vsel %vm5068, %v7859, 0.0
      %v7988 = vsel %vm5068, %v7860, 0.0
      %v7989 = vsel %vm5068, %v7861, 0.0
      %v7990 = vsel %vm5068, %v7862, 0.0
      %v7991 = vsel %vm5068, %v7863, 0.0
      %v7992 = vsel %vm5068, %v7864, 0.0
      %v7993 = vsel %vm5068, %v7865, 0.0
      %v7994 = vsel %vm5068, %v7866, 0.0
      %v7995 = vsel %vm5068, %v7867, 0.0
      %v7996 = vsel %vm5068, %v7868, 0.0
      %v7997 = vsel %vm5068, %v7869, 0.0
      %v7998 = vsel %vm5068, %v7870, 0.0
      %v7999 = vsel %vm5068, %v7871, 0.0
      %v8000 = vsel %vm5068, %v7872, 0.0
      %v8001 = vsel %vm5068, %v7873, 0.0
      %v8002 = vsel %vm5068, %v7874, 0.0
      %v8003 = vsel %vm5068, %v7875, 0.0
      %v8004 = vsel %vm5068, %v7876, 0.0
      %v8005 = vsel %vm5068, %v7877, 0.0
      %v8006 = vsel %vm5068, %v7878, 0.0
      %v8007 = vsel %vm5068, %v7879, 0.0
      %v8008 = vsel %vm5068, %v7880, 0.0
      %v8009 = vsel %vm5068, %v7881, 0.0
      %v8010 = vsel %vm5068, %v7882, 0.0
      %v8011 = vsel %vm5068, %v7883, 0.0
      %v8012 = vsel %vm5068, %v7884, 0.0
      %v8013 = vsel %vm5068, %v7885, 0.0
      %v8014 = vsel %vm5068, %v7886, 0.0
      %v8015 = vsel %vm5068, %v7887, 0.0
      %v8016 = vsel %vm5068, %v7888, 0.0
      %v8017 = vsel %vm5068, %v7889, 0.0
      %v8018 = vsel %vm5068, %v7890, 0.0
      %v8019 = vsel %vm5068, %v7891, 0.0
      %v8020 = vsel %vm5068, %v7892, 0.0
      %v8021 = vsel %vm5068, %v7893, 0.0
      %v8022 = vsel %vm5068, %v7894, 0.0
      %v8023 = vsel %vm5068, %v7895, 0.0
      %v8024 = vsel %vm5068, %v7896, 0.0
      %v8025 = vsel %vm5068, %v7897, 0.0
      %v8026 = vsel %vm5068, %v7898, 0.0
      %v8027 = vsel %vm5068, %v7899, 0.0
      %v8028 = vsel %vm5068, %v7900, 0.0
      %v8029 = vsel %vm5068, %v7901, 0.0
      %v8030 = vsel %vm5068, %v7902, 0.0
      %v8031 = vsel %vm5068, %v7903, 0.0
      %v8032 = vsel %vm5068, %v7904, 0.0
      %v8033 = vsel %vm5068, %v7905, 0.0
      %v8034 = vsel %vm5068, %v7906, 0.0
      %v8035 = vsel %vm5068, %v7907, 0.0
      %v8036 = vsel %vm5068, %v7908, 0.0
      %v8037 = vsel %vm5068, %v7909, 0.0
      %v8038 = vsel %vm5068, %v7910, 0.0
      %v8039 = vsel %vm5068, %v7911, 0.0
      %v8040 = vsel %vm5068, %v7912, 0.0
      %v8041 = vsel %vm5068, %v7913, 0.0
      %v8042 = vsel %vm5068, %v7914, 0.0
      %v8043 = vsel %vm5068, %v7915, 0.0
      %v8044 = vsel %vm5068, %v7916, 0.0
      %v8045 = vsel %vm5068, %v7917, 0.0
      %v8046 = vmul.f32 %v7982, %v5645
      %v8047 = vmul.f32 %v7983, %v5645
      %v8048 = vmul.f32 %v7984, %v5645
      %v8049 = vmul.f32 %v7985, %v5645
      %v8050 = vmul.f32 %v7986, %v5645
      %v8051 = vmul.f32 %v7987, %v5645
      %v8052 = vmul.f32 %v7988, %v5645
      %v8053 = vmul.f32 %v7989, %v5645
      %v8054 = vmul.f32 %v7990, %v5645
      %v8055 = vmul.f32 %v7991, %v5645
      %v8056 = vmul.f32 %v7992, %v5645
      %v8057 = vmul.f32 %v7993, %v5645
      %v8058 = vmul.f32 %v7994, %v5645
      %v8059 = vmul.f32 %v7995, %v5645
      %v8060 = vmul.f32 %v7996, %v5645
      %v8061 = vmul.f32 %v7997, %v5645
      %v8062 = vmul.f32 %v7998, %v5645
      %v8063 = vmul.f32 %v7999, %v5645
      %v8064 = vmul.f32 %v8000, %v5645
      %v8065 = vmul.f32 %v8001, %v5645
      %v8066 = vmul.f32 %v8002, %v5645
      %v8067 = vmul.f32 %v8003, %v5645
      %v8068 = vmul.f32 %v8004, %v5645
      %v8069 = vmul.f32 %v8005, %v5645
      %v8070 = vmul.f32 %v8006, %v5645
      %v8071 = vmul.f32 %v8007, %v5645
      %v8072 = vmul.f32 %v8008, %v5645
      %v8073 = vmul.f32 %v8009, %v5645
      %v8074 = vmul.f32 %v8010, %v5645
      %v8075 = vmul.f32 %v8011, %v5645
      %v8076 = vmul.f32 %v8012, %v5645
      %v8077 = vmul.f32 %v8013, %v5645
      %v8078 = vmul.f32 %v8014, %v5645
      %v8079 = vmul.f32 %v8015, %v5645
      %v8080 = vmul.f32 %v8016, %v5645
      %v8081 = vmul.f32 %v8017, %v5645
      %v8082 = vmul.f32 %v8018, %v5645
      %v8083 = vmul.f32 %v8019, %v5645
      %v8084 = vmul.f32 %v8020, %v5645
      %v8085 = vmul.f32 %v8021, %v5645
      %v8086 = vmul.f32 %v8022, %v5645
      %v8087 = vmul.f32 %v8023, %v5645
      %v8088 = vmul.f32 %v8024, %v5645
      %v8089 = vmul.f32 %v8025, %v5645
      %v8090 = vmul.f32 %v8026, %v5645
      %v8091 = vmul.f32 %v8027, %v5645
      %v8092 = vmul.f32 %v8028, %v5645
      %v8093 = vmul.f32 %v8029, %v5645
      %v8094 = vmul.f32 %v8030, %v5645
      %v8095 = vmul.f32 %v8031, %v5645
      %v8096 = vmul.f32 %v8032, %v5645
      %v8097 = vmul.f32 %v8033, %v5645
      %v8098 = vmul.f32 %v8034, %v5645
      %v8099 = vmul.f32 %v8035, %v5645
      %v8100 = vmul.f32 %v8036, %v5645
      %v8101 = vmul.f32 %v8037, %v5645
      %v8102 = vmul.f32 %v8038, %v5645
      %v8103 = vmul.f32 %v8039, %v5645
      %v8104 = vmul.f32 %v8040, %v5645
      %v8105 = vmul.f32 %v8041, %v5645
      %v8106 = vmul.f32 %v8042, %v5645
      %v8107 = vmul.f32 %v8043, %v5645
      %v8108 = vmul.f32 %v8044, %v5645
      %v8109 = vmul.f32 %v8045, %v5645
      %v8110 = vadd.f32 %v7790, %v8046
      %v8111 = vadd.f32 %v7791, %v8047
      %v8112 = vadd.f32 %v7792, %v8048
      %v8113 = vadd.f32 %v7793, %v8049
      %v8114 = vadd.f32 %v7794, %v8050
      %v8115 = vadd.f32 %v7795, %v8051
      %v8116 = vadd.f32 %v7796, %v8052
      %v8117 = vadd.f32 %v7797, %v8053
      %v8118 = vadd.f32 %v7798, %v8054
      %v8119 = vadd.f32 %v7799, %v8055
      %v8120 = vadd.f32 %v7800, %v8056
      %v8121 = vadd.f32 %v7801, %v8057
      %v8122 = vadd.f32 %v7802, %v8058
      %v8123 = vadd.f32 %v7803, %v8059
      %v8124 = vadd.f32 %v7804, %v8060
      %v8125 = vadd.f32 %v7805, %v8061
      %v8126 = vadd.f32 %v7806, %v8062
      %v8127 = vadd.f32 %v7807, %v8063
      %v8128 = vadd.f32 %v7808, %v8064
      %v8129 = vadd.f32 %v7809, %v8065
      %v8130 = vadd.f32 %v7810, %v8066
      %v8131 = vadd.f32 %v7811, %v8067
      %v8132 = vadd.f32 %v7812, %v8068
      %v8133 = vadd.f32 %v7813, %v8069
      %v8134 = vadd.f32 %v7814, %v8070
      %v8135 = vadd.f32 %v7815, %v8071
      %v8136 = vadd.f32 %v7816, %v8072
      %v8137 = vadd.f32 %v7817, %v8073
      %v8138 = vadd.f32 %v7818, %v8074
      %v8139 = vadd.f32 %v7819, %v8075
      %v8140 = vadd.f32 %v7820, %v8076
      %v8141 = vadd.f32 %v7821, %v8077
      %v8142 = vadd.f32 %v7822, %v8078
      %v8143 = vadd.f32 %v7823, %v8079
      %v8144 = vadd.f32 %v7824, %v8080
      %v8145 = vadd.f32 %v7825, %v8081
      %v8146 = vadd.f32 %v7826, %v8082
      %v8147 = vadd.f32 %v7827, %v8083
      %v8148 = vadd.f32 %v7828, %v8084
      %v8149 = vadd.f32 %v7829, %v8085
      %v8150 = vadd.f32 %v7830, %v8086
      %v8151 = vadd.f32 %v7831, %v8087
      %v8152 = vadd.f32 %v7832, %v8088
      %v8153 = vadd.f32 %v7833, %v8089
      %v8154 = vadd.f32 %v7834, %v8090
      %v8155 = vadd.f32 %v7835, %v8091
      %v8156 = vadd.f32 %v7836, %v8092
      %v8157 = vadd.f32 %v7837, %v8093
      %v8158 = vadd.f32 %v7838, %v8094
      %v8159 = vadd.f32 %v7839, %v8095
      %v8160 = vadd.f32 %v7840, %v8096
      %v8161 = vadd.f32 %v7841, %v8097
      %v8162 = vadd.f32 %v7842, %v8098
      %v8163 = vadd.f32 %v7843, %v8099
      %v8164 = vadd.f32 %v7844, %v8100
      %v8165 = vadd.f32 %v7845, %v8101
      %v8166 = vadd.f32 %v7846, %v8102
      %v8167 = vadd.f32 %v7847, %v8103
      %v8168 = vadd.f32 %v7848, %v8104
      %v8169 = vadd.f32 %v7849, %v8105
      %v8170 = vadd.f32 %v7850, %v8106
      %v8171 = vadd.f32 %v7851, %v8107
      %v8172 = vadd.f32 %v7852, %v8108
      %v8173 = vadd.f32 %v7853, %v8109
      %v8174 = vmul.f32 %v7279, %v5763
      %v8175 = vmul.f32 %v7282, %v5763
      %v8176 = vmul.f32 %v7287, %v5763
      %v8177 = vmul.f32 %v7290, %v5763
      %v8178 = vmul.f32 %v7295, %v5763
      %v8179 = vmul.f32 %v7298, %v5763
      %v8180 = vmul.f32 %v7303, %v5763
      %v8181 = vmul.f32 %v7306, %v5763
      %v8182 = vmul.f32 %v7311, %v5763
      %v8183 = vmul.f32 %v7314, %v5763
      %v8184 = vmul.f32 %v7319, %v5763
      %v8185 = vmul.f32 %v7322, %v5763
      %v8186 = vmul.f32 %v7327, %v5763
      %v8187 = vmul.f32 %v7330, %v5763
      %v8188 = vmul.f32 %v7335, %v5763
      %v8189 = vmul.f32 %v7338, %v5763
      %v8190 = vmul.f32 %v7343, %v5763
      %v8191 = vmul.f32 %v7346, %v5763
      %v8192 = vmul.f32 %v7351, %v5763
      %v8193 = vmul.f32 %v7354, %v5763
      %v8194 = vmul.f32 %v7359, %v5763
      %v8195 = vmul.f32 %v7362, %v5763
      %v8196 = vmul.f32 %v7367, %v5763
      %v8197 = vmul.f32 %v7370, %v5763
      %v8198 = vmul.f32 %v7375, %v5763
      %v8199 = vmul.f32 %v7378, %v5763
      %v8200 = vmul.f32 %v7383, %v5763
      %v8201 = vmul.f32 %v7386, %v5763
      %v8202 = vmul.f32 %v7391, %v5763
      %v8203 = vmul.f32 %v7394, %v5763
      %v8204 = vmul.f32 %v7399, %v5763
      %v8205 = vmul.f32 %v7402, %v5763
      %v8206 = vmul.f32 %v7407, %v5763
      %v8207 = vmul.f32 %v7410, %v5763
      %v8208 = vmul.f32 %v7415, %v5763
      %v8209 = vmul.f32 %v7418, %v5763
      %v8210 = vmul.f32 %v7423, %v5763
      %v8211 = vmul.f32 %v7426, %v5763
      %v8212 = vmul.f32 %v7431, %v5763
      %v8213 = vmul.f32 %v7434, %v5763
      %v8214 = vmul.f32 %v7439, %v5763
      %v8215 = vmul.f32 %v7442, %v5763
      %v8216 = vmul.f32 %v7447, %v5763
      %v8217 = vmul.f32 %v7450, %v5763
      %v8218 = vmul.f32 %v7455, %v5763
      %v8219 = vmul.f32 %v7458, %v5763
      %v8220 = vmul.f32 %v7463, %v5763
      %v8221 = vmul.f32 %v7466, %v5763
      %v8222 = vmul.f32 %v7471, %v5763
      %v8223 = vmul.f32 %v7474, %v5763
      %v8224 = vmul.f32 %v7479, %v5763
      %v8225 = vmul.f32 %v7482, %v5763
      %v8226 = vmul.f32 %v7487, %v5763
      %v8227 = vmul.f32 %v7490, %v5763
      %v8228 = vmul.f32 %v7495, %v5763
      %v8229 = vmul.f32 %v7498, %v5763
      %v8230 = vmul.f32 %v7503, %v5763
      %v8231 = vmul.f32 %v7506, %v5763
      %v8232 = vmul.f32 %v7511, %v5763
      %v8233 = vmul.f32 %v7514, %v5763
      %v8234 = vmul.f32 %v7519, %v5763
      %v8235 = vmul.f32 %v7522, %v5763
      %v8236 = vmul.f32 %v7527, %v5763
      %v8237 = vmul.f32 %v7530, %v5763
      %v8238 = vadd.f32 %v8110, %v8174
      %v8239 = vadd.f32 %v8111, %v8175
      %v8240 = vadd.f32 %v8112, %v8176
      %v8241 = vadd.f32 %v8113, %v8177
      %v8242 = vadd.f32 %v8114, %v8178
      %v8243 = vadd.f32 %v8115, %v8179
      %v8244 = vadd.f32 %v8116, %v8180
      %v8245 = vadd.f32 %v8117, %v8181
      %v8246 = vadd.f32 %v8118, %v8182
      %v8247 = vadd.f32 %v8119, %v8183
      %v8248 = vadd.f32 %v8120, %v8184
      %v8249 = vadd.f32 %v8121, %v8185
      %v8250 = vadd.f32 %v8122, %v8186
      %v8251 = vadd.f32 %v8123, %v8187
      %v8252 = vadd.f32 %v8124, %v8188
      %v8253 = vadd.f32 %v8125, %v8189
      %v8254 = vadd.f32 %v8126, %v8190
      %v8255 = vadd.f32 %v8127, %v8191
      %v8256 = vadd.f32 %v8128, %v8192
      %v8257 = vadd.f32 %v8129, %v8193
      %v8258 = vadd.f32 %v8130, %v8194
      %v8259 = vadd.f32 %v8131, %v8195
      %v8260 = vadd.f32 %v8132, %v8196
      %v8261 = vadd.f32 %v8133, %v8197
      %v8262 = vadd.f32 %v8134, %v8198
      %v8263 = vadd.f32 %v8135, %v8199
      %v8264 = vadd.f32 %v8136, %v8200
      %v8265 = vadd.f32 %v8137, %v8201
      %v8266 = vadd.f32 %v8138, %v8202
      %v8267 = vadd.f32 %v8139, %v8203
      %v8268 = vadd.f32 %v8140, %v8204
      %v8269 = vadd.f32 %v8141, %v8205
      %v8270 = vadd.f32 %v8142, %v8206
      %v8271 = vadd.f32 %v8143, %v8207
      %v8272 = vadd.f32 %v8144, %v8208
      %v8273 = vadd.f32 %v8145, %v8209
      %v8274 = vadd.f32 %v8146, %v8210
      %v8275 = vadd.f32 %v8147, %v8211
      %v8276 = vadd.f32 %v8148, %v8212
      %v8277 = vadd.f32 %v8149, %v8213
      %v8278 = vadd.f32 %v8150, %v8214
      %v8279 = vadd.f32 %v8151, %v8215
      %v8280 = vadd.f32 %v8152, %v8216
      %v8281 = vadd.f32 %v8153, %v8217
      %v8282 = vadd.f32 %v8154, %v8218
      %v8283 = vadd.f32 %v8155, %v8219
      %v8284 = vadd.f32 %v8156, %v8220
      %v8285 = vadd.f32 %v8157, %v8221
      %v8286 = vadd.f32 %v8158, %v8222
      %v8287 = vadd.f32 %v8159, %v8223
      %v8288 = vadd.f32 %v8160, %v8224
      %v8289 = vadd.f32 %v8161, %v8225
      %v8290 = vadd.f32 %v8162, %v8226
      %v8291 = vadd.f32 %v8163, %v8227
      %v8292 = vadd.f32 %v8164, %v8228
      %v8293 = vadd.f32 %v8165, %v8229
      %v8294 = vadd.f32 %v8166, %v8230
      %v8295 = vadd.f32 %v8167, %v8231
      %v8296 = vadd.f32 %v8168, %v8232
      %v8297 = vadd.f32 %v8169, %v8233
      %v8298 = vadd.f32 %v8170, %v8234
      %v8299 = vadd.f32 %v8171, %v8235
      %v8300 = vadd.f32 %v8172, %v8236
      %v8301 = vadd.f32 %v8173, %v8237
      %v8302 = vrot.slane %v7279, 7
      %v8303 = vrot.slane %v7282, 7
      %v8304 = vrot.slane %v7287, 7
      %v8305 = vrot.slane %v7290, 7
      %v8306 = vrot.slane %v7295, 7
      %v8307 = vrot.slane %v7298, 7
      %v8308 = vrot.slane %v7303, 7
      %v8309 = vrot.slane %v7306, 7
      %v8310 = vrot.slane %v7311, 7
      %v8311 = vrot.slane %v7314, 7
      %v8312 = vrot.slane %v7319, 7
      %v8313 = vrot.slane %v7322, 7
      %v8314 = vrot.slane %v7327, 7
      %v8315 = vrot.slane %v7330, 7
      %v8316 = vrot.slane %v7335, 7
      %v8317 = vrot.slane %v7338, 7
      %v8318 = vrot.slane %v7343, 7
      %v8319 = vrot.slane %v7346, 7
      %v8320 = vrot.slane %v7351, 7
      %v8321 = vrot.slane %v7354, 7
      %v8322 = vrot.slane %v7359, 7
      %v8323 = vrot.slane %v7362, 7
      %v8324 = vrot.slane %v7367, 7
      %v8325 = vrot.slane %v7370, 7
      %v8326 = vrot.slane %v7375, 7
      %v8327 = vrot.slane %v7378, 7
      %v8328 = vrot.slane %v7383, 7
      %v8329 = vrot.slane %v7386, 7
      %v8330 = vrot.slane %v7391, 7
      %v8331 = vrot.slane %v7394, 7
      %v8332 = vrot.slane %v7399, 7
      %v8333 = vrot.slane %v7402, 7
      %v8334 = vrot.slane %v7407, 7
      %v8335 = vrot.slane %v7410, 7
      %v8336 = vrot.slane %v7415, 7
      %v8337 = vrot.slane %v7418, 7
      %v8338 = vrot.slane %v7423, 7
      %v8339 = vrot.slane %v7426, 7
      %v8340 = vrot.slane %v7431, 7
      %v8341 = vrot.slane %v7434, 7
      %v8342 = vrot.slane %v7439, 7
      %v8343 = vrot.slane %v7442, 7
      %v8344 = vrot.slane %v7447, 7
      %v8345 = vrot.slane %v7450, 7
      %v8346 = vrot.slane %v7455, 7
      %v8347 = vrot.slane %v7458, 7
      %v8348 = vrot.slane %v7463, 7
      %v8349 = vrot.slane %v7466, 7
      %v8350 = vrot.slane %v7471, 7
      %v8351 = vrot.slane %v7474, 7
      %v8352 = vrot.slane %v7479, 7
      %v8353 = vrot.slane %v7482, 7
      %v8354 = vrot.slane %v7487, 7
      %v8355 = vrot.slane %v7490, 7
      %v8356 = vrot.slane %v7495, 7
      %v8357 = vrot.slane %v7498, 7
      %v8358 = vrot.slane %v7503, 7
      %v8359 = vrot.slane %v7506, 7
      %v8360 = vrot.slane %v7511, 7
      %v8361 = vrot.slane %v7514, 7
      %v8362 = vrot.slane %v7519, 7
      %v8363 = vrot.slane %v7522, 7
      %v8364 = vrot.slane %v7527, 7
      %v8365 = vrot.slane %v7530, 7
      %v8430 = vsel %vm4747, 0.0, %v8302
      %v8431 = vsel %vm4747, 0.0, %v8303
      %v8432 = vsel %vm4747, 0.0, %v8304
      %v8433 = vsel %vm4747, 0.0, %v8305
      %v8434 = vsel %vm4747, 0.0, %v8306
      %v8435 = vsel %vm4747, 0.0, %v8307
      %v8436 = vsel %vm4747, 0.0, %v8308
      %v8437 = vsel %vm4747, 0.0, %v8309
      %v8438 = vsel %vm4747, 0.0, %v8310
      %v8439 = vsel %vm4747, 0.0, %v8311
      %v8440 = vsel %vm4747, 0.0, %v8312
      %v8441 = vsel %vm4747, 0.0, %v8313
      %v8442 = vsel %vm4747, 0.0, %v8314
      %v8443 = vsel %vm4747, 0.0, %v8315
      %v8444 = vsel %vm4747, 0.0, %v8316
      %v8445 = vsel %vm4747, 0.0, %v8317
      %v8446 = vsel %vm4747, 0.0, %v8318
      %v8447 = vsel %vm4747, 0.0, %v8319
      %v8448 = vsel %vm4747, 0.0, %v8320
      %v8449 = vsel %vm4747, 0.0, %v8321
      %v8450 = vsel %vm4747, 0.0, %v8322
      %v8451 = vsel %vm4747, 0.0, %v8323
      %v8452 = vsel %vm4747, 0.0, %v8324
      %v8453 = vsel %vm4747, 0.0, %v8325
      %v8454 = vsel %vm4747, 0.0, %v8326
      %v8455 = vsel %vm4747, 0.0, %v8327
      %v8456 = vsel %vm4747, 0.0, %v8328
      %v8457 = vsel %vm4747, 0.0, %v8329
      %v8458 = vsel %vm4747, 0.0, %v8330
      %v8459 = vsel %vm4747, 0.0, %v8331
      %v8460 = vsel %vm4747, 0.0, %v8332
      %v8461 = vsel %vm4747, 0.0, %v8333
      %v8462 = vsel %vm4747, 0.0, %v8334
      %v8463 = vsel %vm4747, 0.0, %v8335
      %v8464 = vsel %vm4747, 0.0, %v8336
      %v8465 = vsel %vm4747, 0.0, %v8337
      %v8466 = vsel %vm4747, 0.0, %v8338
      %v8467 = vsel %vm4747, 0.0, %v8339
      %v8468 = vsel %vm4747, 0.0, %v8340
      %v8469 = vsel %vm4747, 0.0, %v8341
      %v8470 = vsel %vm4747, 0.0, %v8342
      %v8471 = vsel %vm4747, 0.0, %v8343
      %v8472 = vsel %vm4747, 0.0, %v8344
      %v8473 = vsel %vm4747, 0.0, %v8345
      %v8474 = vsel %vm4747, 0.0, %v8346
      %v8475 = vsel %vm4747, 0.0, %v8347
      %v8476 = vsel %vm4747, 0.0, %v8348
      %v8477 = vsel %vm4747, 0.0, %v8349
      %v8478 = vsel %vm4747, 0.0, %v8350
      %v8479 = vsel %vm4747, 0.0, %v8351
      %v8480 = vsel %vm4747, 0.0, %v8352
      %v8481 = vsel %vm4747, 0.0, %v8353
      %v8482 = vsel %vm4747, 0.0, %v8354
      %v8483 = vsel %vm4747, 0.0, %v8355
      %v8484 = vsel %vm4747, 0.0, %v8356
      %v8485 = vsel %vm4747, 0.0, %v8357
      %v8486 = vsel %vm4747, 0.0, %v8358
      %v8487 = vsel %vm4747, 0.0, %v8359
      %v8488 = vsel %vm4747, 0.0, %v8360
      %v8489 = vsel %vm4747, 0.0, %v8361
      %v8490 = vsel %vm4747, 0.0, %v8362
      %v8491 = vsel %vm4747, 0.0, %v8363
      %v8492 = vsel %vm4747, 0.0, %v8364
      %v8493 = vsel %vm4747, 0.0, %v8365
      %v8494 = vmul.f32 %v8430, %v5895
      %v8495 = vmul.f32 %v8431, %v5895
      %v8496 = vmul.f32 %v8432, %v5895
      %v8497 = vmul.f32 %v8433, %v5895
      %v8498 = vmul.f32 %v8434, %v5895
      %v8499 = vmul.f32 %v8435, %v5895
      %v8500 = vmul.f32 %v8436, %v5895
      %v8501 = vmul.f32 %v8437, %v5895
      %v8502 = vmul.f32 %v8438, %v5895
      %v8503 = vmul.f32 %v8439, %v5895
      %v8504 = vmul.f32 %v8440, %v5895
      %v8505 = vmul.f32 %v8441, %v5895
      %v8506 = vmul.f32 %v8442, %v5895
      %v8507 = vmul.f32 %v8443, %v5895
      %v8508 = vmul.f32 %v8444, %v5895
      %v8509 = vmul.f32 %v8445, %v5895
      %v8510 = vmul.f32 %v8446, %v5895
      %v8511 = vmul.f32 %v8447, %v5895
      %v8512 = vmul.f32 %v8448, %v5895
      %v8513 = vmul.f32 %v8449, %v5895
      %v8514 = vmul.f32 %v8450, %v5895
      %v8515 = vmul.f32 %v8451, %v5895
      %v8516 = vmul.f32 %v8452, %v5895
      %v8517 = vmul.f32 %v8453, %v5895
      %v8518 = vmul.f32 %v8454, %v5895
      %v8519 = vmul.f32 %v8455, %v5895
      %v8520 = vmul.f32 %v8456, %v5895
      %v8521 = vmul.f32 %v8457, %v5895
      %v8522 = vmul.f32 %v8458, %v5895
      %v8523 = vmul.f32 %v8459, %v5895
      %v8524 = vmul.f32 %v8460, %v5895
      %v8525 = vmul.f32 %v8461, %v5895
      %v8526 = vmul.f32 %v8462, %v5895
      %v8527 = vmul.f32 %v8463, %v5895
      %v8528 = vmul.f32 %v8464, %v5895
      %v8529 = vmul.f32 %v8465, %v5895
      %v8530 = vmul.f32 %v8466, %v5895
      %v8531 = vmul.f32 %v8467, %v5895
      %v8532 = vmul.f32 %v8468, %v5895
      %v8533 = vmul.f32 %v8469, %v5895
      %v8534 = vmul.f32 %v8470, %v5895
      %v8535 = vmul.f32 %v8471, %v5895
      %v8536 = vmul.f32 %v8472, %v5895
      %v8537 = vmul.f32 %v8473, %v5895
      %v8538 = vmul.f32 %v8474, %v5895
      %v8539 = vmul.f32 %v8475, %v5895
      %v8540 = vmul.f32 %v8476, %v5895
      %v8541 = vmul.f32 %v8477, %v5895
      %v8542 = vmul.f32 %v8478, %v5895
      %v8543 = vmul.f32 %v8479, %v5895
      %v8544 = vmul.f32 %v8480, %v5895
      %v8545 = vmul.f32 %v8481, %v5895
      %v8546 = vmul.f32 %v8482, %v5895
      %v8547 = vmul.f32 %v8483, %v5895
      %v8548 = vmul.f32 %v8484, %v5895
      %v8549 = vmul.f32 %v8485, %v5895
      %v8550 = vmul.f32 %v8486, %v5895
      %v8551 = vmul.f32 %v8487, %v5895
      %v8552 = vmul.f32 %v8488, %v5895
      %v8553 = vmul.f32 %v8489, %v5895
      %v8554 = vmul.f32 %v8490, %v5895
      %v8555 = vmul.f32 %v8491, %v5895
      %v8556 = vmul.f32 %v8492, %v5895
      %v8557 = vmul.f32 %v8493, %v5895
      %v8558 = vadd.f32 %v8238, %v8494
      %v8559 = vadd.f32 %v8239, %v8495
      %v8560 = vadd.f32 %v8240, %v8496
      %v8561 = vadd.f32 %v8241, %v8497
      %v8562 = vadd.f32 %v8242, %v8498
      %v8563 = vadd.f32 %v8243, %v8499
      %v8564 = vadd.f32 %v8244, %v8500
      %v8565 = vadd.f32 %v8245, %v8501
      %v8566 = vadd.f32 %v8246, %v8502
      %v8567 = vadd.f32 %v8247, %v8503
      %v8568 = vadd.f32 %v8248, %v8504
      %v8569 = vadd.f32 %v8249, %v8505
      %v8570 = vadd.f32 %v8250, %v8506
      %v8571 = vadd.f32 %v8251, %v8507
      %v8572 = vadd.f32 %v8252, %v8508
      %v8573 = vadd.f32 %v8253, %v8509
      %v8574 = vadd.f32 %v8254, %v8510
      %v8575 = vadd.f32 %v8255, %v8511
      %v8576 = vadd.f32 %v8256, %v8512
      %v8577 = vadd.f32 %v8257, %v8513
      %v8578 = vadd.f32 %v8258, %v8514
      %v8579 = vadd.f32 %v8259, %v8515
      %v8580 = vadd.f32 %v8260, %v8516
      %v8581 = vadd.f32 %v8261, %v8517
      %v8582 = vadd.f32 %v8262, %v8518
      %v8583 = vadd.f32 %v8263, %v8519
      %v8584 = vadd.f32 %v8264, %v8520
      %v8585 = vadd.f32 %v8265, %v8521
      %v8586 = vadd.f32 %v8266, %v8522
      %v8587 = vadd.f32 %v8267, %v8523
      %v8588 = vadd.f32 %v8268, %v8524
      %v8589 = vadd.f32 %v8269, %v8525
      %v8590 = vadd.f32 %v8270, %v8526
      %v8591 = vadd.f32 %v8271, %v8527
      %v8592 = vadd.f32 %v8272, %v8528
      %v8593 = vadd.f32 %v8273, %v8529
      %v8594 = vadd.f32 %v8274, %v8530
      %v8595 = vadd.f32 %v8275, %v8531
      %v8596 = vadd.f32 %v8276, %v8532
      %v8597 = vadd.f32 %v8277, %v8533
      %v8598 = vadd.f32 %v8278, %v8534
      %v8599 = vadd.f32 %v8279, %v8535
      %v8600 = vadd.f32 %v8280, %v8536
      %v8601 = vadd.f32 %v8281, %v8537
      %v8602 = vadd.f32 %v8282, %v8538
      %v8603 = vadd.f32 %v8283, %v8539
      %v8604 = vadd.f32 %v8284, %v8540
      %v8605 = vadd.f32 %v8285, %v8541
      %v8606 = vadd.f32 %v8286, %v8542
      %v8607 = vadd.f32 %v8287, %v8543
      %v8608 = vadd.f32 %v8288, %v8544
      %v8609 = vadd.f32 %v8289, %v8545
      %v8610 = vadd.f32 %v8290, %v8546
      %v8611 = vadd.f32 %v8291, %v8547
      %v8612 = vadd.f32 %v8292, %v8548
      %v8613 = vadd.f32 %v8293, %v8549
      %v8614 = vadd.f32 %v8294, %v8550
      %v8615 = vadd.f32 %v8295, %v8551
      %v8616 = vadd.f32 %v8296, %v8552
      %v8617 = vadd.f32 %v8297, %v8553
      %v8618 = vadd.f32 %v8298, %v8554
      %v8619 = vadd.f32 %v8299, %v8555
      %v8620 = vadd.f32 %v8300, %v8556
      %v8621 = vadd.f32 %v8301, %v8557
      %v8622 = vrot.slane %v7279, 6
      %v8623 = vrot.slane %v7282, 6
      %v8624 = vrot.slane %v7287, 6
      %v8625 = vrot.slane %v7290, 6
      %v8626 = vrot.slane %v7295, 6
      %v8627 = vrot.slane %v7298, 6
      %v8628 = vrot.slane %v7303, 6
      %v8629 = vrot.slane %v7306, 6
      %v8630 = vrot.slane %v7311, 6
      %v8631 = vrot.slane %v7314, 6
      %v8632 = vrot.slane %v7319, 6
      %v8633 = vrot.slane %v7322, 6
      %v8634 = vrot.slane %v7327, 6
      %v8635 = vrot.slane %v7330, 6
      %v8636 = vrot.slane %v7335, 6
      %v8637 = vrot.slane %v7338, 6
      %v8638 = vrot.slane %v7343, 6
      %v8639 = vrot.slane %v7346, 6
      %v8640 = vrot.slane %v7351, 6
      %v8641 = vrot.slane %v7354, 6
      %v8642 = vrot.slane %v7359, 6
      %v8643 = vrot.slane %v7362, 6
      %v8644 = vrot.slane %v7367, 6
      %v8645 = vrot.slane %v7370, 6
      %v8646 = vrot.slane %v7375, 6
      %v8647 = vrot.slane %v7378, 6
      %v8648 = vrot.slane %v7383, 6
      %v8649 = vrot.slane %v7386, 6
      %v8650 = vrot.slane %v7391, 6
      %v8651 = vrot.slane %v7394, 6
      %v8652 = vrot.slane %v7399, 6
      %v8653 = vrot.slane %v7402, 6
      %v8654 = vrot.slane %v7407, 6
      %v8655 = vrot.slane %v7410, 6
      %v8656 = vrot.slane %v7415, 6
      %v8657 = vrot.slane %v7418, 6
      %v8658 = vrot.slane %v7423, 6
      %v8659 = vrot.slane %v7426, 6
      %v8660 = vrot.slane %v7431, 6
      %v8661 = vrot.slane %v7434, 6
      %v8662 = vrot.slane %v7439, 6
      %v8663 = vrot.slane %v7442, 6
      %v8664 = vrot.slane %v7447, 6
      %v8665 = vrot.slane %v7450, 6
      %v8666 = vrot.slane %v7455, 6
      %v8667 = vrot.slane %v7458, 6
      %v8668 = vrot.slane %v7463, 6
      %v8669 = vrot.slane %v7466, 6
      %v8670 = vrot.slane %v7471, 6
      %v8671 = vrot.slane %v7474, 6
      %v8672 = vrot.slane %v7479, 6
      %v8673 = vrot.slane %v7482, 6
      %v8674 = vrot.slane %v7487, 6
      %v8675 = vrot.slane %v7490, 6
      %v8676 = vrot.slane %v7495, 6
      %v8677 = vrot.slane %v7498, 6
      %v8678 = vrot.slane %v7503, 6
      %v8679 = vrot.slane %v7506, 6
      %v8680 = vrot.slane %v7511, 6
      %v8681 = vrot.slane %v7514, 6
      %v8682 = vrot.slane %v7519, 6
      %v8683 = vrot.slane %v7522, 6
      %v8684 = vrot.slane %v7527, 6
      %v8685 = vrot.slane %v7530, 6
      %v8750 = vsel %vm6281, 0.0, %v8622
      %v8751 = vsel %vm6281, 0.0, %v8623
      %v8752 = vsel %vm6281, 0.0, %v8624
      %v8753 = vsel %vm6281, 0.0, %v8625
      %v8754 = vsel %vm6281, 0.0, %v8626
      %v8755 = vsel %vm6281, 0.0, %v8627
      %v8756 = vsel %vm6281, 0.0, %v8628
      %v8757 = vsel %vm6281, 0.0, %v8629
      %v8758 = vsel %vm6281, 0.0, %v8630
      %v8759 = vsel %vm6281, 0.0, %v8631
      %v8760 = vsel %vm6281, 0.0, %v8632
      %v8761 = vsel %vm6281, 0.0, %v8633
      %v8762 = vsel %vm6281, 0.0, %v8634
      %v8763 = vsel %vm6281, 0.0, %v8635
      %v8764 = vsel %vm6281, 0.0, %v8636
      %v8765 = vsel %vm6281, 0.0, %v8637
      %v8766 = vsel %vm6281, 0.0, %v8638
      %v8767 = vsel %vm6281, 0.0, %v8639
      %v8768 = vsel %vm6281, 0.0, %v8640
      %v8769 = vsel %vm6281, 0.0, %v8641
      %v8770 = vsel %vm6281, 0.0, %v8642
      %v8771 = vsel %vm6281, 0.0, %v8643
      %v8772 = vsel %vm6281, 0.0, %v8644
      %v8773 = vsel %vm6281, 0.0, %v8645
      %v8774 = vsel %vm6281, 0.0, %v8646
      %v8775 = vsel %vm6281, 0.0, %v8647
      %v8776 = vsel %vm6281, 0.0, %v8648
      %v8777 = vsel %vm6281, 0.0, %v8649
      %v8778 = vsel %vm6281, 0.0, %v8650
      %v8779 = vsel %vm6281, 0.0, %v8651
      %v8780 = vsel %vm6281, 0.0, %v8652
      %v8781 = vsel %vm6281, 0.0, %v8653
      %v8782 = vsel %vm6281, 0.0, %v8654
      %v8783 = vsel %vm6281, 0.0, %v8655
      %v8784 = vsel %vm6281, 0.0, %v8656
      %v8785 = vsel %vm6281, 0.0, %v8657
      %v8786 = vsel %vm6281, 0.0, %v8658
      %v8787 = vsel %vm6281, 0.0, %v8659
      %v8788 = vsel %vm6281, 0.0, %v8660
      %v8789 = vsel %vm6281, 0.0, %v8661
      %v8790 = vsel %vm6281, 0.0, %v8662
      %v8791 = vsel %vm6281, 0.0, %v8663
      %v8792 = vsel %vm6281, 0.0, %v8664
      %v8793 = vsel %vm6281, 0.0, %v8665
      %v8794 = vsel %vm6281, 0.0, %v8666
      %v8795 = vsel %vm6281, 0.0, %v8667
      %v8796 = vsel %vm6281, 0.0, %v8668
      %v8797 = vsel %vm6281, 0.0, %v8669
      %v8798 = vsel %vm6281, 0.0, %v8670
      %v8799 = vsel %vm6281, 0.0, %v8671
      %v8800 = vsel %vm6281, 0.0, %v8672
      %v8801 = vsel %vm6281, 0.0, %v8673
      %v8802 = vsel %vm6281, 0.0, %v8674
      %v8803 = vsel %vm6281, 0.0, %v8675
      %v8804 = vsel %vm6281, 0.0, %v8676
      %v8805 = vsel %vm6281, 0.0, %v8677
      %v8806 = vsel %vm6281, 0.0, %v8678
      %v8807 = vsel %vm6281, 0.0, %v8679
      %v8808 = vsel %vm6281, 0.0, %v8680
      %v8809 = vsel %vm6281, 0.0, %v8681
      %v8810 = vsel %vm6281, 0.0, %v8682
      %v8811 = vsel %vm6281, 0.0, %v8683
      %v8812 = vsel %vm6281, 0.0, %v8684
      %v8813 = vsel %vm6281, 0.0, %v8685
      %v8814 = vmul.f32 %v8750, %v6020
      %v8815 = vmul.f32 %v8751, %v6020
      %v8816 = vmul.f32 %v8752, %v6020
      %v8817 = vmul.f32 %v8753, %v6020
      %v8818 = vmul.f32 %v8754, %v6020
      %v8819 = vmul.f32 %v8755, %v6020
      %v8820 = vmul.f32 %v8756, %v6020
      %v8821 = vmul.f32 %v8757, %v6020
      %v8822 = vmul.f32 %v8758, %v6020
      %v8823 = vmul.f32 %v8759, %v6020
      %v8824 = vmul.f32 %v8760, %v6020
      %v8825 = vmul.f32 %v8761, %v6020
      %v8826 = vmul.f32 %v8762, %v6020
      %v8827 = vmul.f32 %v8763, %v6020
      %v8828 = vmul.f32 %v8764, %v6020
      %v8829 = vmul.f32 %v8765, %v6020
      %v8830 = vmul.f32 %v8766, %v6020
      %v8831 = vmul.f32 %v8767, %v6020
      %v8832 = vmul.f32 %v8768, %v6020
      %v8833 = vmul.f32 %v8769, %v6020
      %v8834 = vmul.f32 %v8770, %v6020
      %v8835 = vmul.f32 %v8771, %v6020
      %v8836 = vmul.f32 %v8772, %v6020
      %v8837 = vmul.f32 %v8773, %v6020
      %v8838 = vmul.f32 %v8774, %v6020
      %v8839 = vmul.f32 %v8775, %v6020
      %v8840 = vmul.f32 %v8776, %v6020
      %v8841 = vmul.f32 %v8777, %v6020
      %v8842 = vmul.f32 %v8778, %v6020
      %v8843 = vmul.f32 %v8779, %v6020
      %v8844 = vmul.f32 %v8780, %v6020
      %v8845 = vmul.f32 %v8781, %v6020
      %v8846 = vmul.f32 %v8782, %v6020
      %v8847 = vmul.f32 %v8783, %v6020
      %v8848 = vmul.f32 %v8784, %v6020
      %v8849 = vmul.f32 %v8785, %v6020
      %v8850 = vmul.f32 %v8786, %v6020
      %v8851 = vmul.f32 %v8787, %v6020
      %v8852 = vmul.f32 %v8788, %v6020
      %v8853 = vmul.f32 %v8789, %v6020
      %v8854 = vmul.f32 %v8790, %v6020
      %v8855 = vmul.f32 %v8791, %v6020
      %v8856 = vmul.f32 %v8792, %v6020
      %v8857 = vmul.f32 %v8793, %v6020
      %v8858 = vmul.f32 %v8794, %v6020
      %v8859 = vmul.f32 %v8795, %v6020
      %v8860 = vmul.f32 %v8796, %v6020
      %v8861 = vmul.f32 %v8797, %v6020
      %v8862 = vmul.f32 %v8798, %v6020
      %v8863 = vmul.f32 %v8799, %v6020
      %v8864 = vmul.f32 %v8800, %v6020
      %v8865 = vmul.f32 %v8801, %v6020
      %v8866 = vmul.f32 %v8802, %v6020
      %v8867 = vmul.f32 %v8803, %v6020
      %v8868 = vmul.f32 %v8804, %v6020
      %v8869 = vmul.f32 %v8805, %v6020
      %v8870 = vmul.f32 %v8806, %v6020
      %v8871 = vmul.f32 %v8807, %v6020
      %v8872 = vmul.f32 %v8808, %v6020
      %v8873 = vmul.f32 %v8809, %v6020
      %v8874 = vmul.f32 %v8810, %v6020
      %v8875 = vmul.f32 %v8811, %v6020
      %v8876 = vmul.f32 %v8812, %v6020
      %v8877 = vmul.f32 %v8813, %v6020
      %v8878 = vadd.f32 %v8558, %v8814
      %v8879 = vadd.f32 %v8559, %v8815
      %v8880 = vadd.f32 %v8560, %v8816
      %v8881 = vadd.f32 %v8561, %v8817
      %v8882 = vadd.f32 %v8562, %v8818
      %v8883 = vadd.f32 %v8563, %v8819
      %v8884 = vadd.f32 %v8564, %v8820
      %v8885 = vadd.f32 %v8565, %v8821
      %v8886 = vadd.f32 %v8566, %v8822
      %v8887 = vadd.f32 %v8567, %v8823
      %v8888 = vadd.f32 %v8568, %v8824
      %v8889 = vadd.f32 %v8569, %v8825
      %v8890 = vadd.f32 %v8570, %v8826
      %v8891 = vadd.f32 %v8571, %v8827
      %v8892 = vadd.f32 %v8572, %v8828
      %v8893 = vadd.f32 %v8573, %v8829
      %v8894 = vadd.f32 %v8574, %v8830
      %v8895 = vadd.f32 %v8575, %v8831
      %v8896 = vadd.f32 %v8576, %v8832
      %v8897 = vadd.f32 %v8577, %v8833
      %v8898 = vadd.f32 %v8578, %v8834
      %v8899 = vadd.f32 %v8579, %v8835
      %v8900 = vadd.f32 %v8580, %v8836
      %v8901 = vadd.f32 %v8581, %v8837
      %v8902 = vadd.f32 %v8582, %v8838
      %v8903 = vadd.f32 %v8583, %v8839
      %v8904 = vadd.f32 %v8584, %v8840
      %v8905 = vadd.f32 %v8585, %v8841
      %v8906 = vadd.f32 %v8586, %v8842
      %v8907 = vadd.f32 %v8587, %v8843
      %v8908 = vadd.f32 %v8588, %v8844
      %v8909 = vadd.f32 %v8589, %v8845
      %v8910 = vadd.f32 %v8590, %v8846
      %v8911 = vadd.f32 %v8591, %v8847
      %v8912 = vadd.f32 %v8592, %v8848
      %v8913 = vadd.f32 %v8593, %v8849
      %v8914 = vadd.f32 %v8594, %v8850
      %v8915 = vadd.f32 %v8595, %v8851
      %v8916 = vadd.f32 %v8596, %v8852
      %v8917 = vadd.f32 %v8597, %v8853
      %v8918 = vadd.f32 %v8598, %v8854
      %v8919 = vadd.f32 %v8599, %v8855
      %v8920 = vadd.f32 %v8600, %v8856
      %v8921 = vadd.f32 %v8601, %v8857
      %v8922 = vadd.f32 %v8602, %v8858
      %v8923 = vadd.f32 %v8603, %v8859
      %v8924 = vadd.f32 %v8604, %v8860
      %v8925 = vadd.f32 %v8605, %v8861
      %v8926 = vadd.f32 %v8606, %v8862
      %v8927 = vadd.f32 %v8607, %v8863
      %v8928 = vadd.f32 %v8608, %v8864
      %v8929 = vadd.f32 %v8609, %v8865
      %v8930 = vadd.f32 %v8610, %v8866
      %v8931 = vadd.f32 %v8611, %v8867
      %v8932 = vadd.f32 %v8612, %v8868
      %v8933 = vadd.f32 %v8613, %v8869
      %v8934 = vadd.f32 %v8614, %v8870
      %v8935 = vadd.f32 %v8615, %v8871
      %v8936 = vadd.f32 %v8616, %v8872
      %v8937 = vadd.f32 %v8617, %v8873
      %v8938 = vadd.f32 %v8618, %v8874
      %v8939 = vadd.f32 %v8619, %v8875
      %v8940 = vadd.f32 %v8620, %v8876
      %v8941 = vadd.f32 %v8621, %v8877
      %v8942 = vpack.c.bf16 %v8879, %v8878
      %v8943 = vpack.c.bf16 %v8881, %v8880
      %v8944 = vpack.c.bf16 %v8883, %v8882
      %v8945 = vpack.c.bf16 %v8885, %v8884
      %v8946 = vpack.c.bf16 %v8887, %v8886
      %v8947 = vpack.c.bf16 %v8889, %v8888
      %v8948 = vpack.c.bf16 %v8891, %v8890
      %v8949 = vpack.c.bf16 %v8893, %v8892
      %v8950 = vpack.c.bf16 %v8895, %v8894
      %v8951 = vpack.c.bf16 %v8897, %v8896
      %v8952 = vpack.c.bf16 %v8899, %v8898
      %v8953 = vpack.c.bf16 %v8901, %v8900
      %v8954 = vpack.c.bf16 %v8903, %v8902
      %v8955 = vpack.c.bf16 %v8905, %v8904
      %v8956 = vpack.c.bf16 %v8907, %v8906
      %v8957 = vpack.c.bf16 %v8909, %v8908
      %v8958 = vpack.c.bf16 %v8911, %v8910
      %v8959 = vpack.c.bf16 %v8913, %v8912
      %v8960 = vpack.c.bf16 %v8915, %v8914
      %v8961 = vpack.c.bf16 %v8917, %v8916
      %v8962 = vpack.c.bf16 %v8919, %v8918
      %v8963 = vpack.c.bf16 %v8921, %v8920
      %v8964 = vpack.c.bf16 %v8923, %v8922
      %v8965 = vpack.c.bf16 %v8925, %v8924
      %v8966 = vpack.c.bf16 %v8927, %v8926
      %v8967 = vpack.c.bf16 %v8929, %v8928
      %v8968 = vpack.c.bf16 %v8931, %v8930
      %v8969 = vpack.c.bf16 %v8933, %v8932
      %v8970 = vpack.c.bf16 %v8935, %v8934
      %v8971 = vpack.c.bf16 %v8937, %v8936
      %v8972 = vpack.c.bf16 %v8939, %v8938
      %v8973 = vpack.c.bf16 %v8941, %v8940
      %v8974 = vld [vmem:[%s8] sm:$0xf]
      %v8975 = vld [vmem:[%s8 + $0x4] sm:$0xf]
      %v8976 = vld [vmem:[%s8 + $0x8] sm:$0x3]
      %v8977 = vld [vmem:[%s9] sm:$0x1]
      %v8979 = vlaneseq
      %v8980 = vshrl.u32 %v8979, 7
      %v8981 = vsub.s32 0, %v8980
      %v8982 = vrot.slane %v8977, %v8981
      %v8987 = vunpack.c.l.b16 %v8974
      %v8988 = vunpack.c.l.b16 %v8975
      %v8989 = vunpack.c.l.b16 %v8976
      %v8990 = vpack.c.b16 %v8988, %v8987
      %v8991 = vpack.c.b16 %v8989, %v8989
      %v8994 = vsel %vm361, %v8942, 0
      %v8997 = vsel %vm361, %v8943, 0
      %v9000 = vsel %vm361, %v8944, 0
      %v9003 = vsel %vm361, %v8945, 0
      %v9006 = vsel %vm361, %v8946, 0
      %v9009 = vsel %vm361, %v8947, 0
      %v9012 = vsel %vm361, %v8948, 0
      %v9015 = vsel %vm361, %v8949, 0
      %v9018 = vsel %vm361, %v8950, 0
      %v9021 = vsel %vm361, %v8951, 0
      %v9024 = vsel %vm361, %v8952, 0
      %v9027 = vsel %vm361, %v8953, 0
      %v9030 = vsel %vm361, %v8954, 0
      %v9033 = vsel %vm361, %v8955, 0
      %v9036 = vsel %vm361, %v8956, 0
      %v9039 = vsel %vm361, %v8957, 0
      %v9042 = vsel %vm361, %v8958, 0
      %v9045 = vsel %vm361, %v8959, 0
      %v9048 = vsel %vm361, %v8960, 0
      %v9051 = vsel %vm361, %v8961, 0
      %v9054 = vsel %vm361, %v8962, 0
      %v9057 = vsel %vm361, %v8963, 0
      %v9060 = vsel %vm361, %v8964, 0
      %v9063 = vsel %vm361, %v8965, 0
      %v9066 = vsel %vm361, %v8966, 0
      %v9069 = vsel %vm361, %v8967, 0
      %v9072 = vsel %vm361, %v8968, 0
      %v9075 = vsel %vm361, %v8969, 0
      %v9078 = vsel %vm361, %v8970, 0
      %v9081 = vsel %vm361, %v8971, 0
      %v9084 = vsel %vm361, %v8972, 0
      %v9087 = vsel %vm361, %v8973, 0
      %v9090 = vsel %vm6281, %v8991, 0
      %9092 = vmatprep.subr.bf16.mxu0 0
      %9093 = vmatpush1.bf16.msra.mxu0 %v8990
      %9094 = vmatprep.subr.bf16.mxu0 0
      %9095 = vmatpush1.bf16.msra.mxu0 %v9090
      %9096 = vmatprep.subr.bf16.mxu0 0
      %9097 = vmatpush1.bf16.msra.mxu0 0
      %9098 = vmatprep.subr.bf16.mxu0 0
      %9099 = vmatpush1.bf16.msra.mxu0 0
      %9100 = vmatprep.subr.bf16.mxu0 0
      %9101 = vmatpush1.bf16.msra.mxu0 0
      %9102 = vmatprep.subr.bf16.mxu0 0
      %9103 = vmatpush1.bf16.msra.mxu0 0
      %9104 = vmatprep.subr.bf16.mxu0 0
      %9105 = vmatpush1.bf16.msra.mxu0 0
      %9106 = vmatprep.subr.bf16.mxu0 0
      %9107 = vmatpush1.bf16.msra.mxu0 0
      %9108 = vmatprep.subr.bf16.mxu0 0
      %9109 = vmatpush1.bf16.msra.mxu0 0
      %9110 = vmatprep.subr.bf16.mxu0 0
      %9111 = vmatpush1.bf16.msra.mxu0 0
      %9112 = vmatprep.subr.bf16.mxu0 0
      %9113 = vmatpush1.bf16.msra.mxu0 0
      %9114 = vmatprep.subr.bf16.mxu0 0
      %9115 = vmatpush1.bf16.msra.mxu0 0
      %9116 = vmatprep.subr.bf16.mxu0 0
      %9117 = vmatpush1.bf16.msra.mxu0 0
      %9118 = vmatprep.subr.bf16.mxu0 0
      %9119 = vmatpush1.bf16.msra.mxu0 0
      %9120 = vmatprep.subr.bf16.mxu0 0
      %9121 = vmatpush1.bf16.msra.mxu0 0
      %9122 = vmatprep.subr.bf16.mxu0 0
      %9123 = vmatpush1.bf16.msra.mxu0 0
      %9124 = vmatprep.mubr.bf16.mxu0 0
      %9125 = vmatmul.mubr.bf16.gmra.mrb[0].mxu0 %v8994
      %v9126 = vpop.f32.mrb[0].mxu0
      %v9127 = vadd.f32 %v8982, %v9126
      %v9128 = vpop.f32.mrb[0].mxu0
      %v9129 = vpop.f32.mrb[0].mxu0
      %v9130 = vadd.f32 %v8982, %v9129
      %v9131 = vpop.f32.mrb[0].mxu0
      %9132 = vmatprep.mubr.bf16.mxu0 0
      %9133 = vmatmul.mubr.bf16.gmra.mrb[0].mxu0 %v8997
      %v9134 = vpop.f32.mrb[0].mxu0
      %v9135 = vadd.f32 %v8982, %v9134
      %v9136 = vpop.f32.mrb[0].mxu0
      %v9137 = vpop.f32.mrb[0].mxu0
      %v9138 = vadd.f32 %v8982, %v9137
      %v9139 = vpop.f32.mrb[0].mxu0
      %9140 = vmatprep.mubr.bf16.mxu0 0
      %9141 = vmatmul.mubr.bf16.gmra.mrb[0].mxu0 %v9000
      %v9142 = vpop.f32.mrb[0].mxu0
      %v9143 = vadd.f32 %v8982, %v9142
      %v9144 = vpop.f32.mrb[0].mxu0
      %v9145 = vpop.f32.mrb[0].mxu0
      %v9146 = vadd.f32 %v8982, %v9145
      %v9147 = vpop.f32.mrb[0].mxu0
      %9148 = vmatprep.mubr.bf16.mxu0 0
      %9149 = vmatmul.mubr.bf16.gmra.mrb[0].mxu0 %v9003
      %v9150 = vpop.f32.mrb[0].mxu0
      %v9151 = vadd.f32 %v8982, %v9150
      %v9152 = vpop.f32.mrb[0].mxu0
      %v9153 = vpop.f32.mrb[0].mxu0
      %v9154 = vadd.f32 %v8982, %v9153
      %v9155 = vpop.f32.mrb[0].mxu0
      %9156 = vmatprep.mubr.bf16.mxu0 0
      %9157 = vmatmul.mubr.bf16.gmra.mrb[0].mxu0 %v9006
      %v9158 = vpop.f32.mrb[0].mxu0
      %v9159 = vadd.f32 %v8982, %v9158
      %v9160 = vpop.f32.mrb[0].mxu0
      %v9161 = vpop.f32.mrb[0].mxu0
      %v9162 = vadd.f32 %v8982, %v9161
      %v9163 = vpop.f32.mrb[0].mxu0
      %9164 = vmatprep.mubr.bf16.mxu0 0
      %9165 = vmatmul.mubr.bf16.gmra.mrb[0].mxu0 %v9009
      %v9166 = vpop.f32.mrb[0].mxu0
      %v9167 = vadd.f32 %v8982, %v9166
      %v9168 = vpop.f32.mrb[0].mxu0
      %v9169 = vpop.f32.mrb[0].mxu0
      %v9170 = vadd.f32 %v8982, %v9169
      %v9171 = vpop.f32.mrb[0].mxu0
      %9172 = vmatprep.mubr.bf16.mxu0 0
      %9173 = vmatmul.mubr.bf16.gmra.mrb[0].mxu0 %v9012
      %v9174 = vpop.f32.mrb[0].mxu0
      %v9175 = vadd.f32 %v8982, %v9174
      %v9176 = vpop.f32.mrb[0].mxu0
      %v9177 = vpop.f32.mrb[0].mxu0
      %v9178 = vadd.f32 %v8982, %v9177
      %v9179 = vpop.f32.mrb[0].mxu0
      %9180 = vmatprep.mubr.bf16.mxu0 0
      %9181 = vmatmul.mubr.bf16.gmra.mrb[0].mxu0 %v9015
      %v9182 = vpop.f32.mrb[0].mxu0
      %v9183 = vadd.f32 %v8982, %v9182
      %v9184 = vpop.f32.mrb[0].mxu0
      %v9185 = vpop.f32.mrb[0].mxu0
      %v9186 = vadd.f32 %v8982, %v9185
      %v9187 = vpop.f32.mrb[0].mxu0
      %9188 = vmatprep.mubr.bf16.mxu0 0
      %9189 = vmatmul.mubr.bf16.gmra.mrb[0].mxu0 %v9018
      %v9190 = vpop.f32.mrb[0].mxu0
      %v9191 = vadd.f32 %v8982, %v9190
      %v9192 = vpop.f32.mrb[0].mxu0
      %v9193 = vpop.f32.mrb[0].mxu0
      %v9194 = vadd.f32 %v8982, %v9193
      %v9195 = vpop.f32.mrb[0].mxu0
      %9196 = vmatprep.mubr.bf16.mxu0 0
      %9197 = vmatmul.mubr.bf16.gmra.mrb[0].mxu0 %v9021
      %v9198 = vpop.f32.mrb[0].mxu0
      %v9199 = vadd.f32 %v8982, %v9198
      %v9200 = vpop.f32.mrb[0].mxu0
      %v9201 = vpop.f32.mrb[0].mxu0
      %v9202 = vadd.f32 %v8982, %v9201
      %v9203 = vpop.f32.mrb[0].mxu0
      %9204 = vmatprep.mubr.bf16.mxu0 0
      %9205 = vmatmul.mubr.bf16.gmra.mrb[0].mxu0 %v9024
      %v9206 = vpop.f32.mrb[0].mxu0
      %v9207 = vadd.f32 %v8982, %v9206
      %v9208 = vpop.f32.mrb[0].mxu0
      %v9209 = vpop.f32.mrb[0].mxu0
      %v9210 = vadd.f32 %v8982, %v9209
      %v9211 = vpop.f32.mrb[0].mxu0
      %9212 = vmatprep.mubr.bf16.mxu0 0
      %9213 = vmatmul.mubr.bf16.gmra.mrb[0].mxu0 %v9027
      %v9214 = vpop.f32.mrb[0].mxu0
      %v9215 = vadd.f32 %v8982, %v9214
      %v9216 = vpop.f32.mrb[0].mxu0
      %v9217 = vpop.f32.mrb[0].mxu0
      %v9218 = vadd.f32 %v8982, %v9217
      %v9219 = vpop.f32.mrb[0].mxu0
      %9220 = vmatprep.mubr.bf16.mxu0 0
      %9221 = vmatmul.mubr.bf16.gmra.mrb[0].mxu0 %v9030
      %v9222 = vpop.f32.mrb[0].mxu0
      %v9223 = vadd.f32 %v8982, %v9222
      %v9224 = vpop.f32.mrb[0].mxu0
      %v9225 = vpop.f32.mrb[0].mxu0
      %v9226 = vadd.f32 %v8982, %v9225
      %v9227 = vpop.f32.mrb[0].mxu0
      %9228 = vmatprep.mubr.bf16.mxu0 0
      %9229 = vmatmul.mubr.bf16.gmra.mrb[0].mxu0 %v9033
      %v9230 = vpop.f32.mrb[0].mxu0
      %v9231 = vadd.f32 %v8982, %v9230
      %v9232 = vpop.f32.mrb[0].mxu0
      %v9233 = vpop.f32.mrb[0].mxu0
      %v9234 = vadd.f32 %v8982, %v9233
      %v9235 = vpop.f32.mrb[0].mxu0
      %9236 = vmatprep.mubr.bf16.mxu0 0
      %9237 = vmatmul.mubr.bf16.gmra.mrb[0].mxu0 %v9036
      %v9238 = vpop.f32.mrb[0].mxu0
      %v9239 = vadd.f32 %v8982, %v9238
      %v9240 = vpop.f32.mrb[0].mxu0
      %v9241 = vpop.f32.mrb[0].mxu0
      %v9242 = vadd.f32 %v8982, %v9241
      %v9243 = vpop.f32.mrb[0].mxu0
      %9244 = vmatprep.mubr.bf16.mxu0 0
      %9245 = vmatmul.mubr.bf16.gmra.mrb[0].mxu0 %v9039
      %v9246 = vpop.f32.mrb[0].mxu0
      %v9247 = vadd.f32 %v8982, %v9246
      %v9248 = vpop.f32.mrb[0].mxu0
      %v9249 = vpop.f32.mrb[0].mxu0
      %v9250 = vadd.f32 %v8982, %v9249
      %v9251 = vpop.f32.mrb[0].mxu0
      %9252 = vmatprep.mubr.bf16.mxu0 0
      %9253 = vmatmul.mubr.bf16.gmra.mrb[0].mxu0 %v9042
      %v9254 = vpop.f32.mrb[0].mxu0
      %v9255 = vadd.f32 %v8982, %v9254
      %v9256 = vpop.f32.mrb[0].mxu0
      %v9257 = vpop.f32.mrb[0].mxu0
      %v9258 = vadd.f32 %v8982, %v9257
      %v9259 = vpop.f32.mrb[0].mxu0
      %9260 = vmatprep.mubr.bf16.mxu0 0
      %9261 = vmatmul.mubr.bf16.gmra.mrb[0].mxu0 %v9045
      %v9262 = vpop.f32.mrb[0].mxu0
      %v9263 = vadd.f32 %v8982, %v9262
      %v9264 = vpop.f32.mrb[0].mxu0
      %v9265 = vpop.f32.mrb[0].mxu0
      %v9266 = vadd.f32 %v8982, %v9265
      %v9267 = vpop.f32.mrb[0].mxu0
      %9268 = vmatprep.mubr.bf16.mxu0 0
      %9269 = vmatmul.mubr.bf16.gmra.mrb[0].mxu0 %v9048
      %v9270 = vpop.f32.mrb[0].mxu0
      %v9271 = vadd.f32 %v8982, %v9270
      %v9272 = vpop.f32.mrb[0].mxu0
      %v9273 = vpop.f32.mrb[0].mxu0
      %v9274 = vadd.f32 %v8982, %v9273
      %v9275 = vpop.f32.mrb[0].mxu0
      %9276 = vmatprep.mubr.bf16.mxu0 0
      %9277 = vmatmul.mubr.bf16.gmra.mrb[0].mxu0 %v9051
      %v9278 = vpop.f32.mrb[0].mxu0
      %v9279 = vadd.f32 %v8982, %v9278
      %v9280 = vpop.f32.mrb[0].mxu0
      %v9281 = vpop.f32.mrb[0].mxu0
      %v9282 = vadd.f32 %v8982, %v9281
      %v9283 = vpop.f32.mrb[0].mxu0
      %9284 = vmatprep.mubr.bf16.mxu0 0
      %9285 = vmatmul.mubr.bf16.gmra.mrb[0].mxu0 %v9054
      %v9286 = vpop.f32.mrb[0].mxu0
      %v9287 = vadd.f32 %v8982, %v9286
      %v9288 = vpop.f32.mrb[0].mxu0
      %v9289 = vpop.f32.mrb[0].mxu0
      %v9290 = vadd.f32 %v8982, %v9289
      %v9291 = vpop.f32.mrb[0].mxu0
      %9292 = vmatprep.mubr.bf16.mxu0 0
      %9293 = vmatmul.mubr.bf16.gmra.mrb[0].mxu0 %v9057
      %v9294 = vpop.f32.mrb[0].mxu0
      %v9295 = vadd.f32 %v8982, %v9294
      %v9296 = vpop.f32.mrb[0].mxu0
      %v9297 = vpop.f32.mrb[0].mxu0
      %v9298 = vadd.f32 %v8982, %v9297
      %v9299 = vpop.f32.mrb[0].mxu0
      %9300 = vmatprep.mubr.bf16.mxu0 0
      %9301 = vmatmul.mubr.bf16.gmra.mrb[0].mxu0 %v9060
      %v9302 = vpop.f32.mrb[0].mxu0
      %v9303 = vadd.f32 %v8982, %v9302
      %v9304 = vpop.f32.mrb[0].mxu0
      %v9305 = vpop.f32.mrb[0].mxu0
      %v9306 = vadd.f32 %v8982, %v9305
      %v9307 = vpop.f32.mrb[0].mxu0
      %9308 = vmatprep.mubr.bf16.mxu0 0
      %9309 = vmatmul.mubr.bf16.gmra.mrb[0].mxu0 %v9063
      %v9310 = vpop.f32.mrb[0].mxu0
      %v9311 = vadd.f32 %v8982, %v9310
      %v9312 = vpop.f32.mrb[0].mxu0
      %v9313 = vpop.f32.mrb[0].mxu0
      %v9314 = vadd.f32 %v8982, %v9313
      %v9315 = vpop.f32.mrb[0].mxu0
      %9316 = vmatprep.mubr.bf16.mxu0 0
      %9317 = vmatmul.mubr.bf16.gmra.mrb[0].mxu0 %v9066
      %v9318 = vpop.f32.mrb[0].mxu0
      %v9319 = vadd.f32 %v8982, %v9318
      %v9320 = vpop.f32.mrb[0].mxu0
      %v9321 = vpop.f32.mrb[0].mxu0
      %v9322 = vadd.f32 %v8982, %v9321
      %v9323 = vpop.f32.mrb[0].mxu0
      %9324 = vmatprep.mubr.bf16.mxu0 0
      %9325 = vmatmul.mubr.bf16.gmra.mrb[0].mxu0 %v9069
      %v9326 = vpop.f32.mrb[0].mxu0
      %v9327 = vadd.f32 %v8982, %v9326
      %v9328 = vpop.f32.mrb[0].mxu0
      %v9329 = vpop.f32.mrb[0].mxu0
      %v9330 = vadd.f32 %v8982, %v9329
      %v9331 = vpop.f32.mrb[0].mxu0
      %9332 = vmatprep.mubr.bf16.mxu0 0
      %9333 = vmatmul.mubr.bf16.gmra.mrb[0].mxu0 %v9072
      %v9334 = vpop.f32.mrb[0].mxu0
      %v9335 = vadd.f32 %v8982, %v9334
      %v9336 = vpop.f32.mrb[0].mxu0
      %v9337 = vpop.f32.mrb[0].mxu0
      %v9338 = vadd.f32 %v8982, %v9337
      %v9339 = vpop.f32.mrb[0].mxu0
      %9340 = vmatprep.mubr.bf16.mxu0 0
      %9341 = vmatmul.mubr.bf16.gmra.mrb[0].mxu0 %v9075
      %v9342 = vpop.f32.mrb[0].mxu0
      %v9343 = vadd.f32 %v8982, %v9342
      %v9344 = vpop.f32.mrb[0].mxu0
      %v9345 = vpop.f32.mrb[0].mxu0
      %v9346 = vadd.f32 %v8982, %v9345
      %v9347 = vpop.f32.mrb[0].mxu0
      %9348 = vmatprep.mubr.bf16.mxu0 0
      %9349 = vmatmul.mubr.bf16.gmra.mrb[0].mxu0 %v9078
      %v9350 = vpop.f32.mrb[0].mxu0
      %v9351 = vadd.f32 %v8982, %v9350
      %v9352 = vpop.f32.mrb[0].mxu0
      %v9353 = vpop.f32.mrb[0].mxu0
      %v9354 = vadd.f32 %v8982, %v9353
      %v9355 = vpop.f32.mrb[0].mxu0
      %9356 = vmatprep.mubr.bf16.mxu0 0
      %9357 = vmatmul.mubr.bf16.gmra.mrb[0].mxu0 %v9081
      %v9358 = vpop.f32.mrb[0].mxu0
      %v9359 = vadd.f32 %v8982, %v9358
      %v9360 = vpop.f32.mrb[0].mxu0
      %v9361 = vpop.f32.mrb[0].mxu0
      %v9362 = vadd.f32 %v8982, %v9361
      %v9363 = vpop.f32.mrb[0].mxu0
      %9364 = vmatprep.mubr.bf16.mxu0 0
      %9365 = vmatmul.mubr.bf16.gmra.mrb[0].mxu0 %v9084
      %v9366 = vpop.f32.mrb[0].mxu0
      %v9367 = vadd.f32 %v8982, %v9366
      %v9368 = vpop.f32.mrb[0].mxu0
      %v9369 = vpop.f32.mrb[0].mxu0
      %v9370 = vadd.f32 %v8982, %v9369
      %v9371 = vpop.f32.mrb[0].mxu0
      %9372 = vmatprep.mubr.bf16.mxu0 0
      %9373 = vmatmul.mubr.bf16.gmra.mrb[0].mxu0 %v9087
      %v9374 = vpop.f32.mrb[0].mxu0
      %v9375 = vadd.f32 %v8982, %v9374
      %v9376 = vpop.f32.mrb[0].mxu0
      %v9377 = vpop.f32.mrb[0].mxu0
      %v9378 = vadd.f32 %v8982, %v9377
      %v9379 = vpop.f32.mrb[0].mxu0
      %9380 = vdwg.mxu0
      %9381 = vst.msk [vmem:[%s359] sm:$0xff] %vm361, %v9127
      %9382 = vst.msk [vmem:[%s359 + $0x8] sm:$0xff] %vm361, %v9130
      %9383 = vst.msk [vmem:[%s359 + $0x10] sm:$0xff] %vm361, %v9135
      %9384 = vst.msk [vmem:[%s359 + $0x18] sm:$0xff] %vm361, %v9138
      %9385 = vst.msk [vmem:[%s359 + $0x20] sm:$0xff] %vm361, %v9143
      %9386 = vst.msk [vmem:[%s359 + $0x28] sm:$0xff] %vm361, %v9146
      %9387 = vst.msk [vmem:[%s359 + $0x30] sm:$0xff] %vm361, %v9151
      %9388 = vst.msk [vmem:[%s359 + $0x38] sm:$0xff] %vm361, %v9154
      %9389 = vst.msk [vmem:[%s359 + $0x40] sm:$0xff] %vm361, %v9159
      %9390 = vst.msk [vmem:[%s359 + $0x48] sm:$0xff] %vm361, %v9162
      %9391 = vst.msk [vmem:[%s359 + $0x50] sm:$0xff] %vm361, %v9167
      %9392 = vst.msk [vmem:[%s359 + $0x58] sm:$0xff] %vm361, %v9170
      %9393 = vst.msk [vmem:[%s359 + $0x60] sm:$0xff] %vm361, %v9175
      %9394 = vst.msk [vmem:[%s359 + $0x68] sm:$0xff] %vm361, %v9178
      %9395 = vst.msk [vmem:[%s359 + $0x70] sm:$0xff] %vm361, %v9183
      %9396 = vst.msk [vmem:[%s359 + $0x78] sm:$0xff] %vm361, %v9186
      %9397 = vst.msk [vmem:[%s359 + $0x80] sm:$0xff] %vm361, %v9191
      %9398 = vst.msk [vmem:[%s359 + $0x88] sm:$0xff] %vm361, %v9194
      %9399 = vst.msk [vmem:[%s359 + $0x90] sm:$0xff] %vm361, %v9199
      %9400 = vst.msk [vmem:[%s359 + $0x98] sm:$0xff] %vm361, %v9202
      %9401 = vst.msk [vmem:[%s359 + $0xa0] sm:$0xff] %vm361, %v9207
      %9402 = vst.msk [vmem:[%s359 + $0xa8] sm:$0xff] %vm361, %v9210
      %9403 = vst.msk [vmem:[%s359 + $0xb0] sm:$0xff] %vm361, %v9215
      %9404 = vst.msk [vmem:[%s359 + $0xb8] sm:$0xff] %vm361, %v9218
      %9405 = vst.msk [vmem:[%s359 + $0xc0] sm:$0xff] %vm361, %v9223
      %9406 = vst.msk [vmem:[%s359 + $0xc8] sm:$0xff] %vm361, %v9226
      %9407 = vst.msk [vmem:[%s359 + $0xd0] sm:$0xff] %vm361, %v9231
      %9408 = vst.msk [vmem:[%s359 + $0xd8] sm:$0xff] %vm361, %v9234
      %9409 = vst.msk [vmem:[%s359 + $0xe0] sm:$0xff] %vm361, %v9239
      %9410 = vst.msk [vmem:[%s359 + $0xe8] sm:$0xff] %vm361, %v9242
      %9411 = vst.msk [vmem:[%s359 + $0xf0] sm:$0xff] %vm361, %v9247
      %9412 = vst.msk [vmem:[%s359 + $0xf8] sm:$0xff] %vm361, %v9250
      %9413 = vst.msk [vmem:[%s359 + $0x100] sm:$0xff] %vm361, %v9255
      %9414 = vst.msk [vmem:[%s359 + $0x108] sm:$0xff] %vm361, %v9258
      %9415 = vst.msk [vmem:[%s359 + $0x110] sm:$0xff] %vm361, %v9263
      %9416 = vst.msk [vmem:[%s359 + $0x118] sm:$0xff] %vm361, %v9266
      %9417 = vst.msk [vmem:[%s359 + $0x120] sm:$0xff] %vm361, %v9271
      %9418 = vst.msk [vmem:[%s359 + $0x128] sm:$0xff] %vm361, %v9274
      %9419 = vst.msk [vmem:[%s359 + $0x130] sm:$0xff] %vm361, %v9279
      %9420 = vst.msk [vmem:[%s359 + $0x138] sm:$0xff] %vm361, %v9282
      %9421 = vst.msk [vmem:[%s359 + $0x140] sm:$0xff] %vm361, %v9287
      %9422 = vst.msk [vmem:[%s359 + $0x148] sm:$0xff] %vm361, %v9290
      %9423 = vst.msk [vmem:[%s359 + $0x150] sm:$0xff] %vm361, %v9295
      %9424 = vst.msk [vmem:[%s359 + $0x158] sm:$0xff] %vm361, %v9298
      %9425 = vst.msk [vmem:[%s359 + $0x160] sm:$0xff] %vm361, %v9303
      %9426 = vst.msk [vmem:[%s359 + $0x168] sm:$0xff] %vm361, %v9306
      %9427 = vst.msk [vmem:[%s359 + $0x170] sm:$0xff] %vm361, %v9311
      %9428 = vst.msk [vmem:[%s359 + $0x178] sm:$0xff] %vm361, %v9314
      %9429 = vst.msk [vmem:[%s359 + $0x180] sm:$0xff] %vm361, %v9319
      %9430 = vst.msk [vmem:[%s359 + $0x188] sm:$0xff] %vm361, %v9322
      %9431 = vst.msk [vmem:[%s359 + $0x190] sm:$0xff] %vm361, %v9327
      %9432 = vst.msk [vmem:[%s359 + $0x198] sm:$0xff] %vm361, %v9330
      %9433 = vst.msk [vmem:[%s359 + $0x1a0] sm:$0xff] %vm361, %v9335
      %9434 = vst.msk [vmem:[%s359 + $0x1a8] sm:$0xff] %vm361, %v9338
      %9435 = vst.msk [vmem:[%s359 + $0x1b0] sm:$0xff] %vm361, %v9343
      %9436 = vst.msk [vmem:[%s359 + $0x1b8] sm:$0xff] %vm361, %v9346
      %9437 = vst.msk [vmem:[%s359 + $0x1c0] sm:$0xff] %vm361, %v9351
      %9438 = vst.msk [vmem:[%s359 + $0x1c8] sm:$0xff] %vm361, %v9354
      %9439 = vst.msk [vmem:[%s359 + $0x1d0] sm:$0xff] %vm361, %v9359
      %9440 = vst.msk [vmem:[%s359 + $0x1d8] sm:$0xff] %vm361, %v9362
      %9441 = vst.msk [vmem:[%s359 + $0x1e0] sm:$0xff] %vm361, %v9367
      %9442 = vst.msk [vmem:[%s359 + $0x1e8] sm:$0xff] %vm361, %v9370
      %9443 = vst.msk [vmem:[%s359 + $0x1f0] sm:$0xff] %vm361, %v9375
      %9444 = vst.msk [vmem:[%s359 + $0x1f8] sm:$0xff] %vm361, %v9378
      %p9445 = scmp.lt.s32.totalorder %s21, 1
      %s9446 = scalar_select %p9445, %s21, 1
      %s9447 = smul.addr %s9446, 64
      %s9448 = smul.addr %s9447, 8
      %s9449 = scalar_lea.vmem %s10, %s9448
      // Predicated region
      $region61: #{shiftmlp_forward.1} parent=59 // pred_check
        %p9450 = pneg %p254
      $region62: #{shiftmlp_forward.1} parent=59 // pred_check_branch
        %9452 = sbr.rel (%p9450) target = $region64
      $region63: #{shiftmlp_forward.1} parent=59 // pred_region
        _
      $region64: #{shiftmlp_forward.1} parent=59 // pred_fallthru
        _
    $region60: #{shiftmlp_forward.1} parent=5 // pred_fallthru
      _
    %p9453 = scmp.le.s32.totalorder 2, %s16
    // Predicated region
    $region65: #{shiftmlp_forward.1} parent=5 // pred_check
      %p9454 = pneg %p9453
    $region66: #{shiftmlp_forward.1} parent=5 // pred_check_branch
      %9456 = sbr.rel (%p9454) target = $region68
    $region67: #{shiftmlp_forward.1} parent=5 // pred_region
      %s9457 = ssub.s32 %s16, 2
      // Predicated region
      $region69: #{shiftmlp_forward.1} parent=67 // pred_check
        %p9458 = pneg %p260
      $region70: #{shiftmlp_forward.1} parent=67 // pred_check_branch
        %9460 = sbr.rel (%p9458) target = $region72
      $region71: #{shiftmlp_forward.1} parent=67 // pred_region
        %p9461 = scmp.lt.s32.totalorder %s22, 1
        %s9462 = scalar_select %p9461, %s22, 1
        %s9463 = smul.addr %s9462, 64
        %s9464 = smul.addr %s9463, 8
        %s9465 = scalar_lea.vmem %s10, %s9464
      $region72: #{shiftmlp_forward.1} parent=67 // pred_fallthru
        _
    $region68: #{shiftmlp_forward.1} parent=5 // pred_fallthru
      _
  $region6: #{shiftmlp_forward.1} parent=0 // loop_footer
    %s20 = sadd.s32 1, %s16
  $region7: #{shiftmlp_forward.1} parent=0 // loop_footer_branch
    %15 = sbr.rel target = $region3
  $region8: #{shiftmlp_forward.1} parent=0 // loop_exit
    _

</llo_original>
